<compile_context>
chip_gen: v5e
topology: v5e:2x2
jax: 0.10.0
libtpu: 0.0.40
codegen_flags: <defaults>
</compile_context>

<pallas_src>
import functools

import jax
import jax.numpy as jnp
from jax.experimental import pallas as pl
from jax.experimental.pallas import tpu as pltpu

EPS = 1e-5
_STRIP = 72  # channels per in-kernel strip (9 sublane tiles of 8)


def _bn_kernel(x_ref, gb_ref, o_ref, *, strip):
    c_blk, r = x_ref.shape
    inv_r = jnp.float32(1.0 / r)            # always 1/(N*H*W); R is unpadded
    ones_col = jnp.ones((r, 1), dtype=jnp.float32)
    dims = (((1,), (0,)), ((), ()))

    # Static (fully unrolled) loop over independent channel strips: each strip
    # is a self-contained load -> reduce -> scale -> store, so live ranges are
    # bounded to one strip (~18 vregs) instead of the whole slab.
    for c0 in range(0, c_blk, strip):
        cs = min(strip, c_blk - c0)
        x = x_ref[c0:c0 + cs, :].astype(jnp.float32)          # (cs, r)

        # Cross-lane reductions on the MXU (matvec vs ones); keeps the XLU idle.
        s = jax.lax.dot_general(
            x, ones_col, dims,
            precision=jax.lax.Precision.HIGHEST,
            preferred_element_type=jnp.float32)               # (cs, 1)
        ss = jax.lax.dot_general(
            x * x, ones_col, dims,
            precision=jax.lax.Precision.HIGHEST,
            preferred_element_type=jnp.float32)               # (cs, 1)

        mean = s * inv_r
        # One-pass E[x^2] - mean^2 can round slightly negative: clamp before rsqrt.
        var = jnp.maximum(ss * inv_r - mean * mean, 0.0)
        inv_std = jax.lax.rsqrt(var + EPS)

        gb = gb_ref[c0:c0 + cs, :].astype(jnp.float32)        # (cs, 2)
        scale = gb[:, 0:1] * inv_std                          # gamma * inv_std
        shift = gb[:, 1:2] - mean * scale                     # beta - mean*scale

        o_ref[c0:c0 + cs, :] = (x * scale + shift).astype(o_ref.dtype)


def _is_two_core_chip():
    """True on chips with two TensorCores sharing HBM (v7x-class)."""
    try:
        kind = jax.devices()[0].device_kind.lower()
    except Exception:
        return False
    return "v7" in kind


def batchnorm2d(x_nchw, gamma, beta, *, strip=_STRIP):
    """x_nchw: (N, C, H, W). gamma, beta: (C,). Returns (N, C, H, W)."""
    N, C, H, W = x_nchw.shape

    # Channels-leading 2-D slab; pure reshape (no data movement) for N == 1.
    if N == 1:
        x2d = x_nchw.reshape(C, H * W)
    else:
        # TODO(synk): for N > 1, reduce over N inside the kernel instead of
        # paying two full-array HBM round trips for transpose / untranspose.
        x2d = jnp.transpose(x_nchw, (1, 0, 2, 3)).reshape(C, N * H * W)
    R = x2d.shape[1]

    # gamma (lane 0) and beta (lane 1) packed into one (C, 2) operand.
    gb = jnp.stack([gamma, beta], axis=1).astype(x_nchw.dtype)

    # Split channels across the two TensorCores on v7x; stay single-block on
    # single-TC chips (extra grid steps only add per-step overhead there).
    n_blocks = 2 if (_is_two_core_chip() and C % 2 == 0 and (C // 2) % 8 == 0) else 1
    cb = C // n_blocks

    out2d = pl.pallas_call(
        functools.partial(_bn_kernel, strip=strip),
        out_shape=jax.ShapeDtypeStruct((C, R), x_nchw.dtype),
        grid=(n_blocks,),
        in_specs=[
            pl.BlockSpec((cb, R), lambda i: (i, 0)),
            pl.BlockSpec((cb, 2), lambda i: (i, 0)),
        ],
        out_specs=pl.BlockSpec((cb, R), lambda i: (i, 0)),
        # BN forward never needs x after the write: reuse its buffer.
        input_output_aliases={0: 0},
        compiler_params=pltpu.CompilerParams(
            dimension_semantics=("parallel",)),
    )(x2d, gb)

    if N == 1:
        return out2d.reshape(N, C, H, W)
    return jnp.transpose(out2d.reshape(C, N, H, W), (1, 0, 2, 3))


def _reference(x_nchw, gamma, beta):
    mean = jnp.mean(x_nchw, axis=(0, 2, 3), keepdims=True)
    var = jnp.mean((x_nchw - mean) ** 2, axis=(0, 2, 3), keepdims=True)
    return (x_nchw - mean) / jnp.sqrt(var + EPS) * gamma.reshape(1, -1, 1, 1) \
        + beta.reshape(1, -1, 1, 1)


if __name__ == "__main__":
    # Shapes consistent with the module: BatchNorm2d(432) on (1, 432, 14, 14).
    N, C, H, W = 1, 432, 14, 14
    key = jax.random.PRNGKey(0)
    kx, kg, kb = jax.random.split(key, 3)

    x = jax.random.normal(kx, (N, C, H, W), dtype=jnp.float32)
    # Deterministic parameter init (affine=True -> learnable gamma/beta).
    gamma = 1.0 + 0.1 * jax.random.normal(kg, (C,), dtype=jnp.float32)
    beta = 0.1 * jax.random.normal(kb, (C,), dtype=jnp.float32)

    out = batchnorm2d(x, gamma, beta)
    out = jax.block_until_ready(out)

    ref = _reference(x, gamma, beta)
    assert out.shape == (N, C, H, W)
    assert jnp.max(jnp.abs(out - ref)) < 1e-4, "mismatch vs reference"

    print("KERNEL_OK")
</pallas_src>

<mosaic_0001>
module attributes {stable_mosaic.version = 11 : i64} {
  func.func @_bn_kernel(%arg0: i32, %arg1: memref<432x196xf32, #tpu.memory_space<vmem>>, %arg2: memref<432x2xf32, #tpu.memory_space<vmem>>, %arg3: memref<432x196xf32, #tpu.memory_space<vmem>>) attributes {dimension_semantics = [#tpu.dimension_semantics<parallel>], iteration_bounds = array<i64: 1>, scalar_prefetch = 0 : i64, scratch_operands = 0 : i64, tpu.core_type = #tpu.core_type<tc>, window_params = [{transform_indices = @transform_0, window_bounds = array<i64: 432, 196>}, {transform_indices = @transform_1, window_bounds = array<i64: 432, 2>}, {transform_indices = @transform_2, window_bounds = array<i64: 432, 196>}]} {
    %cst = arith.constant 1.000000e+00 : f32
    %0 = vector.broadcast %cst : f32 to vector<196x1xf32>
    %c0 = arith.constant 0 : index
    %c0_0 = arith.constant 0 : index
    %1 = vector.load %arg1[%c0, %c0_0] : memref<432x196xf32, #tpu.memory_space<vmem>>, vector<72x196xf32>
    %cst_1 = arith.constant dense<0.000000e+00> : vector<72x1xf32>
    %2 = tpu.matmul %1, %0, %cst_1 {dimension_numbers = #tpu.dot_dimension_numbers<[1], [0], [0], [1], [0, 0, 1, 1], [], []>, precision = #tpu.contract_precision<fp32>} : vector<72x196xf32>, vector<196x1xf32>, vector<72x1xf32> -> vector<72x1xf32>
    %3 = arith.mulf %1, %1 : vector<72x196xf32>
    %cst_2 = arith.constant dense<0.000000e+00> : vector<72x1xf32>
    %4 = tpu.matmul %3, %0, %cst_2 {dimension_numbers = #tpu.dot_dimension_numbers<[1], [0], [0], [1], [0, 0, 1, 1], [], []>, precision = #tpu.contract_precision<fp32>} : vector<72x196xf32>, vector<196x1xf32>, vector<72x1xf32> -> vector<72x1xf32>
    %cst_3 = arith.constant 0.00510204071 : f32
    %5 = vector.broadcast %cst_3 : f32 to vector<72x1xf32>
    %6 = arith.mulf %2, %5 : vector<72x1xf32>
    %cst_4 = arith.constant 0.00510204071 : f32
    %7 = vector.broadcast %cst_4 : f32 to vector<72x1xf32>
    %8 = arith.mulf %4, %7 : vector<72x1xf32>
    %9 = arith.mulf %6, %6 : vector<72x1xf32>
    %10 = arith.subf %8, %9 : vector<72x1xf32>
    %cst_5 = arith.constant 0.000000e+00 : f32
    %11 = vector.broadcast %cst_5 : f32 to vector<72x1xf32>
    %12 = arith.maximumf %10, %11 : vector<72x1xf32>
    %cst_6 = arith.constant 9.99999974E-6 : f32
    %13 = vector.broadcast %cst_6 : f32 to vector<72x1xf32>
    %14 = arith.addf %12, %13 : vector<72x1xf32>
    %15 = math.rsqrt %14 : vector<72x1xf32>
    %c0_7 = arith.constant 0 : index
    %c0_8 = arith.constant 0 : index
    %16 = vector.load %arg2[%c0_7, %c0_8] : memref<432x2xf32, #tpu.memory_space<vmem>>, vector<72x2xf32>
    %17 = vector.extract_strided_slice %16 {offsets = [0, 0], sizes = [72, 1], strides = [1, 1]} : vector<72x2xf32> to vector<72x1xf32>
    %18 = arith.mulf %17, %15 : vector<72x1xf32>
    %19 = vector.extract_strided_slice %16 {offsets = [0, 1], sizes = [72, 1], strides = [1, 1]} : vector<72x2xf32> to vector<72x1xf32>
    %20 = arith.mulf %6, %18 : vector<72x1xf32>
    %21 = arith.subf %19, %20 : vector<72x1xf32>
    %22 = vector.broadcast %18 : vector<72x1xf32> to vector<72x196xf32>
    %23 = arith.mulf %1, %22 : vector<72x196xf32>
    %24 = vector.broadcast %21 : vector<72x1xf32> to vector<72x196xf32>
    %25 = arith.addf %23, %24 : vector<72x196xf32>
    %c0_9 = arith.constant 0 : index
    %c0_10 = arith.constant 0 : index
    %26 = vector.load %arg3[%c0_9, %c0_10] : memref<432x196xf32, #tpu.memory_space<vmem>>, vector<72x196xf32>
    tpu.vector_store %arg3[%c0_9, %c0_10], %25 {strides = array<i32>} : memref<432x196xf32, #tpu.memory_space<vmem>>, vector<72x196xf32>,
    %c72 = arith.constant 72 : index
    %c0_11 = arith.constant 0 : index
    %27 = vector.load %arg1[%c72, %c0_11] : memref<432x196xf32, #tpu.memory_space<vmem>>, vector<72x196xf32>
    %cst_12 = arith.constant dense<0.000000e+00> : vector<72x1xf32>
    %28 = tpu.matmul %27, %0, %cst_12 {dimension_numbers = #tpu.dot_dimension_numbers<[1], [0], [0], [1], [0, 0, 1, 1], [], []>, precision = #tpu.contract_precision<fp32>} : vector<72x196xf32>, vector<196x1xf32>, vector<72x1xf32> -> vector<72x1xf32>
    %29 = arith.mulf %27, %27 : vector<72x196xf32>
    %cst_13 = arith.constant dense<0.000000e+00> : vector<72x1xf32>
    %30 = tpu.matmul %29, %0, %cst_13 {dimension_numbers = #tpu.dot_dimension_numbers<[1], [0], [0], [1], [0, 0, 1, 1], [], []>, precision = #tpu.contract_precision<fp32>} : vector<72x196xf32>, vector<196x1xf32>, vector<72x1xf32> -> vector<72x1xf32>
    %cst_14 = arith.constant 0.00510204071 : f32
    %31 = vector.broadcast %cst_14 : f32 to vector<72x1xf32>
    %32 = arith.mulf %28, %31 : vector<72x1xf32>
    %cst_15 = arith.constant 0.00510204071 : f32
    %33 = vector.broadcast %cst_15 : f32 to vector<72x1xf32>
    %34 = arith.mulf %30, %33 : vector<72x1xf32>
    %35 = arith.mulf %32, %32 : vector<72x1xf32>
    %36 = arith.subf %34, %35 : vector<72x1xf32>
    %cst_16 = arith.constant 0.000000e+00 : f32
    %37 = vector.broadcast %cst_16 : f32 to vector<72x1xf32>
    %38 = arith.maximumf %36, %37 : vector<72x1xf32>
    %cst_17 = arith.constant 9.99999974E-6 : f32
    %39 = vector.broadcast %cst_17 : f32 to vector<72x1xf32>
    %40 = arith.addf %38, %39 : vector<72x1xf32>
    %41 = math.rsqrt %40 : vector<72x1xf32>
    %c72_18 = arith.constant 72 : index
    %c0_19 = arith.constant 0 : index
    %42 = vector.load %arg2[%c72_18, %c0_19] : memref<432x2xf32, #tpu.memory_space<vmem>>, vector<72x2xf32>
    %43 = vector.extract_strided_slice %42 {offsets = [0, 0], sizes = [72, 1], strides = [1, 1]} : vector<72x2xf32> to vector<72x1xf32>
    %44 = arith.mulf %43, %41 : vector<72x1xf32>
    %45 = vector.extract_strided_slice %42 {offsets = [0, 1], sizes = [72, 1], strides = [1, 1]} : vector<72x2xf32> to vector<72x1xf32>
    %46 = arith.mulf %32, %44 : vector<72x1xf32>
    %47 = arith.subf %45, %46 : vector<72x1xf32>
    %48 = vector.broadcast %44 : vector<72x1xf32> to vector<72x196xf32>
    %49 = arith.mulf %27, %48 : vector<72x196xf32>
    %50 = vector.broadcast %47 : vector<72x1xf32> to vector<72x196xf32>
    %51 = arith.addf %49, %50 : vector<72x196xf32>
    %c72_20 = arith.constant 72 : index
    %c0_21 = arith.constant 0 : index
    %52 = vector.load %arg3[%c72_20, %c0_21] : memref<432x196xf32, #tpu.memory_space<vmem>>, vector<72x196xf32>
    tpu.vector_store %arg3[%c72_20, %c0_21], %51 {strides = array<i32>} : memref<432x196xf32, #tpu.memory_space<vmem>>, vector<72x196xf32>,
    %c144 = arith.constant 144 : index
    %c0_22 = arith.constant 0 : index
    %53 = vector.load %arg1[%c144, %c0_22] : memref<432x196xf32, #tpu.memory_space<vmem>>, vector<72x196xf32>
    %cst_23 = arith.constant dense<0.000000e+00> : vector<72x1xf32>
    %54 = tpu.matmul %53, %0, %cst_23 {dimension_numbers = #tpu.dot_dimension_numbers<[1], [0], [0], [1], [0, 0, 1, 1], [], []>, precision = #tpu.contract_precision<fp32>} : vector<72x196xf32>, vector<196x1xf32>, vector<72x1xf32> -> vector<72x1xf32>
    %55 = arith.mulf %53, %53 : vector<72x196xf32>
    %cst_24 = arith.constant dense<0.000000e+00> : vector<72x1xf32>
    %56 = tpu.matmul %55, %0, %cst_24 {dimension_numbers = #tpu.dot_dimension_numbers<[1], [0], [0], [1], [0, 0, 1, 1], [], []>, precision = #tpu.contract_precision<fp32>} : vector<72x196xf32>, vector<196x1xf32>, vector<72x1xf32> -> vector<72x1xf32>
    %cst_25 = arith.constant 0.00510204071 : f32
    %57 = vector.broadcast %cst_25 : f32 to vector<72x1xf32>
    %58 = arith.mulf %54, %57 : vector<72x1xf32>
    %cst_26 = arith.constant 0.00510204071 : f32
    %59 = vector.broadcast %cst_26 : f32 to vector<72x1xf32>
    %60 = arith.mulf %56, %59 : vector<72x1xf32>
    %61 = arith.mulf %58, %58 : vector<72x1xf32>
    %62 = arith.subf %60, %61 : vector<72x1xf32>
    %cst_27 = arith.constant 0.000000e+00 : f32
    %63 = vector.broadcast %cst_27 : f32 to vector<72x1xf32>
    %64 = arith.maximumf %62, %63 : vector<72x1xf32>
    %cst_28 = arith.constant 9.99999974E-6 : f32
    %65 = vector.broadcast %cst_28 : f32 to vector<72x1xf32>
    %66 = arith.addf %64, %65 : vector<72x1xf32>
    %67 = math.rsqrt %66 : vector<72x1xf32>
    %c144_29 = arith.constant 144 : index
    %c0_30 = arith.constant 0 : index
    %68 = vector.load %arg2[%c144_29, %c0_30] : memref<432x2xf32, #tpu.memory_space<vmem>>, vector<72x2xf32>
    %69 = vector.extract_strided_slice %68 {offsets = [0, 0], sizes = [72, 1], strides = [1, 1]} : vector<72x2xf32> to vector<72x1xf32>
    %70 = arith.mulf %69, %67 : vector<72x1xf32>
    %71 = vector.extract_strided_slice %68 {offsets = [0, 1], sizes = [72, 1], strides = [1, 1]} : vector<72x2xf32> to vector<72x1xf32>
    %72 = arith.mulf %58, %70 : vector<72x1xf32>
    %73 = arith.subf %71, %72 : vector<72x1xf32>
    %74 = vector.broadcast %70 : vector<72x1xf32> to vector<72x196xf32>
    %75 = arith.mulf %53, %74 : vector<72x196xf32>
    %76 = vector.broadcast %73 : vector<72x1xf32> to vector<72x196xf32>
    %77 = arith.addf %75, %76 : vector<72x196xf32>
    %c144_31 = arith.constant 144 : index
    %c0_32 = arith.constant 0 : index
    %78 = vector.load %arg3[%c144_31, %c0_32] : memref<432x196xf32, #tpu.memory_space<vmem>>, vector<72x196xf32>
    tpu.vector_store %arg3[%c144_31, %c0_32], %77 {strides = array<i32>} : memref<432x196xf32, #tpu.memory_space<vmem>>, vector<72x196xf32>,
    %c216 = arith.constant 216 : index
    %c0_33 = arith.constant 0 : index
    %79 = vector.load %arg1[%c216, %c0_33] : memref<432x196xf32, #tpu.memory_space<vmem>>, vector<72x196xf32>
    %cst_34 = arith.constant dense<0.000000e+00> : vector<72x1xf32>
    %80 = tpu.matmul %79, %0, %cst_34 {dimension_numbers = #tpu.dot_dimension_numbers<[1], [0], [0], [1], [0, 0, 1, 1], [], []>, precision = #tpu.contract_precision<fp32>} : vector<72x196xf32>, vector<196x1xf32>, vector<72x1xf32> -> vector<72x1xf32>
    %81 = arith.mulf %79, %79 : vector<72x196xf32>
    %cst_35 = arith.constant dense<0.000000e+00> : vector<72x1xf32>
    %82 = tpu.matmul %81, %0, %cst_35 {dimension_numbers = #tpu.dot_dimension_numbers<[1], [0], [0], [1], [0, 0, 1, 1], [], []>, precision = #tpu.contract_precision<fp32>} : vector<72x196xf32>, vector<196x1xf32>, vector<72x1xf32> -> vector<72x1xf32>
    %cst_36 = arith.constant 0.00510204071 : f32
    %83 = vector.broadcast %cst_36 : f32 to vector<72x1xf32>
    %84 = arith.mulf %80, %83 : vector<72x1xf32>
    %cst_37 = arith.constant 0.00510204071 : f32
    %85 = vector.broadcast %cst_37 : f32 to vector<72x1xf32>
    %86 = arith.mulf %82, %85 : vector<72x1xf32>
    %87 = arith.mulf %84, %84 : vector<72x1xf32>
    %88 = arith.subf %86, %87 : vector<72x1xf32>
    %cst_38 = arith.constant 0.000000e+00 : f32
    %89 = vector.broadcast %cst_38 : f32 to vector<72x1xf32>
    %90 = arith.maximumf %88, %89 : vector<72x1xf32>
    %cst_39 = arith.constant 9.99999974E-6 : f32
    %91 = vector.broadcast %cst_39 : f32 to vector<72x1xf32>
    %92 = arith.addf %90, %91 : vector<72x1xf32>
    %93 = math.rsqrt %92 : vector<72x1xf32>
    %c216_40 = arith.constant 216 : index
    %c0_41 = arith.constant 0 : index
    %94 = vector.load %arg2[%c216_40, %c0_41] : memref<432x2xf32, #tpu.memory_space<vmem>>, vector<72x2xf32>
    %95 = vector.extract_strided_slice %94 {offsets = [0, 0], sizes = [72, 1], strides = [1, 1]} : vector<72x2xf32> to vector<72x1xf32>
    %96 = arith.mulf %95, %93 : vector<72x1xf32>
    %97 = vector.extract_strided_slice %94 {offsets = [0, 1], sizes = [72, 1], strides = [1, 1]} : vector<72x2xf32> to vector<72x1xf32>
    %98 = arith.mulf %84, %96 : vector<72x1xf32>
    %99 = arith.subf %97, %98 : vector<72x1xf32>
    %100 = vector.broadcast %96 : vector<72x1xf32> to vector<72x196xf32>
    %101 = arith.mulf %79, %100 : vector<72x196xf32>
    %102 = vector.broadcast %99 : vector<72x1xf32> to vector<72x196xf32>
    %103 = arith.addf %101, %102 : vector<72x196xf32>
    %c216_42 = arith.constant 216 : index
    %c0_43 = arith.constant 0 : index
    %104 = vector.load %arg3[%c216_42, %c0_43] : memref<432x196xf32, #tpu.memory_space<vmem>>, vector<72x196xf32>
    tpu.vector_store %arg3[%c216_42, %c0_43], %103 {strides = array<i32>} : memref<432x196xf32, #tpu.memory_space<vmem>>, vector<72x196xf32>,
    %c288 = arith.constant 288 : index
    %c0_44 = arith.constant 0 : index
    %105 = vector.load %arg1[%c288, %c0_44] : memref<432x196xf32, #tpu.memory_space<vmem>>, vector<72x196xf32>
    %cst_45 = arith.constant dense<0.000000e+00> : vector<72x1xf32>
    %106 = tpu.matmul %105, %0, %cst_45 {dimension_numbers = #tpu.dot_dimension_numbers<[1], [0], [0], [1], [0, 0, 1, 1], [], []>, precision = #tpu.contract_precision<fp32>} : vector<72x196xf32>, vector<196x1xf32>, vector<72x1xf32> -> vector<72x1xf32>
    %107 = arith.mulf %105, %105 : vector<72x196xf32>
    %cst_46 = arith.constant dense<0.000000e+00> : vector<72x1xf32>
    %108 = tpu.matmul %107, %0, %cst_46 {dimension_numbers = #tpu.dot_dimension_numbers<[1], [0], [0], [1], [0, 0, 1, 1], [], []>, precision = #tpu.contract_precision<fp32>} : vector<72x196xf32>, vector<196x1xf32>, vector<72x1xf32> -> vector<72x1xf32>
    %cst_47 = arith.constant 0.00510204071 : f32
    %109 = vector.broadcast %cst_47 : f32 to vector<72x1xf32>
    %110 = arith.mulf %106, %109 : vector<72x1xf32>
    %cst_48 = arith.constant 0.00510204071 : f32
    %111 = vector.broadcast %cst_48 : f32 to vector<72x1xf32>
    %112 = arith.mulf %108, %111 : vector<72x1xf32>
    %113 = arith.mulf %110, %110 : vector<72x1xf32>
    %114 = arith.subf %112, %113 : vector<72x1xf32>
    %cst_49 = arith.constant 0.000000e+00 : f32
    %115 = vector.broadcast %cst_49 : f32 to vector<72x1xf32>
    %116 = arith.maximumf %114, %115 : vector<72x1xf32>
    %cst_50 = arith.constant 9.99999974E-6 : f32
    %117 = vector.broadcast %cst_50 : f32 to vector<72x1xf32>
    %118 = arith.addf %116, %117 : vector<72x1xf32>
    %119 = math.rsqrt %118 : vector<72x1xf32>
    %c288_51 = arith.constant 288 : index
    %c0_52 = arith.constant 0 : index
    %120 = vector.load %arg2[%c288_51, %c0_52] : memref<432x2xf32, #tpu.memory_space<vmem>>, vector<72x2xf32>
    %121 = vector.extract_strided_slice %120 {offsets = [0, 0], sizes = [72, 1], strides = [1, 1]} : vector<72x2xf32> to vector<72x1xf32>
    %122 = arith.mulf %121, %119 : vector<72x1xf32>
    %123 = vector.extract_strided_slice %120 {offsets = [0, 1], sizes = [72, 1], strides = [1, 1]} : vector<72x2xf32> to vector<72x1xf32>
    %124 = arith.mulf %110, %122 : vector<72x1xf32>
    %125 = arith.subf %123, %124 : vector<72x1xf32>
    %126 = vector.broadcast %122 : vector<72x1xf32> to vector<72x196xf32>
    %127 = arith.mulf %105, %126 : vector<72x196xf32>
    %128 = vector.broadcast %125 : vector<72x1xf32> to vector<72x196xf32>
    %129 = arith.addf %127, %128 : vector<72x196xf32>
    %c288_53 = arith.constant 288 : index
    %c0_54 = arith.constant 0 : index
    %130 = vector.load %arg3[%c288_53, %c0_54] : memref<432x196xf32, #tpu.memory_space<vmem>>, vector<72x196xf32>
    tpu.vector_store %arg3[%c288_53, %c0_54], %129 {strides = array<i32>} : memref<432x196xf32, #tpu.memory_space<vmem>>, vector<72x196xf32>,
    %c360 = arith.constant 360 : index
    %c0_55 = arith.constant 0 : index
    %131 = vector.load %arg1[%c360, %c0_55] : memref<432x196xf32, #tpu.memory_space<vmem>>, vector<72x196xf32>
    %cst_56 = arith.constant dense<0.000000e+00> : vector<72x1xf32>
    %132 = tpu.matmul %131, %0, %cst_56 {dimension_numbers = #tpu.dot_dimension_numbers<[1], [0], [0], [1], [0, 0, 1, 1], [], []>, precision = #tpu.contract_precision<fp32>} : vector<72x196xf32>, vector<196x1xf32>, vector<72x1xf32> -> vector<72x1xf32>
    %133 = arith.mulf %131, %131 : vector<72x196xf32>
    %cst_57 = arith.constant dense<0.000000e+00> : vector<72x1xf32>
    %134 = tpu.matmul %133, %0, %cst_57 {dimension_numbers = #tpu.dot_dimension_numbers<[1], [0], [0], [1], [0, 0, 1, 1], [], []>, precision = #tpu.contract_precision<fp32>} : vector<72x196xf32>, vector<196x1xf32>, vector<72x1xf32> -> vector<72x1xf32>
    %cst_58 = arith.constant 0.00510204071 : f32
    %135 = vector.broadcast %cst_58 : f32 to vector<72x1xf32>
    %136 = arith.mulf %132, %135 : vector<72x1xf32>
    %cst_59 = arith.constant 0.00510204071 : f32
    %137 = vector.broadcast %cst_59 : f32 to vector<72x1xf32>
    %138 = arith.mulf %134, %137 : vector<72x1xf32>
    %139 = arith.mulf %136, %136 : vector<72x1xf32>
    %140 = arith.subf %138, %139 : vector<72x1xf32>
    %cst_60 = arith.constant 0.000000e+00 : f32
    %141 = vector.broadcast %cst_60 : f32 to vector<72x1xf32>
    %142 = arith.maximumf %140, %141 : vector<72x1xf32>
    %cst_61 = arith.constant 9.99999974E-6 : f32
    %143 = vector.broadcast %cst_61 : f32 to vector<72x1xf32>
    %144 = arith.addf %142, %143 : vector<72x1xf32>
    %145 = math.rsqrt %144 : vector<72x1xf32>
    %c360_62 = arith.constant 360 : index
    %c0_63 = arith.constant 0 : index
    %146 = vector.load %arg2[%c360_62, %c0_63] : memref<432x2xf32, #tpu.memory_space<vmem>>, vector<72x2xf32>
    %147 = vector.extract_strided_slice %146 {offsets = [0, 0], sizes = [72, 1], strides = [1, 1]} : vector<72x2xf32> to vector<72x1xf32>
    %148 = arith.mulf %147, %145 : vector<72x1xf32>
    %149 = vector.extract_strided_slice %146 {offsets = [0, 1], sizes = [72, 1], strides = [1, 1]} : vector<72x2xf32> to vector<72x1xf32>
    %150 = arith.mulf %136, %148 : vector<72x1xf32>
    %151 = arith.subf %149, %150 : vector<72x1xf32>
    %152 = vector.broadcast %148 : vector<72x1xf32> to vector<72x196xf32>
    %153 = arith.mulf %131, %152 : vector<72x196xf32>
    %154 = vector.broadcast %151 : vector<72x1xf32> to vector<72x196xf32>
    %155 = arith.addf %153, %154 : vector<72x196xf32>
    %c360_64 = arith.constant 360 : index
    %c0_65 = arith.constant 0 : index
    %156 = vector.load %arg3[%c360_64, %c0_65] : memref<432x196xf32, #tpu.memory_space<vmem>>, vector<72x196xf32>
    tpu.vector_store %arg3[%c360_64, %c0_65], %155 {strides = array<i32>} : memref<432x196xf32, #tpu.memory_space<vmem>>, vector<72x196xf32>,
    return
  }
  func.func @transform_0(%arg0: i32) -> (i32, i32) {
    %c0_i32 = arith.constant 0 : i32
    %c0_i32_0 = arith.constant 0 : i32
    return %arg0, %c0_i32 : i32, i32
  }
  func.func @transform_1(%arg0: i32) -> (i32, i32) {
    %c0_i32 = arith.constant 0 : i32
    %c0_i32_0 = arith.constant 0 : i32
    return %arg0, %c0_i32 : i32, i32
  }
  func.func @transform_2(%arg0: i32) -> (i32, i32) {
    %c0_i32 = arith.constant 0 : i32
    %c0_i32_0 = arith.constant 0 : i32
    return %arg0, %c0_i32 : i32, i32
  }
}

</mosaic_0001>

<llo_original>
// kernel: tpu_custom_call.1
$region0: #{tpu_custom_call.1}
  #allocation0 [shape = 'u32[]', space=smem, size = 0x4, offset = 0x4, fixed_abs, tag = 'smem constant byte address 0x4 - core index']
  #allocation1 [shape = 'u32[72,128]{1,0:T(1,128)}', space=vmem, size = 0x9000, scoped, tag = 'internal scratch']
  %s0 = inlined_call_operand.vmem [shape: f32[432,196], index: 0, kind: input, shape index: {}, may-alias: {0,2}]
  %s1 = inlined_call_operand.vmem [shape: f32[432,2], index: 1, kind: input, shape index: {}]
  %s2 = inlined_call_operand.vmem [shape: f32[432,196], index: 2, kind: output, shape index: {}, may-alias: {0,2}]
  %s3 = sld [smem:[#allocation0]]
  $region18: #{tpu_custom_call.1} parent=0
    _
  %s5 = ssub.s32 1, %s3
  %s6 = scalar_select 0, %s5, %s3
  // Predicated region
  $region2: #{tpu_custom_call.1} parent=0 // pred_check
    _
  $region3: #{tpu_custom_call.1} parent=0 // pred_check_branch
    %8 = sbr.rel (0) target = $region5
  $region4: #{tpu_custom_call.1} parent=0 // pred_region
    _
  $region5: #{tpu_custom_call.1} parent=0 // pred_fallthru
    _
  // Predicated region
  $region6: #{tpu_custom_call.1} parent=0 // pred_check
    _
  $region7: #{tpu_custom_call.1} parent=0 // pred_check_branch
    %10 = sbr.rel (0) target = $region9
  $region8: #{tpu_custom_call.1} parent=0 // pred_region
    _
  $region9: #{tpu_custom_call.1} parent=0 // pred_fallthru
    _
  %v11 = vld [vmem:[%s0] sm:$0xff]
  %v12 = vld [vmem:[%s0 + $0x8] sm:$0xff]
  %v13 = vld [vmem:[%s0 + $0x10] sm:$0xff]
  %v14 = vld [vmem:[%s0 + $0x18] sm:$0xff]
  %v15 = vld [vmem:[%s0 + $0x20] sm:$0xff]
  %v16 = vld [vmem:[%s0 + $0x28] sm:$0xff]
  %v17 = vld [vmem:[%s0 + $0x30] sm:$0xff]
  %v18 = vld [vmem:[%s0 + $0x38] sm:$0xff]
  %v19 = vld [vmem:[%s0 + $0x40] sm:$0xff]
  %v20 = vld [vmem:[%s0 + $0x48] sm:$0xff]
  %v21 = vld [vmem:[%s0 + $0x50] sm:$0xff]
  %v22 = vld [vmem:[%s0 + $0x58] sm:$0xff]
  %v23 = vld [vmem:[%s0 + $0x60] sm:$0xff]
  %v24 = vld [vmem:[%s0 + $0x68] sm:$0xff]
  %v25 = vld [vmem:[%s0 + $0x70] sm:$0xff]
  %v26 = vld [vmem:[%s0 + $0x78] sm:$0xff]
  %v27 = vld [vmem:[%s0 + $0x80] sm:$0xff]
  %v28 = vld [vmem:[%s0 + $0x88] sm:$0xff]
  %vm29 = vcmask 556032
  %v31 = vsel %vm29, %v12, 0
  %v34 = vsel %vm29, %v14, 0
  %v37 = vsel %vm29, %v16, 0
  %v40 = vsel %vm29, %v18, 0
  %v43 = vsel %vm29, %v20, 0
  %v46 = vsel %vm29, %v22, 0
  %v49 = vsel %vm29, %v24, 0
  %v52 = vsel %vm29, %v26, 0
  %v55 = vsel %vm29, %v28, 0
  %vm57 = vcmask 1043456
  %v59 = vsel %vm57, 1.0, 0
  %61 = vmatpush.msra.mxu0 1.0
  %62 = vmatpush.msra.mxu0 1.0
  %63 = vmatpush.msra.mxu0 1.0
  %64 = vmatpush.msra.mxu0 1.0
  %65 = vmatpush.msra.mxu0 1.0
  %66 = vmatpush.msra.mxu0 1.0
  %67 = vmatpush.msra.mxu0 1.0
  %68 = vmatpush.msra.mxu0 1.0
  %69 = vmatpush.msra.mxu0 1.0
  %70 = vmatpush.msra.mxu0 1.0
  %71 = vmatpush.msra.mxu0 1.0
  %72 = vmatpush.msra.mxu0 1.0
  %73 = vmatpush.msra.mxu0 1.0
  %74 = vmatpush.msra.mxu0 1.0
  %75 = vmatpush.msra.mxu0 1.0
  %76 = vmatpush.msra.mxu0 1.0
  %v77 = vand.u32 %v11, 4294901760
  %v78 = vsub.f32 %v11, %v77
  %v79 = vand.u32 %v78, 4294901760
  %v80 = vsub.f32 %v78, %v79
  %v81 = vand.u32 %v80, 4294901760
  %82 = vmatmul.f32.gmra.mxu0 %v81
  %v83 = vpop.f32.mrf.mxu0
  %v84 = vadd.f32 0.0, %v83
  %v85 = vand.u32 %v13, 4294901760
  %v86 = vsub.f32 %v13, %v85
  %v87 = vand.u32 %v86, 4294901760
  %v88 = vsub.f32 %v86, %v87
  %v89 = vand.u32 %v88, 4294901760
  %90 = vmatmul.f32.gmra.mxu0 %v89
  %v91 = vpop.f32.mrf.mxu0
  %v92 = vadd.f32 0.0, %v91
  %v93 = vand.u32 %v15, 4294901760
  %v94 = vsub.f32 %v15, %v93
  %v95 = vand.u32 %v94, 4294901760
  %v96 = vsub.f32 %v94, %v95
  %v97 = vand.u32 %v96, 4294901760
  %98 = vmatmul.f32.gmra.mxu0 %v97
  %v99 = vpop.f32.mrf.mxu0
  %v100 = vadd.f32 0.0, %v99
  %v101 = vand.u32 %v17, 4294901760
  %v102 = vsub.f32 %v17, %v101
  %v103 = vand.u32 %v102, 4294901760
  %v104 = vsub.f32 %v102, %v103
  %v105 = vand.u32 %v104, 4294901760
  %106 = vmatmul.f32.gmra.mxu0 %v105
  %v107 = vpop.f32.mrf.mxu0
  %v108 = vadd.f32 0.0, %v107
  %v109 = vand.u32 %v19, 4294901760
  %v110 = vsub.f32 %v19, %v109
  %v111 = vand.u32 %v110, 4294901760
  %v112 = vsub.f32 %v110, %v111
  %v113 = vand.u32 %v112, 4294901760
  %114 = vmatmul.f32.gmra.mxu0 %v113
  %v115 = vpop.f32.mrf.mxu0
  %v116 = vadd.f32 0.0, %v115
  %v117 = vand.u32 %v21, 4294901760
  %v118 = vsub.f32 %v21, %v117
  %v119 = vand.u32 %v118, 4294901760
  %v120 = vsub.f32 %v118, %v119
  %v121 = vand.u32 %v120, 4294901760
  %122 = vmatmul.f32.gmra.mxu0 %v121
  %v123 = vpop.f32.mrf.mxu0
  %v124 = vadd.f32 0.0, %v123
  %v125 = vand.u32 %v23, 4294901760
  %v126 = vsub.f32 %v23, %v125
  %v127 = vand.u32 %v126, 4294901760
  %v128 = vsub.f32 %v126, %v127
  %v129 = vand.u32 %v128, 4294901760
  %130 = vmatmul.f32.gmra.mxu0 %v129
  %v131 = vpop.f32.mrf.mxu0
  %v132 = vadd.f32 0.0, %v131
  %v133 = vand.u32 %v25, 4294901760
  %v134 = vsub.f32 %v25, %v133
  %v135 = vand.u32 %v134, 4294901760
  %v136 = vsub.f32 %v134, %v135
  %v137 = vand.u32 %v136, 4294901760
  %138 = vmatmul.f32.gmra.mxu0 %v137
  %v139 = vpop.f32.mrf.mxu0
  %v140 = vadd.f32 0.0, %v139
  %v141 = vand.u32 %v27, 4294901760
  %v142 = vsub.f32 %v27, %v141
  %v143 = vand.u32 %v142, 4294901760
  %v144 = vsub.f32 %v142, %v143
  %v145 = vand.u32 %v144, 4294901760
  %146 = vmatmul.f32.gmra.mxu0 %v145
  %v147 = vpop.f32.mrf.mxu0
  %v148 = vadd.f32 0.0, %v147
  %149 = vdwg.mxu0
  %150 = vmatpush.msra.mxu0 0.0
  %151 = vmatpush.msra.mxu0 0.0
  %152 = vmatpush.msra.mxu0 0.0
  %153 = vmatpush.msra.mxu0 0.0
  %154 = vmatpush.msra.mxu0 0.0
  %155 = vmatpush.msra.mxu0 0.0
  %156 = vmatpush.msra.mxu0 0.0
  %157 = vmatpush.msra.mxu0 0.0
  %158 = vmatpush.msra.mxu0 0.0
  %159 = vmatpush.msra.mxu0 0.0
  %160 = vmatpush.msra.mxu0 0.0
  %161 = vmatpush.msra.mxu0 0.0
  %162 = vmatpush.msra.mxu0 0.0
  %163 = vmatpush.msra.mxu0 0.0
  %164 = vmatpush.msra.mxu0 0.0
  %165 = vmatpush.msra.mxu0 0.0
  %v166 = vand.u32 %v11, 4294901760
  %167 = vmatmul.f32.gmra.mxu0 %v166
  %v168 = vpop.f32.mrf.mxu0
  %v169 = vadd.f32 %v84, %v168
  %v170 = vand.u32 %v13, 4294901760
  %171 = vmatmul.f32.gmra.mxu0 %v170
  %v172 = vpop.f32.mrf.mxu0
  %v173 = vadd.f32 %v92, %v172
  %v174 = vand.u32 %v15, 4294901760
  %175 = vmatmul.f32.gmra.mxu0 %v174
  %v176 = vpop.f32.mrf.mxu0
  %v177 = vadd.f32 %v100, %v176
  %v178 = vand.u32 %v17, 4294901760
  %179 = vmatmul.f32.gmra.mxu0 %v178
  %v180 = vpop.f32.mrf.mxu0
  %v181 = vadd.f32 %v108, %v180
  %v182 = vand.u32 %v19, 4294901760
  %183 = vmatmul.f32.gmra.mxu0 %v182
  %v184 = vpop.f32.mrf.mxu0
  %v185 = vadd.f32 %v116, %v184
  %v186 = vand.u32 %v21, 4294901760
  %187 = vmatmul.f32.gmra.mxu0 %v186
  %v188 = vpop.f32.mrf.mxu0
  %v189 = vadd.f32 %v124, %v188
  %v190 = vand.u32 %v23, 4294901760
  %191 = vmatmul.f32.gmra.mxu0 %v190
  %v192 = vpop.f32.mrf.mxu0
  %v193 = vadd.f32 %v132, %v192
  %v194 = vand.u32 %v25, 4294901760
  %195 = vmatmul.f32.gmra.mxu0 %v194
  %v196 = vpop.f32.mrf.mxu0
  %v197 = vadd.f32 %v140, %v196
  %v198 = vand.u32 %v27, 4294901760
  %199 = vmatmul.f32.gmra.mxu0 %v198
  %v200 = vpop.f32.mrf.mxu0
  %v201 = vadd.f32 %v148, %v200
  %202 = vdwg.mxu0
  %203 = vmatpush.msra.mxu0 0.0
  %204 = vmatpush.msra.mxu0 0.0
  %205 = vmatpush.msra.mxu0 0.0
  %206 = vmatpush.msra.mxu0 0.0
  %207 = vmatpush.msra.mxu0 0.0
  %208 = vmatpush.msra.mxu0 0.0
  %209 = vmatpush.msra.mxu0 0.0
  %210 = vmatpush.msra.mxu0 0.0
  %211 = vmatpush.msra.mxu0 0.0
  %212 = vmatpush.msra.mxu0 0.0
  %213 = vmatpush.msra.mxu0 0.0
  %214 = vmatpush.msra.mxu0 0.0
  %215 = vmatpush.msra.mxu0 0.0
  %216 = vmatpush.msra.mxu0 0.0
  %217 = vmatpush.msra.mxu0 0.0
  %218 = vmatpush.msra.mxu0 0.0
  %v219 = vand.u32 %v11, 4294901760
  %v220 = vsub.f32 %v11, %v219
  %221 = vmatmul.f32.gmra.mxu0 %v220
  %v222 = vpop.f32.mrf.mxu0
  %v223 = vadd.f32 %v169, %v222
  %v224 = vand.u32 %v13, 4294901760
  %v225 = vsub.f32 %v13, %v224
  %226 = vmatmul.f32.gmra.mxu0 %v225
  %v227 = vpop.f32.mrf.mxu0
  %v228 = vadd.f32 %v173, %v227
  %v229 = vand.u32 %v15, 4294901760
  %v230 = vsub.f32 %v15, %v229
  %231 = vmatmul.f32.gmra.mxu0 %v230
  %v232 = vpop.f32.mrf.mxu0
  %v233 = vadd.f32 %v177, %v232
  %v234 = vand.u32 %v17, 4294901760
  %v235 = vsub.f32 %v17, %v234
  %236 = vmatmul.f32.gmra.mxu0 %v235
  %v237 = vpop.f32.mrf.mxu0
  %v238 = vadd.f32 %v181, %v237
  %v239 = vand.u32 %v19, 4294901760
  %v240 = vsub.f32 %v19, %v239
  %241 = vmatmul.f32.gmra.mxu0 %v240
  %v242 = vpop.f32.mrf.mxu0
  %v243 = vadd.f32 %v185, %v242
  %v244 = vand.u32 %v21, 4294901760
  %v245 = vsub.f32 %v21, %v244
  %246 = vmatmul.f32.gmra.mxu0 %v245
  %v247 = vpop.f32.mrf.mxu0
  %v248 = vadd.f32 %v189, %v247
  %v249 = vand.u32 %v23, 4294901760
  %v250 = vsub.f32 %v23, %v249
  %251 = vmatmul.f32.gmra.mxu0 %v250
  %v252 = vpop.f32.mrf.mxu0
  %v253 = vadd.f32 %v193, %v252
  %v254 = vand.u32 %v25, 4294901760
  %v255 = vsub.f32 %v25, %v254
  %256 = vmatmul.f32.gmra.mxu0 %v255
  %v257 = vpop.f32.mrf.mxu0
  %v258 = vadd.f32 %v197, %v257
  %v259 = vand.u32 %v27, 4294901760
  %v260 = vsub.f32 %v27, %v259
  %261 = vmatmul.f32.gmra.mxu0 %v260
  %v262 = vpop.f32.mrf.mxu0
  %v263 = vadd.f32 %v201, %v262
  %264 = vdwg.mxu0
  %265 = vmatpush.msra.mxu0 1.0
  %266 = vmatpush.msra.mxu0 1.0
  %267 = vmatpush.msra.mxu0 1.0
  %268 = vmatpush.msra.mxu0 1.0
  %269 = vmatpush.msra.mxu0 1.0
  %270 = vmatpush.msra.mxu0 1.0
  %271 = vmatpush.msra.mxu0 1.0
  %272 = vmatpush.msra.mxu0 1.0
  %273 = vmatpush.msra.mxu0 1.0
  %274 = vmatpush.msra.mxu0 1.0
  %275 = vmatpush.msra.mxu0 1.0
  %276 = vmatpush.msra.mxu0 1.0
  %277 = vmatpush.msra.mxu0 1.0
  %278 = vmatpush.msra.mxu0 1.0
  %279 = vmatpush.msra.mxu0 1.0
  %280 = vmatpush.msra.mxu0 1.0
  %v281 = vand.u32 %v11, 4294901760
  %v282 = vsub.f32 %v11, %v281
  %v283 = vand.u32 %v282, 4294901760
  %284 = vmatmul.f32.gmra.mxu0 %v283
  %v285 = vpop.f32.mrf.mxu0
  %v286 = vadd.f32 %v223, %v285
  %v287 = vand.u32 %v13, 4294901760
  %v288 = vsub.f32 %v13, %v287
  %v289 = vand.u32 %v288, 4294901760
  %290 = vmatmul.f32.gmra.mxu0 %v289
  %v291 = vpop.f32.mrf.mxu0
  %v292 = vadd.f32 %v228, %v291
  %v293 = vand.u32 %v15, 4294901760
  %v294 = vsub.f32 %v15, %v293
  %v295 = vand.u32 %v294, 4294901760
  %296 = vmatmul.f32.gmra.mxu0 %v295
  %v297 = vpop.f32.mrf.mxu0
  %v298 = vadd.f32 %v233, %v297
  %v299 = vand.u32 %v17, 4294901760
  %v300 = vsub.f32 %v17, %v299
  %v301 = vand.u32 %v300, 4294901760
  %302 = vmatmul.f32.gmra.mxu0 %v301
  %v303 = vpop.f32.mrf.mxu0
  %v304 = vadd.f32 %v238, %v303
  %v305 = vand.u32 %v19, 4294901760
  %v306 = vsub.f32 %v19, %v305
  %v307 = vand.u32 %v306, 4294901760
  %308 = vmatmul.f32.gmra.mxu0 %v307
  %v309 = vpop.f32.mrf.mxu0
  %v310 = vadd.f32 %v243, %v309
  %v311 = vand.u32 %v21, 4294901760
  %v312 = vsub.f32 %v21, %v311
  %v313 = vand.u32 %v312, 4294901760
  %314 = vmatmul.f32.gmra.mxu0 %v313
  %v315 = vpop.f32.mrf.mxu0
  %v316 = vadd.f32 %v248, %v315
  %v317 = vand.u32 %v23, 4294901760
  %v318 = vsub.f32 %v23, %v317
  %v319 = vand.u32 %v318, 4294901760
  %320 = vmatmul.f32.gmra.mxu0 %v319
  %v321 = vpop.f32.mrf.mxu0
  %v322 = vadd.f32 %v253, %v321
  %v323 = vand.u32 %v25, 4294901760
  %v324 = vsub.f32 %v25, %v323
  %v325 = vand.u32 %v324, 4294901760
  %326 = vmatmul.f32.gmra.mxu0 %v325
  %v327 = vpop.f32.mrf.mxu0
  %v328 = vadd.f32 %v258, %v327
  %v329 = vand.u32 %v27, 4294901760
  %v330 = vsub.f32 %v27, %v329
  %v331 = vand.u32 %v330, 4294901760
  %332 = vmatmul.f32.gmra.mxu0 %v331
  %v333 = vpop.f32.mrf.mxu0
  %v334 = vadd.f32 %v263, %v333
  %335 = vdwg.mxu0
  %336 = vmatpush.msra.mxu0 0.0
  %337 = vmatpush.msra.mxu0 0.0
  %338 = vmatpush.msra.mxu0 0.0
  %339 = vmatpush.msra.mxu0 0.0
  %340 = vmatpush.msra.mxu0 0.0
  %341 = vmatpush.msra.mxu0 0.0
  %342 = vmatpush.msra.mxu0 0.0
  %343 = vmatpush.msra.mxu0 0.0
  %344 = vmatpush.msra.mxu0 0.0
  %345 = vmatpush.msra.mxu0 0.0
  %346 = vmatpush.msra.mxu0 0.0
  %347 = vmatpush.msra.mxu0 0.0
  %348 = vmatpush.msra.mxu0 0.0
  %349 = vmatpush.msra.mxu0 0.0
  %350 = vmatpush.msra.mxu0 0.0
  %351 = vmatpush.msra.mxu0 0.0
  %v352 = vand.u32 %v11, 4294901760
  %353 = vmatmul.f32.gmra.mxu0 %v352
  %v354 = vpop.f32.mrf.mxu0
  %v355 = vadd.f32 %v286, %v354
  %v356 = vand.u32 %v13, 4294901760
  %357 = vmatmul.f32.gmra.mxu0 %v356
  %v358 = vpop.f32.mrf.mxu0
  %v359 = vadd.f32 %v292, %v358
  %v360 = vand.u32 %v15, 4294901760
  %361 = vmatmul.f32.gmra.mxu0 %v360
  %v362 = vpop.f32.mrf.mxu0
  %v363 = vadd.f32 %v298, %v362
  %v364 = vand.u32 %v17, 4294901760
  %365 = vmatmul.f32.gmra.mxu0 %v364
  %v366 = vpop.f32.mrf.mxu0
  %v367 = vadd.f32 %v304, %v366
  %v368 = vand.u32 %v19, 4294901760
  %369 = vmatmul.f32.gmra.mxu0 %v368
  %v370 = vpop.f32.mrf.mxu0
  %v371 = vadd.f32 %v310, %v370
  %v372 = vand.u32 %v21, 4294901760
  %373 = vmatmul.f32.gmra.mxu0 %v372
  %v374 = vpop.f32.mrf.mxu0
  %v375 = vadd.f32 %v316, %v374
  %v376 = vand.u32 %v23, 4294901760
  %377 = vmatmul.f32.gmra.mxu0 %v376
  %v378 = vpop.f32.mrf.mxu0
  %v379 = vadd.f32 %v322, %v378
  %v380 = vand.u32 %v25, 4294901760
  %381 = vmatmul.f32.gmra.mxu0 %v380
  %v382 = vpop.f32.mrf.mxu0
  %v383 = vadd.f32 %v328, %v382
  %v384 = vand.u32 %v27, 4294901760
  %385 = vmatmul.f32.gmra.mxu0 %v384
  %v386 = vpop.f32.mrf.mxu0
  %v387 = vadd.f32 %v334, %v386
  %388 = vdwg.mxu0
  %389 = vmatpush.msra.mxu0 1.0
  %390 = vmatpush.msra.mxu0 1.0
  %391 = vmatpush.msra.mxu0 1.0
  %392 = vmatpush.msra.mxu0 1.0
  %393 = vmatpush.msra.mxu0 1.0
  %394 = vmatpush.msra.mxu0 1.0
  %395 = vmatpush.msra.mxu0 1.0
  %396 = vmatpush.msra.mxu0 1.0
  %397 = vmatpush.msra.mxu0 1.0
  %398 = vmatpush.msra.mxu0 1.0
  %399 = vmatpush.msra.mxu0 1.0
  %400 = vmatpush.msra.mxu0 1.0
  %401 = vmatpush.msra.mxu0 1.0
  %402 = vmatpush.msra.mxu0 1.0
  %403 = vmatpush.msra.mxu0 1.0
  %404 = vmatpush.msra.mxu0 1.0
  %v405 = vand.u32 %v11, 4294901760
  %406 = vmatmul.f32.gmra.mxu0 %v405
  %v407 = vpop.f32.mrf.mxu0
  %v408 = vadd.f32 %v355, %v407
  %v409 = vand.u32 %v13, 4294901760
  %410 = vmatmul.f32.gmra.mxu0 %v409
  %v411 = vpop.f32.mrf.mxu0
  %v412 = vadd.f32 %v359, %v411
  %v413 = vand.u32 %v15, 4294901760
  %414 = vmatmul.f32.gmra.mxu0 %v413
  %v415 = vpop.f32.mrf.mxu0
  %v416 = vadd.f32 %v363, %v415
  %v417 = vand.u32 %v17, 4294901760
  %418 = vmatmul.f32.gmra.mxu0 %v417
  %v419 = vpop.f32.mrf.mxu0
  %v420 = vadd.f32 %v367, %v419
  %v421 = vand.u32 %v19, 4294901760
  %422 = vmatmul.f32.gmra.mxu0 %v421
  %v423 = vpop.f32.mrf.mxu0
  %v424 = vadd.f32 %v371, %v423
  %v425 = vand.u32 %v21, 4294901760
  %426 = vmatmul.f32.gmra.mxu0 %v425
  %v427 = vpop.f32.mrf.mxu0
  %v428 = vadd.f32 %v375, %v427
  %v429 = vand.u32 %v23, 4294901760
  %430 = vmatmul.f32.gmra.mxu0 %v429
  %v431 = vpop.f32.mrf.mxu0
  %v432 = vadd.f32 %v379, %v431
  %v433 = vand.u32 %v25, 4294901760
  %434 = vmatmul.f32.gmra.mxu0 %v433
  %v435 = vpop.f32.mrf.mxu0
  %v436 = vadd.f32 %v383, %v435
  %v437 = vand.u32 %v27, 4294901760
  %438 = vmatmul.f32.gmra.mxu0 %v437
  %v439 = vpop.f32.mrf.mxu0
  %v440 = vadd.f32 %v387, %v439
  %441 = vdwg.mxu0
  %442 = vmatpush.msra.mxu0 0.0
  %443 = vmatpush.msra.mxu0 0.0
  %444 = vmatpush.msra.mxu0 0.0
  %445 = vmatpush.msra.mxu0 0.0
  %446 = vmatpush.msra.mxu0 0.0
  %447 = vmatpush.msra.mxu0 0.0
  %448 = vmatpush.msra.mxu0 0.0
  %v449 = vand.u32 %v59, 4294901760
  %450 = vmatpush.msra.mxu0 %v449
  %451 = vmatpush.msra.mxu0 1.0
  %452 = vmatpush.msra.mxu0 1.0
  %453 = vmatpush.msra.mxu0 1.0
  %454 = vmatpush.msra.mxu0 1.0
  %455 = vmatpush.msra.mxu0 1.0
  %456 = vmatpush.msra.mxu0 1.0
  %457 = vmatpush.msra.mxu0 1.0
  %458 = vmatpush.msra.mxu0 1.0
  %v459 = vand.u32 %v31, 4294901760
  %v460 = vsub.f32 %v31, %v459
  %v461 = vand.u32 %v460, 4294901760
  %v462 = vsub.f32 %v460, %v461
  %v463 = vand.u32 %v462, 4294901760
  %464 = vmatmul.f32.gmra.mxu0 %v463
  %v465 = vpop.f32.mrf.mxu0
  %v466 = vadd.f32 %v408, %v465
  %v467 = vand.u32 %v34, 4294901760
  %v468 = vsub.f32 %v34, %v467
  %v469 = vand.u32 %v468, 4294901760
  %v470 = vsub.f32 %v468, %v469
  %v471 = vand.u32 %v470, 4294901760
  %472 = vmatmul.f32.gmra.mxu0 %v471
  %v473 = vpop.f32.mrf.mxu0
  %v474 = vadd.f32 %v412, %v473
  %v475 = vand.u32 %v37, 4294901760
  %v476 = vsub.f32 %v37, %v475
  %v477 = vand.u32 %v476, 4294901760
  %v478 = vsub.f32 %v476, %v477
  %v479 = vand.u32 %v478, 4294901760
  %480 = vmatmul.f32.gmra.mxu0 %v479
  %v481 = vpop.f32.mrf.mxu0
  %v482 = vadd.f32 %v416, %v481
  %v483 = vand.u32 %v40, 4294901760
  %v484 = vsub.f32 %v40, %v483
  %v485 = vand.u32 %v484, 4294901760
  %v486 = vsub.f32 %v484, %v485
  %v487 = vand.u32 %v486, 4294901760
  %488 = vmatmul.f32.gmra.mxu0 %v487
  %v489 = vpop.f32.mrf.mxu0
  %v490 = vadd.f32 %v420, %v489
  %v491 = vand.u32 %v43, 4294901760
  %v492 = vsub.f32 %v43, %v491
  %v493 = vand.u32 %v492, 4294901760
  %v494 = vsub.f32 %v492, %v493
  %v495 = vand.u32 %v494, 4294901760
  %496 = vmatmul.f32.gmra.mxu0 %v495
  %v497 = vpop.f32.mrf.mxu0
  %v498 = vadd.f32 %v424, %v497
  %v499 = vand.u32 %v46, 4294901760
  %v500 = vsub.f32 %v46, %v499
  %v501 = vand.u32 %v500, 4294901760
  %v502 = vsub.f32 %v500, %v501
  %v503 = vand.u32 %v502, 4294901760
  %504 = vmatmul.f32.gmra.mxu0 %v503
  %v505 = vpop.f32.mrf.mxu0
  %v506 = vadd.f32 %v428, %v505
  %v507 = vand.u32 %v49, 4294901760
  %v508 = vsub.f32 %v49, %v507
  %v509 = vand.u32 %v508, 4294901760
  %v510 = vsub.f32 %v508, %v509
  %v511 = vand.u32 %v510, 4294901760
  %512 = vmatmul.f32.gmra.mxu0 %v511
  %v513 = vpop.f32.mrf.mxu0
  %v514 = vadd.f32 %v432, %v513
  %v515 = vand.u32 %v52, 4294901760
  %v516 = vsub.f32 %v52, %v515
  %v517 = vand.u32 %v516, 4294901760
  %v518 = vsub.f32 %v516, %v517
  %v519 = vand.u32 %v518, 4294901760
  %520 = vmatmul.f32.gmra.mxu0 %v519
  %v521 = vpop.f32.mrf.mxu0
  %v522 = vadd.f32 %v436, %v521
  %v523 = vand.u32 %v55, 4294901760
  %v524 = vsub.f32 %v55, %v523
  %v525 = vand.u32 %v524, 4294901760
  %v526 = vsub.f32 %v524, %v525
  %v527 = vand.u32 %v526, 4294901760
  %528 = vmatmul.f32.gmra.mxu0 %v527
  %v529 = vpop.f32.mrf.mxu0
  %v530 = vadd.f32 %v440, %v529
  %531 = vdwg.mxu0
  %532 = vmatpush.msra.mxu0 0.0
  %533 = vmatpush.msra.mxu0 0.0
  %534 = vmatpush.msra.mxu0 0.0
  %535 = vmatpush.msra.mxu0 0.0
  %536 = vmatpush.msra.mxu0 0.0
  %537 = vmatpush.msra.mxu0 0.0
  %538 = vmatpush.msra.mxu0 0.0
  %v539 = vand.u32 %v59, 4294901760
  %v540 = vsub.f32 %v59, %v539
  %v541 = vand.u32 %v540, 4294901760
  %v542 = vsub.f32 %v540, %v541
  %v543 = vand.u32 %v542, 4294901760
  %544 = vmatpush.msra.mxu0 %v543
  %545 = vmatpush.msra.mxu0 0.0
  %546 = vmatpush.msra.mxu0 0.0
  %547 = vmatpush.msra.mxu0 0.0
  %548 = vmatpush.msra.mxu0 0.0
  %549 = vmatpush.msra.mxu0 0.0
  %550 = vmatpush.msra.mxu0 0.0
  %551 = vmatpush.msra.mxu0 0.0
  %552 = vmatpush.msra.mxu0 0.0
  %v553 = vand.u32 %v31, 4294901760
  %554 = vmatmul.f32.gmra.mxu0 %v553
  %v555 = vpop.f32.mrf.mxu0
  %v556 = vadd.f32 %v466, %v555
  %v557 = vand.u32 %v34, 4294901760
  %558 = vmatmul.f32.gmra.mxu0 %v557
  %v559 = vpop.f32.mrf.mxu0
  %v560 = vadd.f32 %v474, %v559
  %v561 = vand.u32 %v37, 4294901760
  %562 = vmatmul.f32.gmra.mxu0 %v561
  %v563 = vpop.f32.mrf.mxu0
  %v564 = vadd.f32 %v482, %v563
  %v565 = vand.u32 %v40, 4294901760
  %566 = vmatmul.f32.gmra.mxu0 %v565
  %v567 = vpop.f32.mrf.mxu0
  %v568 = vadd.f32 %v490, %v567
  %v569 = vand.u32 %v43, 4294901760
  %570 = vmatmul.f32.gmra.mxu0 %v569
  %v571 = vpop.f32.mrf.mxu0
  %v572 = vadd.f32 %v498, %v571
  %v573 = vand.u32 %v46, 4294901760
  %574 = vmatmul.f32.gmra.mxu0 %v573
  %v575 = vpop.f32.mrf.mxu0
  %v576 = vadd.f32 %v506, %v575
  %v577 = vand.u32 %v49, 4294901760
  %578 = vmatmul.f32.gmra.mxu0 %v577
  %v579 = vpop.f32.mrf.mxu0
  %v580 = vadd.f32 %v514, %v579
  %v581 = vand.u32 %v52, 4294901760
  %582 = vmatmul.f32.gmra.mxu0 %v581
  %v583 = vpop.f32.mrf.mxu0
  %v584 = vadd.f32 %v522, %v583
  %v585 = vand.u32 %v55, 4294901760
  %586 = vmatmul.f32.gmra.mxu0 %v585
  %v587 = vpop.f32.mrf.mxu0
  %v588 = vadd.f32 %v530, %v587
  %589 = vdwg.mxu0
  %590 = vmatpush.msra.mxu0 0.0
  %591 = vmatpush.msra.mxu0 0.0
  %592 = vmatpush.msra.mxu0 0.0
  %593 = vmatpush.msra.mxu0 0.0
  %594 = vmatpush.msra.mxu0 0.0
  %595 = vmatpush.msra.mxu0 0.0
  %596 = vmatpush.msra.mxu0 0.0
  %v597 = vand.u32 %v59, 4294901760
  %v598 = vsub.f32 %v59, %v597
  %599 = vmatpush.msra.mxu0 %v598
  %600 = vmatpush.msra.mxu0 0.0
  %601 = vmatpush.msra.mxu0 0.0
  %602 = vmatpush.msra.mxu0 0.0
  %603 = vmatpush.msra.mxu0 0.0
  %604 = vmatpush.msra.mxu0 0.0
  %605 = vmatpush.msra.mxu0 0.0
  %606 = vmatpush.msra.mxu0 0.0
  %607 = vmatpush.msra.mxu0 0.0
  %v608 = vand.u32 %v31, 4294901760
  %v609 = vsub.f32 %v31, %v608
  %610 = vmatmul.f32.gmra.mxu0 %v609
  %v611 = vpop.f32.mrf.mxu0
  %v612 = vadd.f32 %v556, %v611
  %v613 = vand.u32 %v34, 4294901760
  %v614 = vsub.f32 %v34, %v613
  %615 = vmatmul.f32.gmra.mxu0 %v614
  %v616 = vpop.f32.mrf.mxu0
  %v617 = vadd.f32 %v560, %v616
  %v618 = vand.u32 %v37, 4294901760
  %v619 = vsub.f32 %v37, %v618
  %620 = vmatmul.f32.gmra.mxu0 %v619
  %v621 = vpop.f32.mrf.mxu0
  %v622 = vadd.f32 %v564, %v621
  %v623 = vand.u32 %v40, 4294901760
  %v624 = vsub.f32 %v40, %v623
  %625 = vmatmul.f32.gmra.mxu0 %v624
  %v626 = vpop.f32.mrf.mxu0
  %v627 = vadd.f32 %v568, %v626
  %v628 = vand.u32 %v43, 4294901760
  %v629 = vsub.f32 %v43, %v628
  %630 = vmatmul.f32.gmra.mxu0 %v629
  %v631 = vpop.f32.mrf.mxu0
  %v632 = vadd.f32 %v572, %v631
  %v633 = vand.u32 %v46, 4294901760
  %v634 = vsub.f32 %v46, %v633
  %635 = vmatmul.f32.gmra.mxu0 %v634
  %v636 = vpop.f32.mrf.mxu0
  %v637 = vadd.f32 %v576, %v636
  %v638 = vand.u32 %v49, 4294901760
  %v639 = vsub.f32 %v49, %v638
  %640 = vmatmul.f32.gmra.mxu0 %v639
  %v641 = vpop.f32.mrf.mxu0
  %v642 = vadd.f32 %v580, %v641
  %v643 = vand.u32 %v52, 4294901760
  %v644 = vsub.f32 %v52, %v643
  %645 = vmatmul.f32.gmra.mxu0 %v644
  %v646 = vpop.f32.mrf.mxu0
  %v647 = vadd.f32 %v584, %v646
  %v648 = vand.u32 %v55, 4294901760
  %v649 = vsub.f32 %v55, %v648
  %650 = vmatmul.f32.gmra.mxu0 %v649
  %v651 = vpop.f32.mrf.mxu0
  %v652 = vadd.f32 %v588, %v651
  %653 = vdwg.mxu0
  %654 = vmatpush.msra.mxu0 0.0
  %655 = vmatpush.msra.mxu0 0.0
  %656 = vmatpush.msra.mxu0 0.0
  %657 = vmatpush.msra.mxu0 0.0
  %658 = vmatpush.msra.mxu0 0.0
  %659 = vmatpush.msra.mxu0 0.0
  %660 = vmatpush.msra.mxu0 0.0
  %v661 = vand.u32 %v59, 4294901760
  %662 = vmatpush.msra.mxu0 %v661
  %663 = vmatpush.msra.mxu0 1.0
  %664 = vmatpush.msra.mxu0 1.0
  %665 = vmatpush.msra.mxu0 1.0
  %666 = vmatpush.msra.mxu0 1.0
  %667 = vmatpush.msra.mxu0 1.0
  %668 = vmatpush.msra.mxu0 1.0
  %669 = vmatpush.msra.mxu0 1.0
  %670 = vmatpush.msra.mxu0 1.0
  %v671 = vand.u32 %v31, 4294901760
  %v672 = vsub.f32 %v31, %v671
  %v673 = vand.u32 %v672, 4294901760
  %674 = vmatmul.f32.gmra.mxu0 %v673
  %v675 = vpop.f32.mrf.mxu0
  %v676 = vadd.f32 %v612, %v675
  %v677 = vand.u32 %v34, 4294901760
  %v678 = vsub.f32 %v34, %v677
  %v679 = vand.u32 %v678, 4294901760
  %680 = vmatmul.f32.gmra.mxu0 %v679
  %v681 = vpop.f32.mrf.mxu0
  %v682 = vadd.f32 %v617, %v681
  %v683 = vand.u32 %v37, 4294901760
  %v684 = vsub.f32 %v37, %v683
  %v685 = vand.u32 %v684, 4294901760
  %686 = vmatmul.f32.gmra.mxu0 %v685
  %v687 = vpop.f32.mrf.mxu0
  %v688 = vadd.f32 %v622, %v687
  %v689 = vand.u32 %v40, 4294901760
  %v690 = vsub.f32 %v40, %v689
  %v691 = vand.u32 %v690, 4294901760
  %692 = vmatmul.f32.gmra.mxu0 %v691
  %v693 = vpop.f32.mrf.mxu0
  %v694 = vadd.f32 %v627, %v693
  %v695 = vand.u32 %v43, 4294901760
  %v696 = vsub.f32 %v43, %v695
  %v697 = vand.u32 %v696, 4294901760
  %698 = vmatmul.f32.gmra.mxu0 %v697
  %v699 = vpop.f32.mrf.mxu0
  %v700 = vadd.f32 %v632, %v699
  %v701 = vand.u32 %v46, 4294901760
  %v702 = vsub.f32 %v46, %v701
  %v703 = vand.u32 %v702, 4294901760
  %704 = vmatmul.f32.gmra.mxu0 %v703
  %v705 = vpop.f32.mrf.mxu0
  %v706 = vadd.f32 %v637, %v705
  %v707 = vand.u32 %v49, 4294901760
  %v708 = vsub.f32 %v49, %v707
  %v709 = vand.u32 %v708, 4294901760
  %710 = vmatmul.f32.gmra.mxu0 %v709
  %v711 = vpop.f32.mrf.mxu0
  %v712 = vadd.f32 %v642, %v711
  %v713 = vand.u32 %v52, 4294901760
  %v714 = vsub.f32 %v52, %v713
  %v715 = vand.u32 %v714, 4294901760
  %716 = vmatmul.f32.gmra.mxu0 %v715
  %v717 = vpop.f32.mrf.mxu0
  %v718 = vadd.f32 %v647, %v717
  %v719 = vand.u32 %v55, 4294901760
  %v720 = vsub.f32 %v55, %v719
  %v721 = vand.u32 %v720, 4294901760
  %722 = vmatmul.f32.gmra.mxu0 %v721
  %v723 = vpop.f32.mrf.mxu0
  %v724 = vadd.f32 %v652, %v723
  %725 = vdwg.mxu0
  %726 = vmatpush.msra.mxu0 0.0
  %727 = vmatpush.msra.mxu0 0.0
  %728 = vmatpush.msra.mxu0 0.0
  %729 = vmatpush.msra.mxu0 0.0
  %730 = vmatpush.msra.mxu0 0.0
  %731 = vmatpush.msra.mxu0 0.0
  %732 = vmatpush.msra.mxu0 0.0
  %v733 = vand.u32 %v59, 4294901760
  %v734 = vsub.f32 %v59, %v733
  %v735 = vand.u32 %v734, 4294901760
  %736 = vmatpush.msra.mxu0 %v735
  %737 = vmatpush.msra.mxu0 0.0
  %738 = vmatpush.msra.mxu0 0.0
  %739 = vmatpush.msra.mxu0 0.0
  %740 = vmatpush.msra.mxu0 0.0
  %741 = vmatpush.msra.mxu0 0.0
  %742 = vmatpush.msra.mxu0 0.0
  %743 = vmatpush.msra.mxu0 0.0
  %744 = vmatpush.msra.mxu0 0.0
  %v745 = vand.u32 %v31, 4294901760
  %746 = vmatmul.f32.gmra.mxu0 %v745
  %v747 = vpop.f32.mrf.mxu0
  %v748 = vadd.f32 %v676, %v747
  %v749 = vand.u32 %v34, 4294901760
  %750 = vmatmul.f32.gmra.mxu0 %v749
  %v751 = vpop.f32.mrf.mxu0
  %v752 = vadd.f32 %v682, %v751
  %v753 = vand.u32 %v37, 4294901760
  %754 = vmatmul.f32.gmra.mxu0 %v753
  %v755 = vpop.f32.mrf.mxu0
  %v756 = vadd.f32 %v688, %v755
  %v757 = vand.u32 %v40, 4294901760
  %758 = vmatmul.f32.gmra.mxu0 %v757
  %v759 = vpop.f32.mrf.mxu0
  %v760 = vadd.f32 %v694, %v759
  %v761 = vand.u32 %v43, 4294901760
  %762 = vmatmul.f32.gmra.mxu0 %v761
  %v763 = vpop.f32.mrf.mxu0
  %v764 = vadd.f32 %v700, %v763
  %v765 = vand.u32 %v46, 4294901760
  %766 = vmatmul.f32.gmra.mxu0 %v765
  %v767 = vpop.f32.mrf.mxu0
  %v768 = vadd.f32 %v706, %v767
  %v769 = vand.u32 %v49, 4294901760
  %770 = vmatmul.f32.gmra.mxu0 %v769
  %v771 = vpop.f32.mrf.mxu0
  %v772 = vadd.f32 %v712, %v771
  %v773 = vand.u32 %v52, 4294901760
  %774 = vmatmul.f32.gmra.mxu0 %v773
  %v775 = vpop.f32.mrf.mxu0
  %v776 = vadd.f32 %v718, %v775
  %v777 = vand.u32 %v55, 4294901760
  %778 = vmatmul.f32.gmra.mxu0 %v777
  %v779 = vpop.f32.mrf.mxu0
  %v780 = vadd.f32 %v724, %v779
  %781 = vdwg.mxu0
  %782 = vmatpush.msra.mxu0 0.0
  %783 = vmatpush.msra.mxu0 0.0
  %784 = vmatpush.msra.mxu0 0.0
  %785 = vmatpush.msra.mxu0 0.0
  %786 = vmatpush.msra.mxu0 0.0
  %787 = vmatpush.msra.mxu0 0.0
  %788 = vmatpush.msra.mxu0 0.0
  %v789 = vand.u32 %v59, 4294901760
  %790 = vmatpush.msra.mxu0 %v789
  %791 = vmatpush.msra.mxu0 1.0
  %792 = vmatpush.msra.mxu0 1.0
  %793 = vmatpush.msra.mxu0 1.0
  %794 = vmatpush.msra.mxu0 1.0
  %795 = vmatpush.msra.mxu0 1.0
  %796 = vmatpush.msra.mxu0 1.0
  %797 = vmatpush.msra.mxu0 1.0
  %798 = vmatpush.msra.mxu0 1.0
  %v799 = vand.u32 %v31, 4294901760
  %800 = vmatmul.f32.gmra.mxu0 %v799
  %v801 = vpop.f32.mrf.mxu0
  %v802 = vadd.f32 %v748, %v801
  %v803 = vand.u32 %v34, 4294901760
  %804 = vmatmul.f32.gmra.mxu0 %v803
  %v805 = vpop.f32.mrf.mxu0
  %v806 = vadd.f32 %v752, %v805
  %v807 = vand.u32 %v37, 4294901760
  %808 = vmatmul.f32.gmra.mxu0 %v807
  %v809 = vpop.f32.mrf.mxu0
  %v810 = vadd.f32 %v756, %v809
  %v811 = vand.u32 %v40, 4294901760
  %812 = vmatmul.f32.gmra.mxu0 %v811
  %v813 = vpop.f32.mrf.mxu0
  %v814 = vadd.f32 %v760, %v813
  %v815 = vand.u32 %v43, 4294901760
  %816 = vmatmul.f32.gmra.mxu0 %v815
  %v817 = vpop.f32.mrf.mxu0
  %v818 = vadd.f32 %v764, %v817
  %v819 = vand.u32 %v46, 4294901760
  %820 = vmatmul.f32.gmra.mxu0 %v819
  %v821 = vpop.f32.mrf.mxu0
  %v822 = vadd.f32 %v768, %v821
  %v823 = vand.u32 %v49, 4294901760
  %824 = vmatmul.f32.gmra.mxu0 %v823
  %v825 = vpop.f32.mrf.mxu0
  %v826 = vadd.f32 %v772, %v825
  %v827 = vand.u32 %v52, 4294901760
  %828 = vmatmul.f32.gmra.mxu0 %v827
  %v829 = vpop.f32.mrf.mxu0
  %v830 = vadd.f32 %v776, %v829
  %v831 = vand.u32 %v55, 4294901760
  %832 = vmatmul.f32.gmra.mxu0 %v831
  %v833 = vpop.f32.mrf.mxu0
  %v834 = vadd.f32 %v780, %v833
  %835 = vdwg.mxu0
  %v836 = vmul.f32 %v11, %v11
  %v837 = vmul.f32 %v12, %v12
  %v838 = vmul.f32 %v13, %v13
  %v839 = vmul.f32 %v14, %v14
  %v840 = vmul.f32 %v15, %v15
  %v841 = vmul.f32 %v16, %v16
  %v842 = vmul.f32 %v17, %v17
  %v843 = vmul.f32 %v18, %v18
  %v844 = vmul.f32 %v19, %v19
  %v845 = vmul.f32 %v20, %v20
  %v846 = vmul.f32 %v21, %v21
  %v847 = vmul.f32 %v22, %v22
  %v848 = vmul.f32 %v23, %v23
  %v849 = vmul.f32 %v24, %v24
  %v850 = vmul.f32 %v25, %v25
  %v851 = vmul.f32 %v26, %v26
  %v852 = vmul.f32 %v27, %v27
  %v853 = vmul.f32 %v28, %v28
  %v855 = vsel %vm29, %v837, 0
  %v858 = vsel %vm29, %v839, 0
  %v861 = vsel %vm29, %v841, 0
  %v864 = vsel %vm29, %v843, 0
  %v867 = vsel %vm29, %v845, 0
  %v870 = vsel %vm29, %v847, 0
  %v873 = vsel %vm29, %v849, 0
  %v876 = vsel %vm29, %v851, 0
  %v879 = vsel %vm29, %v853, 0
  %881 = vmatpush.msra.mxu0 1.0
  %882 = vmatpush.msra.mxu0 1.0
  %883 = vmatpush.msra.mxu0 1.0
  %884 = vmatpush.msra.mxu0 1.0
  %885 = vmatpush.msra.mxu0 1.0
  %886 = vmatpush.msra.mxu0 1.0
  %887 = vmatpush.msra.mxu0 1.0
  %888 = vmatpush.msra.mxu0 1.0
  %889 = vmatpush.msra.mxu0 1.0
  %890 = vmatpush.msra.mxu0 1.0
  %891 = vmatpush.msra.mxu0 1.0
  %892 = vmatpush.msra.mxu0 1.0
  %893 = vmatpush.msra.mxu0 1.0
  %894 = vmatpush.msra.mxu0 1.0
  %895 = vmatpush.msra.mxu0 1.0
  %896 = vmatpush.msra.mxu0 1.0
  %v897 = vand.u32 %v836, 4294901760
  %v898 = vsub.f32 %v836, %v897
  %v899 = vand.u32 %v898, 4294901760
  %v900 = vsub.f32 %v898, %v899
  %v901 = vand.u32 %v900, 4294901760
  %902 = vmatmul.f32.gmra.mxu0 %v901
  %v903 = vpop.f32.mrf.mxu0
  %v904 = vadd.f32 0.0, %v903
  %v905 = vand.u32 %v838, 4294901760
  %v906 = vsub.f32 %v838, %v905
  %v907 = vand.u32 %v906, 4294901760
  %v908 = vsub.f32 %v906, %v907
  %v909 = vand.u32 %v908, 4294901760
  %910 = vmatmul.f32.gmra.mxu0 %v909
  %v911 = vpop.f32.mrf.mxu0
  %v912 = vadd.f32 0.0, %v911
  %v913 = vand.u32 %v840, 4294901760
  %v914 = vsub.f32 %v840, %v913
  %v915 = vand.u32 %v914, 4294901760
  %v916 = vsub.f32 %v914, %v915
  %v917 = vand.u32 %v916, 4294901760
  %918 = vmatmul.f32.gmra.mxu0 %v917
  %v919 = vpop.f32.mrf.mxu0
  %v920 = vadd.f32 0.0, %v919
  %v921 = vand.u32 %v842, 4294901760
  %v922 = vsub.f32 %v842, %v921
  %v923 = vand.u32 %v922, 4294901760
  %v924 = vsub.f32 %v922, %v923
  %v925 = vand.u32 %v924, 4294901760
  %926 = vmatmul.f32.gmra.mxu0 %v925
  %v927 = vpop.f32.mrf.mxu0
  %v928 = vadd.f32 0.0, %v927
  %v929 = vand.u32 %v844, 4294901760
  %v930 = vsub.f32 %v844, %v929
  %v931 = vand.u32 %v930, 4294901760
  %v932 = vsub.f32 %v930, %v931
  %v933 = vand.u32 %v932, 4294901760
  %934 = vmatmul.f32.gmra.mxu0 %v933
  %v935 = vpop.f32.mrf.mxu0
  %v936 = vadd.f32 0.0, %v935
  %v937 = vand.u32 %v846, 4294901760
  %v938 = vsub.f32 %v846, %v937
  %v939 = vand.u32 %v938, 4294901760
  %v940 = vsub.f32 %v938, %v939
  %v941 = vand.u32 %v940, 4294901760
  %942 = vmatmul.f32.gmra.mxu0 %v941
  %v943 = vpop.f32.mrf.mxu0
  %v944 = vadd.f32 0.0, %v943
  %v945 = vand.u32 %v848, 4294901760
  %v946 = vsub.f32 %v848, %v945
  %v947 = vand.u32 %v946, 4294901760
  %v948 = vsub.f32 %v946, %v947
  %v949 = vand.u32 %v948, 4294901760
  %950 = vmatmul.f32.gmra.mxu0 %v949
  %v951 = vpop.f32.mrf.mxu0
  %v952 = vadd.f32 0.0, %v951
  %v953 = vand.u32 %v850, 4294901760
  %v954 = vsub.f32 %v850, %v953
  %v955 = vand.u32 %v954, 4294901760
  %v956 = vsub.f32 %v954, %v955
  %v957 = vand.u32 %v956, 4294901760
  %958 = vmatmul.f32.gmra.mxu0 %v957
  %v959 = vpop.f32.mrf.mxu0
  %v960 = vadd.f32 0.0, %v959
  %v961 = vand.u32 %v852, 4294901760
  %v962 = vsub.f32 %v852, %v961
  %v963 = vand.u32 %v962, 4294901760
  %v964 = vsub.f32 %v962, %v963
  %v965 = vand.u32 %v964, 4294901760
  %966 = vmatmul.f32.gmra.mxu0 %v965
  %v967 = vpop.f32.mrf.mxu0
  %v968 = vadd.f32 0.0, %v967
  %969 = vdwg.mxu0
  %970 = vmatpush.msra.mxu0 0.0
  %971 = vmatpush.msra.mxu0 0.0
  %972 = vmatpush.msra.mxu0 0.0
  %973 = vmatpush.msra.mxu0 0.0
  %974 = vmatpush.msra.mxu0 0.0
  %975 = vmatpush.msra.mxu0 0.0
  %976 = vmatpush.msra.mxu0 0.0
  %977 = vmatpush.msra.mxu0 0.0
  %978 = vmatpush.msra.mxu0 0.0
  %979 = vmatpush.msra.mxu0 0.0
  %980 = vmatpush.msra.mxu0 0.0
  %981 = vmatpush.msra.mxu0 0.0
  %982 = vmatpush.msra.mxu0 0.0
  %983 = vmatpush.msra.mxu0 0.0
  %984 = vmatpush.msra.mxu0 0.0
  %985 = vmatpush.msra.mxu0 0.0
  %v986 = vand.u32 %v836, 4294901760
  %987 = vmatmul.f32.gmra.mxu0 %v986
  %v988 = vpop.f32.mrf.mxu0
  %v989 = vadd.f32 %v904, %v988
  %v990 = vand.u32 %v838, 4294901760
  %991 = vmatmul.f32.gmra.mxu0 %v990
  %v992 = vpop.f32.mrf.mxu0
  %v993 = vadd.f32 %v912, %v992
  %v994 = vand.u32 %v840, 4294901760
  %995 = vmatmul.f32.gmra.mxu0 %v994
  %v996 = vpop.f32.mrf.mxu0
  %v997 = vadd.f32 %v920, %v996
  %v998 = vand.u32 %v842, 4294901760
  %999 = vmatmul.f32.gmra.mxu0 %v998
  %v1000 = vpop.f32.mrf.mxu0
  %v1001 = vadd.f32 %v928, %v1000
  %v1002 = vand.u32 %v844, 4294901760
  %1003 = vmatmul.f32.gmra.mxu0 %v1002
  %v1004 = vpop.f32.mrf.mxu0
  %v1005 = vadd.f32 %v936, %v1004
  %v1006 = vand.u32 %v846, 4294901760
  %1007 = vmatmul.f32.gmra.mxu0 %v1006
  %v1008 = vpop.f32.mrf.mxu0
  %v1009 = vadd.f32 %v944, %v1008
  %v1010 = vand.u32 %v848, 4294901760
  %1011 = vmatmul.f32.gmra.mxu0 %v1010
  %v1012 = vpop.f32.mrf.mxu0
  %v1013 = vadd.f32 %v952, %v1012
  %v1014 = vand.u32 %v850, 4294901760
  %1015 = vmatmul.f32.gmra.mxu0 %v1014
  %v1016 = vpop.f32.mrf.mxu0
  %v1017 = vadd.f32 %v960, %v1016
  %v1018 = vand.u32 %v852, 4294901760
  %1019 = vmatmul.f32.gmra.mxu0 %v1018
  %v1020 = vpop.f32.mrf.mxu0
  %v1021 = vadd.f32 %v968, %v1020
  %1022 = vdwg.mxu0
  %1023 = vmatpush.msra.mxu0 0.0
  %1024 = vmatpush.msra.mxu0 0.0
  %1025 = vmatpush.msra.mxu0 0.0
  %1026 = vmatpush.msra.mxu0 0.0
  %1027 = vmatpush.msra.mxu0 0.0
  %1028 = vmatpush.msra.mxu0 0.0
  %1029 = vmatpush.msra.mxu0 0.0
  %1030 = vmatpush.msra.mxu0 0.0
  %1031 = vmatpush.msra.mxu0 0.0
  %1032 = vmatpush.msra.mxu0 0.0
  %1033 = vmatpush.msra.mxu0 0.0
  %1034 = vmatpush.msra.mxu0 0.0
  %1035 = vmatpush.msra.mxu0 0.0
  %1036 = vmatpush.msra.mxu0 0.0
  %1037 = vmatpush.msra.mxu0 0.0
  %1038 = vmatpush.msra.mxu0 0.0
  %v1039 = vand.u32 %v836, 4294901760
  %v1040 = vsub.f32 %v836, %v1039
  %1041 = vmatmul.f32.gmra.mxu0 %v1040
  %v1042 = vpop.f32.mrf.mxu0
  %v1043 = vadd.f32 %v989, %v1042
  %v1044 = vand.u32 %v838, 4294901760
  %v1045 = vsub.f32 %v838, %v1044
  %1046 = vmatmul.f32.gmra.mxu0 %v1045
  %v1047 = vpop.f32.mrf.mxu0
  %v1048 = vadd.f32 %v993, %v1047
  %v1049 = vand.u32 %v840, 4294901760
  %v1050 = vsub.f32 %v840, %v1049
  %1051 = vmatmul.f32.gmra.mxu0 %v1050
  %v1052 = vpop.f32.mrf.mxu0
  %v1053 = vadd.f32 %v997, %v1052
  %v1054 = vand.u32 %v842, 4294901760
  %v1055 = vsub.f32 %v842, %v1054
  %1056 = vmatmul.f32.gmra.mxu0 %v1055
  %v1057 = vpop.f32.mrf.mxu0
  %v1058 = vadd.f32 %v1001, %v1057
  %v1059 = vand.u32 %v844, 4294901760
  %v1060 = vsub.f32 %v844, %v1059
  %1061 = vmatmul.f32.gmra.mxu0 %v1060
  %v1062 = vpop.f32.mrf.mxu0
  %v1063 = vadd.f32 %v1005, %v1062
  %v1064 = vand.u32 %v846, 4294901760
  %v1065 = vsub.f32 %v846, %v1064
  %1066 = vmatmul.f32.gmra.mxu0 %v1065
  %v1067 = vpop.f32.mrf.mxu0
  %v1068 = vadd.f32 %v1009, %v1067
  %v1069 = vand.u32 %v848, 4294901760
  %v1070 = vsub.f32 %v848, %v1069
  %1071 = vmatmul.f32.gmra.mxu0 %v1070
  %v1072 = vpop.f32.mrf.mxu0
  %v1073 = vadd.f32 %v1013, %v1072
  %v1074 = vand.u32 %v850, 4294901760
  %v1075 = vsub.f32 %v850, %v1074
  %1076 = vmatmul.f32.gmra.mxu0 %v1075
  %v1077 = vpop.f32.mrf.mxu0
  %v1078 = vadd.f32 %v1017, %v1077
  %v1079 = vand.u32 %v852, 4294901760
  %v1080 = vsub.f32 %v852, %v1079
  %1081 = vmatmul.f32.gmra.mxu0 %v1080
  %v1082 = vpop.f32.mrf.mxu0
  %v1083 = vadd.f32 %v1021, %v1082
  %1084 = vdwg.mxu0
  %1085 = vmatpush.msra.mxu0 1.0
  %1086 = vmatpush.msra.mxu0 1.0
  %1087 = vmatpush.msra.mxu0 1.0
  %1088 = vmatpush.msra.mxu0 1.0
  %1089 = vmatpush.msra.mxu0 1.0
  %1090 = vmatpush.msra.mxu0 1.0
  %1091 = vmatpush.msra.mxu0 1.0
  %1092 = vmatpush.msra.mxu0 1.0
  %1093 = vmatpush.msra.mxu0 1.0
  %1094 = vmatpush.msra.mxu0 1.0
  %1095 = vmatpush.msra.mxu0 1.0
  %1096 = vmatpush.msra.mxu0 1.0
  %1097 = vmatpush.msra.mxu0 1.0
  %1098 = vmatpush.msra.mxu0 1.0
  %1099 = vmatpush.msra.mxu0 1.0
  %1100 = vmatpush.msra.mxu0 1.0
  %v1101 = vand.u32 %v836, 4294901760
  %v1102 = vsub.f32 %v836, %v1101
  %v1103 = vand.u32 %v1102, 4294901760
  %1104 = vmatmul.f32.gmra.mxu0 %v1103
  %v1105 = vpop.f32.mrf.mxu0
  %v1106 = vadd.f32 %v1043, %v1105
  %v1107 = vand.u32 %v838, 4294901760
  %v1108 = vsub.f32 %v838, %v1107
  %v1109 = vand.u32 %v1108, 4294901760
  %1110 = vmatmul.f32.gmra.mxu0 %v1109
  %v1111 = vpop.f32.mrf.mxu0
  %v1112 = vadd.f32 %v1048, %v1111
  %v1113 = vand.u32 %v840, 4294901760
  %v1114 = vsub.f32 %v840, %v1113
  %v1115 = vand.u32 %v1114, 4294901760
  %1116 = vmatmul.f32.gmra.mxu0 %v1115
  %v1117 = vpop.f32.mrf.mxu0
  %v1118 = vadd.f32 %v1053, %v1117
  %v1119 = vand.u32 %v842, 4294901760
  %v1120 = vsub.f32 %v842, %v1119
  %v1121 = vand.u32 %v1120, 4294901760
  %1122 = vmatmul.f32.gmra.mxu0 %v1121
  %v1123 = vpop.f32.mrf.mxu0
  %v1124 = vadd.f32 %v1058, %v1123
  %v1125 = vand.u32 %v844, 4294901760
  %v1126 = vsub.f32 %v844, %v1125
  %v1127 = vand.u32 %v1126, 4294901760
  %1128 = vmatmul.f32.gmra.mxu0 %v1127
  %v1129 = vpop.f32.mrf.mxu0
  %v1130 = vadd.f32 %v1063, %v1129
  %v1131 = vand.u32 %v846, 4294901760
  %v1132 = vsub.f32 %v846, %v1131
  %v1133 = vand.u32 %v1132, 4294901760
  %1134 = vmatmul.f32.gmra.mxu0 %v1133
  %v1135 = vpop.f32.mrf.mxu0
  %v1136 = vadd.f32 %v1068, %v1135
  %v1137 = vand.u32 %v848, 4294901760
  %v1138 = vsub.f32 %v848, %v1137
  %v1139 = vand.u32 %v1138, 4294901760
  %1140 = vmatmul.f32.gmra.mxu0 %v1139
  %v1141 = vpop.f32.mrf.mxu0
  %v1142 = vadd.f32 %v1073, %v1141
  %v1143 = vand.u32 %v850, 4294901760
  %v1144 = vsub.f32 %v850, %v1143
  %v1145 = vand.u32 %v1144, 4294901760
  %1146 = vmatmul.f32.gmra.mxu0 %v1145
  %v1147 = vpop.f32.mrf.mxu0
  %v1148 = vadd.f32 %v1078, %v1147
  %v1149 = vand.u32 %v852, 4294901760
  %v1150 = vsub.f32 %v852, %v1149
  %v1151 = vand.u32 %v1150, 4294901760
  %1152 = vmatmul.f32.gmra.mxu0 %v1151
  %v1153 = vpop.f32.mrf.mxu0
  %v1154 = vadd.f32 %v1083, %v1153
  %1155 = vdwg.mxu0
  %1156 = vmatpush.msra.mxu0 0.0
  %1157 = vmatpush.msra.mxu0 0.0
  %1158 = vmatpush.msra.mxu0 0.0
  %1159 = vmatpush.msra.mxu0 0.0
  %1160 = vmatpush.msra.mxu0 0.0
  %1161 = vmatpush.msra.mxu0 0.0
  %1162 = vmatpush.msra.mxu0 0.0
  %1163 = vmatpush.msra.mxu0 0.0
  %1164 = vmatpush.msra.mxu0 0.0
  %1165 = vmatpush.msra.mxu0 0.0
  %1166 = vmatpush.msra.mxu0 0.0
  %1167 = vmatpush.msra.mxu0 0.0
  %1168 = vmatpush.msra.mxu0 0.0
  %1169 = vmatpush.msra.mxu0 0.0
  %1170 = vmatpush.msra.mxu0 0.0
  %1171 = vmatpush.msra.mxu0 0.0
  %v1172 = vand.u32 %v836, 4294901760
  %1173 = vmatmul.f32.gmra.mxu0 %v1172
  %v1174 = vpop.f32.mrf.mxu0
  %v1175 = vadd.f32 %v1106, %v1174
  %v1176 = vand.u32 %v838, 4294901760
  %1177 = vmatmul.f32.gmra.mxu0 %v1176
  %v1178 = vpop.f32.mrf.mxu0
  %v1179 = vadd.f32 %v1112, %v1178
  %v1180 = vand.u32 %v840, 4294901760
  %1181 = vmatmul.f32.gmra.mxu0 %v1180
  %v1182 = vpop.f32.mrf.mxu0
  %v1183 = vadd.f32 %v1118, %v1182
  %v1184 = vand.u32 %v842, 4294901760
  %1185 = vmatmul.f32.gmra.mxu0 %v1184
  %v1186 = vpop.f32.mrf.mxu0
  %v1187 = vadd.f32 %v1124, %v1186
  %v1188 = vand.u32 %v844, 4294901760
  %1189 = vmatmul.f32.gmra.mxu0 %v1188
  %v1190 = vpop.f32.mrf.mxu0
  %v1191 = vadd.f32 %v1130, %v1190
  %v1192 = vand.u32 %v846, 4294901760
  %1193 = vmatmul.f32.gmra.mxu0 %v1192
  %v1194 = vpop.f32.mrf.mxu0
  %v1195 = vadd.f32 %v1136, %v1194
  %v1196 = vand.u32 %v848, 4294901760
  %1197 = vmatmul.f32.gmra.mxu0 %v1196
  %v1198 = vpop.f32.mrf.mxu0
  %v1199 = vadd.f32 %v1142, %v1198
  %v1200 = vand.u32 %v850, 4294901760
  %1201 = vmatmul.f32.gmra.mxu0 %v1200
  %v1202 = vpop.f32.mrf.mxu0
  %v1203 = vadd.f32 %v1148, %v1202
  %v1204 = vand.u32 %v852, 4294901760
  %1205 = vmatmul.f32.gmra.mxu0 %v1204
  %v1206 = vpop.f32.mrf.mxu0
  %v1207 = vadd.f32 %v1154, %v1206
  %1208 = vdwg.mxu0
  %1209 = vmatpush.msra.mxu0 1.0
  %1210 = vmatpush.msra.mxu0 1.0
  %1211 = vmatpush.msra.mxu0 1.0
  %1212 = vmatpush.msra.mxu0 1.0
  %1213 = vmatpush.msra.mxu0 1.0
  %1214 = vmatpush.msra.mxu0 1.0
  %1215 = vmatpush.msra.mxu0 1.0
  %1216 = vmatpush.msra.mxu0 1.0
  %1217 = vmatpush.msra.mxu0 1.0
  %1218 = vmatpush.msra.mxu0 1.0
  %1219 = vmatpush.msra.mxu0 1.0
  %1220 = vmatpush.msra.mxu0 1.0
  %1221 = vmatpush.msra.mxu0 1.0
  %1222 = vmatpush.msra.mxu0 1.0
  %1223 = vmatpush.msra.mxu0 1.0
  %1224 = vmatpush.msra.mxu0 1.0
  %v1225 = vand.u32 %v836, 4294901760
  %1226 = vmatmul.f32.gmra.mxu0 %v1225
  %v1227 = vpop.f32.mrf.mxu0
  %v1228 = vadd.f32 %v1175, %v1227
  %v1229 = vand.u32 %v838, 4294901760
  %1230 = vmatmul.f32.gmra.mxu0 %v1229
  %v1231 = vpop.f32.mrf.mxu0
  %v1232 = vadd.f32 %v1179, %v1231
  %v1233 = vand.u32 %v840, 4294901760
  %1234 = vmatmul.f32.gmra.mxu0 %v1233
  %v1235 = vpop.f32.mrf.mxu0
  %v1236 = vadd.f32 %v1183, %v1235
  %v1237 = vand.u32 %v842, 4294901760
  %1238 = vmatmul.f32.gmra.mxu0 %v1237
  %v1239 = vpop.f32.mrf.mxu0
  %v1240 = vadd.f32 %v1187, %v1239
  %v1241 = vand.u32 %v844, 4294901760
  %1242 = vmatmul.f32.gmra.mxu0 %v1241
  %v1243 = vpop.f32.mrf.mxu0
  %v1244 = vadd.f32 %v1191, %v1243
  %v1245 = vand.u32 %v846, 4294901760
  %1246 = vmatmul.f32.gmra.mxu0 %v1245
  %v1247 = vpop.f32.mrf.mxu0
  %v1248 = vadd.f32 %v1195, %v1247
  %v1249 = vand.u32 %v848, 4294901760
  %1250 = vmatmul.f32.gmra.mxu0 %v1249
  %v1251 = vpop.f32.mrf.mxu0
  %v1252 = vadd.f32 %v1199, %v1251
  %v1253 = vand.u32 %v850, 4294901760
  %1254 = vmatmul.f32.gmra.mxu0 %v1253
  %v1255 = vpop.f32.mrf.mxu0
  %v1256 = vadd.f32 %v1203, %v1255
  %v1257 = vand.u32 %v852, 4294901760
  %1258 = vmatmul.f32.gmra.mxu0 %v1257
  %v1259 = vpop.f32.mrf.mxu0
  %v1260 = vadd.f32 %v1207, %v1259
  %1261 = vdwg.mxu0
  %1262 = vmatpush.msra.mxu0 0.0
  %1263 = vmatpush.msra.mxu0 0.0
  %1264 = vmatpush.msra.mxu0 0.0
  %1265 = vmatpush.msra.mxu0 0.0
  %1266 = vmatpush.msra.mxu0 0.0
  %1267 = vmatpush.msra.mxu0 0.0
  %1268 = vmatpush.msra.mxu0 0.0
  %v1269 = vand.u32 %v59, 4294901760
  %1270 = vmatpush.msra.mxu0 %v1269
  %1271 = vmatpush.msra.mxu0 1.0
  %1272 = vmatpush.msra.mxu0 1.0
  %1273 = vmatpush.msra.mxu0 1.0
  %1274 = vmatpush.msra.mxu0 1.0
  %1275 = vmatpush.msra.mxu0 1.0
  %1276 = vmatpush.msra.mxu0 1.0
  %1277 = vmatpush.msra.mxu0 1.0
  %1278 = vmatpush.msra.mxu0 1.0
  %v1279 = vand.u32 %v855, 4294901760
  %v1280 = vsub.f32 %v855, %v1279
  %v1281 = vand.u32 %v1280, 4294901760
  %v1282 = vsub.f32 %v1280, %v1281
  %v1283 = vand.u32 %v1282, 4294901760
  %1284 = vmatmul.f32.gmra.mxu0 %v1283
  %v1285 = vpop.f32.mrf.mxu0
  %v1286 = vadd.f32 %v1228, %v1285
  %v1287 = vand.u32 %v858, 4294901760
  %v1288 = vsub.f32 %v858, %v1287
  %v1289 = vand.u32 %v1288, 4294901760
  %v1290 = vsub.f32 %v1288, %v1289
  %v1291 = vand.u32 %v1290, 4294901760
  %1292 = vmatmul.f32.gmra.mxu0 %v1291
  %v1293 = vpop.f32.mrf.mxu0
  %v1294 = vadd.f32 %v1232, %v1293
  %v1295 = vand.u32 %v861, 4294901760
  %v1296 = vsub.f32 %v861, %v1295
  %v1297 = vand.u32 %v1296, 4294901760
  %v1298 = vsub.f32 %v1296, %v1297
  %v1299 = vand.u32 %v1298, 4294901760
  %1300 = vmatmul.f32.gmra.mxu0 %v1299
  %v1301 = vpop.f32.mrf.mxu0
  %v1302 = vadd.f32 %v1236, %v1301
  %v1303 = vand.u32 %v864, 4294901760
  %v1304 = vsub.f32 %v864, %v1303
  %v1305 = vand.u32 %v1304, 4294901760
  %v1306 = vsub.f32 %v1304, %v1305
  %v1307 = vand.u32 %v1306, 4294901760
  %1308 = vmatmul.f32.gmra.mxu0 %v1307
  %v1309 = vpop.f32.mrf.mxu0
  %v1310 = vadd.f32 %v1240, %v1309
  %v1311 = vand.u32 %v867, 4294901760
  %v1312 = vsub.f32 %v867, %v1311
  %v1313 = vand.u32 %v1312, 4294901760
  %v1314 = vsub.f32 %v1312, %v1313
  %v1315 = vand.u32 %v1314, 4294901760
  %1316 = vmatmul.f32.gmra.mxu0 %v1315
  %v1317 = vpop.f32.mrf.mxu0
  %v1318 = vadd.f32 %v1244, %v1317
  %v1319 = vand.u32 %v870, 4294901760
  %v1320 = vsub.f32 %v870, %v1319
  %v1321 = vand.u32 %v1320, 4294901760
  %v1322 = vsub.f32 %v1320, %v1321
  %v1323 = vand.u32 %v1322, 4294901760
  %1324 = vmatmul.f32.gmra.mxu0 %v1323
  %v1325 = vpop.f32.mrf.mxu0
  %v1326 = vadd.f32 %v1248, %v1325
  %v1327 = vand.u32 %v873, 4294901760
  %v1328 = vsub.f32 %v873, %v1327
  %v1329 = vand.u32 %v1328, 4294901760
  %v1330 = vsub.f32 %v1328, %v1329
  %v1331 = vand.u32 %v1330, 4294901760
  %1332 = vmatmul.f32.gmra.mxu0 %v1331
  %v1333 = vpop.f32.mrf.mxu0
  %v1334 = vadd.f32 %v1252, %v1333
  %v1335 = vand.u32 %v876, 4294901760
  %v1336 = vsub.f32 %v876, %v1335
  %v1337 = vand.u32 %v1336, 4294901760
  %v1338 = vsub.f32 %v1336, %v1337
  %v1339 = vand.u32 %v1338, 4294901760
  %1340 = vmatmul.f32.gmra.mxu0 %v1339
  %v1341 = vpop.f32.mrf.mxu0
  %v1342 = vadd.f32 %v1256, %v1341
  %v1343 = vand.u32 %v879, 4294901760
  %v1344 = vsub.f32 %v879, %v1343
  %v1345 = vand.u32 %v1344, 4294901760
  %v1346 = vsub.f32 %v1344, %v1345
  %v1347 = vand.u32 %v1346, 4294901760
  %1348 = vmatmul.f32.gmra.mxu0 %v1347
  %v1349 = vpop.f32.mrf.mxu0
  %v1350 = vadd.f32 %v1260, %v1349
  %1351 = vdwg.mxu0
  %1352 = vmatpush.msra.mxu0 0.0
  %1353 = vmatpush.msra.mxu0 0.0
  %1354 = vmatpush.msra.mxu0 0.0
  %1355 = vmatpush.msra.mxu0 0.0
  %1356 = vmatpush.msra.mxu0 0.0
  %1357 = vmatpush.msra.mxu0 0.0
  %1358 = vmatpush.msra.mxu0 0.0
  %v1359 = vand.u32 %v59, 4294901760
  %v1360 = vsub.f32 %v59, %v1359
  %v1361 = vand.u32 %v1360, 4294901760
  %v1362 = vsub.f32 %v1360, %v1361
  %v1363 = vand.u32 %v1362, 4294901760
  %1364 = vmatpush.msra.mxu0 %v1363
  %1365 = vmatpush.msra.mxu0 0.0
  %1366 = vmatpush.msra.mxu0 0.0
  %1367 = vmatpush.msra.mxu0 0.0
  %1368 = vmatpush.msra.mxu0 0.0
  %1369 = vmatpush.msra.mxu0 0.0
  %1370 = vmatpush.msra.mxu0 0.0
  %1371 = vmatpush.msra.mxu0 0.0
  %1372 = vmatpush.msra.mxu0 0.0
  %v1373 = vand.u32 %v855, 4294901760
  %1374 = vmatmul.f32.gmra.mxu0 %v1373
  %v1375 = vpop.f32.mrf.mxu0
  %v1376 = vadd.f32 %v1286, %v1375
  %v1377 = vand.u32 %v858, 4294901760
  %1378 = vmatmul.f32.gmra.mxu0 %v1377
  %v1379 = vpop.f32.mrf.mxu0
  %v1380 = vadd.f32 %v1294, %v1379
  %v1381 = vand.u32 %v861, 4294901760
  %1382 = vmatmul.f32.gmra.mxu0 %v1381
  %v1383 = vpop.f32.mrf.mxu0
  %v1384 = vadd.f32 %v1302, %v1383
  %v1385 = vand.u32 %v864, 4294901760
  %1386 = vmatmul.f32.gmra.mxu0 %v1385
  %v1387 = vpop.f32.mrf.mxu0
  %v1388 = vadd.f32 %v1310, %v1387
  %v1389 = vand.u32 %v867, 4294901760
  %1390 = vmatmul.f32.gmra.mxu0 %v1389
  %v1391 = vpop.f32.mrf.mxu0
  %v1392 = vadd.f32 %v1318, %v1391
  %v1393 = vand.u32 %v870, 4294901760
  %1394 = vmatmul.f32.gmra.mxu0 %v1393
  %v1395 = vpop.f32.mrf.mxu0
  %v1396 = vadd.f32 %v1326, %v1395
  %v1397 = vand.u32 %v873, 4294901760
  %1398 = vmatmul.f32.gmra.mxu0 %v1397
  %v1399 = vpop.f32.mrf.mxu0
  %v1400 = vadd.f32 %v1334, %v1399
  %v1401 = vand.u32 %v876, 4294901760
  %1402 = vmatmul.f32.gmra.mxu0 %v1401
  %v1403 = vpop.f32.mrf.mxu0
  %v1404 = vadd.f32 %v1342, %v1403
  %v1405 = vand.u32 %v879, 4294901760
  %1406 = vmatmul.f32.gmra.mxu0 %v1405
  %v1407 = vpop.f32.mrf.mxu0
  %v1408 = vadd.f32 %v1350, %v1407
  %1409 = vdwg.mxu0
  %1410 = vmatpush.msra.mxu0 0.0
  %1411 = vmatpush.msra.mxu0 0.0
  %1412 = vmatpush.msra.mxu0 0.0
  %1413 = vmatpush.msra.mxu0 0.0
  %1414 = vmatpush.msra.mxu0 0.0
  %1415 = vmatpush.msra.mxu0 0.0
  %1416 = vmatpush.msra.mxu0 0.0
  %v1417 = vand.u32 %v59, 4294901760
  %v1418 = vsub.f32 %v59, %v1417
  %1419 = vmatpush.msra.mxu0 %v1418
  %1420 = vmatpush.msra.mxu0 0.0
  %1421 = vmatpush.msra.mxu0 0.0
  %1422 = vmatpush.msra.mxu0 0.0
  %1423 = vmatpush.msra.mxu0 0.0
  %1424 = vmatpush.msra.mxu0 0.0
  %1425 = vmatpush.msra.mxu0 0.0
  %1426 = vmatpush.msra.mxu0 0.0
  %1427 = vmatpush.msra.mxu0 0.0
  %v1428 = vand.u32 %v855, 4294901760
  %v1429 = vsub.f32 %v855, %v1428
  %1430 = vmatmul.f32.gmra.mxu0 %v1429
  %v1431 = vpop.f32.mrf.mxu0
  %v1432 = vadd.f32 %v1376, %v1431
  %v1433 = vand.u32 %v858, 4294901760
  %v1434 = vsub.f32 %v858, %v1433
  %1435 = vmatmul.f32.gmra.mxu0 %v1434
  %v1436 = vpop.f32.mrf.mxu0
  %v1437 = vadd.f32 %v1380, %v1436
  %v1438 = vand.u32 %v861, 4294901760
  %v1439 = vsub.f32 %v861, %v1438
  %1440 = vmatmul.f32.gmra.mxu0 %v1439
  %v1441 = vpop.f32.mrf.mxu0
  %v1442 = vadd.f32 %v1384, %v1441
  %v1443 = vand.u32 %v864, 4294901760
  %v1444 = vsub.f32 %v864, %v1443
  %1445 = vmatmul.f32.gmra.mxu0 %v1444
  %v1446 = vpop.f32.mrf.mxu0
  %v1447 = vadd.f32 %v1388, %v1446
  %v1448 = vand.u32 %v867, 4294901760
  %v1449 = vsub.f32 %v867, %v1448
  %1450 = vmatmul.f32.gmra.mxu0 %v1449
  %v1451 = vpop.f32.mrf.mxu0
  %v1452 = vadd.f32 %v1392, %v1451
  %v1453 = vand.u32 %v870, 4294901760
  %v1454 = vsub.f32 %v870, %v1453
  %1455 = vmatmul.f32.gmra.mxu0 %v1454
  %v1456 = vpop.f32.mrf.mxu0
  %v1457 = vadd.f32 %v1396, %v1456
  %v1458 = vand.u32 %v873, 4294901760
  %v1459 = vsub.f32 %v873, %v1458
  %1460 = vmatmul.f32.gmra.mxu0 %v1459
  %v1461 = vpop.f32.mrf.mxu0
  %v1462 = vadd.f32 %v1400, %v1461
  %v1463 = vand.u32 %v876, 4294901760
  %v1464 = vsub.f32 %v876, %v1463
  %1465 = vmatmul.f32.gmra.mxu0 %v1464
  %v1466 = vpop.f32.mrf.mxu0
  %v1467 = vadd.f32 %v1404, %v1466
  %v1468 = vand.u32 %v879, 4294901760
  %v1469 = vsub.f32 %v879, %v1468
  %1470 = vmatmul.f32.gmra.mxu0 %v1469
  %v1471 = vpop.f32.mrf.mxu0
  %v1472 = vadd.f32 %v1408, %v1471
  %1473 = vdwg.mxu0
  %1474 = vmatpush.msra.mxu0 0.0
  %1475 = vmatpush.msra.mxu0 0.0
  %1476 = vmatpush.msra.mxu0 0.0
  %1477 = vmatpush.msra.mxu0 0.0
  %1478 = vmatpush.msra.mxu0 0.0
  %1479 = vmatpush.msra.mxu0 0.0
  %1480 = vmatpush.msra.mxu0 0.0
  %v1481 = vand.u32 %v59, 4294901760
  %1482 = vmatpush.msra.mxu0 %v1481
  %1483 = vmatpush.msra.mxu0 1.0
  %1484 = vmatpush.msra.mxu0 1.0
  %1485 = vmatpush.msra.mxu0 1.0
  %1486 = vmatpush.msra.mxu0 1.0
  %1487 = vmatpush.msra.mxu0 1.0
  %1488 = vmatpush.msra.mxu0 1.0
  %1489 = vmatpush.msra.mxu0 1.0
  %1490 = vmatpush.msra.mxu0 1.0
  %v1491 = vand.u32 %v855, 4294901760
  %v1492 = vsub.f32 %v855, %v1491
  %v1493 = vand.u32 %v1492, 4294901760
  %1494 = vmatmul.f32.gmra.mxu0 %v1493
  %v1495 = vpop.f32.mrf.mxu0
  %v1496 = vadd.f32 %v1432, %v1495
  %v1497 = vand.u32 %v858, 4294901760
  %v1498 = vsub.f32 %v858, %v1497
  %v1499 = vand.u32 %v1498, 4294901760
  %1500 = vmatmul.f32.gmra.mxu0 %v1499
  %v1501 = vpop.f32.mrf.mxu0
  %v1502 = vadd.f32 %v1437, %v1501
  %v1503 = vand.u32 %v861, 4294901760
  %v1504 = vsub.f32 %v861, %v1503
  %v1505 = vand.u32 %v1504, 4294901760
  %1506 = vmatmul.f32.gmra.mxu0 %v1505
  %v1507 = vpop.f32.mrf.mxu0
  %v1508 = vadd.f32 %v1442, %v1507
  %v1509 = vand.u32 %v864, 4294901760
  %v1510 = vsub.f32 %v864, %v1509
  %v1511 = vand.u32 %v1510, 4294901760
  %1512 = vmatmul.f32.gmra.mxu0 %v1511
  %v1513 = vpop.f32.mrf.mxu0
  %v1514 = vadd.f32 %v1447, %v1513
  %v1515 = vand.u32 %v867, 4294901760
  %v1516 = vsub.f32 %v867, %v1515
  %v1517 = vand.u32 %v1516, 4294901760
  %1518 = vmatmul.f32.gmra.mxu0 %v1517
  %v1519 = vpop.f32.mrf.mxu0
  %v1520 = vadd.f32 %v1452, %v1519
  %v1521 = vand.u32 %v870, 4294901760
  %v1522 = vsub.f32 %v870, %v1521
  %v1523 = vand.u32 %v1522, 4294901760
  %1524 = vmatmul.f32.gmra.mxu0 %v1523
  %v1525 = vpop.f32.mrf.mxu0
  %v1526 = vadd.f32 %v1457, %v1525
  %v1527 = vand.u32 %v873, 4294901760
  %v1528 = vsub.f32 %v873, %v1527
  %v1529 = vand.u32 %v1528, 4294901760
  %1530 = vmatmul.f32.gmra.mxu0 %v1529
  %v1531 = vpop.f32.mrf.mxu0
  %v1532 = vadd.f32 %v1462, %v1531
  %v1533 = vand.u32 %v876, 4294901760
  %v1534 = vsub.f32 %v876, %v1533
  %v1535 = vand.u32 %v1534, 4294901760
  %1536 = vmatmul.f32.gmra.mxu0 %v1535
  %v1537 = vpop.f32.mrf.mxu0
  %v1538 = vadd.f32 %v1467, %v1537
  %v1539 = vand.u32 %v879, 4294901760
  %v1540 = vsub.f32 %v879, %v1539
  %v1541 = vand.u32 %v1540, 4294901760
  %1542 = vmatmul.f32.gmra.mxu0 %v1541
  %v1543 = vpop.f32.mrf.mxu0
  %v1544 = vadd.f32 %v1472, %v1543
  %1545 = vdwg.mxu0
  %1546 = vmatpush.msra.mxu0 0.0
  %1547 = vmatpush.msra.mxu0 0.0
  %1548 = vmatpush.msra.mxu0 0.0
  %1549 = vmatpush.msra.mxu0 0.0
  %1550 = vmatpush.msra.mxu0 0.0
  %1551 = vmatpush.msra.mxu0 0.0
  %1552 = vmatpush.msra.mxu0 0.0
  %v1553 = vand.u32 %v59, 4294901760
  %v1554 = vsub.f32 %v59, %v1553
  %v1555 = vand.u32 %v1554, 4294901760
  %1556 = vmatpush.msra.mxu0 %v1555
  %1557 = vmatpush.msra.mxu0 0.0
  %1558 = vmatpush.msra.mxu0 0.0
  %1559 = vmatpush.msra.mxu0 0.0
  %1560 = vmatpush.msra.mxu0 0.0
  %1561 = vmatpush.msra.mxu0 0.0
  %1562 = vmatpush.msra.mxu0 0.0
  %1563 = vmatpush.msra.mxu0 0.0
  %1564 = vmatpush.msra.mxu0 0.0
  %v1565 = vand.u32 %v855, 4294901760
  %1566 = vmatmul.f32.gmra.mxu0 %v1565
  %v1567 = vpop.f32.mrf.mxu0
  %v1568 = vadd.f32 %v1496, %v1567
  %v1569 = vand.u32 %v858, 4294901760
  %1570 = vmatmul.f32.gmra.mxu0 %v1569
  %v1571 = vpop.f32.mrf.mxu0
  %v1572 = vadd.f32 %v1502, %v1571
  %v1573 = vand.u32 %v861, 4294901760
  %1574 = vmatmul.f32.gmra.mxu0 %v1573
  %v1575 = vpop.f32.mrf.mxu0
  %v1576 = vadd.f32 %v1508, %v1575
  %v1577 = vand.u32 %v864, 4294901760
  %1578 = vmatmul.f32.gmra.mxu0 %v1577
  %v1579 = vpop.f32.mrf.mxu0
  %v1580 = vadd.f32 %v1514, %v1579
  %v1581 = vand.u32 %v867, 4294901760
  %1582 = vmatmul.f32.gmra.mxu0 %v1581
  %v1583 = vpop.f32.mrf.mxu0
  %v1584 = vadd.f32 %v1520, %v1583
  %v1585 = vand.u32 %v870, 4294901760
  %1586 = vmatmul.f32.gmra.mxu0 %v1585
  %v1587 = vpop.f32.mrf.mxu0
  %v1588 = vadd.f32 %v1526, %v1587
  %v1589 = vand.u32 %v873, 4294901760
  %1590 = vmatmul.f32.gmra.mxu0 %v1589
  %v1591 = vpop.f32.mrf.mxu0
  %v1592 = vadd.f32 %v1532, %v1591
  %v1593 = vand.u32 %v876, 4294901760
  %1594 = vmatmul.f32.gmra.mxu0 %v1593
  %v1595 = vpop.f32.mrf.mxu0
  %v1596 = vadd.f32 %v1538, %v1595
  %v1597 = vand.u32 %v879, 4294901760
  %1598 = vmatmul.f32.gmra.mxu0 %v1597
  %v1599 = vpop.f32.mrf.mxu0
  %v1600 = vadd.f32 %v1544, %v1599
  %1601 = vdwg.mxu0
  %1602 = vmatpush.msra.mxu0 0.0
  %1603 = vmatpush.msra.mxu0 0.0
  %1604 = vmatpush.msra.mxu0 0.0
  %1605 = vmatpush.msra.mxu0 0.0
  %1606 = vmatpush.msra.mxu0 0.0
  %1607 = vmatpush.msra.mxu0 0.0
  %1608 = vmatpush.msra.mxu0 0.0
  %v1609 = vand.u32 %v59, 4294901760
  %1610 = vmatpush.msra.mxu0 %v1609
  %1611 = vmatpush.msra.mxu0 1.0
  %1612 = vmatpush.msra.mxu0 1.0
  %1613 = vmatpush.msra.mxu0 1.0
  %1614 = vmatpush.msra.mxu0 1.0
  %1615 = vmatpush.msra.mxu0 1.0
  %1616 = vmatpush.msra.mxu0 1.0
  %1617 = vmatpush.msra.mxu0 1.0
  %1618 = vmatpush.msra.mxu0 1.0
  %v1619 = vand.u32 %v855, 4294901760
  %1620 = vmatmul.f32.gmra.mxu0 %v1619
  %v1621 = vpop.f32.mrf.mxu0
  %v1622 = vadd.f32 %v1568, %v1621
  %v1623 = vand.u32 %v858, 4294901760
  %1624 = vmatmul.f32.gmra.mxu0 %v1623
  %v1625 = vpop.f32.mrf.mxu0
  %v1626 = vadd.f32 %v1572, %v1625
  %v1627 = vand.u32 %v861, 4294901760
  %1628 = vmatmul.f32.gmra.mxu0 %v1627
  %v1629 = vpop.f32.mrf.mxu0
  %v1630 = vadd.f32 %v1576, %v1629
  %v1631 = vand.u32 %v864, 4294901760
  %1632 = vmatmul.f32.gmra.mxu0 %v1631
  %v1633 = vpop.f32.mrf.mxu0
  %v1634 = vadd.f32 %v1580, %v1633
  %v1635 = vand.u32 %v867, 4294901760
  %1636 = vmatmul.f32.gmra.mxu0 %v1635
  %v1637 = vpop.f32.mrf.mxu0
  %v1638 = vadd.f32 %v1584, %v1637
  %v1639 = vand.u32 %v870, 4294901760
  %1640 = vmatmul.f32.gmra.mxu0 %v1639
  %v1641 = vpop.f32.mrf.mxu0
  %v1642 = vadd.f32 %v1588, %v1641
  %v1643 = vand.u32 %v873, 4294901760
  %1644 = vmatmul.f32.gmra.mxu0 %v1643
  %v1645 = vpop.f32.mrf.mxu0
  %v1646 = vadd.f32 %v1592, %v1645
  %v1647 = vand.u32 %v876, 4294901760
  %1648 = vmatmul.f32.gmra.mxu0 %v1647
  %v1649 = vpop.f32.mrf.mxu0
  %v1650 = vadd.f32 %v1596, %v1649
  %v1651 = vand.u32 %v879, 4294901760
  %1652 = vmatmul.f32.gmra.mxu0 %v1651
  %v1653 = vpop.f32.mrf.mxu0
  %v1654 = vadd.f32 %v1600, %v1653
  %1655 = vdwg.mxu0
  %v1656 = vmul.f32 %v802, 0.0051020407
  %v1657 = vmul.f32 %v806, 0.0051020407
  %v1658 = vmul.f32 %v810, 0.0051020407
  %v1659 = vmul.f32 %v814, 0.0051020407
  %v1660 = vmul.f32 %v818, 0.0051020407
  %v1661 = vmul.f32 %v822, 0.0051020407
  %v1662 = vmul.f32 %v826, 0.0051020407
  %v1663 = vmul.f32 %v830, 0.0051020407
  %v1664 = vmul.f32 %v834, 0.0051020407
  %v1665 = vmul.f32 %v1622, 0.0051020407
  %v1666 = vmul.f32 %v1626, 0.0051020407
  %v1667 = vmul.f32 %v1630, 0.0051020407
  %v1668 = vmul.f32 %v1634, 0.0051020407
  %v1669 = vmul.f32 %v1638, 0.0051020407
  %v1670 = vmul.f32 %v1642, 0.0051020407
  %v1671 = vmul.f32 %v1646, 0.0051020407
  %v1672 = vmul.f32 %v1650, 0.0051020407
  %v1673 = vmul.f32 %v1654, 0.0051020407
  %v1674 = vmul.f32 %v1656, %v1656
  %v1675 = vmul.f32 %v1657, %v1657
  %v1676 = vmul.f32 %v1658, %v1658
  %v1677 = vmul.f32 %v1659, %v1659
  %v1678 = vmul.f32 %v1660, %v1660
  %v1679 = vmul.f32 %v1661, %v1661
  %v1680 = vmul.f32 %v1662, %v1662
  %v1681 = vmul.f32 %v1663, %v1663
  %v1682 = vmul.f32 %v1664, %v1664
  %v1683 = vsub.f32 %v1665, %v1674
  %v1684 = vsub.f32 %v1666, %v1675
  %v1685 = vsub.f32 %v1667, %v1676
  %v1686 = vsub.f32 %v1668, %v1677
  %v1687 = vsub.f32 %v1669, %v1678
  %v1688 = vsub.f32 %v1670, %v1679
  %v1689 = vsub.f32 %v1671, %v1680
  %v1690 = vsub.f32 %v1672, %v1681
  %v1691 = vsub.f32 %v1673, %v1682
  %v1692 = vmax.f32 %v1683, 0.0
  %v1693 = vmax.f32 %v1684, 0.0
  %v1694 = vmax.f32 %v1685, 0.0
  %v1695 = vmax.f32 %v1686, 0.0
  %v1696 = vmax.f32 %v1687, 0.0
  %v1697 = vmax.f32 %v1688, 0.0
  %v1698 = vmax.f32 %v1689, 0.0
  %v1699 = vmax.f32 %v1690, 0.0
  %v1700 = vmax.f32 %v1691, 0.0
  %v1701 = vadd.f32 %v1692, 1e-05
  %v1702 = vadd.f32 %v1693, 1e-05
  %v1703 = vadd.f32 %v1694, 1e-05
  %v1704 = vadd.f32 %v1695, 1e-05
  %v1705 = vadd.f32 %v1696, 1e-05
  %v1706 = vadd.f32 %v1697, 1e-05
  %v1707 = vadd.f32 %v1698, 1e-05
  %v1708 = vadd.f32 %v1699, 1e-05
  %v1709 = vadd.f32 %v1700, 1e-05
  %v1710 = vrsqrt.pop %v1701
  %v1711 = vmul.f32 %v1710, %v1701
  %v1712 = vmul.f32 %v1711, %v1710
  %v1713 = vmul.f32 0.5, %v1712
  %v1714 = vsub.f32 1.5, %v1713
  %v1715 = vmul.f32 %v1710, %v1714
  %vm1716 = vweird.f32 %v1701
  %vm1717 = vweird.f32 %v1710
  %vm1718 = vmor %vm1716, %vm1717
  %v1719 = vsel %vm1718, %v1710, %v1715
  %v1720 = vrsqrt.pop %v1702
  %v1721 = vmul.f32 %v1720, %v1702
  %v1722 = vmul.f32 %v1721, %v1720
  %v1723 = vmul.f32 0.5, %v1722
  %v1724 = vsub.f32 1.5, %v1723
  %v1725 = vmul.f32 %v1720, %v1724
  %vm1726 = vweird.f32 %v1702
  %vm1727 = vweird.f32 %v1720
  %vm1728 = vmor %vm1726, %vm1727
  %v1729 = vsel %vm1728, %v1720, %v1725
  %v1730 = vrsqrt.pop %v1703
  %v1731 = vmul.f32 %v1730, %v1703
  %v1732 = vmul.f32 %v1731, %v1730
  %v1733 = vmul.f32 0.5, %v1732
  %v1734 = vsub.f32 1.5, %v1733
  %v1735 = vmul.f32 %v1730, %v1734
  %vm1736 = vweird.f32 %v1703
  %vm1737 = vweird.f32 %v1730
  %vm1738 = vmor %vm1736, %vm1737
  %v1739 = vsel %vm1738, %v1730, %v1735
  %v1740 = vrsqrt.pop %v1704
  %v1741 = vmul.f32 %v1740, %v1704
  %v1742 = vmul.f32 %v1741, %v1740
  %v1743 = vmul.f32 0.5, %v1742
  %v1744 = vsub.f32 1.5, %v1743
  %v1745 = vmul.f32 %v1740, %v1744
  %vm1746 = vweird.f32 %v1704
  %vm1747 = vweird.f32 %v1740
  %vm1748 = vmor %vm1746, %vm1747
  %v1749 = vsel %vm1748, %v1740, %v1745
  %v1750 = vrsqrt.pop %v1705
  %v1751 = vmul.f32 %v1750, %v1705
  %v1752 = vmul.f32 %v1751, %v1750
  %v1753 = vmul.f32 0.5, %v1752
  %v1754 = vsub.f32 1.5, %v1753
  %v1755 = vmul.f32 %v1750, %v1754
  %vm1756 = vweird.f32 %v1705
  %vm1757 = vweird.f32 %v1750
  %vm1758 = vmor %vm1756, %vm1757
  %v1759 = vsel %vm1758, %v1750, %v1755
  %v1760 = vrsqrt.pop %v1706
  %v1761 = vmul.f32 %v1760, %v1706
  %v1762 = vmul.f32 %v1761, %v1760
  %v1763 = vmul.f32 0.5, %v1762
  %v1764 = vsub.f32 1.5, %v1763
  %v1765 = vmul.f32 %v1760, %v1764
  %vm1766 = vweird.f32 %v1706
  %vm1767 = vweird.f32 %v1760
  %vm1768 = vmor %vm1766, %vm1767
  %v1769 = vsel %vm1768, %v1760, %v1765
  %v1770 = vrsqrt.pop %v1707
  %v1771 = vmul.f32 %v1770, %v1707
  %v1772 = vmul.f32 %v1771, %v1770
  %v1773 = vmul.f32 0.5, %v1772
  %v1774 = vsub.f32 1.5, %v1773
  %v1775 = vmul.f32 %v1770, %v1774
  %vm1776 = vweird.f32 %v1707
  %vm1777 = vweird.f32 %v1770
  %vm1778 = vmor %vm1776, %vm1777
  %v1779 = vsel %vm1778, %v1770, %v1775
  %v1780 = vrsqrt.pop %v1708
  %v1781 = vmul.f32 %v1780, %v1708
  %v1782 = vmul.f32 %v1781, %v1780
  %v1783 = vmul.f32 0.5, %v1782
  %v1784 = vsub.f32 1.5, %v1783
  %v1785 = vmul.f32 %v1780, %v1784
  %vm1786 = vweird.f32 %v1708
  %vm1787 = vweird.f32 %v1780
  %vm1788 = vmor %vm1786, %vm1787
  %v1789 = vsel %vm1788, %v1780, %v1785
  %v1790 = vrsqrt.pop %v1709
  %v1791 = vmul.f32 %v1790, %v1709
  %v1792 = vmul.f32 %v1791, %v1790
  %v1793 = vmul.f32 0.5, %v1792
  %v1794 = vsub.f32 1.5, %v1793
  %v1795 = vmul.f32 %v1790, %v1794
  %vm1796 = vweird.f32 %v1709
  %vm1797 = vweird.f32 %v1790
  %vm1798 = vmor %vm1796, %vm1797
  %v1799 = vsel %vm1798, %v1790, %v1795
  %v1800 = vld [vmem:[%s1] sm:$0xff]
  %v1801 = vld [vmem:[%s1 + $0x8] sm:$0xff]
  %v1802 = vld [vmem:[%s1 + $0x10] sm:$0xff]
  %v1803 = vld [vmem:[%s1 + $0x18] sm:$0xff]
  %v1804 = vld [vmem:[%s1 + $0x20] sm:$0xff]
  %v1805 = vld [vmem:[%s1 + $0x28] sm:$0xff]
  %v1806 = vld [vmem:[%s1 + $0x30] sm:$0xff]
  %v1807 = vld [vmem:[%s1 + $0x38] sm:$0xff]
  %v1808 = vld [vmem:[%s1 + $0x40] sm:$0xff]
  %v1809 = vmul.f32 %v1800, %v1719
  %v1810 = vmul.f32 %v1801, %v1729
  %v1811 = vmul.f32 %v1802, %v1739
  %v1812 = vmul.f32 %v1803, %v1749
  %v1813 = vmul.f32 %v1804, %v1759
  %v1814 = vmul.f32 %v1805, %v1769
  %v1815 = vmul.f32 %v1806, %v1779
  %v1816 = vmul.f32 %v1807, %v1789
  %v1817 = vmul.f32 %v1808, %v1799
  %v1818 = vmul.f32 %v1656, %v1809
  %v1819 = vmul.f32 %v1657, %v1810
  %v1820 = vmul.f32 %v1658, %v1811
  %v1821 = vmul.f32 %v1659, %v1812
  %v1822 = vmul.f32 %v1660, %v1813
  %v1823 = vmul.f32 %v1661, %v1814
  %v1824 = vmul.f32 %v1662, %v1815
  %v1825 = vmul.f32 %v1663, %v1816
  %v1826 = vmul.f32 %v1664, %v1817
  %1836 = vrot.lane.b32.xlu0 %v1818, 1
  %v1837 = vpop.permute.xlu0 %1836
  %1838 = vrot.lane.b32.xlu0 %v1819, 1
  %v1839 = vpop.permute.xlu0 %1838
  %1840 = vrot.lane.b32.xlu0 %v1820, 1
  %v1841 = vpop.permute.xlu0 %1840
  %1842 = vrot.lane.b32.xlu0 %v1821, 1
  %v1843 = vpop.permute.xlu0 %1842
  %1844 = vrot.lane.b32.xlu0 %v1822, 1
  %v1845 = vpop.permute.xlu0 %1844
  %1846 = vrot.lane.b32.xlu0 %v1823, 1
  %v1847 = vpop.permute.xlu0 %1846
  %1848 = vrot.lane.b32.xlu0 %v1824, 1
  %v1849 = vpop.permute.xlu0 %1848
  %1850 = vrot.lane.b32.xlu0 %v1825, 1
  %v1851 = vpop.permute.xlu0 %1850
  %1852 = vrot.lane.b32.xlu0 %v1826, 1
  %v1853 = vpop.permute.xlu0 %1852
  %v1863 = vsub.f32 %v1800, %v1837
  %v1864 = vsub.f32 %v1801, %v1839
  %v1865 = vsub.f32 %v1802, %v1841
  %v1866 = vsub.f32 %v1803, %v1843
  %v1867 = vsub.f32 %v1804, %v1845
  %v1868 = vsub.f32 %v1805, %v1847
  %v1869 = vsub.f32 %v1806, %v1849
  %v1870 = vsub.f32 %v1807, %v1851
  %v1871 = vsub.f32 %v1808, %v1853
  %1873 = vset.pattern.permute.xlu0 0
  %1874 = vperm.xlu0 %1873, %v1809
  %v1875 = vpop.permute.xlu0 %1874
  %1878 = vset.pattern.permute.xlu0 0
  %1879 = vperm.xlu0 %1878, %v1810
  %v1880 = vpop.permute.xlu0 %1879
  %1883 = vset.pattern.permute.xlu0 0
  %1884 = vperm.xlu0 %1883, %v1811
  %v1885 = vpop.permute.xlu0 %1884
  %1888 = vset.pattern.permute.xlu0 0
  %1889 = vperm.xlu0 %1888, %v1812
  %v1890 = vpop.permute.xlu0 %1889
  %1893 = vset.pattern.permute.xlu0 0
  %1894 = vperm.xlu0 %1893, %v1813
  %v1895 = vpop.permute.xlu0 %1894
  %1898 = vset.pattern.permute.xlu0 0
  %1899 = vperm.xlu0 %1898, %v1814
  %v1900 = vpop.permute.xlu0 %1899
  %1903 = vset.pattern.permute.xlu0 0
  %1904 = vperm.xlu0 %1903, %v1815
  %v1905 = vpop.permute.xlu0 %1904
  %1908 = vset.pattern.permute.xlu0 0
  %1909 = vperm.xlu0 %1908, %v1816
  %v1910 = vpop.permute.xlu0 %1909
  %1913 = vset.pattern.permute.xlu0 0
  %1914 = vperm.xlu0 %1913, %v1817
  %v1915 = vpop.permute.xlu0 %1914
  %v1917 = vmul.f32 %v11, %v1875
  %v1918 = vmul.f32 %v12, %v1875
  %v1919 = vmul.f32 %v13, %v1880
  %v1920 = vmul.f32 %v14, %v1880
  %v1921 = vmul.f32 %v15, %v1885
  %v1922 = vmul.f32 %v16, %v1885
  %v1923 = vmul.f32 %v17, %v1890
  %v1924 = vmul.f32 %v18, %v1890
  %v1925 = vmul.f32 %v19, %v1895
  %v1926 = vmul.f32 %v20, %v1895
  %v1927 = vmul.f32 %v21, %v1900
  %v1928 = vmul.f32 %v22, %v1900
  %v1929 = vmul.f32 %v23, %v1905
  %v1930 = vmul.f32 %v24, %v1905
  %v1931 = vmul.f32 %v25, %v1910
  %v1932 = vmul.f32 %v26, %v1910
  %v1933 = vmul.f32 %v27, %v1915
  %v1934 = vmul.f32 %v28, %v1915
  %1936 = vset.pattern.permute.xlu0 1
  %1937 = vperm.xlu0 %1936, %v1863
  %v1938 = vpop.permute.xlu0 %1937
  %1941 = vset.pattern.permute.xlu0 1
  %1942 = vperm.xlu0 %1941, %v1864
  %v1943 = vpop.permute.xlu0 %1942
  %1946 = vset.pattern.permute.xlu0 1
  %1947 = vperm.xlu0 %1946, %v1865
  %v1948 = vpop.permute.xlu0 %1947
  %1951 = vset.pattern.permute.xlu0 1
  %1952 = vperm.xlu0 %1951, %v1866
  %v1953 = vpop.permute.xlu0 %1952
  %1956 = vset.pattern.permute.xlu0 1
  %1957 = vperm.xlu0 %1956, %v1867
  %v1958 = vpop.permute.xlu0 %1957
  %1961 = vset.pattern.permute.xlu0 1
  %1962 = vperm.xlu0 %1961, %v1868
  %v1963 = vpop.permute.xlu0 %1962
  %1966 = vset.pattern.permute.xlu0 1
  %1967 = vperm.xlu0 %1966, %v1869
  %v1968 = vpop.permute.xlu0 %1967
  %1971 = vset.pattern.permute.xlu0 1
  %1972 = vperm.xlu0 %1971, %v1870
  %v1973 = vpop.permute.xlu0 %1972
  %1976 = vset.pattern.permute.xlu0 1
  %1977 = vperm.xlu0 %1976, %v1871
  %v1978 = vpop.permute.xlu0 %1977
  %v1980 = vadd.f32 %v1917, %v1938
  %v1981 = vadd.f32 %v1918, %v1938
  %v1982 = vadd.f32 %v1919, %v1943
  %v1983 = vadd.f32 %v1920, %v1943
  %v1984 = vadd.f32 %v1921, %v1948
  %v1985 = vadd.f32 %v1922, %v1948
  %v1986 = vadd.f32 %v1923, %v1953
  %v1987 = vadd.f32 %v1924, %v1953
  %v1988 = vadd.f32 %v1925, %v1958
  %v1989 = vadd.f32 %v1926, %v1958
  %v1990 = vadd.f32 %v1927, %v1963
  %v1991 = vadd.f32 %v1928, %v1963
  %v1992 = vadd.f32 %v1929, %v1968
  %v1993 = vadd.f32 %v1930, %v1968
  %v1994 = vadd.f32 %v1931, %v1973
  %v1995 = vadd.f32 %v1932, %v1973
  %v1996 = vadd.f32 %v1933, %v1978
  %v1997 = vadd.f32 %v1934, %v1978
  %1998 = vst [vmem:[%s2] sm:$0xff] %v1980
  %1999 = vst.msk [vmem:[%s2 + $0x8] sm:$0xff] %vm29, %v1981
  %2000 = vst [vmem:[%s2 + $0x10] sm:$0xff] %v1982
  %2001 = vst.msk [vmem:[%s2 + $0x18] sm:$0xff] %vm29, %v1983
  %2002 = vst [vmem:[%s2 + $0x20] sm:$0xff] %v1984
  %2003 = vst.msk [vmem:[%s2 + $0x28] sm:$0xff] %vm29, %v1985
  %2004 = vst [vmem:[%s2 + $0x30] sm:$0xff] %v1986
  %2005 = vst.msk [vmem:[%s2 + $0x38] sm:$0xff] %vm29, %v1987
  %2006 = vst [vmem:[%s2 + $0x40] sm:$0xff] %v1988
  %2007 = vst.msk [vmem:[%s2 + $0x48] sm:$0xff] %vm29, %v1989
  %2008 = vst [vmem:[%s2 + $0x50] sm:$0xff] %v1990
  %2009 = vst.msk [vmem:[%s2 + $0x58] sm:$0xff] %vm29, %v1991
  %2010 = vst [vmem:[%s2 + $0x60] sm:$0xff] %v1992
  %2011 = vst.msk [vmem:[%s2 + $0x68] sm:$0xff] %vm29, %v1993
  %2012 = vst [vmem:[%s2 + $0x70] sm:$0xff] %v1994
  %2013 = vst.msk [vmem:[%s2 + $0x78] sm:$0xff] %vm29, %v1995
  %2014 = vst [vmem:[%s2 + $0x80] sm:$0xff] %v1996
  %2015 = vst.msk [vmem:[%s2 + $0x88] sm:$0xff] %vm29, %v1997
  %v2016 = vld [vmem:[%s0 + $0x90] sm:$0xff]
  %v2017 = vld [vmem:[%s0 + $0x98] sm:$0xff]
  %v2018 = vld [vmem:[%s0 + $0xa0] sm:$0xff]
  %v2019 = vld [vmem:[%s0 + $0xa8] sm:$0xff]
  %v2020 = vld [vmem:[%s0 + $0xb0] sm:$0xff]
  %v2021 = vld [vmem:[%s0 + $0xb8] sm:$0xff]
  %v2022 = vld [vmem:[%s0 + $0xc0] sm:$0xff]
  %v2023 = vld [vmem:[%s0 + $0xc8] sm:$0xff]
  %v2024 = vld [vmem:[%s0 + $0xd0] sm:$0xff]
  %v2025 = vld [vmem:[%s0 + $0xd8] sm:$0xff]
  %v2026 = vld [vmem:[%s0 + $0xe0] sm:$0xff]
  %v2027 = vld [vmem:[%s0 + $0xe8] sm:$0xff]
  %v2028 = vld [vmem:[%s0 + $0xf0] sm:$0xff]
  %v2029 = vld [vmem:[%s0 + $0xf8] sm:$0xff]
  %v2030 = vld [vmem:[%s0 + $0x100] sm:$0xff]
  %v2031 = vld [vmem:[%s0 + $0x108] sm:$0xff]
  %v2032 = vld [vmem:[%s0 + $0x110] sm:$0xff]
  %v2033 = vld [vmem:[%s0 + $0x118] sm:$0xff]
  %v2035 = vsel %vm29, %v2017, 0
  %v2038 = vsel %vm29, %v2019, 0
  %v2041 = vsel %vm29, %v2021, 0
  %v2044 = vsel %vm29, %v2023, 0
  %v2047 = vsel %vm29, %v2025, 0
  %v2050 = vsel %vm29, %v2027, 0
  %v2053 = vsel %vm29, %v2029, 0
  %v2056 = vsel %vm29, %v2031, 0
  %v2059 = vsel %vm29, %v2033, 0
  %2061 = vmatpush.msra.mxu0 1.0
  %2062 = vmatpush.msra.mxu0 1.0
  %2063 = vmatpush.msra.mxu0 1.0
  %2064 = vmatpush.msra.mxu0 1.0
  %2065 = vmatpush.msra.mxu0 1.0
  %2066 = vmatpush.msra.mxu0 1.0
  %2067 = vmatpush.msra.mxu0 1.0
  %2068 = vmatpush.msra.mxu0 1.0
  %2069 = vmatpush.msra.mxu0 1.0
  %2070 = vmatpush.msra.mxu0 1.0
  %2071 = vmatpush.msra.mxu0 1.0
  %2072 = vmatpush.msra.mxu0 1.0
  %2073 = vmatpush.msra.mxu0 1.0
  %2074 = vmatpush.msra.mxu0 1.0
  %2075 = vmatpush.msra.mxu0 1.0
  %2076 = vmatpush.msra.mxu0 1.0
  %v2077 = vand.u32 %v2016, 4294901760
  %v2078 = vsub.f32 %v2016, %v2077
  %v2079 = vand.u32 %v2078, 4294901760
  %v2080 = vsub.f32 %v2078, %v2079
  %v2081 = vand.u32 %v2080, 4294901760
  %2082 = vmatmul.f32.gmra.mxu0 %v2081
  %v2083 = vpop.f32.mrf.mxu0
  %v2084 = vadd.f32 0.0, %v2083
  %v2085 = vand.u32 %v2018, 4294901760
  %v2086 = vsub.f32 %v2018, %v2085
  %v2087 = vand.u32 %v2086, 4294901760
  %v2088 = vsub.f32 %v2086, %v2087
  %v2089 = vand.u32 %v2088, 4294901760
  %2090 = vmatmul.f32.gmra.mxu0 %v2089
  %v2091 = vpop.f32.mrf.mxu0
  %v2092 = vadd.f32 0.0, %v2091
  %v2093 = vand.u32 %v2020, 4294901760
  %v2094 = vsub.f32 %v2020, %v2093
  %v2095 = vand.u32 %v2094, 4294901760
  %v2096 = vsub.f32 %v2094, %v2095
  %v2097 = vand.u32 %v2096, 4294901760
  %2098 = vmatmul.f32.gmra.mxu0 %v2097
  %v2099 = vpop.f32.mrf.mxu0
  %v2100 = vadd.f32 0.0, %v2099
  %v2101 = vand.u32 %v2022, 4294901760
  %v2102 = vsub.f32 %v2022, %v2101
  %v2103 = vand.u32 %v2102, 4294901760
  %v2104 = vsub.f32 %v2102, %v2103
  %v2105 = vand.u32 %v2104, 4294901760
  %2106 = vmatmul.f32.gmra.mxu0 %v2105
  %v2107 = vpop.f32.mrf.mxu0
  %v2108 = vadd.f32 0.0, %v2107
  %v2109 = vand.u32 %v2024, 4294901760
  %v2110 = vsub.f32 %v2024, %v2109
  %v2111 = vand.u32 %v2110, 4294901760
  %v2112 = vsub.f32 %v2110, %v2111
  %v2113 = vand.u32 %v2112, 4294901760
  %2114 = vmatmul.f32.gmra.mxu0 %v2113
  %v2115 = vpop.f32.mrf.mxu0
  %v2116 = vadd.f32 0.0, %v2115
  %v2117 = vand.u32 %v2026, 4294901760
  %v2118 = vsub.f32 %v2026, %v2117
  %v2119 = vand.u32 %v2118, 4294901760
  %v2120 = vsub.f32 %v2118, %v2119
  %v2121 = vand.u32 %v2120, 4294901760
  %2122 = vmatmul.f32.gmra.mxu0 %v2121
  %v2123 = vpop.f32.mrf.mxu0
  %v2124 = vadd.f32 0.0, %v2123
  %v2125 = vand.u32 %v2028, 4294901760
  %v2126 = vsub.f32 %v2028, %v2125
  %v2127 = vand.u32 %v2126, 4294901760
  %v2128 = vsub.f32 %v2126, %v2127
  %v2129 = vand.u32 %v2128, 4294901760
  %2130 = vmatmul.f32.gmra.mxu0 %v2129
  %v2131 = vpop.f32.mrf.mxu0
  %v2132 = vadd.f32 0.0, %v2131
  %v2133 = vand.u32 %v2030, 4294901760
  %v2134 = vsub.f32 %v2030, %v2133
  %v2135 = vand.u32 %v2134, 4294901760
  %v2136 = vsub.f32 %v2134, %v2135
  %v2137 = vand.u32 %v2136, 4294901760
  %2138 = vmatmul.f32.gmra.mxu0 %v2137
  %v2139 = vpop.f32.mrf.mxu0
  %v2140 = vadd.f32 0.0, %v2139
  %v2141 = vand.u32 %v2032, 4294901760
  %v2142 = vsub.f32 %v2032, %v2141
  %v2143 = vand.u32 %v2142, 4294901760
  %v2144 = vsub.f32 %v2142, %v2143
  %v2145 = vand.u32 %v2144, 4294901760
  %2146 = vmatmul.f32.gmra.mxu0 %v2145
  %v2147 = vpop.f32.mrf.mxu0
  %v2148 = vadd.f32 0.0, %v2147
  %2149 = vdwg.mxu0
  %2150 = vmatpush.msra.mxu0 0.0
  %2151 = vmatpush.msra.mxu0 0.0
  %2152 = vmatpush.msra.mxu0 0.0
  %2153 = vmatpush.msra.mxu0 0.0
  %2154 = vmatpush.msra.mxu0 0.0
  %2155 = vmatpush.msra.mxu0 0.0
  %2156 = vmatpush.msra.mxu0 0.0
  %2157 = vmatpush.msra.mxu0 0.0
  %2158 = vmatpush.msra.mxu0 0.0
  %2159 = vmatpush.msra.mxu0 0.0
  %2160 = vmatpush.msra.mxu0 0.0
  %2161 = vmatpush.msra.mxu0 0.0
  %2162 = vmatpush.msra.mxu0 0.0
  %2163 = vmatpush.msra.mxu0 0.0
  %2164 = vmatpush.msra.mxu0 0.0
  %2165 = vmatpush.msra.mxu0 0.0
  %v2166 = vand.u32 %v2016, 4294901760
  %2167 = vmatmul.f32.gmra.mxu0 %v2166
  %v2168 = vpop.f32.mrf.mxu0
  %v2169 = vadd.f32 %v2084, %v2168
  %v2170 = vand.u32 %v2018, 4294901760
  %2171 = vmatmul.f32.gmra.mxu0 %v2170
  %v2172 = vpop.f32.mrf.mxu0
  %v2173 = vadd.f32 %v2092, %v2172
  %v2174 = vand.u32 %v2020, 4294901760
  %2175 = vmatmul.f32.gmra.mxu0 %v2174
  %v2176 = vpop.f32.mrf.mxu0
  %v2177 = vadd.f32 %v2100, %v2176
  %v2178 = vand.u32 %v2022, 4294901760
  %2179 = vmatmul.f32.gmra.mxu0 %v2178
  %v2180 = vpop.f32.mrf.mxu0
  %v2181 = vadd.f32 %v2108, %v2180
  %v2182 = vand.u32 %v2024, 4294901760
  %2183 = vmatmul.f32.gmra.mxu0 %v2182
  %v2184 = vpop.f32.mrf.mxu0
  %v2185 = vadd.f32 %v2116, %v2184
  %v2186 = vand.u32 %v2026, 4294901760
  %2187 = vmatmul.f32.gmra.mxu0 %v2186
  %v2188 = vpop.f32.mrf.mxu0
  %v2189 = vadd.f32 %v2124, %v2188
  %v2190 = vand.u32 %v2028, 4294901760
  %2191 = vmatmul.f32.gmra.mxu0 %v2190
  %v2192 = vpop.f32.mrf.mxu0
  %v2193 = vadd.f32 %v2132, %v2192
  %v2194 = vand.u32 %v2030, 4294901760
  %2195 = vmatmul.f32.gmra.mxu0 %v2194
  %v2196 = vpop.f32.mrf.mxu0
  %v2197 = vadd.f32 %v2140, %v2196
  %v2198 = vand.u32 %v2032, 4294901760
  %2199 = vmatmul.f32.gmra.mxu0 %v2198
  %v2200 = vpop.f32.mrf.mxu0
  %v2201 = vadd.f32 %v2148, %v2200
  %2202 = vdwg.mxu0
  %2203 = vmatpush.msra.mxu0 0.0
  %2204 = vmatpush.msra.mxu0 0.0
  %2205 = vmatpush.msra.mxu0 0.0
  %2206 = vmatpush.msra.mxu0 0.0
  %2207 = vmatpush.msra.mxu0 0.0
  %2208 = vmatpush.msra.mxu0 0.0
  %2209 = vmatpush.msra.mxu0 0.0
  %2210 = vmatpush.msra.mxu0 0.0
  %2211 = vmatpush.msra.mxu0 0.0
  %2212 = vmatpush.msra.mxu0 0.0
  %2213 = vmatpush.msra.mxu0 0.0
  %2214 = vmatpush.msra.mxu0 0.0
  %2215 = vmatpush.msra.mxu0 0.0
  %2216 = vmatpush.msra.mxu0 0.0
  %2217 = vmatpush.msra.mxu0 0.0
  %2218 = vmatpush.msra.mxu0 0.0
  %v2219 = vand.u32 %v2016, 4294901760
  %v2220 = vsub.f32 %v2016, %v2219
  %2221 = vmatmul.f32.gmra.mxu0 %v2220
  %v2222 = vpop.f32.mrf.mxu0
  %v2223 = vadd.f32 %v2169, %v2222
  %v2224 = vand.u32 %v2018, 4294901760
  %v2225 = vsub.f32 %v2018, %v2224
  %2226 = vmatmul.f32.gmra.mxu0 %v2225
  %v2227 = vpop.f32.mrf.mxu0
  %v2228 = vadd.f32 %v2173, %v2227
  %v2229 = vand.u32 %v2020, 4294901760
  %v2230 = vsub.f32 %v2020, %v2229
  %2231 = vmatmul.f32.gmra.mxu0 %v2230
  %v2232 = vpop.f32.mrf.mxu0
  %v2233 = vadd.f32 %v2177, %v2232
  %v2234 = vand.u32 %v2022, 4294901760
  %v2235 = vsub.f32 %v2022, %v2234
  %2236 = vmatmul.f32.gmra.mxu0 %v2235
  %v2237 = vpop.f32.mrf.mxu0
  %v2238 = vadd.f32 %v2181, %v2237
  %v2239 = vand.u32 %v2024, 4294901760
  %v2240 = vsub.f32 %v2024, %v2239
  %2241 = vmatmul.f32.gmra.mxu0 %v2240
  %v2242 = vpop.f32.mrf.mxu0
  %v2243 = vadd.f32 %v2185, %v2242
  %v2244 = vand.u32 %v2026, 4294901760
  %v2245 = vsub.f32 %v2026, %v2244
  %2246 = vmatmul.f32.gmra.mxu0 %v2245
  %v2247 = vpop.f32.mrf.mxu0
  %v2248 = vadd.f32 %v2189, %v2247
  %v2249 = vand.u32 %v2028, 4294901760
  %v2250 = vsub.f32 %v2028, %v2249
  %2251 = vmatmul.f32.gmra.mxu0 %v2250
  %v2252 = vpop.f32.mrf.mxu0
  %v2253 = vadd.f32 %v2193, %v2252
  %v2254 = vand.u32 %v2030, 4294901760
  %v2255 = vsub.f32 %v2030, %v2254
  %2256 = vmatmul.f32.gmra.mxu0 %v2255
  %v2257 = vpop.f32.mrf.mxu0
  %v2258 = vadd.f32 %v2197, %v2257
  %v2259 = vand.u32 %v2032, 4294901760
  %v2260 = vsub.f32 %v2032, %v2259
  %2261 = vmatmul.f32.gmra.mxu0 %v2260
  %v2262 = vpop.f32.mrf.mxu0
  %v2263 = vadd.f32 %v2201, %v2262
  %2264 = vdwg.mxu0
  %2265 = vmatpush.msra.mxu0 1.0
  %2266 = vmatpush.msra.mxu0 1.0
  %2267 = vmatpush.msra.mxu0 1.0
  %2268 = vmatpush.msra.mxu0 1.0
  %2269 = vmatpush.msra.mxu0 1.0
  %2270 = vmatpush.msra.mxu0 1.0
  %2271 = vmatpush.msra.mxu0 1.0
  %2272 = vmatpush.msra.mxu0 1.0
  %2273 = vmatpush.msra.mxu0 1.0
  %2274 = vmatpush.msra.mxu0 1.0
  %2275 = vmatpush.msra.mxu0 1.0
  %2276 = vmatpush.msra.mxu0 1.0
  %2277 = vmatpush.msra.mxu0 1.0
  %2278 = vmatpush.msra.mxu0 1.0
  %2279 = vmatpush.msra.mxu0 1.0
  %2280 = vmatpush.msra.mxu0 1.0
  %v2281 = vand.u32 %v2016, 4294901760
  %v2282 = vsub.f32 %v2016, %v2281
  %v2283 = vand.u32 %v2282, 4294901760
  %2284 = vmatmul.f32.gmra.mxu0 %v2283
  %v2285 = vpop.f32.mrf.mxu0
  %v2286 = vadd.f32 %v2223, %v2285
  %v2287 = vand.u32 %v2018, 4294901760
  %v2288 = vsub.f32 %v2018, %v2287
  %v2289 = vand.u32 %v2288, 4294901760
  %2290 = vmatmul.f32.gmra.mxu0 %v2289
  %v2291 = vpop.f32.mrf.mxu0
  %v2292 = vadd.f32 %v2228, %v2291
  %v2293 = vand.u32 %v2020, 4294901760
  %v2294 = vsub.f32 %v2020, %v2293
  %v2295 = vand.u32 %v2294, 4294901760
  %2296 = vmatmul.f32.gmra.mxu0 %v2295
  %v2297 = vpop.f32.mrf.mxu0
  %v2298 = vadd.f32 %v2233, %v2297
  %v2299 = vand.u32 %v2022, 4294901760
  %v2300 = vsub.f32 %v2022, %v2299
  %v2301 = vand.u32 %v2300, 4294901760
  %2302 = vmatmul.f32.gmra.mxu0 %v2301
  %v2303 = vpop.f32.mrf.mxu0
  %v2304 = vadd.f32 %v2238, %v2303
  %v2305 = vand.u32 %v2024, 4294901760
  %v2306 = vsub.f32 %v2024, %v2305
  %v2307 = vand.u32 %v2306, 4294901760
  %2308 = vmatmul.f32.gmra.mxu0 %v2307
  %v2309 = vpop.f32.mrf.mxu0
  %v2310 = vadd.f32 %v2243, %v2309
  %v2311 = vand.u32 %v2026, 4294901760
  %v2312 = vsub.f32 %v2026, %v2311
  %v2313 = vand.u32 %v2312, 4294901760
  %2314 = vmatmul.f32.gmra.mxu0 %v2313
  %v2315 = vpop.f32.mrf.mxu0
  %v2316 = vadd.f32 %v2248, %v2315
  %v2317 = vand.u32 %v2028, 4294901760
  %v2318 = vsub.f32 %v2028, %v2317
  %v2319 = vand.u32 %v2318, 4294901760
  %2320 = vmatmul.f32.gmra.mxu0 %v2319
  %v2321 = vpop.f32.mrf.mxu0
  %v2322 = vadd.f32 %v2253, %v2321
  %v2323 = vand.u32 %v2030, 4294901760
  %v2324 = vsub.f32 %v2030, %v2323
  %v2325 = vand.u32 %v2324, 4294901760
  %2326 = vmatmul.f32.gmra.mxu0 %v2325
  %v2327 = vpop.f32.mrf.mxu0
  %v2328 = vadd.f32 %v2258, %v2327
  %v2329 = vand.u32 %v2032, 4294901760
  %v2330 = vsub.f32 %v2032, %v2329
  %v2331 = vand.u32 %v2330, 4294901760
  %2332 = vmatmul.f32.gmra.mxu0 %v2331
  %v2333 = vpop.f32.mrf.mxu0
  %v2334 = vadd.f32 %v2263, %v2333
  %2335 = vdwg.mxu0
  %2336 = vmatpush.msra.mxu0 0.0
  %2337 = vmatpush.msra.mxu0 0.0
  %2338 = vmatpush.msra.mxu0 0.0
  %2339 = vmatpush.msra.mxu0 0.0
  %2340 = vmatpush.msra.mxu0 0.0
  %2341 = vmatpush.msra.mxu0 0.0
  %2342 = vmatpush.msra.mxu0 0.0
  %2343 = vmatpush.msra.mxu0 0.0
  %2344 = vmatpush.msra.mxu0 0.0
  %2345 = vmatpush.msra.mxu0 0.0
  %2346 = vmatpush.msra.mxu0 0.0
  %2347 = vmatpush.msra.mxu0 0.0
  %2348 = vmatpush.msra.mxu0 0.0
  %2349 = vmatpush.msra.mxu0 0.0
  %2350 = vmatpush.msra.mxu0 0.0
  %2351 = vmatpush.msra.mxu0 0.0
  %v2352 = vand.u32 %v2016, 4294901760
  %2353 = vmatmul.f32.gmra.mxu0 %v2352
  %v2354 = vpop.f32.mrf.mxu0
  %v2355 = vadd.f32 %v2286, %v2354
  %v2356 = vand.u32 %v2018, 4294901760
  %2357 = vmatmul.f32.gmra.mxu0 %v2356
  %v2358 = vpop.f32.mrf.mxu0
  %v2359 = vadd.f32 %v2292, %v2358
  %v2360 = vand.u32 %v2020, 4294901760
  %2361 = vmatmul.f32.gmra.mxu0 %v2360
  %v2362 = vpop.f32.mrf.mxu0
  %v2363 = vadd.f32 %v2298, %v2362
  %v2364 = vand.u32 %v2022, 4294901760
  %2365 = vmatmul.f32.gmra.mxu0 %v2364
  %v2366 = vpop.f32.mrf.mxu0
  %v2367 = vadd.f32 %v2304, %v2366
  %v2368 = vand.u32 %v2024, 4294901760
  %2369 = vmatmul.f32.gmra.mxu0 %v2368
  %v2370 = vpop.f32.mrf.mxu0
  %v2371 = vadd.f32 %v2310, %v2370
  %v2372 = vand.u32 %v2026, 4294901760
  %2373 = vmatmul.f32.gmra.mxu0 %v2372
  %v2374 = vpop.f32.mrf.mxu0
  %v2375 = vadd.f32 %v2316, %v2374
  %v2376 = vand.u32 %v2028, 4294901760
  %2377 = vmatmul.f32.gmra.mxu0 %v2376
  %v2378 = vpop.f32.mrf.mxu0
  %v2379 = vadd.f32 %v2322, %v2378
  %v2380 = vand.u32 %v2030, 4294901760
  %2381 = vmatmul.f32.gmra.mxu0 %v2380
  %v2382 = vpop.f32.mrf.mxu0
  %v2383 = vadd.f32 %v2328, %v2382
  %v2384 = vand.u32 %v2032, 4294901760
  %2385 = vmatmul.f32.gmra.mxu0 %v2384
  %v2386 = vpop.f32.mrf.mxu0
  %v2387 = vadd.f32 %v2334, %v2386
  %2388 = vdwg.mxu0
  %2389 = vmatpush.msra.mxu0 1.0
  %2390 = vmatpush.msra.mxu0 1.0
  %2391 = vmatpush.msra.mxu0 1.0
  %2392 = vmatpush.msra.mxu0 1.0
  %2393 = vmatpush.msra.mxu0 1.0
  %2394 = vmatpush.msra.mxu0 1.0
  %2395 = vmatpush.msra.mxu0 1.0
  %2396 = vmatpush.msra.mxu0 1.0
  %2397 = vmatpush.msra.mxu0 1.0
  %2398 = vmatpush.msra.mxu0 1.0
  %2399 = vmatpush.msra.mxu0 1.0
  %2400 = vmatpush.msra.mxu0 1.0
  %2401 = vmatpush.msra.mxu0 1.0
  %2402 = vmatpush.msra.mxu0 1.0
  %2403 = vmatpush.msra.mxu0 1.0
  %2404 = vmatpush.msra.mxu0 1.0
  %v2405 = vand.u32 %v2016, 4294901760
  %2406 = vmatmul.f32.gmra.mxu0 %v2405
  %v2407 = vpop.f32.mrf.mxu0
  %v2408 = vadd.f32 %v2355, %v2407
  %v2409 = vand.u32 %v2018, 4294901760
  %2410 = vmatmul.f32.gmra.mxu0 %v2409
  %v2411 = vpop.f32.mrf.mxu0
  %v2412 = vadd.f32 %v2359, %v2411
  %v2413 = vand.u32 %v2020, 4294901760
  %2414 = vmatmul.f32.gmra.mxu0 %v2413
  %v2415 = vpop.f32.mrf.mxu0
  %v2416 = vadd.f32 %v2363, %v2415
  %v2417 = vand.u32 %v2022, 4294901760
  %2418 = vmatmul.f32.gmra.mxu0 %v2417
  %v2419 = vpop.f32.mrf.mxu0
  %v2420 = vadd.f32 %v2367, %v2419
  %v2421 = vand.u32 %v2024, 4294901760
  %2422 = vmatmul.f32.gmra.mxu0 %v2421
  %v2423 = vpop.f32.mrf.mxu0
  %v2424 = vadd.f32 %v2371, %v2423
  %v2425 = vand.u32 %v2026, 4294901760
  %2426 = vmatmul.f32.gmra.mxu0 %v2425
  %v2427 = vpop.f32.mrf.mxu0
  %v2428 = vadd.f32 %v2375, %v2427
  %v2429 = vand.u32 %v2028, 4294901760
  %2430 = vmatmul.f32.gmra.mxu0 %v2429
  %v2431 = vpop.f32.mrf.mxu0
  %v2432 = vadd.f32 %v2379, %v2431
  %v2433 = vand.u32 %v2030, 4294901760
  %2434 = vmatmul.f32.gmra.mxu0 %v2433
  %v2435 = vpop.f32.mrf.mxu0
  %v2436 = vadd.f32 %v2383, %v2435
  %v2437 = vand.u32 %v2032, 4294901760
  %2438 = vmatmul.f32.gmra.mxu0 %v2437
  %v2439 = vpop.f32.mrf.mxu0
  %v2440 = vadd.f32 %v2387, %v2439
  %2441 = vdwg.mxu0
  %2442 = vmatpush.msra.mxu0 0.0
  %2443 = vmatpush.msra.mxu0 0.0
  %2444 = vmatpush.msra.mxu0 0.0
  %2445 = vmatpush.msra.mxu0 0.0
  %2446 = vmatpush.msra.mxu0 0.0
  %2447 = vmatpush.msra.mxu0 0.0
  %2448 = vmatpush.msra.mxu0 0.0
  %v2449 = vand.u32 %v59, 4294901760
  %2450 = vmatpush.msra.mxu0 %v2449
  %2451 = vmatpush.msra.mxu0 1.0
  %2452 = vmatpush.msra.mxu0 1.0
  %2453 = vmatpush.msra.mxu0 1.0
  %2454 = vmatpush.msra.mxu0 1.0
  %2455 = vmatpush.msra.mxu0 1.0
  %2456 = vmatpush.msra.mxu0 1.0
  %2457 = vmatpush.msra.mxu0 1.0
  %2458 = vmatpush.msra.mxu0 1.0
  %v2459 = vand.u32 %v2035, 4294901760
  %v2460 = vsub.f32 %v2035, %v2459
  %v2461 = vand.u32 %v2460, 4294901760
  %v2462 = vsub.f32 %v2460, %v2461
  %v2463 = vand.u32 %v2462, 4294901760
  %2464 = vmatmul.f32.gmra.mxu0 %v2463
  %v2465 = vpop.f32.mrf.mxu0
  %v2466 = vadd.f32 %v2408, %v2465
  %v2467 = vand.u32 %v2038, 4294901760
  %v2468 = vsub.f32 %v2038, %v2467
  %v2469 = vand.u32 %v2468, 4294901760
  %v2470 = vsub.f32 %v2468, %v2469
  %v2471 = vand.u32 %v2470, 4294901760
  %2472 = vmatmul.f32.gmra.mxu0 %v2471
  %v2473 = vpop.f32.mrf.mxu0
  %v2474 = vadd.f32 %v2412, %v2473
  %v2475 = vand.u32 %v2041, 4294901760
  %v2476 = vsub.f32 %v2041, %v2475
  %v2477 = vand.u32 %v2476, 4294901760
  %v2478 = vsub.f32 %v2476, %v2477
  %v2479 = vand.u32 %v2478, 4294901760
  %2480 = vmatmul.f32.gmra.mxu0 %v2479
  %v2481 = vpop.f32.mrf.mxu0
  %v2482 = vadd.f32 %v2416, %v2481
  %v2483 = vand.u32 %v2044, 4294901760
  %v2484 = vsub.f32 %v2044, %v2483
  %v2485 = vand.u32 %v2484, 4294901760
  %v2486 = vsub.f32 %v2484, %v2485
  %v2487 = vand.u32 %v2486, 4294901760
  %2488 = vmatmul.f32.gmra.mxu0 %v2487
  %v2489 = vpop.f32.mrf.mxu0
  %v2490 = vadd.f32 %v2420, %v2489
  %v2491 = vand.u32 %v2047, 4294901760
  %v2492 = vsub.f32 %v2047, %v2491
  %v2493 = vand.u32 %v2492, 4294901760
  %v2494 = vsub.f32 %v2492, %v2493
  %v2495 = vand.u32 %v2494, 4294901760
  %2496 = vmatmul.f32.gmra.mxu0 %v2495
  %v2497 = vpop.f32.mrf.mxu0
  %v2498 = vadd.f32 %v2424, %v2497
  %v2499 = vand.u32 %v2050, 4294901760
  %v2500 = vsub.f32 %v2050, %v2499
  %v2501 = vand.u32 %v2500, 4294901760
  %v2502 = vsub.f32 %v2500, %v2501
  %v2503 = vand.u32 %v2502, 4294901760
  %2504 = vmatmul.f32.gmra.mxu0 %v2503
  %v2505 = vpop.f32.mrf.mxu0
  %v2506 = vadd.f32 %v2428, %v2505
  %v2507 = vand.u32 %v2053, 4294901760
  %v2508 = vsub.f32 %v2053, %v2507
  %v2509 = vand.u32 %v2508, 4294901760
  %v2510 = vsub.f32 %v2508, %v2509
  %v2511 = vand.u32 %v2510, 4294901760
  %2512 = vmatmul.f32.gmra.mxu0 %v2511
  %v2513 = vpop.f32.mrf.mxu0
  %v2514 = vadd.f32 %v2432, %v2513
  %v2515 = vand.u32 %v2056, 4294901760
  %v2516 = vsub.f32 %v2056, %v2515
  %v2517 = vand.u32 %v2516, 4294901760
  %v2518 = vsub.f32 %v2516, %v2517
  %v2519 = vand.u32 %v2518, 4294901760
  %2520 = vmatmul.f32.gmra.mxu0 %v2519
  %v2521 = vpop.f32.mrf.mxu0
  %v2522 = vadd.f32 %v2436, %v2521
  %v2523 = vand.u32 %v2059, 4294901760
  %v2524 = vsub.f32 %v2059, %v2523
  %v2525 = vand.u32 %v2524, 4294901760
  %v2526 = vsub.f32 %v2524, %v2525
  %v2527 = vand.u32 %v2526, 4294901760
  %2528 = vmatmul.f32.gmra.mxu0 %v2527
  %v2529 = vpop.f32.mrf.mxu0
  %v2530 = vadd.f32 %v2440, %v2529
  %2531 = vdwg.mxu0
  %2532 = vmatpush.msra.mxu0 0.0
  %2533 = vmatpush.msra.mxu0 0.0
  %2534 = vmatpush.msra.mxu0 0.0
  %2535 = vmatpush.msra.mxu0 0.0
  %2536 = vmatpush.msra.mxu0 0.0
  %2537 = vmatpush.msra.mxu0 0.0
  %2538 = vmatpush.msra.mxu0 0.0
  %v2539 = vand.u32 %v59, 4294901760
  %v2540 = vsub.f32 %v59, %v2539
  %v2541 = vand.u32 %v2540, 4294901760
  %v2542 = vsub.f32 %v2540, %v2541
  %v2543 = vand.u32 %v2542, 4294901760
  %2544 = vmatpush.msra.mxu0 %v2543
  %2545 = vmatpush.msra.mxu0 0.0
  %2546 = vmatpush.msra.mxu0 0.0
  %2547 = vmatpush.msra.mxu0 0.0
  %2548 = vmatpush.msra.mxu0 0.0
  %2549 = vmatpush.msra.mxu0 0.0
  %2550 = vmatpush.msra.mxu0 0.0
  %2551 = vmatpush.msra.mxu0 0.0
  %2552 = vmatpush.msra.mxu0 0.0
  %v2553 = vand.u32 %v2035, 4294901760
  %2554 = vmatmul.f32.gmra.mxu0 %v2553
  %v2555 = vpop.f32.mrf.mxu0
  %v2556 = vadd.f32 %v2466, %v2555
  %v2557 = vand.u32 %v2038, 4294901760
  %2558 = vmatmul.f32.gmra.mxu0 %v2557
  %v2559 = vpop.f32.mrf.mxu0
  %v2560 = vadd.f32 %v2474, %v2559
  %v2561 = vand.u32 %v2041, 4294901760
  %2562 = vmatmul.f32.gmra.mxu0 %v2561
  %v2563 = vpop.f32.mrf.mxu0
  %v2564 = vadd.f32 %v2482, %v2563
  %v2565 = vand.u32 %v2044, 4294901760
  %2566 = vmatmul.f32.gmra.mxu0 %v2565
  %v2567 = vpop.f32.mrf.mxu0
  %v2568 = vadd.f32 %v2490, %v2567
  %v2569 = vand.u32 %v2047, 4294901760
  %2570 = vmatmul.f32.gmra.mxu0 %v2569
  %v2571 = vpop.f32.mrf.mxu0
  %v2572 = vadd.f32 %v2498, %v2571
  %v2573 = vand.u32 %v2050, 4294901760
  %2574 = vmatmul.f32.gmra.mxu0 %v2573
  %v2575 = vpop.f32.mrf.mxu0
  %v2576 = vadd.f32 %v2506, %v2575
  %v2577 = vand.u32 %v2053, 4294901760
  %2578 = vmatmul.f32.gmra.mxu0 %v2577
  %v2579 = vpop.f32.mrf.mxu0
  %v2580 = vadd.f32 %v2514, %v2579
  %v2581 = vand.u32 %v2056, 4294901760
  %2582 = vmatmul.f32.gmra.mxu0 %v2581
  %v2583 = vpop.f32.mrf.mxu0
  %v2584 = vadd.f32 %v2522, %v2583
  %v2585 = vand.u32 %v2059, 4294901760
  %2586 = vmatmul.f32.gmra.mxu0 %v2585
  %v2587 = vpop.f32.mrf.mxu0
  %v2588 = vadd.f32 %v2530, %v2587
  %2589 = vdwg.mxu0
  %2590 = vmatpush.msra.mxu0 0.0
  %2591 = vmatpush.msra.mxu0 0.0
  %2592 = vmatpush.msra.mxu0 0.0
  %2593 = vmatpush.msra.mxu0 0.0
  %2594 = vmatpush.msra.mxu0 0.0
  %2595 = vmatpush.msra.mxu0 0.0
  %2596 = vmatpush.msra.mxu0 0.0
  %v2597 = vand.u32 %v59, 4294901760
  %v2598 = vsub.f32 %v59, %v2597
  %2599 = vmatpush.msra.mxu0 %v2598
  %2600 = vmatpush.msra.mxu0 0.0
  %2601 = vmatpush.msra.mxu0 0.0
  %2602 = vmatpush.msra.mxu0 0.0
  %2603 = vmatpush.msra.mxu0 0.0
  %2604 = vmatpush.msra.mxu0 0.0
  %2605 = vmatpush.msra.mxu0 0.0
  %2606 = vmatpush.msra.mxu0 0.0
  %2607 = vmatpush.msra.mxu0 0.0
  %v2608 = vand.u32 %v2035, 4294901760
  %v2609 = vsub.f32 %v2035, %v2608
  %2610 = vmatmul.f32.gmra.mxu0 %v2609
  %v2611 = vpop.f32.mrf.mxu0
  %v2612 = vadd.f32 %v2556, %v2611
  %v2613 = vand.u32 %v2038, 4294901760
  %v2614 = vsub.f32 %v2038, %v2613
  %2615 = vmatmul.f32.gmra.mxu0 %v2614
  %v2616 = vpop.f32.mrf.mxu0
  %v2617 = vadd.f32 %v2560, %v2616
  %v2618 = vand.u32 %v2041, 4294901760
  %v2619 = vsub.f32 %v2041, %v2618
  %2620 = vmatmul.f32.gmra.mxu0 %v2619
  %v2621 = vpop.f32.mrf.mxu0
  %v2622 = vadd.f32 %v2564, %v2621
  %v2623 = vand.u32 %v2044, 4294901760
  %v2624 = vsub.f32 %v2044, %v2623
  %2625 = vmatmul.f32.gmra.mxu0 %v2624
  %v2626 = vpop.f32.mrf.mxu0
  %v2627 = vadd.f32 %v2568, %v2626
  %v2628 = vand.u32 %v2047, 4294901760
  %v2629 = vsub.f32 %v2047, %v2628
  %2630 = vmatmul.f32.gmra.mxu0 %v2629
  %v2631 = vpop.f32.mrf.mxu0
  %v2632 = vadd.f32 %v2572, %v2631
  %v2633 = vand.u32 %v2050, 4294901760
  %v2634 = vsub.f32 %v2050, %v2633
  %2635 = vmatmul.f32.gmra.mxu0 %v2634
  %v2636 = vpop.f32.mrf.mxu0
  %v2637 = vadd.f32 %v2576, %v2636
  %v2638 = vand.u32 %v2053, 4294901760
  %v2639 = vsub.f32 %v2053, %v2638
  %2640 = vmatmul.f32.gmra.mxu0 %v2639
  %v2641 = vpop.f32.mrf.mxu0
  %v2642 = vadd.f32 %v2580, %v2641
  %v2643 = vand.u32 %v2056, 4294901760
  %v2644 = vsub.f32 %v2056, %v2643
  %2645 = vmatmul.f32.gmra.mxu0 %v2644
  %v2646 = vpop.f32.mrf.mxu0
  %v2647 = vadd.f32 %v2584, %v2646
  %v2648 = vand.u32 %v2059, 4294901760
  %v2649 = vsub.f32 %v2059, %v2648
  %2650 = vmatmul.f32.gmra.mxu0 %v2649
  %v2651 = vpop.f32.mrf.mxu0
  %v2652 = vadd.f32 %v2588, %v2651
  %2653 = vdwg.mxu0
  %2654 = vmatpush.msra.mxu0 0.0
  %2655 = vmatpush.msra.mxu0 0.0
  %2656 = vmatpush.msra.mxu0 0.0
  %2657 = vmatpush.msra.mxu0 0.0
  %2658 = vmatpush.msra.mxu0 0.0
  %2659 = vmatpush.msra.mxu0 0.0
  %2660 = vmatpush.msra.mxu0 0.0
  %v2661 = vand.u32 %v59, 4294901760
  %2662 = vmatpush.msra.mxu0 %v2661
  %2663 = vmatpush.msra.mxu0 1.0
  %2664 = vmatpush.msra.mxu0 1.0
  %2665 = vmatpush.msra.mxu0 1.0
  %2666 = vmatpush.msra.mxu0 1.0
  %2667 = vmatpush.msra.mxu0 1.0
  %2668 = vmatpush.msra.mxu0 1.0
  %2669 = vmatpush.msra.mxu0 1.0
  %2670 = vmatpush.msra.mxu0 1.0
  %v2671 = vand.u32 %v2035, 4294901760
  %v2672 = vsub.f32 %v2035, %v2671
  %v2673 = vand.u32 %v2672, 4294901760
  %2674 = vmatmul.f32.gmra.mxu0 %v2673
  %v2675 = vpop.f32.mrf.mxu0
  %v2676 = vadd.f32 %v2612, %v2675
  %v2677 = vand.u32 %v2038, 4294901760
  %v2678 = vsub.f32 %v2038, %v2677
  %v2679 = vand.u32 %v2678, 4294901760
  %2680 = vmatmul.f32.gmra.mxu0 %v2679
  %v2681 = vpop.f32.mrf.mxu0
  %v2682 = vadd.f32 %v2617, %v2681
  %v2683 = vand.u32 %v2041, 4294901760
  %v2684 = vsub.f32 %v2041, %v2683
  %v2685 = vand.u32 %v2684, 4294901760
  %2686 = vmatmul.f32.gmra.mxu0 %v2685
  %v2687 = vpop.f32.mrf.mxu0
  %v2688 = vadd.f32 %v2622, %v2687
  %v2689 = vand.u32 %v2044, 4294901760
  %v2690 = vsub.f32 %v2044, %v2689
  %v2691 = vand.u32 %v2690, 4294901760
  %2692 = vmatmul.f32.gmra.mxu0 %v2691
  %v2693 = vpop.f32.mrf.mxu0
  %v2694 = vadd.f32 %v2627, %v2693
  %v2695 = vand.u32 %v2047, 4294901760
  %v2696 = vsub.f32 %v2047, %v2695
  %v2697 = vand.u32 %v2696, 4294901760
  %2698 = vmatmul.f32.gmra.mxu0 %v2697
  %v2699 = vpop.f32.mrf.mxu0
  %v2700 = vadd.f32 %v2632, %v2699
  %v2701 = vand.u32 %v2050, 4294901760
  %v2702 = vsub.f32 %v2050, %v2701
  %v2703 = vand.u32 %v2702, 4294901760
  %2704 = vmatmul.f32.gmra.mxu0 %v2703
  %v2705 = vpop.f32.mrf.mxu0
  %v2706 = vadd.f32 %v2637, %v2705
  %v2707 = vand.u32 %v2053, 4294901760
  %v2708 = vsub.f32 %v2053, %v2707
  %v2709 = vand.u32 %v2708, 4294901760
  %2710 = vmatmul.f32.gmra.mxu0 %v2709
  %v2711 = vpop.f32.mrf.mxu0
  %v2712 = vadd.f32 %v2642, %v2711
  %v2713 = vand.u32 %v2056, 4294901760
  %v2714 = vsub.f32 %v2056, %v2713
  %v2715 = vand.u32 %v2714, 4294901760
  %2716 = vmatmul.f32.gmra.mxu0 %v2715
  %v2717 = vpop.f32.mrf.mxu0
  %v2718 = vadd.f32 %v2647, %v2717
  %v2719 = vand.u32 %v2059, 4294901760
  %v2720 = vsub.f32 %v2059, %v2719
  %v2721 = vand.u32 %v2720, 4294901760
  %2722 = vmatmul.f32.gmra.mxu0 %v2721
  %v2723 = vpop.f32.mrf.mxu0
  %v2724 = vadd.f32 %v2652, %v2723
  %2725 = vdwg.mxu0
  %2726 = vmatpush.msra.mxu0 0.0
  %2727 = vmatpush.msra.mxu0 0.0
  %2728 = vmatpush.msra.mxu0 0.0
  %2729 = vmatpush.msra.mxu0 0.0
  %2730 = vmatpush.msra.mxu0 0.0
  %2731 = vmatpush.msra.mxu0 0.0
  %2732 = vmatpush.msra.mxu0 0.0
  %v2733 = vand.u32 %v59, 4294901760
  %v2734 = vsub.f32 %v59, %v2733
  %v2735 = vand.u32 %v2734, 4294901760
  %2736 = vmatpush.msra.mxu0 %v2735
  %2737 = vmatpush.msra.mxu0 0.0
  %2738 = vmatpush.msra.mxu0 0.0
  %2739 = vmatpush.msra.mxu0 0.0
  %2740 = vmatpush.msra.mxu0 0.0
  %2741 = vmatpush.msra.mxu0 0.0
  %2742 = vmatpush.msra.mxu0 0.0
  %2743 = vmatpush.msra.mxu0 0.0
  %2744 = vmatpush.msra.mxu0 0.0
  %v2745 = vand.u32 %v2035, 4294901760
  %2746 = vmatmul.f32.gmra.mxu0 %v2745
  %v2747 = vpop.f32.mrf.mxu0
  %v2748 = vadd.f32 %v2676, %v2747
  %v2749 = vand.u32 %v2038, 4294901760
  %2750 = vmatmul.f32.gmra.mxu0 %v2749
  %v2751 = vpop.f32.mrf.mxu0
  %v2752 = vadd.f32 %v2682, %v2751
  %v2753 = vand.u32 %v2041, 4294901760
  %2754 = vmatmul.f32.gmra.mxu0 %v2753
  %v2755 = vpop.f32.mrf.mxu0
  %v2756 = vadd.f32 %v2688, %v2755
  %v2757 = vand.u32 %v2044, 4294901760
  %2758 = vmatmul.f32.gmra.mxu0 %v2757
  %v2759 = vpop.f32.mrf.mxu0
  %v2760 = vadd.f32 %v2694, %v2759
  %v2761 = vand.u32 %v2047, 4294901760
  %2762 = vmatmul.f32.gmra.mxu0 %v2761
  %v2763 = vpop.f32.mrf.mxu0
  %v2764 = vadd.f32 %v2700, %v2763
  %v2765 = vand.u32 %v2050, 4294901760
  %2766 = vmatmul.f32.gmra.mxu0 %v2765
  %v2767 = vpop.f32.mrf.mxu0
  %v2768 = vadd.f32 %v2706, %v2767
  %v2769 = vand.u32 %v2053, 4294901760
  %2770 = vmatmul.f32.gmra.mxu0 %v2769
  %v2771 = vpop.f32.mrf.mxu0
  %v2772 = vadd.f32 %v2712, %v2771
  %v2773 = vand.u32 %v2056, 4294901760
  %2774 = vmatmul.f32.gmra.mxu0 %v2773
  %v2775 = vpop.f32.mrf.mxu0
  %v2776 = vadd.f32 %v2718, %v2775
  %v2777 = vand.u32 %v2059, 4294901760
  %2778 = vmatmul.f32.gmra.mxu0 %v2777
  %v2779 = vpop.f32.mrf.mxu0
  %v2780 = vadd.f32 %v2724, %v2779
  %2781 = vdwg.mxu0
  %2782 = vmatpush.msra.mxu0 0.0
  %2783 = vmatpush.msra.mxu0 0.0
  %2784 = vmatpush.msra.mxu0 0.0
  %2785 = vmatpush.msra.mxu0 0.0
  %2786 = vmatpush.msra.mxu0 0.0
  %2787 = vmatpush.msra.mxu0 0.0
  %2788 = vmatpush.msra.mxu0 0.0
  %v2789 = vand.u32 %v59, 4294901760
  %2790 = vmatpush.msra.mxu0 %v2789
  %2791 = vmatpush.msra.mxu0 1.0
  %2792 = vmatpush.msra.mxu0 1.0
  %2793 = vmatpush.msra.mxu0 1.0
  %2794 = vmatpush.msra.mxu0 1.0
  %2795 = vmatpush.msra.mxu0 1.0
  %2796 = vmatpush.msra.mxu0 1.0
  %2797 = vmatpush.msra.mxu0 1.0
  %2798 = vmatpush.msra.mxu0 1.0
  %v2799 = vand.u32 %v2035, 4294901760
  %2800 = vmatmul.f32.gmra.mxu0 %v2799
  %v2801 = vpop.f32.mrf.mxu0
  %v2802 = vadd.f32 %v2748, %v2801
  %v2803 = vand.u32 %v2038, 4294901760
  %2804 = vmatmul.f32.gmra.mxu0 %v2803
  %v2805 = vpop.f32.mrf.mxu0
  %v2806 = vadd.f32 %v2752, %v2805
  %v2807 = vand.u32 %v2041, 4294901760
  %2808 = vmatmul.f32.gmra.mxu0 %v2807
  %v2809 = vpop.f32.mrf.mxu0
  %v2810 = vadd.f32 %v2756, %v2809
  %v2811 = vand.u32 %v2044, 4294901760
  %2812 = vmatmul.f32.gmra.mxu0 %v2811
  %v2813 = vpop.f32.mrf.mxu0
  %v2814 = vadd.f32 %v2760, %v2813
  %v2815 = vand.u32 %v2047, 4294901760
  %2816 = vmatmul.f32.gmra.mxu0 %v2815
  %v2817 = vpop.f32.mrf.mxu0
  %v2818 = vadd.f32 %v2764, %v2817
  %v2819 = vand.u32 %v2050, 4294901760
  %2820 = vmatmul.f32.gmra.mxu0 %v2819
  %v2821 = vpop.f32.mrf.mxu0
  %v2822 = vadd.f32 %v2768, %v2821
  %v2823 = vand.u32 %v2053, 4294901760
  %2824 = vmatmul.f32.gmra.mxu0 %v2823
  %v2825 = vpop.f32.mrf.mxu0
  %v2826 = vadd.f32 %v2772, %v2825
  %v2827 = vand.u32 %v2056, 4294901760
  %2828 = vmatmul.f32.gmra.mxu0 %v2827
  %v2829 = vpop.f32.mrf.mxu0
  %v2830 = vadd.f32 %v2776, %v2829
  %v2831 = vand.u32 %v2059, 4294901760
  %2832 = vmatmul.f32.gmra.mxu0 %v2831
  %v2833 = vpop.f32.mrf.mxu0
  %v2834 = vadd.f32 %v2780, %v2833
  %2835 = vdwg.mxu0
  %v2836 = vmul.f32 %v2016, %v2016
  %v2837 = vmul.f32 %v2017, %v2017
  %v2838 = vmul.f32 %v2018, %v2018
  %v2839 = vmul.f32 %v2019, %v2019
  %v2840 = vmul.f32 %v2020, %v2020
  %v2841 = vmul.f32 %v2021, %v2021
  %v2842 = vmul.f32 %v2022, %v2022
  %v2843 = vmul.f32 %v2023, %v2023
  %v2844 = vmul.f32 %v2024, %v2024
  %v2845 = vmul.f32 %v2025, %v2025
  %v2846 = vmul.f32 %v2026, %v2026
  %v2847 = vmul.f32 %v2027, %v2027
  %v2848 = vmul.f32 %v2028, %v2028
  %v2849 = vmul.f32 %v2029, %v2029
  %v2850 = vmul.f32 %v2030, %v2030
  %v2851 = vmul.f32 %v2031, %v2031
  %v2852 = vmul.f32 %v2032, %v2032
  %v2853 = vmul.f32 %v2033, %v2033
  %v2855 = vsel %vm29, %v2837, 0
  %v2858 = vsel %vm29, %v2839, 0
  %v2861 = vsel %vm29, %v2841, 0
  %v2864 = vsel %vm29, %v2843, 0
  %v2867 = vsel %vm29, %v2845, 0
  %v2870 = vsel %vm29, %v2847, 0
  %v2873 = vsel %vm29, %v2849, 0
  %v2876 = vsel %vm29, %v2851, 0
  %v2879 = vsel %vm29, %v2853, 0
  %2881 = vmatpush.msra.mxu0 1.0
  %2882 = vmatpush.msra.mxu0 1.0
  %2883 = vmatpush.msra.mxu0 1.0
  %2884 = vmatpush.msra.mxu0 1.0
  %2885 = vmatpush.msra.mxu0 1.0
  %2886 = vmatpush.msra.mxu0 1.0
  %2887 = vmatpush.msra.mxu0 1.0
  %2888 = vmatpush.msra.mxu0 1.0
  %2889 = vmatpush.msra.mxu0 1.0
  %2890 = vmatpush.msra.mxu0 1.0
  %2891 = vmatpush.msra.mxu0 1.0
  %2892 = vmatpush.msra.mxu0 1.0
  %2893 = vmatpush.msra.mxu0 1.0
  %2894 = vmatpush.msra.mxu0 1.0
  %2895 = vmatpush.msra.mxu0 1.0
  %2896 = vmatpush.msra.mxu0 1.0
  %v2897 = vand.u32 %v2836, 4294901760
  %v2898 = vsub.f32 %v2836, %v2897
  %v2899 = vand.u32 %v2898, 4294901760
  %v2900 = vsub.f32 %v2898, %v2899
  %v2901 = vand.u32 %v2900, 4294901760
  %2902 = vmatmul.f32.gmra.mxu0 %v2901
  %v2903 = vpop.f32.mrf.mxu0
  %v2904 = vadd.f32 0.0, %v2903
  %v2905 = vand.u32 %v2838, 4294901760
  %v2906 = vsub.f32 %v2838, %v2905
  %v2907 = vand.u32 %v2906, 4294901760
  %v2908 = vsub.f32 %v2906, %v2907
  %v2909 = vand.u32 %v2908, 4294901760
  %2910 = vmatmul.f32.gmra.mxu0 %v2909
  %v2911 = vpop.f32.mrf.mxu0
  %v2912 = vadd.f32 0.0, %v2911
  %v2913 = vand.u32 %v2840, 4294901760
  %v2914 = vsub.f32 %v2840, %v2913
  %v2915 = vand.u32 %v2914, 4294901760
  %v2916 = vsub.f32 %v2914, %v2915
  %v2917 = vand.u32 %v2916, 4294901760
  %2918 = vmatmul.f32.gmra.mxu0 %v2917
  %v2919 = vpop.f32.mrf.mxu0
  %v2920 = vadd.f32 0.0, %v2919
  %v2921 = vand.u32 %v2842, 4294901760
  %v2922 = vsub.f32 %v2842, %v2921
  %v2923 = vand.u32 %v2922, 4294901760
  %v2924 = vsub.f32 %v2922, %v2923
  %v2925 = vand.u32 %v2924, 4294901760
  %2926 = vmatmul.f32.gmra.mxu0 %v2925
  %v2927 = vpop.f32.mrf.mxu0
  %v2928 = vadd.f32 0.0, %v2927
  %v2929 = vand.u32 %v2844, 4294901760
  %v2930 = vsub.f32 %v2844, %v2929
  %v2931 = vand.u32 %v2930, 4294901760
  %v2932 = vsub.f32 %v2930, %v2931
  %v2933 = vand.u32 %v2932, 4294901760
  %2934 = vmatmul.f32.gmra.mxu0 %v2933
  %v2935 = vpop.f32.mrf.mxu0
  %v2936 = vadd.f32 0.0, %v2935
  %v2937 = vand.u32 %v2846, 4294901760
  %v2938 = vsub.f32 %v2846, %v2937
  %v2939 = vand.u32 %v2938, 4294901760
  %v2940 = vsub.f32 %v2938, %v2939
  %v2941 = vand.u32 %v2940, 4294901760
  %2942 = vmatmul.f32.gmra.mxu0 %v2941
  %v2943 = vpop.f32.mrf.mxu0
  %v2944 = vadd.f32 0.0, %v2943
  %v2945 = vand.u32 %v2848, 4294901760
  %v2946 = vsub.f32 %v2848, %v2945
  %v2947 = vand.u32 %v2946, 4294901760
  %v2948 = vsub.f32 %v2946, %v2947
  %v2949 = vand.u32 %v2948, 4294901760
  %2950 = vmatmul.f32.gmra.mxu0 %v2949
  %v2951 = vpop.f32.mrf.mxu0
  %v2952 = vadd.f32 0.0, %v2951
  %v2953 = vand.u32 %v2850, 4294901760
  %v2954 = vsub.f32 %v2850, %v2953
  %v2955 = vand.u32 %v2954, 4294901760
  %v2956 = vsub.f32 %v2954, %v2955
  %v2957 = vand.u32 %v2956, 4294901760
  %2958 = vmatmul.f32.gmra.mxu0 %v2957
  %v2959 = vpop.f32.mrf.mxu0
  %v2960 = vadd.f32 0.0, %v2959
  %v2961 = vand.u32 %v2852, 4294901760
  %v2962 = vsub.f32 %v2852, %v2961
  %v2963 = vand.u32 %v2962, 4294901760
  %v2964 = vsub.f32 %v2962, %v2963
  %v2965 = vand.u32 %v2964, 4294901760
  %2966 = vmatmul.f32.gmra.mxu0 %v2965
  %v2967 = vpop.f32.mrf.mxu0
  %v2968 = vadd.f32 0.0, %v2967
  %2969 = vdwg.mxu0
  %2970 = vmatpush.msra.mxu0 0.0
  %2971 = vmatpush.msra.mxu0 0.0
  %2972 = vmatpush.msra.mxu0 0.0
  %2973 = vmatpush.msra.mxu0 0.0
  %2974 = vmatpush.msra.mxu0 0.0
  %2975 = vmatpush.msra.mxu0 0.0
  %2976 = vmatpush.msra.mxu0 0.0
  %2977 = vmatpush.msra.mxu0 0.0
  %2978 = vmatpush.msra.mxu0 0.0
  %2979 = vmatpush.msra.mxu0 0.0
  %2980 = vmatpush.msra.mxu0 0.0
  %2981 = vmatpush.msra.mxu0 0.0
  %2982 = vmatpush.msra.mxu0 0.0
  %2983 = vmatpush.msra.mxu0 0.0
  %2984 = vmatpush.msra.mxu0 0.0
  %2985 = vmatpush.msra.mxu0 0.0
  %v2986 = vand.u32 %v2836, 4294901760
  %2987 = vmatmul.f32.gmra.mxu0 %v2986
  %v2988 = vpop.f32.mrf.mxu0
  %v2989 = vadd.f32 %v2904, %v2988
  %v2990 = vand.u32 %v2838, 4294901760
  %2991 = vmatmul.f32.gmra.mxu0 %v2990
  %v2992 = vpop.f32.mrf.mxu0
  %v2993 = vadd.f32 %v2912, %v2992
  %v2994 = vand.u32 %v2840, 4294901760
  %2995 = vmatmul.f32.gmra.mxu0 %v2994
  %v2996 = vpop.f32.mrf.mxu0
  %v2997 = vadd.f32 %v2920, %v2996
  %v2998 = vand.u32 %v2842, 4294901760
  %2999 = vmatmul.f32.gmra.mxu0 %v2998
  %v3000 = vpop.f32.mrf.mxu0
  %v3001 = vadd.f32 %v2928, %v3000
  %v3002 = vand.u32 %v2844, 4294901760
  %3003 = vmatmul.f32.gmra.mxu0 %v3002
  %v3004 = vpop.f32.mrf.mxu0
  %v3005 = vadd.f32 %v2936, %v3004
  %v3006 = vand.u32 %v2846, 4294901760
  %3007 = vmatmul.f32.gmra.mxu0 %v3006
  %v3008 = vpop.f32.mrf.mxu0
  %v3009 = vadd.f32 %v2944, %v3008
  %v3010 = vand.u32 %v2848, 4294901760
  %3011 = vmatmul.f32.gmra.mxu0 %v3010
  %v3012 = vpop.f32.mrf.mxu0
  %v3013 = vadd.f32 %v2952, %v3012
  %v3014 = vand.u32 %v2850, 4294901760
  %3015 = vmatmul.f32.gmra.mxu0 %v3014
  %v3016 = vpop.f32.mrf.mxu0
  %v3017 = vadd.f32 %v2960, %v3016
  %v3018 = vand.u32 %v2852, 4294901760
  %3019 = vmatmul.f32.gmra.mxu0 %v3018
  %v3020 = vpop.f32.mrf.mxu0
  %v3021 = vadd.f32 %v2968, %v3020
  %3022 = vdwg.mxu0
  %3023 = vmatpush.msra.mxu0 0.0
  %3024 = vmatpush.msra.mxu0 0.0
  %3025 = vmatpush.msra.mxu0 0.0
  %3026 = vmatpush.msra.mxu0 0.0
  %3027 = vmatpush.msra.mxu0 0.0
  %3028 = vmatpush.msra.mxu0 0.0
  %3029 = vmatpush.msra.mxu0 0.0
  %3030 = vmatpush.msra.mxu0 0.0
  %3031 = vmatpush.msra.mxu0 0.0
  %3032 = vmatpush.msra.mxu0 0.0
  %3033 = vmatpush.msra.mxu0 0.0
  %3034 = vmatpush.msra.mxu0 0.0
  %3035 = vmatpush.msra.mxu0 0.0
  %3036 = vmatpush.msra.mxu0 0.0
  %3037 = vmatpush.msra.mxu0 0.0
  %3038 = vmatpush.msra.mxu0 0.0
  %v3039 = vand.u32 %v2836, 4294901760
  %v3040 = vsub.f32 %v2836, %v3039
  %3041 = vmatmul.f32.gmra.mxu0 %v3040
  %v3042 = vpop.f32.mrf.mxu0
  %v3043 = vadd.f32 %v2989, %v3042
  %v3044 = vand.u32 %v2838, 4294901760
  %v3045 = vsub.f32 %v2838, %v3044
  %3046 = vmatmul.f32.gmra.mxu0 %v3045
  %v3047 = vpop.f32.mrf.mxu0
  %v3048 = vadd.f32 %v2993, %v3047
  %v3049 = vand.u32 %v2840, 4294901760
  %v3050 = vsub.f32 %v2840, %v3049
  %3051 = vmatmul.f32.gmra.mxu0 %v3050
  %v3052 = vpop.f32.mrf.mxu0
  %v3053 = vadd.f32 %v2997, %v3052
  %v3054 = vand.u32 %v2842, 4294901760
  %v3055 = vsub.f32 %v2842, %v3054
  %3056 = vmatmul.f32.gmra.mxu0 %v3055
  %v3057 = vpop.f32.mrf.mxu0
  %v3058 = vadd.f32 %v3001, %v3057
  %v3059 = vand.u32 %v2844, 4294901760
  %v3060 = vsub.f32 %v2844, %v3059
  %3061 = vmatmul.f32.gmra.mxu0 %v3060
  %v3062 = vpop.f32.mrf.mxu0
  %v3063 = vadd.f32 %v3005, %v3062
  %v3064 = vand.u32 %v2846, 4294901760
  %v3065 = vsub.f32 %v2846, %v3064
  %3066 = vmatmul.f32.gmra.mxu0 %v3065
  %v3067 = vpop.f32.mrf.mxu0
  %v3068 = vadd.f32 %v3009, %v3067
  %v3069 = vand.u32 %v2848, 4294901760
  %v3070 = vsub.f32 %v2848, %v3069
  %3071 = vmatmul.f32.gmra.mxu0 %v3070
  %v3072 = vpop.f32.mrf.mxu0
  %v3073 = vadd.f32 %v3013, %v3072
  %v3074 = vand.u32 %v2850, 4294901760
  %v3075 = vsub.f32 %v2850, %v3074
  %3076 = vmatmul.f32.gmra.mxu0 %v3075
  %v3077 = vpop.f32.mrf.mxu0
  %v3078 = vadd.f32 %v3017, %v3077
  %v3079 = vand.u32 %v2852, 4294901760
  %v3080 = vsub.f32 %v2852, %v3079
  %3081 = vmatmul.f32.gmra.mxu0 %v3080
  %v3082 = vpop.f32.mrf.mxu0
  %v3083 = vadd.f32 %v3021, %v3082
  %3084 = vdwg.mxu0
  %3085 = vmatpush.msra.mxu0 1.0
  %3086 = vmatpush.msra.mxu0 1.0
  %3087 = vmatpush.msra.mxu0 1.0
  %3088 = vmatpush.msra.mxu0 1.0
  %3089 = vmatpush.msra.mxu0 1.0
  %3090 = vmatpush.msra.mxu0 1.0
  %3091 = vmatpush.msra.mxu0 1.0
  %3092 = vmatpush.msra.mxu0 1.0
  %3093 = vmatpush.msra.mxu0 1.0
  %3094 = vmatpush.msra.mxu0 1.0
  %3095 = vmatpush.msra.mxu0 1.0
  %3096 = vmatpush.msra.mxu0 1.0
  %3097 = vmatpush.msra.mxu0 1.0
  %3098 = vmatpush.msra.mxu0 1.0
  %3099 = vmatpush.msra.mxu0 1.0
  %3100 = vmatpush.msra.mxu0 1.0
  %v3101 = vand.u32 %v2836, 4294901760
  %v3102 = vsub.f32 %v2836, %v3101
  %v3103 = vand.u32 %v3102, 4294901760
  %3104 = vmatmul.f32.gmra.mxu0 %v3103
  %v3105 = vpop.f32.mrf.mxu0
  %v3106 = vadd.f32 %v3043, %v3105
  %v3107 = vand.u32 %v2838, 4294901760
  %v3108 = vsub.f32 %v2838, %v3107
  %v3109 = vand.u32 %v3108, 4294901760
  %3110 = vmatmul.f32.gmra.mxu0 %v3109
  %v3111 = vpop.f32.mrf.mxu0
  %v3112 = vadd.f32 %v3048, %v3111
  %v3113 = vand.u32 %v2840, 4294901760
  %v3114 = vsub.f32 %v2840, %v3113
  %v3115 = vand.u32 %v3114, 4294901760
  %3116 = vmatmul.f32.gmra.mxu0 %v3115
  %v3117 = vpop.f32.mrf.mxu0
  %v3118 = vadd.f32 %v3053, %v3117
  %v3119 = vand.u32 %v2842, 4294901760
  %v3120 = vsub.f32 %v2842, %v3119
  %v3121 = vand.u32 %v3120, 4294901760
  %3122 = vmatmul.f32.gmra.mxu0 %v3121
  %v3123 = vpop.f32.mrf.mxu0
  %v3124 = vadd.f32 %v3058, %v3123
  %v3125 = vand.u32 %v2844, 4294901760
  %v3126 = vsub.f32 %v2844, %v3125
  %v3127 = vand.u32 %v3126, 4294901760
  %3128 = vmatmul.f32.gmra.mxu0 %v3127
  %v3129 = vpop.f32.mrf.mxu0
  %v3130 = vadd.f32 %v3063, %v3129
  %v3131 = vand.u32 %v2846, 4294901760
  %v3132 = vsub.f32 %v2846, %v3131
  %v3133 = vand.u32 %v3132, 4294901760
  %3134 = vmatmul.f32.gmra.mxu0 %v3133
  %v3135 = vpop.f32.mrf.mxu0
  %v3136 = vadd.f32 %v3068, %v3135
  %v3137 = vand.u32 %v2848, 4294901760
  %v3138 = vsub.f32 %v2848, %v3137
  %v3139 = vand.u32 %v3138, 4294901760
  %3140 = vmatmul.f32.gmra.mxu0 %v3139
  %v3141 = vpop.f32.mrf.mxu0
  %v3142 = vadd.f32 %v3073, %v3141
  %v3143 = vand.u32 %v2850, 4294901760
  %v3144 = vsub.f32 %v2850, %v3143
  %v3145 = vand.u32 %v3144, 4294901760
  %3146 = vmatmul.f32.gmra.mxu0 %v3145
  %v3147 = vpop.f32.mrf.mxu0
  %v3148 = vadd.f32 %v3078, %v3147
  %v3149 = vand.u32 %v2852, 4294901760
  %v3150 = vsub.f32 %v2852, %v3149
  %v3151 = vand.u32 %v3150, 4294901760
  %3152 = vmatmul.f32.gmra.mxu0 %v3151
  %v3153 = vpop.f32.mrf.mxu0
  %v3154 = vadd.f32 %v3083, %v3153
  %3155 = vdwg.mxu0
  %3156 = vmatpush.msra.mxu0 0.0
  %3157 = vmatpush.msra.mxu0 0.0
  %3158 = vmatpush.msra.mxu0 0.0
  %3159 = vmatpush.msra.mxu0 0.0
  %3160 = vmatpush.msra.mxu0 0.0
  %3161 = vmatpush.msra.mxu0 0.0
  %3162 = vmatpush.msra.mxu0 0.0
  %3163 = vmatpush.msra.mxu0 0.0
  %3164 = vmatpush.msra.mxu0 0.0
  %3165 = vmatpush.msra.mxu0 0.0
  %3166 = vmatpush.msra.mxu0 0.0
  %3167 = vmatpush.msra.mxu0 0.0
  %3168 = vmatpush.msra.mxu0 0.0
  %3169 = vmatpush.msra.mxu0 0.0
  %3170 = vmatpush.msra.mxu0 0.0
  %3171 = vmatpush.msra.mxu0 0.0
  %v3172 = vand.u32 %v2836, 4294901760
  %3173 = vmatmul.f32.gmra.mxu0 %v3172
  %v3174 = vpop.f32.mrf.mxu0
  %v3175 = vadd.f32 %v3106, %v3174
  %v3176 = vand.u32 %v2838, 4294901760
  %3177 = vmatmul.f32.gmra.mxu0 %v3176
  %v3178 = vpop.f32.mrf.mxu0
  %v3179 = vadd.f32 %v3112, %v3178
  %v3180 = vand.u32 %v2840, 4294901760
  %3181 = vmatmul.f32.gmra.mxu0 %v3180
  %v3182 = vpop.f32.mrf.mxu0
  %v3183 = vadd.f32 %v3118, %v3182
  %v3184 = vand.u32 %v2842, 4294901760
  %3185 = vmatmul.f32.gmra.mxu0 %v3184
  %v3186 = vpop.f32.mrf.mxu0
  %v3187 = vadd.f32 %v3124, %v3186
  %v3188 = vand.u32 %v2844, 4294901760
  %3189 = vmatmul.f32.gmra.mxu0 %v3188
  %v3190 = vpop.f32.mrf.mxu0
  %v3191 = vadd.f32 %v3130, %v3190
  %v3192 = vand.u32 %v2846, 4294901760
  %3193 = vmatmul.f32.gmra.mxu0 %v3192
  %v3194 = vpop.f32.mrf.mxu0
  %v3195 = vadd.f32 %v3136, %v3194
  %v3196 = vand.u32 %v2848, 4294901760
  %3197 = vmatmul.f32.gmra.mxu0 %v3196
  %v3198 = vpop.f32.mrf.mxu0
  %v3199 = vadd.f32 %v3142, %v3198
  %v3200 = vand.u32 %v2850, 4294901760
  %3201 = vmatmul.f32.gmra.mxu0 %v3200
  %v3202 = vpop.f32.mrf.mxu0
  %v3203 = vadd.f32 %v3148, %v3202
  %v3204 = vand.u32 %v2852, 4294901760
  %3205 = vmatmul.f32.gmra.mxu0 %v3204
  %v3206 = vpop.f32.mrf.mxu0
  %v3207 = vadd.f32 %v3154, %v3206
  %3208 = vdwg.mxu0
  %3209 = vmatpush.msra.mxu0 1.0
  %3210 = vmatpush.msra.mxu0 1.0
  %3211 = vmatpush.msra.mxu0 1.0
  %3212 = vmatpush.msra.mxu0 1.0
  %3213 = vmatpush.msra.mxu0 1.0
  %3214 = vmatpush.msra.mxu0 1.0
  %3215 = vmatpush.msra.mxu0 1.0
  %3216 = vmatpush.msra.mxu0 1.0
  %3217 = vmatpush.msra.mxu0 1.0
  %3218 = vmatpush.msra.mxu0 1.0
  %3219 = vmatpush.msra.mxu0 1.0
  %3220 = vmatpush.msra.mxu0 1.0
  %3221 = vmatpush.msra.mxu0 1.0
  %3222 = vmatpush.msra.mxu0 1.0
  %3223 = vmatpush.msra.mxu0 1.0
  %3224 = vmatpush.msra.mxu0 1.0
  %v3225 = vand.u32 %v2836, 4294901760
  %3226 = vmatmul.f32.gmra.mxu0 %v3225
  %v3227 = vpop.f32.mrf.mxu0
  %v3228 = vadd.f32 %v3175, %v3227
  %v3229 = vand.u32 %v2838, 4294901760
  %3230 = vmatmul.f32.gmra.mxu0 %v3229
  %v3231 = vpop.f32.mrf.mxu0
  %v3232 = vadd.f32 %v3179, %v3231
  %v3233 = vand.u32 %v2840, 4294901760
  %3234 = vmatmul.f32.gmra.mxu0 %v3233
  %v3235 = vpop.f32.mrf.mxu0
  %v3236 = vadd.f32 %v3183, %v3235
  %v3237 = vand.u32 %v2842, 4294901760
  %3238 = vmatmul.f32.gmra.mxu0 %v3237
  %v3239 = vpop.f32.mrf.mxu0
  %v3240 = vadd.f32 %v3187, %v3239
  %v3241 = vand.u32 %v2844, 4294901760
  %3242 = vmatmul.f32.gmra.mxu0 %v3241
  %v3243 = vpop.f32.mrf.mxu0
  %v3244 = vadd.f32 %v3191, %v3243
  %v3245 = vand.u32 %v2846, 4294901760
  %3246 = vmatmul.f32.gmra.mxu0 %v3245
  %v3247 = vpop.f32.mrf.mxu0
  %v3248 = vadd.f32 %v3195, %v3247
  %v3249 = vand.u32 %v2848, 4294901760
  %3250 = vmatmul.f32.gmra.mxu0 %v3249
  %v3251 = vpop.f32.mrf.mxu0
  %v3252 = vadd.f32 %v3199, %v3251
  %v3253 = vand.u32 %v2850, 4294901760
  %3254 = vmatmul.f32.gmra.mxu0 %v3253
  %v3255 = vpop.f32.mrf.mxu0
  %v3256 = vadd.f32 %v3203, %v3255
  %v3257 = vand.u32 %v2852, 4294901760
  %3258 = vmatmul.f32.gmra.mxu0 %v3257
  %v3259 = vpop.f32.mrf.mxu0
  %v3260 = vadd.f32 %v3207, %v3259
  %3261 = vdwg.mxu0
  %3262 = vmatpush.msra.mxu0 0.0
  %3263 = vmatpush.msra.mxu0 0.0
  %3264 = vmatpush.msra.mxu0 0.0
  %3265 = vmatpush.msra.mxu0 0.0
  %3266 = vmatpush.msra.mxu0 0.0
  %3267 = vmatpush.msra.mxu0 0.0
  %3268 = vmatpush.msra.mxu0 0.0
  %v3269 = vand.u32 %v59, 4294901760
  %3270 = vmatpush.msra.mxu0 %v3269
  %3271 = vmatpush.msra.mxu0 1.0
  %3272 = vmatpush.msra.mxu0 1.0
  %3273 = vmatpush.msra.mxu0 1.0
  %3274 = vmatpush.msra.mxu0 1.0
  %3275 = vmatpush.msra.mxu0 1.0
  %3276 = vmatpush.msra.mxu0 1.0
  %3277 = vmatpush.msra.mxu0 1.0
  %3278 = vmatpush.msra.mxu0 1.0
  %v3279 = vand.u32 %v2855, 4294901760
  %v3280 = vsub.f32 %v2855, %v3279
  %v3281 = vand.u32 %v3280, 4294901760
  %v3282 = vsub.f32 %v3280, %v3281
  %v3283 = vand.u32 %v3282, 4294901760
  %3284 = vmatmul.f32.gmra.mxu0 %v3283
  %v3285 = vpop.f32.mrf.mxu0
  %v3286 = vadd.f32 %v3228, %v3285
  %v3287 = vand.u32 %v2858, 4294901760
  %v3288 = vsub.f32 %v2858, %v3287
  %v3289 = vand.u32 %v3288, 4294901760
  %v3290 = vsub.f32 %v3288, %v3289
  %v3291 = vand.u32 %v3290, 4294901760
  %3292 = vmatmul.f32.gmra.mxu0 %v3291
  %v3293 = vpop.f32.mrf.mxu0
  %v3294 = vadd.f32 %v3232, %v3293
  %v3295 = vand.u32 %v2861, 4294901760
  %v3296 = vsub.f32 %v2861, %v3295
  %v3297 = vand.u32 %v3296, 4294901760
  %v3298 = vsub.f32 %v3296, %v3297
  %v3299 = vand.u32 %v3298, 4294901760
  %3300 = vmatmul.f32.gmra.mxu0 %v3299
  %v3301 = vpop.f32.mrf.mxu0
  %v3302 = vadd.f32 %v3236, %v3301
  %v3303 = vand.u32 %v2864, 4294901760
  %v3304 = vsub.f32 %v2864, %v3303
  %v3305 = vand.u32 %v3304, 4294901760
  %v3306 = vsub.f32 %v3304, %v3305
  %v3307 = vand.u32 %v3306, 4294901760
  %3308 = vmatmul.f32.gmra.mxu0 %v3307
  %v3309 = vpop.f32.mrf.mxu0
  %v3310 = vadd.f32 %v3240, %v3309
  %v3311 = vand.u32 %v2867, 4294901760
  %v3312 = vsub.f32 %v2867, %v3311
  %v3313 = vand.u32 %v3312, 4294901760
  %v3314 = vsub.f32 %v3312, %v3313
  %v3315 = vand.u32 %v3314, 4294901760
  %3316 = vmatmul.f32.gmra.mxu0 %v3315
  %v3317 = vpop.f32.mrf.mxu0
  %v3318 = vadd.f32 %v3244, %v3317
  %v3319 = vand.u32 %v2870, 4294901760
  %v3320 = vsub.f32 %v2870, %v3319
  %v3321 = vand.u32 %v3320, 4294901760
  %v3322 = vsub.f32 %v3320, %v3321
  %v3323 = vand.u32 %v3322, 4294901760
  %3324 = vmatmul.f32.gmra.mxu0 %v3323
  %v3325 = vpop.f32.mrf.mxu0
  %v3326 = vadd.f32 %v3248, %v3325
  %v3327 = vand.u32 %v2873, 4294901760
  %v3328 = vsub.f32 %v2873, %v3327
  %v3329 = vand.u32 %v3328, 4294901760
  %v3330 = vsub.f32 %v3328, %v3329
  %v3331 = vand.u32 %v3330, 4294901760
  %3332 = vmatmul.f32.gmra.mxu0 %v3331
  %v3333 = vpop.f32.mrf.mxu0
  %v3334 = vadd.f32 %v3252, %v3333
  %v3335 = vand.u32 %v2876, 4294901760
  %v3336 = vsub.f32 %v2876, %v3335
  %v3337 = vand.u32 %v3336, 4294901760
  %v3338 = vsub.f32 %v3336, %v3337
  %v3339 = vand.u32 %v3338, 4294901760
  %3340 = vmatmul.f32.gmra.mxu0 %v3339
  %v3341 = vpop.f32.mrf.mxu0
  %v3342 = vadd.f32 %v3256, %v3341
  %v3343 = vand.u32 %v2879, 4294901760
  %v3344 = vsub.f32 %v2879, %v3343
  %v3345 = vand.u32 %v3344, 4294901760
  %v3346 = vsub.f32 %v3344, %v3345
  %v3347 = vand.u32 %v3346, 4294901760
  %3348 = vmatmul.f32.gmra.mxu0 %v3347
  %v3349 = vpop.f32.mrf.mxu0
  %v3350 = vadd.f32 %v3260, %v3349
  %3351 = vdwg.mxu0
  %3352 = vmatpush.msra.mxu0 0.0
  %3353 = vmatpush.msra.mxu0 0.0
  %3354 = vmatpush.msra.mxu0 0.0
  %3355 = vmatpush.msra.mxu0 0.0
  %3356 = vmatpush.msra.mxu0 0.0
  %3357 = vmatpush.msra.mxu0 0.0
  %3358 = vmatpush.msra.mxu0 0.0
  %v3359 = vand.u32 %v59, 4294901760
  %v3360 = vsub.f32 %v59, %v3359
  %v3361 = vand.u32 %v3360, 4294901760
  %v3362 = vsub.f32 %v3360, %v3361
  %v3363 = vand.u32 %v3362, 4294901760
  %3364 = vmatpush.msra.mxu0 %v3363
  %3365 = vmatpush.msra.mxu0 0.0
  %3366 = vmatpush.msra.mxu0 0.0
  %3367 = vmatpush.msra.mxu0 0.0
  %3368 = vmatpush.msra.mxu0 0.0
  %3369 = vmatpush.msra.mxu0 0.0
  %3370 = vmatpush.msra.mxu0 0.0
  %3371 = vmatpush.msra.mxu0 0.0
  %3372 = vmatpush.msra.mxu0 0.0
  %v3373 = vand.u32 %v2855, 4294901760
  %3374 = vmatmul.f32.gmra.mxu0 %v3373
  %v3375 = vpop.f32.mrf.mxu0
  %v3376 = vadd.f32 %v3286, %v3375
  %v3377 = vand.u32 %v2858, 4294901760
  %3378 = vmatmul.f32.gmra.mxu0 %v3377
  %v3379 = vpop.f32.mrf.mxu0
  %v3380 = vadd.f32 %v3294, %v3379
  %v3381 = vand.u32 %v2861, 4294901760
  %3382 = vmatmul.f32.gmra.mxu0 %v3381
  %v3383 = vpop.f32.mrf.mxu0
  %v3384 = vadd.f32 %v3302, %v3383
  %v3385 = vand.u32 %v2864, 4294901760
  %3386 = vmatmul.f32.gmra.mxu0 %v3385
  %v3387 = vpop.f32.mrf.mxu0
  %v3388 = vadd.f32 %v3310, %v3387
  %v3389 = vand.u32 %v2867, 4294901760
  %3390 = vmatmul.f32.gmra.mxu0 %v3389
  %v3391 = vpop.f32.mrf.mxu0
  %v3392 = vadd.f32 %v3318, %v3391
  %v3393 = vand.u32 %v2870, 4294901760
  %3394 = vmatmul.f32.gmra.mxu0 %v3393
  %v3395 = vpop.f32.mrf.mxu0
  %v3396 = vadd.f32 %v3326, %v3395
  %v3397 = vand.u32 %v2873, 4294901760
  %3398 = vmatmul.f32.gmra.mxu0 %v3397
  %v3399 = vpop.f32.mrf.mxu0
  %v3400 = vadd.f32 %v3334, %v3399
  %v3401 = vand.u32 %v2876, 4294901760
  %3402 = vmatmul.f32.gmra.mxu0 %v3401
  %v3403 = vpop.f32.mrf.mxu0
  %v3404 = vadd.f32 %v3342, %v3403
  %v3405 = vand.u32 %v2879, 4294901760
  %3406 = vmatmul.f32.gmra.mxu0 %v3405
  %v3407 = vpop.f32.mrf.mxu0
  %v3408 = vadd.f32 %v3350, %v3407
  %3409 = vdwg.mxu0
  %3410 = vmatpush.msra.mxu0 0.0
  %3411 = vmatpush.msra.mxu0 0.0
  %3412 = vmatpush.msra.mxu0 0.0
  %3413 = vmatpush.msra.mxu0 0.0
  %3414 = vmatpush.msra.mxu0 0.0
  %3415 = vmatpush.msra.mxu0 0.0
  %3416 = vmatpush.msra.mxu0 0.0
  %v3417 = vand.u32 %v59, 4294901760
  %v3418 = vsub.f32 %v59, %v3417
  %3419 = vmatpush.msra.mxu0 %v3418
  %3420 = vmatpush.msra.mxu0 0.0
  %3421 = vmatpush.msra.mxu0 0.0
  %3422 = vmatpush.msra.mxu0 0.0
  %3423 = vmatpush.msra.mxu0 0.0
  %3424 = vmatpush.msra.mxu0 0.0
  %3425 = vmatpush.msra.mxu0 0.0
  %3426 = vmatpush.msra.mxu0 0.0
  %3427 = vmatpush.msra.mxu0 0.0
  %v3428 = vand.u32 %v2855, 4294901760
  %v3429 = vsub.f32 %v2855, %v3428
  %3430 = vmatmul.f32.gmra.mxu0 %v3429
  %v3431 = vpop.f32.mrf.mxu0
  %v3432 = vadd.f32 %v3376, %v3431
  %v3433 = vand.u32 %v2858, 4294901760
  %v3434 = vsub.f32 %v2858, %v3433
  %3435 = vmatmul.f32.gmra.mxu0 %v3434
  %v3436 = vpop.f32.mrf.mxu0
  %v3437 = vadd.f32 %v3380, %v3436
  %v3438 = vand.u32 %v2861, 4294901760
  %v3439 = vsub.f32 %v2861, %v3438
  %3440 = vmatmul.f32.gmra.mxu0 %v3439
  %v3441 = vpop.f32.mrf.mxu0
  %v3442 = vadd.f32 %v3384, %v3441
  %v3443 = vand.u32 %v2864, 4294901760
  %v3444 = vsub.f32 %v2864, %v3443
  %3445 = vmatmul.f32.gmra.mxu0 %v3444
  %v3446 = vpop.f32.mrf.mxu0
  %v3447 = vadd.f32 %v3388, %v3446
  %v3448 = vand.u32 %v2867, 4294901760
  %v3449 = vsub.f32 %v2867, %v3448
  %3450 = vmatmul.f32.gmra.mxu0 %v3449
  %v3451 = vpop.f32.mrf.mxu0
  %v3452 = vadd.f32 %v3392, %v3451
  %v3453 = vand.u32 %v2870, 4294901760
  %v3454 = vsub.f32 %v2870, %v3453
  %3455 = vmatmul.f32.gmra.mxu0 %v3454
  %v3456 = vpop.f32.mrf.mxu0
  %v3457 = vadd.f32 %v3396, %v3456
  %v3458 = vand.u32 %v2873, 4294901760
  %v3459 = vsub.f32 %v2873, %v3458
  %3460 = vmatmul.f32.gmra.mxu0 %v3459
  %v3461 = vpop.f32.mrf.mxu0
  %v3462 = vadd.f32 %v3400, %v3461
  %v3463 = vand.u32 %v2876, 4294901760
  %v3464 = vsub.f32 %v2876, %v3463
  %3465 = vmatmul.f32.gmra.mxu0 %v3464
  %v3466 = vpop.f32.mrf.mxu0
  %v3467 = vadd.f32 %v3404, %v3466
  %v3468 = vand.u32 %v2879, 4294901760
  %v3469 = vsub.f32 %v2879, %v3468
  %3470 = vmatmul.f32.gmra.mxu0 %v3469
  %v3471 = vpop.f32.mrf.mxu0
  %v3472 = vadd.f32 %v3408, %v3471
  %3473 = vdwg.mxu0
  %3474 = vmatpush.msra.mxu0 0.0
  %3475 = vmatpush.msra.mxu0 0.0
  %3476 = vmatpush.msra.mxu0 0.0
  %3477 = vmatpush.msra.mxu0 0.0
  %3478 = vmatpush.msra.mxu0 0.0
  %3479 = vmatpush.msra.mxu0 0.0
  %3480 = vmatpush.msra.mxu0 0.0
  %v3481 = vand.u32 %v59, 4294901760
  %3482 = vmatpush.msra.mxu0 %v3481
  %3483 = vmatpush.msra.mxu0 1.0
  %3484 = vmatpush.msra.mxu0 1.0
  %3485 = vmatpush.msra.mxu0 1.0
  %3486 = vmatpush.msra.mxu0 1.0
  %3487 = vmatpush.msra.mxu0 1.0
  %3488 = vmatpush.msra.mxu0 1.0
  %3489 = vmatpush.msra.mxu0 1.0
  %3490 = vmatpush.msra.mxu0 1.0
  %v3491 = vand.u32 %v2855, 4294901760
  %v3492 = vsub.f32 %v2855, %v3491
  %v3493 = vand.u32 %v3492, 4294901760
  %3494 = vmatmul.f32.gmra.mxu0 %v3493
  %v3495 = vpop.f32.mrf.mxu0
  %v3496 = vadd.f32 %v3432, %v3495
  %v3497 = vand.u32 %v2858, 4294901760
  %v3498 = vsub.f32 %v2858, %v3497
  %v3499 = vand.u32 %v3498, 4294901760
  %3500 = vmatmul.f32.gmra.mxu0 %v3499
  %v3501 = vpop.f32.mrf.mxu0
  %v3502 = vadd.f32 %v3437, %v3501
  %v3503 = vand.u32 %v2861, 4294901760
  %v3504 = vsub.f32 %v2861, %v3503
  %v3505 = vand.u32 %v3504, 4294901760
  %3506 = vmatmul.f32.gmra.mxu0 %v3505
  %v3507 = vpop.f32.mrf.mxu0
  %v3508 = vadd.f32 %v3442, %v3507
  %v3509 = vand.u32 %v2864, 4294901760
  %v3510 = vsub.f32 %v2864, %v3509
  %v3511 = vand.u32 %v3510, 4294901760
  %3512 = vmatmul.f32.gmra.mxu0 %v3511
  %v3513 = vpop.f32.mrf.mxu0
  %v3514 = vadd.f32 %v3447, %v3513
  %v3515 = vand.u32 %v2867, 4294901760
  %v3516 = vsub.f32 %v2867, %v3515
  %v3517 = vand.u32 %v3516, 4294901760
  %3518 = vmatmul.f32.gmra.mxu0 %v3517
  %v3519 = vpop.f32.mrf.mxu0
  %v3520 = vadd.f32 %v3452, %v3519
  %v3521 = vand.u32 %v2870, 4294901760
  %v3522 = vsub.f32 %v2870, %v3521
  %v3523 = vand.u32 %v3522, 4294901760
  %3524 = vmatmul.f32.gmra.mxu0 %v3523
  %v3525 = vpop.f32.mrf.mxu0
  %v3526 = vadd.f32 %v3457, %v3525
  %v3527 = vand.u32 %v2873, 4294901760
  %v3528 = vsub.f32 %v2873, %v3527
  %v3529 = vand.u32 %v3528, 4294901760
  %3530 = vmatmul.f32.gmra.mxu0 %v3529
  %v3531 = vpop.f32.mrf.mxu0
  %v3532 = vadd.f32 %v3462, %v3531
  %v3533 = vand.u32 %v2876, 4294901760
  %v3534 = vsub.f32 %v2876, %v3533
  %v3535 = vand.u32 %v3534, 4294901760
  %3536 = vmatmul.f32.gmra.mxu0 %v3535
  %v3537 = vpop.f32.mrf.mxu0
  %v3538 = vadd.f32 %v3467, %v3537
  %v3539 = vand.u32 %v2879, 4294901760
  %v3540 = vsub.f32 %v2879, %v3539
  %v3541 = vand.u32 %v3540, 4294901760
  %3542 = vmatmul.f32.gmra.mxu0 %v3541
  %v3543 = vpop.f32.mrf.mxu0
  %v3544 = vadd.f32 %v3472, %v3543
  %3545 = vdwg.mxu0
  %3546 = vmatpush.msra.mxu0 0.0
  %3547 = vmatpush.msra.mxu0 0.0
  %3548 = vmatpush.msra.mxu0 0.0
  %3549 = vmatpush.msra.mxu0 0.0
  %3550 = vmatpush.msra.mxu0 0.0
  %3551 = vmatpush.msra.mxu0 0.0
  %3552 = vmatpush.msra.mxu0 0.0
  %v3553 = vand.u32 %v59, 4294901760
  %v3554 = vsub.f32 %v59, %v3553
  %v3555 = vand.u32 %v3554, 4294901760
  %3556 = vmatpush.msra.mxu0 %v3555
  %3557 = vmatpush.msra.mxu0 0.0
  %3558 = vmatpush.msra.mxu0 0.0
  %3559 = vmatpush.msra.mxu0 0.0
  %3560 = vmatpush.msra.mxu0 0.0
  %3561 = vmatpush.msra.mxu0 0.0
  %3562 = vmatpush.msra.mxu0 0.0
  %3563 = vmatpush.msra.mxu0 0.0
  %3564 = vmatpush.msra.mxu0 0.0
  %v3565 = vand.u32 %v2855, 4294901760
  %3566 = vmatmul.f32.gmra.mxu0 %v3565
  %v3567 = vpop.f32.mrf.mxu0
  %v3568 = vadd.f32 %v3496, %v3567
  %v3569 = vand.u32 %v2858, 4294901760
  %3570 = vmatmul.f32.gmra.mxu0 %v3569
  %v3571 = vpop.f32.mrf.mxu0
  %v3572 = vadd.f32 %v3502, %v3571
  %v3573 = vand.u32 %v2861, 4294901760
  %3574 = vmatmul.f32.gmra.mxu0 %v3573
  %v3575 = vpop.f32.mrf.mxu0
  %v3576 = vadd.f32 %v3508, %v3575
  %v3577 = vand.u32 %v2864, 4294901760
  %3578 = vmatmul.f32.gmra.mxu0 %v3577
  %v3579 = vpop.f32.mrf.mxu0
  %v3580 = vadd.f32 %v3514, %v3579
  %v3581 = vand.u32 %v2867, 4294901760
  %3582 = vmatmul.f32.gmra.mxu0 %v3581
  %v3583 = vpop.f32.mrf.mxu0
  %v3584 = vadd.f32 %v3520, %v3583
  %v3585 = vand.u32 %v2870, 4294901760
  %3586 = vmatmul.f32.gmra.mxu0 %v3585
  %v3587 = vpop.f32.mrf.mxu0
  %v3588 = vadd.f32 %v3526, %v3587
  %v3589 = vand.u32 %v2873, 4294901760
  %3590 = vmatmul.f32.gmra.mxu0 %v3589
  %v3591 = vpop.f32.mrf.mxu0
  %v3592 = vadd.f32 %v3532, %v3591
  %v3593 = vand.u32 %v2876, 4294901760
  %3594 = vmatmul.f32.gmra.mxu0 %v3593
  %v3595 = vpop.f32.mrf.mxu0
  %v3596 = vadd.f32 %v3538, %v3595
  %v3597 = vand.u32 %v2879, 4294901760
  %3598 = vmatmul.f32.gmra.mxu0 %v3597
  %v3599 = vpop.f32.mrf.mxu0
  %v3600 = vadd.f32 %v3544, %v3599
  %3601 = vdwg.mxu0
  %3602 = vmatpush.msra.mxu0 0.0
  %3603 = vmatpush.msra.mxu0 0.0
  %3604 = vmatpush.msra.mxu0 0.0
  %3605 = vmatpush.msra.mxu0 0.0
  %3606 = vmatpush.msra.mxu0 0.0
  %3607 = vmatpush.msra.mxu0 0.0
  %3608 = vmatpush.msra.mxu0 0.0
  %v3609 = vand.u32 %v59, 4294901760
  %3610 = vmatpush.msra.mxu0 %v3609
  %3611 = vmatpush.msra.mxu0 1.0
  %3612 = vmatpush.msra.mxu0 1.0
  %3613 = vmatpush.msra.mxu0 1.0
  %3614 = vmatpush.msra.mxu0 1.0
  %3615 = vmatpush.msra.mxu0 1.0
  %3616 = vmatpush.msra.mxu0 1.0
  %3617 = vmatpush.msra.mxu0 1.0
  %3618 = vmatpush.msra.mxu0 1.0
  %v3619 = vand.u32 %v2855, 4294901760
  %3620 = vmatmul.f32.gmra.mxu0 %v3619
  %v3621 = vpop.f32.mrf.mxu0
  %v3622 = vadd.f32 %v3568, %v3621
  %v3623 = vand.u32 %v2858, 4294901760
  %3624 = vmatmul.f32.gmra.mxu0 %v3623
  %v3625 = vpop.f32.mrf.mxu0
  %v3626 = vadd.f32 %v3572, %v3625
  %v3627 = vand.u32 %v2861, 4294901760
  %3628 = vmatmul.f32.gmra.mxu0 %v3627
  %v3629 = vpop.f32.mrf.mxu0
  %v3630 = vadd.f32 %v3576, %v3629
  %v3631 = vand.u32 %v2864, 4294901760
  %3632 = vmatmul.f32.gmra.mxu0 %v3631
  %v3633 = vpop.f32.mrf.mxu0
  %v3634 = vadd.f32 %v3580, %v3633
  %v3635 = vand.u32 %v2867, 4294901760
  %3636 = vmatmul.f32.gmra.mxu0 %v3635
  %v3637 = vpop.f32.mrf.mxu0
  %v3638 = vadd.f32 %v3584, %v3637
  %v3639 = vand.u32 %v2870, 4294901760
  %3640 = vmatmul.f32.gmra.mxu0 %v3639
  %v3641 = vpop.f32.mrf.mxu0
  %v3642 = vadd.f32 %v3588, %v3641
  %v3643 = vand.u32 %v2873, 4294901760
  %3644 = vmatmul.f32.gmra.mxu0 %v3643
  %v3645 = vpop.f32.mrf.mxu0
  %v3646 = vadd.f32 %v3592, %v3645
  %v3647 = vand.u32 %v2876, 4294901760
  %3648 = vmatmul.f32.gmra.mxu0 %v3647
  %v3649 = vpop.f32.mrf.mxu0
  %v3650 = vadd.f32 %v3596, %v3649
  %v3651 = vand.u32 %v2879, 4294901760
  %3652 = vmatmul.f32.gmra.mxu0 %v3651
  %v3653 = vpop.f32.mrf.mxu0
  %v3654 = vadd.f32 %v3600, %v3653
  %3655 = vdwg.mxu0
  %v3656 = vmul.f32 %v2802, 0.0051020407
  %v3657 = vmul.f32 %v2806, 0.0051020407
  %v3658 = vmul.f32 %v2810, 0.0051020407
  %v3659 = vmul.f32 %v2814, 0.0051020407
  %v3660 = vmul.f32 %v2818, 0.0051020407
  %v3661 = vmul.f32 %v2822, 0.0051020407
  %v3662 = vmul.f32 %v2826, 0.0051020407
  %v3663 = vmul.f32 %v2830, 0.0051020407
  %v3664 = vmul.f32 %v2834, 0.0051020407
  %v3665 = vmul.f32 %v3622, 0.0051020407
  %v3666 = vmul.f32 %v3626, 0.0051020407
  %v3667 = vmul.f32 %v3630, 0.0051020407
  %v3668 = vmul.f32 %v3634, 0.0051020407
  %v3669 = vmul.f32 %v3638, 0.0051020407
  %v3670 = vmul.f32 %v3642, 0.0051020407
  %v3671 = vmul.f32 %v3646, 0.0051020407
  %v3672 = vmul.f32 %v3650, 0.0051020407
  %v3673 = vmul.f32 %v3654, 0.0051020407
  %v3674 = vmul.f32 %v3656, %v3656
  %v3675 = vmul.f32 %v3657, %v3657
  %v3676 = vmul.f32 %v3658, %v3658
  %v3677 = vmul.f32 %v3659, %v3659
  %v3678 = vmul.f32 %v3660, %v3660
  %v3679 = vmul.f32 %v3661, %v3661
  %v3680 = vmul.f32 %v3662, %v3662
  %v3681 = vmul.f32 %v3663, %v3663
  %v3682 = vmul.f32 %v3664, %v3664
  %v3683 = vsub.f32 %v3665, %v3674
  %v3684 = vsub.f32 %v3666, %v3675
  %v3685 = vsub.f32 %v3667, %v3676
  %v3686 = vsub.f32 %v3668, %v3677
  %v3687 = vsub.f32 %v3669, %v3678
  %v3688 = vsub.f32 %v3670, %v3679
  %v3689 = vsub.f32 %v3671, %v3680
  %v3690 = vsub.f32 %v3672, %v3681
  %v3691 = vsub.f32 %v3673, %v3682
  %v3692 = vmax.f32 %v3683, 0.0
  %v3693 = vmax.f32 %v3684, 0.0
  %v3694 = vmax.f32 %v3685, 0.0
  %v3695 = vmax.f32 %v3686, 0.0
  %v3696 = vmax.f32 %v3687, 0.0
  %v3697 = vmax.f32 %v3688, 0.0
  %v3698 = vmax.f32 %v3689, 0.0
  %v3699 = vmax.f32 %v3690, 0.0
  %v3700 = vmax.f32 %v3691, 0.0
  %v3701 = vadd.f32 %v3692, 1e-05
  %v3702 = vadd.f32 %v3693, 1e-05
  %v3703 = vadd.f32 %v3694, 1e-05
  %v3704 = vadd.f32 %v3695, 1e-05
  %v3705 = vadd.f32 %v3696, 1e-05
  %v3706 = vadd.f32 %v3697, 1e-05
  %v3707 = vadd.f32 %v3698, 1e-05
  %v3708 = vadd.f32 %v3699, 1e-05
  %v3709 = vadd.f32 %v3700, 1e-05
  %v3710 = vrsqrt.pop %v3701
  %v3711 = vmul.f32 %v3710, %v3701
  %v3712 = vmul.f32 %v3711, %v3710
  %v3713 = vmul.f32 0.5, %v3712
  %v3714 = vsub.f32 1.5, %v3713
  %v3715 = vmul.f32 %v3710, %v3714
  %vm3716 = vweird.f32 %v3701
  %vm3717 = vweird.f32 %v3710
  %vm3718 = vmor %vm3716, %vm3717
  %v3719 = vsel %vm3718, %v3710, %v3715
  %v3720 = vrsqrt.pop %v3702
  %v3721 = vmul.f32 %v3720, %v3702
  %v3722 = vmul.f32 %v3721, %v3720
  %v3723 = vmul.f32 0.5, %v3722
  %v3724 = vsub.f32 1.5, %v3723
  %v3725 = vmul.f32 %v3720, %v3724
  %vm3726 = vweird.f32 %v3702
  %vm3727 = vweird.f32 %v3720
  %vm3728 = vmor %vm3726, %vm3727
  %v3729 = vsel %vm3728, %v3720, %v3725
  %v3730 = vrsqrt.pop %v3703
  %v3731 = vmul.f32 %v3730, %v3703
  %v3732 = vmul.f32 %v3731, %v3730
  %v3733 = vmul.f32 0.5, %v3732
  %v3734 = vsub.f32 1.5, %v3733
  %v3735 = vmul.f32 %v3730, %v3734
  %vm3736 = vweird.f32 %v3703
  %vm3737 = vweird.f32 %v3730
  %vm3738 = vmor %vm3736, %vm3737
  %v3739 = vsel %vm3738, %v3730, %v3735
  %v3740 = vrsqrt.pop %v3704
  %v3741 = vmul.f32 %v3740, %v3704
  %v3742 = vmul.f32 %v3741, %v3740
  %v3743 = vmul.f32 0.5, %v3742
  %v3744 = vsub.f32 1.5, %v3743
  %v3745 = vmul.f32 %v3740, %v3744
  %vm3746 = vweird.f32 %v3704
  %vm3747 = vweird.f32 %v3740
  %vm3748 = vmor %vm3746, %vm3747
  %v3749 = vsel %vm3748, %v3740, %v3745
  %v3750 = vrsqrt.pop %v3705
  %v3751 = vmul.f32 %v3750, %v3705
  %v3752 = vmul.f32 %v3751, %v3750
  %v3753 = vmul.f32 0.5, %v3752
  %v3754 = vsub.f32 1.5, %v3753
  %v3755 = vmul.f32 %v3750, %v3754
  %vm3756 = vweird.f32 %v3705
  %vm3757 = vweird.f32 %v3750
  %vm3758 = vmor %vm3756, %vm3757
  %v3759 = vsel %vm3758, %v3750, %v3755
  %v3760 = vrsqrt.pop %v3706
  %v3761 = vmul.f32 %v3760, %v3706
  %v3762 = vmul.f32 %v3761, %v3760
  %v3763 = vmul.f32 0.5, %v3762
  %v3764 = vsub.f32 1.5, %v3763
  %v3765 = vmul.f32 %v3760, %v3764
  %vm3766 = vweird.f32 %v3706
  %vm3767 = vweird.f32 %v3760
  %vm3768 = vmor %vm3766, %vm3767
  %v3769 = vsel %vm3768, %v3760, %v3765
  %v3770 = vrsqrt.pop %v3707
  %v3771 = vmul.f32 %v3770, %v3707
  %v3772 = vmul.f32 %v3771, %v3770
  %v3773 = vmul.f32 0.5, %v3772
  %v3774 = vsub.f32 1.5, %v3773
  %v3775 = vmul.f32 %v3770, %v3774
  %vm3776 = vweird.f32 %v3707
  %vm3777 = vweird.f32 %v3770
  %vm3778 = vmor %vm3776, %vm3777
  %v3779 = vsel %vm3778, %v3770, %v3775
  %v3780 = vrsqrt.pop %v3708
  %v3781 = vmul.f32 %v3780, %v3708
  %v3782 = vmul.f32 %v3781, %v3780
  %v3783 = vmul.f32 0.5, %v3782
  %v3784 = vsub.f32 1.5, %v3783
  %v3785 = vmul.f32 %v3780, %v3784
  %vm3786 = vweird.f32 %v3708
  %vm3787 = vweird.f32 %v3780
  %vm3788 = vmor %vm3786, %vm3787
  %v3789 = vsel %vm3788, %v3780, %v3785
  %v3790 = vrsqrt.pop %v3709
  %v3791 = vmul.f32 %v3790, %v3709
  %v3792 = vmul.f32 %v3791, %v3790
  %v3793 = vmul.f32 0.5, %v3792
  %v3794 = vsub.f32 1.5, %v3793
  %v3795 = vmul.f32 %v3790, %v3794
  %vm3796 = vweird.f32 %v3709
  %vm3797 = vweird.f32 %v3790
  %vm3798 = vmor %vm3796, %vm3797
  %v3799 = vsel %vm3798, %v3790, %v3795
  %v3800 = vld [vmem:[%s1 + $0x48] sm:$0xff]
  %v3801 = vld [vmem:[%s1 + $0x50] sm:$0xff]
  %v3802 = vld [vmem:[%s1 + $0x58] sm:$0xff]
  %v3803 = vld [vmem:[%s1 + $0x60] sm:$0xff]
  %v3804 = vld [vmem:[%s1 + $0x68] sm:$0xff]
  %v3805 = vld [vmem:[%s1 + $0x70] sm:$0xff]
  %v3806 = vld [vmem:[%s1 + $0x78] sm:$0xff]
  %v3807 = vld [vmem:[%s1 + $0x80] sm:$0xff]
  %v3808 = vld [vmem:[%s1 + $0x88] sm:$0xff]
  %v3809 = vmul.f32 %v3800, %v3719
  %v3810 = vmul.f32 %v3801, %v3729
  %v3811 = vmul.f32 %v3802, %v3739
  %v3812 = vmul.f32 %v3803, %v3749
  %v3813 = vmul.f32 %v3804, %v3759
  %v3814 = vmul.f32 %v3805, %v3769
  %v3815 = vmul.f32 %v3806, %v3779
  %v3816 = vmul.f32 %v3807, %v3789
  %v3817 = vmul.f32 %v3808, %v3799
  %v3818 = vmul.f32 %v3656, %v3809
  %v3819 = vmul.f32 %v3657, %v3810
  %v3820 = vmul.f32 %v3658, %v3811
  %v3821 = vmul.f32 %v3659, %v3812
  %v3822 = vmul.f32 %v3660, %v3813
  %v3823 = vmul.f32 %v3661, %v3814
  %v3824 = vmul.f32 %v3662, %v3815
  %v3825 = vmul.f32 %v3663, %v3816
  %v3826 = vmul.f32 %v3664, %v3817
  %3836 = vrot.lane.b32.xlu0 %v3818, 1
  %v3837 = vpop.permute.xlu0 %3836
  %3838 = vrot.lane.b32.xlu0 %v3819, 1
  %v3839 = vpop.permute.xlu0 %3838
  %3840 = vrot.lane.b32.xlu0 %v3820, 1
  %v3841 = vpop.permute.xlu0 %3840
  %3842 = vrot.lane.b32.xlu0 %v3821, 1
  %v3843 = vpop.permute.xlu0 %3842
  %3844 = vrot.lane.b32.xlu0 %v3822, 1
  %v3845 = vpop.permute.xlu0 %3844
  %3846 = vrot.lane.b32.xlu0 %v3823, 1
  %v3847 = vpop.permute.xlu0 %3846
  %3848 = vrot.lane.b32.xlu0 %v3824, 1
  %v3849 = vpop.permute.xlu0 %3848
  %3850 = vrot.lane.b32.xlu0 %v3825, 1
  %v3851 = vpop.permute.xlu0 %3850
  %3852 = vrot.lane.b32.xlu0 %v3826, 1
  %v3853 = vpop.permute.xlu0 %3852
  %v3863 = vsub.f32 %v3800, %v3837
  %v3864 = vsub.f32 %v3801, %v3839
  %v3865 = vsub.f32 %v3802, %v3841
  %v3866 = vsub.f32 %v3803, %v3843
  %v3867 = vsub.f32 %v3804, %v3845
  %v3868 = vsub.f32 %v3805, %v3847
  %v3869 = vsub.f32 %v3806, %v3849
  %v3870 = vsub.f32 %v3807, %v3851
  %v3871 = vsub.f32 %v3808, %v3853
  %3873 = vset.pattern.permute.xlu0 0
  %3874 = vperm.xlu0 %3873, %v3809
  %v3875 = vpop.permute.xlu0 %3874
  %3878 = vset.pattern.permute.xlu0 0
  %3879 = vperm.xlu0 %3878, %v3810
  %v3880 = vpop.permute.xlu0 %3879
  %3883 = vset.pattern.permute.xlu0 0
  %3884 = vperm.xlu0 %3883, %v3811
  %v3885 = vpop.permute.xlu0 %3884
  %3888 = vset.pattern.permute.xlu0 0
  %3889 = vperm.xlu0 %3888, %v3812
  %v3890 = vpop.permute.xlu0 %3889
  %3893 = vset.pattern.permute.xlu0 0
  %3894 = vperm.xlu0 %3893, %v3813
  %v3895 = vpop.permute.xlu0 %3894
  %3898 = vset.pattern.permute.xlu0 0
  %3899 = vperm.xlu0 %3898, %v3814
  %v3900 = vpop.permute.xlu0 %3899
  %3903 = vset.pattern.permute.xlu0 0
  %3904 = vperm.xlu0 %3903, %v3815
  %v3905 = vpop.permute.xlu0 %3904
  %3908 = vset.pattern.permute.xlu0 0
  %3909 = vperm.xlu0 %3908, %v3816
  %v3910 = vpop.permute.xlu0 %3909
  %3913 = vset.pattern.permute.xlu0 0
  %3914 = vperm.xlu0 %3913, %v3817
  %v3915 = vpop.permute.xlu0 %3914
  %v3917 = vmul.f32 %v2016, %v3875
  %v3918 = vmul.f32 %v2017, %v3875
  %v3919 = vmul.f32 %v2018, %v3880
  %v3920 = vmul.f32 %v2019, %v3880
  %v3921 = vmul.f32 %v2020, %v3885
  %v3922 = vmul.f32 %v2021, %v3885
  %v3923 = vmul.f32 %v2022, %v3890
  %v3924 = vmul.f32 %v2023, %v3890
  %v3925 = vmul.f32 %v2024, %v3895
  %v3926 = vmul.f32 %v2025, %v3895
  %v3927 = vmul.f32 %v2026, %v3900
  %v3928 = vmul.f32 %v2027, %v3900
  %v3929 = vmul.f32 %v2028, %v3905
  %v3930 = vmul.f32 %v2029, %v3905
  %v3931 = vmul.f32 %v2030, %v3910
  %v3932 = vmul.f32 %v2031, %v3910
  %v3933 = vmul.f32 %v2032, %v3915
  %v3934 = vmul.f32 %v2033, %v3915
  %3936 = vset.pattern.permute.xlu0 1
  %3937 = vperm.xlu0 %3936, %v3863
  %v3938 = vpop.permute.xlu0 %3937
  %3941 = vset.pattern.permute.xlu0 1
  %3942 = vperm.xlu0 %3941, %v3864
  %v3943 = vpop.permute.xlu0 %3942
  %3946 = vset.pattern.permute.xlu0 1
  %3947 = vperm.xlu0 %3946, %v3865
  %v3948 = vpop.permute.xlu0 %3947
  %3951 = vset.pattern.permute.xlu0 1
  %3952 = vperm.xlu0 %3951, %v3866
  %v3953 = vpop.permute.xlu0 %3952
  %3956 = vset.pattern.permute.xlu0 1
  %3957 = vperm.xlu0 %3956, %v3867
  %v3958 = vpop.permute.xlu0 %3957
  %3961 = vset.pattern.permute.xlu0 1
  %3962 = vperm.xlu0 %3961, %v3868
  %v3963 = vpop.permute.xlu0 %3962
  %3966 = vset.pattern.permute.xlu0 1
  %3967 = vperm.xlu0 %3966, %v3869
  %v3968 = vpop.permute.xlu0 %3967
  %3971 = vset.pattern.permute.xlu0 1
  %3972 = vperm.xlu0 %3971, %v3870
  %v3973 = vpop.permute.xlu0 %3972
  %3976 = vset.pattern.permute.xlu0 1
  %3977 = vperm.xlu0 %3976, %v3871
  %v3978 = vpop.permute.xlu0 %3977
  %v3980 = vadd.f32 %v3917, %v3938
  %v3981 = vadd.f32 %v3918, %v3938
  %v3982 = vadd.f32 %v3919, %v3943
  %v3983 = vadd.f32 %v3920, %v3943
  %v3984 = vadd.f32 %v3921, %v3948
  %v3985 = vadd.f32 %v3922, %v3948
  %v3986 = vadd.f32 %v3923, %v3953
  %v3987 = vadd.f32 %v3924, %v3953
  %v3988 = vadd.f32 %v3925, %v3958
  %v3989 = vadd.f32 %v3926, %v3958
  %v3990 = vadd.f32 %v3927, %v3963
  %v3991 = vadd.f32 %v3928, %v3963
  %v3992 = vadd.f32 %v3929, %v3968
  %v3993 = vadd.f32 %v3930, %v3968
  %v3994 = vadd.f32 %v3931, %v3973
  %v3995 = vadd.f32 %v3932, %v3973
  %v3996 = vadd.f32 %v3933, %v3978
  %v3997 = vadd.f32 %v3934, %v3978
  %3998 = vst [vmem:[%s2 + $0x90] sm:$0xff] %v3980
  %3999 = vst.msk [vmem:[%s2 + $0x98] sm:$0xff] %vm29, %v3981
  %4000 = vst [vmem:[%s2 + $0xa0] sm:$0xff] %v3982
  %4001 = vst.msk [vmem:[%s2 + $0xa8] sm:$0xff] %vm29, %v3983
  %4002 = vst [vmem:[%s2 + $0xb0] sm:$0xff] %v3984
  %4003 = vst.msk [vmem:[%s2 + $0xb8] sm:$0xff] %vm29, %v3985
  %4004 = vst [vmem:[%s2 + $0xc0] sm:$0xff] %v3986
  %4005 = vst.msk [vmem:[%s2 + $0xc8] sm:$0xff] %vm29, %v3987
  %4006 = vst [vmem:[%s2 + $0xd0] sm:$0xff] %v3988
  %4007 = vst.msk [vmem:[%s2 + $0xd8] sm:$0xff] %vm29, %v3989
  %4008 = vst [vmem:[%s2 + $0xe0] sm:$0xff] %v3990
  %4009 = vst.msk [vmem:[%s2 + $0xe8] sm:$0xff] %vm29, %v3991
  %4010 = vst [vmem:[%s2 + $0xf0] sm:$0xff] %v3992
  %4011 = vst.msk [vmem:[%s2 + $0xf8] sm:$0xff] %vm29, %v3993
  %4012 = vst [vmem:[%s2 + $0x100] sm:$0xff] %v3994
  %4013 = vst.msk [vmem:[%s2 + $0x108] sm:$0xff] %vm29, %v3995
  %4014 = vst [vmem:[%s2 + $0x110] sm:$0xff] %v3996
  %4015 = vst.msk [vmem:[%s2 + $0x118] sm:$0xff] %vm29, %v3997
  %v4016 = vld [vmem:[%s0 + $0x120] sm:$0xff]
  %v4017 = vld [vmem:[%s0 + $0x128] sm:$0xff]
  %v4018 = vld [vmem:[%s0 + $0x130] sm:$0xff]
  %v4019 = vld [vmem:[%s0 + $0x138] sm:$0xff]
  %v4020 = vld [vmem:[%s0 + $0x140] sm:$0xff]
  %v4021 = vld [vmem:[%s0 + $0x148] sm:$0xff]
  %v4022 = vld [vmem:[%s0 + $0x150] sm:$0xff]
  %v4023 = vld [vmem:[%s0 + $0x158] sm:$0xff]
  %v4024 = vld [vmem:[%s0 + $0x160] sm:$0xff]
  %v4025 = vld [vmem:[%s0 + $0x168] sm:$0xff]
  %v4026 = vld [vmem:[%s0 + $0x170] sm:$0xff]
  %v4027 = vld [vmem:[%s0 + $0x178] sm:$0xff]
  %v4028 = vld [vmem:[%s0 + $0x180] sm:$0xff]
  %v4029 = vld [vmem:[%s0 + $0x188] sm:$0xff]
  %v4030 = vld [vmem:[%s0 + $0x190] sm:$0xff]
  %v4031 = vld [vmem:[%s0 + $0x198] sm:$0xff]
  %v4032 = vld [vmem:[%s0 + $0x1a0] sm:$0xff]
  %v4033 = vld [vmem:[%s0 + $0x1a8] sm:$0xff]
  %v4035 = vsel %vm29, %v4017, 0
  %v4038 = vsel %vm29, %v4019, 0
  %v4041 = vsel %vm29, %v4021, 0
  %v4044 = vsel %vm29, %v4023, 0
  %v4047 = vsel %vm29, %v4025, 0
  %v4050 = vsel %vm29, %v4027, 0
  %v4053 = vsel %vm29, %v4029, 0
  %v4056 = vsel %vm29, %v4031, 0
  %v4059 = vsel %vm29, %v4033, 0
  %4061 = vmatpush.msra.mxu0 1.0
  %4062 = vmatpush.msra.mxu0 1.0
  %4063 = vmatpush.msra.mxu0 1.0
  %4064 = vmatpush.msra.mxu0 1.0
  %4065 = vmatpush.msra.mxu0 1.0
  %4066 = vmatpush.msra.mxu0 1.0
  %4067 = vmatpush.msra.mxu0 1.0
  %4068 = vmatpush.msra.mxu0 1.0
  %4069 = vmatpush.msra.mxu0 1.0
  %4070 = vmatpush.msra.mxu0 1.0
  %4071 = vmatpush.msra.mxu0 1.0
  %4072 = vmatpush.msra.mxu0 1.0
  %4073 = vmatpush.msra.mxu0 1.0
  %4074 = vmatpush.msra.mxu0 1.0
  %4075 = vmatpush.msra.mxu0 1.0
  %4076 = vmatpush.msra.mxu0 1.0
  %v4077 = vand.u32 %v4016, 4294901760
  %v4078 = vsub.f32 %v4016, %v4077
  %v4079 = vand.u32 %v4078, 4294901760
  %v4080 = vsub.f32 %v4078, %v4079
  %v4081 = vand.u32 %v4080, 4294901760
  %4082 = vmatmul.f32.gmra.mxu0 %v4081
  %v4083 = vpop.f32.mrf.mxu0
  %v4084 = vadd.f32 0.0, %v4083
  %v4085 = vand.u32 %v4018, 4294901760
  %v4086 = vsub.f32 %v4018, %v4085
  %v4087 = vand.u32 %v4086, 4294901760
  %v4088 = vsub.f32 %v4086, %v4087
  %v4089 = vand.u32 %v4088, 4294901760
  %4090 = vmatmul.f32.gmra.mxu0 %v4089
  %v4091 = vpop.f32.mrf.mxu0
  %v4092 = vadd.f32 0.0, %v4091
  %v4093 = vand.u32 %v4020, 4294901760
  %v4094 = vsub.f32 %v4020, %v4093
  %v4095 = vand.u32 %v4094, 4294901760
  %v4096 = vsub.f32 %v4094, %v4095
  %v4097 = vand.u32 %v4096, 4294901760
  %4098 = vmatmul.f32.gmra.mxu0 %v4097
  %v4099 = vpop.f32.mrf.mxu0
  %v4100 = vadd.f32 0.0, %v4099
  %v4101 = vand.u32 %v4022, 4294901760
  %v4102 = vsub.f32 %v4022, %v4101
  %v4103 = vand.u32 %v4102, 4294901760
  %v4104 = vsub.f32 %v4102, %v4103
  %v4105 = vand.u32 %v4104, 4294901760
  %4106 = vmatmul.f32.gmra.mxu0 %v4105
  %v4107 = vpop.f32.mrf.mxu0
  %v4108 = vadd.f32 0.0, %v4107
  %v4109 = vand.u32 %v4024, 4294901760
  %v4110 = vsub.f32 %v4024, %v4109
  %v4111 = vand.u32 %v4110, 4294901760
  %v4112 = vsub.f32 %v4110, %v4111
  %v4113 = vand.u32 %v4112, 4294901760
  %4114 = vmatmul.f32.gmra.mxu0 %v4113
  %v4115 = vpop.f32.mrf.mxu0
  %v4116 = vadd.f32 0.0, %v4115
  %v4117 = vand.u32 %v4026, 4294901760
  %v4118 = vsub.f32 %v4026, %v4117
  %v4119 = vand.u32 %v4118, 4294901760
  %v4120 = vsub.f32 %v4118, %v4119
  %v4121 = vand.u32 %v4120, 4294901760
  %4122 = vmatmul.f32.gmra.mxu0 %v4121
  %v4123 = vpop.f32.mrf.mxu0
  %v4124 = vadd.f32 0.0, %v4123
  %v4125 = vand.u32 %v4028, 4294901760
  %v4126 = vsub.f32 %v4028, %v4125
  %v4127 = vand.u32 %v4126, 4294901760
  %v4128 = vsub.f32 %v4126, %v4127
  %v4129 = vand.u32 %v4128, 4294901760
  %4130 = vmatmul.f32.gmra.mxu0 %v4129
  %v4131 = vpop.f32.mrf.mxu0
  %v4132 = vadd.f32 0.0, %v4131
  %v4133 = vand.u32 %v4030, 4294901760
  %v4134 = vsub.f32 %v4030, %v4133
  %v4135 = vand.u32 %v4134, 4294901760
  %v4136 = vsub.f32 %v4134, %v4135
  %v4137 = vand.u32 %v4136, 4294901760
  %4138 = vmatmul.f32.gmra.mxu0 %v4137
  %v4139 = vpop.f32.mrf.mxu0
  %v4140 = vadd.f32 0.0, %v4139
  %v4141 = vand.u32 %v4032, 4294901760
  %v4142 = vsub.f32 %v4032, %v4141
  %v4143 = vand.u32 %v4142, 4294901760
  %v4144 = vsub.f32 %v4142, %v4143
  %v4145 = vand.u32 %v4144, 4294901760
  %4146 = vmatmul.f32.gmra.mxu0 %v4145
  %v4147 = vpop.f32.mrf.mxu0
  %v4148 = vadd.f32 0.0, %v4147
  %4149 = vdwg.mxu0
  %4150 = vmatpush.msra.mxu0 0.0
  %4151 = vmatpush.msra.mxu0 0.0
  %4152 = vmatpush.msra.mxu0 0.0
  %4153 = vmatpush.msra.mxu0 0.0
  %4154 = vmatpush.msra.mxu0 0.0
  %4155 = vmatpush.msra.mxu0 0.0
  %4156 = vmatpush.msra.mxu0 0.0
  %4157 = vmatpush.msra.mxu0 0.0
  %4158 = vmatpush.msra.mxu0 0.0
  %4159 = vmatpush.msra.mxu0 0.0
  %4160 = vmatpush.msra.mxu0 0.0
  %4161 = vmatpush.msra.mxu0 0.0
  %4162 = vmatpush.msra.mxu0 0.0
  %4163 = vmatpush.msra.mxu0 0.0
  %4164 = vmatpush.msra.mxu0 0.0
  %4165 = vmatpush.msra.mxu0 0.0
  %v4166 = vand.u32 %v4016, 4294901760
  %4167 = vmatmul.f32.gmra.mxu0 %v4166
  %v4168 = vpop.f32.mrf.mxu0
  %v4169 = vadd.f32 %v4084, %v4168
  %v4170 = vand.u32 %v4018, 4294901760
  %4171 = vmatmul.f32.gmra.mxu0 %v4170
  %v4172 = vpop.f32.mrf.mxu0
  %v4173 = vadd.f32 %v4092, %v4172
  %v4174 = vand.u32 %v4020, 4294901760
  %4175 = vmatmul.f32.gmra.mxu0 %v4174
  %v4176 = vpop.f32.mrf.mxu0
  %v4177 = vadd.f32 %v4100, %v4176
  %v4178 = vand.u32 %v4022, 4294901760
  %4179 = vmatmul.f32.gmra.mxu0 %v4178
  %v4180 = vpop.f32.mrf.mxu0
  %v4181 = vadd.f32 %v4108, %v4180
  %v4182 = vand.u32 %v4024, 4294901760
  %4183 = vmatmul.f32.gmra.mxu0 %v4182
  %v4184 = vpop.f32.mrf.mxu0
  %v4185 = vadd.f32 %v4116, %v4184
  %v4186 = vand.u32 %v4026, 4294901760
  %4187 = vmatmul.f32.gmra.mxu0 %v4186
  %v4188 = vpop.f32.mrf.mxu0
  %v4189 = vadd.f32 %v4124, %v4188
  %v4190 = vand.u32 %v4028, 4294901760
  %4191 = vmatmul.f32.gmra.mxu0 %v4190
  %v4192 = vpop.f32.mrf.mxu0
  %v4193 = vadd.f32 %v4132, %v4192
  %v4194 = vand.u32 %v4030, 4294901760
  %4195 = vmatmul.f32.gmra.mxu0 %v4194
  %v4196 = vpop.f32.mrf.mxu0
  %v4197 = vadd.f32 %v4140, %v4196
  %v4198 = vand.u32 %v4032, 4294901760
  %4199 = vmatmul.f32.gmra.mxu0 %v4198
  %v4200 = vpop.f32.mrf.mxu0
  %v4201 = vadd.f32 %v4148, %v4200
  %4202 = vdwg.mxu0
  %4203 = vmatpush.msra.mxu0 0.0
  %4204 = vmatpush.msra.mxu0 0.0
  %4205 = vmatpush.msra.mxu0 0.0
  %4206 = vmatpush.msra.mxu0 0.0
  %4207 = vmatpush.msra.mxu0 0.0
  %4208 = vmatpush.msra.mxu0 0.0
  %4209 = vmatpush.msra.mxu0 0.0
  %4210 = vmatpush.msra.mxu0 0.0
  %4211 = vmatpush.msra.mxu0 0.0
  %4212 = vmatpush.msra.mxu0 0.0
  %4213 = vmatpush.msra.mxu0 0.0
  %4214 = vmatpush.msra.mxu0 0.0
  %4215 = vmatpush.msra.mxu0 0.0
  %4216 = vmatpush.msra.mxu0 0.0
  %4217 = vmatpush.msra.mxu0 0.0
  %4218 = vmatpush.msra.mxu0 0.0
  %v4219 = vand.u32 %v4016, 4294901760
  %v4220 = vsub.f32 %v4016, %v4219
  %4221 = vmatmul.f32.gmra.mxu0 %v4220
  %v4222 = vpop.f32.mrf.mxu0
  %v4223 = vadd.f32 %v4169, %v4222
  %v4224 = vand.u32 %v4018, 4294901760
  %v4225 = vsub.f32 %v4018, %v4224
  %4226 = vmatmul.f32.gmra.mxu0 %v4225
  %v4227 = vpop.f32.mrf.mxu0
  %v4228 = vadd.f32 %v4173, %v4227
  %v4229 = vand.u32 %v4020, 4294901760
  %v4230 = vsub.f32 %v4020, %v4229
  %4231 = vmatmul.f32.gmra.mxu0 %v4230
  %v4232 = vpop.f32.mrf.mxu0
  %v4233 = vadd.f32 %v4177, %v4232
  %v4234 = vand.u32 %v4022, 4294901760
  %v4235 = vsub.f32 %v4022, %v4234
  %4236 = vmatmul.f32.gmra.mxu0 %v4235
  %v4237 = vpop.f32.mrf.mxu0
  %v4238 = vadd.f32 %v4181, %v4237
  %v4239 = vand.u32 %v4024, 4294901760
  %v4240 = vsub.f32 %v4024, %v4239
  %4241 = vmatmul.f32.gmra.mxu0 %v4240
  %v4242 = vpop.f32.mrf.mxu0
  %v4243 = vadd.f32 %v4185, %v4242
  %v4244 = vand.u32 %v4026, 4294901760
  %v4245 = vsub.f32 %v4026, %v4244
  %4246 = vmatmul.f32.gmra.mxu0 %v4245
  %v4247 = vpop.f32.mrf.mxu0
  %v4248 = vadd.f32 %v4189, %v4247
  %v4249 = vand.u32 %v4028, 4294901760
  %v4250 = vsub.f32 %v4028, %v4249
  %4251 = vmatmul.f32.gmra.mxu0 %v4250
  %v4252 = vpop.f32.mrf.mxu0
  %v4253 = vadd.f32 %v4193, %v4252
  %v4254 = vand.u32 %v4030, 4294901760
  %v4255 = vsub.f32 %v4030, %v4254
  %4256 = vmatmul.f32.gmra.mxu0 %v4255
  %v4257 = vpop.f32.mrf.mxu0
  %v4258 = vadd.f32 %v4197, %v4257
  %v4259 = vand.u32 %v4032, 4294901760
  %v4260 = vsub.f32 %v4032, %v4259
  %4261 = vmatmul.f32.gmra.mxu0 %v4260
  %v4262 = vpop.f32.mrf.mxu0
  %v4263 = vadd.f32 %v4201, %v4262
  %4264 = vdwg.mxu0
  %4265 = vmatpush.msra.mxu0 1.0
  %4266 = vmatpush.msra.mxu0 1.0
  %4267 = vmatpush.msra.mxu0 1.0
  %4268 = vmatpush.msra.mxu0 1.0
  %4269 = vmatpush.msra.mxu0 1.0
  %4270 = vmatpush.msra.mxu0 1.0
  %4271 = vmatpush.msra.mxu0 1.0
  %4272 = vmatpush.msra.mxu0 1.0
  %4273 = vmatpush.msra.mxu0 1.0
  %4274 = vmatpush.msra.mxu0 1.0
  %4275 = vmatpush.msra.mxu0 1.0
  %4276 = vmatpush.msra.mxu0 1.0
  %4277 = vmatpush.msra.mxu0 1.0
  %4278 = vmatpush.msra.mxu0 1.0
  %4279 = vmatpush.msra.mxu0 1.0
  %4280 = vmatpush.msra.mxu0 1.0
  %v4281 = vand.u32 %v4016, 4294901760
  %v4282 = vsub.f32 %v4016, %v4281
  %v4283 = vand.u32 %v4282, 4294901760
  %4284 = vmatmul.f32.gmra.mxu0 %v4283
  %v4285 = vpop.f32.mrf.mxu0
  %v4286 = vadd.f32 %v4223, %v4285
  %v4287 = vand.u32 %v4018, 4294901760
  %v4288 = vsub.f32 %v4018, %v4287
  %v4289 = vand.u32 %v4288, 4294901760
  %4290 = vmatmul.f32.gmra.mxu0 %v4289
  %v4291 = vpop.f32.mrf.mxu0
  %v4292 = vadd.f32 %v4228, %v4291
  %v4293 = vand.u32 %v4020, 4294901760
  %v4294 = vsub.f32 %v4020, %v4293
  %v4295 = vand.u32 %v4294, 4294901760
  %4296 = vmatmul.f32.gmra.mxu0 %v4295
  %v4297 = vpop.f32.mrf.mxu0
  %v4298 = vadd.f32 %v4233, %v4297
  %v4299 = vand.u32 %v4022, 4294901760
  %v4300 = vsub.f32 %v4022, %v4299
  %v4301 = vand.u32 %v4300, 4294901760
  %4302 = vmatmul.f32.gmra.mxu0 %v4301
  %v4303 = vpop.f32.mrf.mxu0
  %v4304 = vadd.f32 %v4238, %v4303
  %v4305 = vand.u32 %v4024, 4294901760
  %v4306 = vsub.f32 %v4024, %v4305
  %v4307 = vand.u32 %v4306, 4294901760
  %4308 = vmatmul.f32.gmra.mxu0 %v4307
  %v4309 = vpop.f32.mrf.mxu0
  %v4310 = vadd.f32 %v4243, %v4309
  %v4311 = vand.u32 %v4026, 4294901760
  %v4312 = vsub.f32 %v4026, %v4311
  %v4313 = vand.u32 %v4312, 4294901760
  %4314 = vmatmul.f32.gmra.mxu0 %v4313
  %v4315 = vpop.f32.mrf.mxu0
  %v4316 = vadd.f32 %v4248, %v4315
  %v4317 = vand.u32 %v4028, 4294901760
  %v4318 = vsub.f32 %v4028, %v4317
  %v4319 = vand.u32 %v4318, 4294901760
  %4320 = vmatmul.f32.gmra.mxu0 %v4319
  %v4321 = vpop.f32.mrf.mxu0
  %v4322 = vadd.f32 %v4253, %v4321
  %v4323 = vand.u32 %v4030, 4294901760
  %v4324 = vsub.f32 %v4030, %v4323
  %v4325 = vand.u32 %v4324, 4294901760
  %4326 = vmatmul.f32.gmra.mxu0 %v4325
  %v4327 = vpop.f32.mrf.mxu0
  %v4328 = vadd.f32 %v4258, %v4327
  %v4329 = vand.u32 %v4032, 4294901760
  %v4330 = vsub.f32 %v4032, %v4329
  %v4331 = vand.u32 %v4330, 4294901760
  %4332 = vmatmul.f32.gmra.mxu0 %v4331
  %v4333 = vpop.f32.mrf.mxu0
  %v4334 = vadd.f32 %v4263, %v4333
  %4335 = vdwg.mxu0
  %4336 = vmatpush.msra.mxu0 0.0
  %4337 = vmatpush.msra.mxu0 0.0
  %4338 = vmatpush.msra.mxu0 0.0
  %4339 = vmatpush.msra.mxu0 0.0
  %4340 = vmatpush.msra.mxu0 0.0
  %4341 = vmatpush.msra.mxu0 0.0
  %4342 = vmatpush.msra.mxu0 0.0
  %4343 = vmatpush.msra.mxu0 0.0
  %4344 = vmatpush.msra.mxu0 0.0
  %4345 = vmatpush.msra.mxu0 0.0
  %4346 = vmatpush.msra.mxu0 0.0
  %4347 = vmatpush.msra.mxu0 0.0
  %4348 = vmatpush.msra.mxu0 0.0
  %4349 = vmatpush.msra.mxu0 0.0
  %4350 = vmatpush.msra.mxu0 0.0
  %4351 = vmatpush.msra.mxu0 0.0
  %v4352 = vand.u32 %v4016, 4294901760
  %4353 = vmatmul.f32.gmra.mxu0 %v4352
  %v4354 = vpop.f32.mrf.mxu0
  %v4355 = vadd.f32 %v4286, %v4354
  %v4356 = vand.u32 %v4018, 4294901760
  %4357 = vmatmul.f32.gmra.mxu0 %v4356
  %v4358 = vpop.f32.mrf.mxu0
  %v4359 = vadd.f32 %v4292, %v4358
  %v4360 = vand.u32 %v4020, 4294901760
  %4361 = vmatmul.f32.gmra.mxu0 %v4360
  %v4362 = vpop.f32.mrf.mxu0
  %v4363 = vadd.f32 %v4298, %v4362
  %v4364 = vand.u32 %v4022, 4294901760
  %4365 = vmatmul.f32.gmra.mxu0 %v4364
  %v4366 = vpop.f32.mrf.mxu0
  %v4367 = vadd.f32 %v4304, %v4366
  %v4368 = vand.u32 %v4024, 4294901760
  %4369 = vmatmul.f32.gmra.mxu0 %v4368
  %v4370 = vpop.f32.mrf.mxu0
  %v4371 = vadd.f32 %v4310, %v4370
  %v4372 = vand.u32 %v4026, 4294901760
  %4373 = vmatmul.f32.gmra.mxu0 %v4372
  %v4374 = vpop.f32.mrf.mxu0
  %v4375 = vadd.f32 %v4316, %v4374
  %v4376 = vand.u32 %v4028, 4294901760
  %4377 = vmatmul.f32.gmra.mxu0 %v4376
  %v4378 = vpop.f32.mrf.mxu0
  %v4379 = vadd.f32 %v4322, %v4378
  %v4380 = vand.u32 %v4030, 4294901760
  %4381 = vmatmul.f32.gmra.mxu0 %v4380
  %v4382 = vpop.f32.mrf.mxu0
  %v4383 = vadd.f32 %v4328, %v4382
  %v4384 = vand.u32 %v4032, 4294901760
  %4385 = vmatmul.f32.gmra.mxu0 %v4384
  %v4386 = vpop.f32.mrf.mxu0
  %v4387 = vadd.f32 %v4334, %v4386
  %4388 = vdwg.mxu0
  %4389 = vmatpush.msra.mxu0 1.0
  %4390 = vmatpush.msra.mxu0 1.0
  %4391 = vmatpush.msra.mxu0 1.0
  %4392 = vmatpush.msra.mxu0 1.0
  %4393 = vmatpush.msra.mxu0 1.0
  %4394 = vmatpush.msra.mxu0 1.0
  %4395 = vmatpush.msra.mxu0 1.0
  %4396 = vmatpush.msra.mxu0 1.0
  %4397 = vmatpush.msra.mxu0 1.0
  %4398 = vmatpush.msra.mxu0 1.0
  %4399 = vmatpush.msra.mxu0 1.0
  %4400 = vmatpush.msra.mxu0 1.0
  %4401 = vmatpush.msra.mxu0 1.0
  %4402 = vmatpush.msra.mxu0 1.0
  %4403 = vmatpush.msra.mxu0 1.0
  %4404 = vmatpush.msra.mxu0 1.0
  %v4405 = vand.u32 %v4016, 4294901760
  %4406 = vmatmul.f32.gmra.mxu0 %v4405
  %v4407 = vpop.f32.mrf.mxu0
  %v4408 = vadd.f32 %v4355, %v4407
  %v4409 = vand.u32 %v4018, 4294901760
  %4410 = vmatmul.f32.gmra.mxu0 %v4409
  %v4411 = vpop.f32.mrf.mxu0
  %v4412 = vadd.f32 %v4359, %v4411
  %v4413 = vand.u32 %v4020, 4294901760
  %4414 = vmatmul.f32.gmra.mxu0 %v4413
  %v4415 = vpop.f32.mrf.mxu0
  %v4416 = vadd.f32 %v4363, %v4415
  %v4417 = vand.u32 %v4022, 4294901760
  %4418 = vmatmul.f32.gmra.mxu0 %v4417
  %v4419 = vpop.f32.mrf.mxu0
  %v4420 = vadd.f32 %v4367, %v4419
  %v4421 = vand.u32 %v4024, 4294901760
  %4422 = vmatmul.f32.gmra.mxu0 %v4421
  %v4423 = vpop.f32.mrf.mxu0
  %v4424 = vadd.f32 %v4371, %v4423
  %v4425 = vand.u32 %v4026, 4294901760
  %4426 = vmatmul.f32.gmra.mxu0 %v4425
  %v4427 = vpop.f32.mrf.mxu0
  %v4428 = vadd.f32 %v4375, %v4427
  %v4429 = vand.u32 %v4028, 4294901760
  %4430 = vmatmul.f32.gmra.mxu0 %v4429
  %v4431 = vpop.f32.mrf.mxu0
  %v4432 = vadd.f32 %v4379, %v4431
  %v4433 = vand.u32 %v4030, 4294901760
  %4434 = vmatmul.f32.gmra.mxu0 %v4433
  %v4435 = vpop.f32.mrf.mxu0
  %v4436 = vadd.f32 %v4383, %v4435
  %v4437 = vand.u32 %v4032, 4294901760
  %4438 = vmatmul.f32.gmra.mxu0 %v4437
  %v4439 = vpop.f32.mrf.mxu0
  %v4440 = vadd.f32 %v4387, %v4439
  %4441 = vdwg.mxu0
  %4442 = vmatpush.msra.mxu0 0.0
  %4443 = vmatpush.msra.mxu0 0.0
  %4444 = vmatpush.msra.mxu0 0.0
  %4445 = vmatpush.msra.mxu0 0.0
  %4446 = vmatpush.msra.mxu0 0.0
  %4447 = vmatpush.msra.mxu0 0.0
  %4448 = vmatpush.msra.mxu0 0.0
  %v4449 = vand.u32 %v59, 4294901760
  %4450 = vmatpush.msra.mxu0 %v4449
  %4451 = vmatpush.msra.mxu0 1.0
  %4452 = vmatpush.msra.mxu0 1.0
  %4453 = vmatpush.msra.mxu0 1.0
  %4454 = vmatpush.msra.mxu0 1.0
  %4455 = vmatpush.msra.mxu0 1.0
  %4456 = vmatpush.msra.mxu0 1.0
  %4457 = vmatpush.msra.mxu0 1.0
  %4458 = vmatpush.msra.mxu0 1.0
  %v4459 = vand.u32 %v4035, 4294901760
  %v4460 = vsub.f32 %v4035, %v4459
  %v4461 = vand.u32 %v4460, 4294901760
  %v4462 = vsub.f32 %v4460, %v4461
  %v4463 = vand.u32 %v4462, 4294901760
  %4464 = vmatmul.f32.gmra.mxu0 %v4463
  %v4465 = vpop.f32.mrf.mxu0
  %v4466 = vadd.f32 %v4408, %v4465
  %v4467 = vand.u32 %v4038, 4294901760
  %v4468 = vsub.f32 %v4038, %v4467
  %v4469 = vand.u32 %v4468, 4294901760
  %v4470 = vsub.f32 %v4468, %v4469
  %v4471 = vand.u32 %v4470, 4294901760
  %4472 = vmatmul.f32.gmra.mxu0 %v4471
  %v4473 = vpop.f32.mrf.mxu0
  %v4474 = vadd.f32 %v4412, %v4473
  %v4475 = vand.u32 %v4041, 4294901760
  %v4476 = vsub.f32 %v4041, %v4475
  %v4477 = vand.u32 %v4476, 4294901760
  %v4478 = vsub.f32 %v4476, %v4477
  %v4479 = vand.u32 %v4478, 4294901760
  %4480 = vmatmul.f32.gmra.mxu0 %v4479
  %v4481 = vpop.f32.mrf.mxu0
  %v4482 = vadd.f32 %v4416, %v4481
  %v4483 = vand.u32 %v4044, 4294901760
  %v4484 = vsub.f32 %v4044, %v4483
  %v4485 = vand.u32 %v4484, 4294901760
  %v4486 = vsub.f32 %v4484, %v4485
  %v4487 = vand.u32 %v4486, 4294901760
  %4488 = vmatmul.f32.gmra.mxu0 %v4487
  %v4489 = vpop.f32.mrf.mxu0
  %v4490 = vadd.f32 %v4420, %v4489
  %v4491 = vand.u32 %v4047, 4294901760
  %v4492 = vsub.f32 %v4047, %v4491
  %v4493 = vand.u32 %v4492, 4294901760
  %v4494 = vsub.f32 %v4492, %v4493
  %v4495 = vand.u32 %v4494, 4294901760
  %4496 = vmatmul.f32.gmra.mxu0 %v4495
  %v4497 = vpop.f32.mrf.mxu0
  %v4498 = vadd.f32 %v4424, %v4497
  %v4499 = vand.u32 %v4050, 4294901760
  %v4500 = vsub.f32 %v4050, %v4499
  %v4501 = vand.u32 %v4500, 4294901760
  %v4502 = vsub.f32 %v4500, %v4501
  %v4503 = vand.u32 %v4502, 4294901760
  %4504 = vmatmul.f32.gmra.mxu0 %v4503
  %v4505 = vpop.f32.mrf.mxu0
  %v4506 = vadd.f32 %v4428, %v4505
  %v4507 = vand.u32 %v4053, 4294901760
  %v4508 = vsub.f32 %v4053, %v4507
  %v4509 = vand.u32 %v4508, 4294901760
  %v4510 = vsub.f32 %v4508, %v4509
  %v4511 = vand.u32 %v4510, 4294901760
  %4512 = vmatmul.f32.gmra.mxu0 %v4511
  %v4513 = vpop.f32.mrf.mxu0
  %v4514 = vadd.f32 %v4432, %v4513
  %v4515 = vand.u32 %v4056, 4294901760
  %v4516 = vsub.f32 %v4056, %v4515
  %v4517 = vand.u32 %v4516, 4294901760
  %v4518 = vsub.f32 %v4516, %v4517
  %v4519 = vand.u32 %v4518, 4294901760
  %4520 = vmatmul.f32.gmra.mxu0 %v4519
  %v4521 = vpop.f32.mrf.mxu0
  %v4522 = vadd.f32 %v4436, %v4521
  %v4523 = vand.u32 %v4059, 4294901760
  %v4524 = vsub.f32 %v4059, %v4523
  %v4525 = vand.u32 %v4524, 4294901760
  %v4526 = vsub.f32 %v4524, %v4525
  %v4527 = vand.u32 %v4526, 4294901760
  %4528 = vmatmul.f32.gmra.mxu0 %v4527
  %v4529 = vpop.f32.mrf.mxu0
  %v4530 = vadd.f32 %v4440, %v4529
  %4531 = vdwg.mxu0
  %4532 = vmatpush.msra.mxu0 0.0
  %4533 = vmatpush.msra.mxu0 0.0
  %4534 = vmatpush.msra.mxu0 0.0
  %4535 = vmatpush.msra.mxu0 0.0
  %4536 = vmatpush.msra.mxu0 0.0
  %4537 = vmatpush.msra.mxu0 0.0
  %4538 = vmatpush.msra.mxu0 0.0
  %v4539 = vand.u32 %v59, 4294901760
  %v4540 = vsub.f32 %v59, %v4539
  %v4541 = vand.u32 %v4540, 4294901760
  %v4542 = vsub.f32 %v4540, %v4541
  %v4543 = vand.u32 %v4542, 4294901760
  %4544 = vmatpush.msra.mxu0 %v4543
  %4545 = vmatpush.msra.mxu0 0.0
  %4546 = vmatpush.msra.mxu0 0.0
  %4547 = vmatpush.msra.mxu0 0.0
  %4548 = vmatpush.msra.mxu0 0.0
  %4549 = vmatpush.msra.mxu0 0.0
  %4550 = vmatpush.msra.mxu0 0.0
  %4551 = vmatpush.msra.mxu0 0.0
  %4552 = vmatpush.msra.mxu0 0.0
  %v4553 = vand.u32 %v4035, 4294901760
  %4554 = vmatmul.f32.gmra.mxu0 %v4553
  %v4555 = vpop.f32.mrf.mxu0
  %v4556 = vadd.f32 %v4466, %v4555
  %v4557 = vand.u32 %v4038, 4294901760
  %4558 = vmatmul.f32.gmra.mxu0 %v4557
  %v4559 = vpop.f32.mrf.mxu0
  %v4560 = vadd.f32 %v4474, %v4559
  %v4561 = vand.u32 %v4041, 4294901760
  %4562 = vmatmul.f32.gmra.mxu0 %v4561
  %v4563 = vpop.f32.mrf.mxu0
  %v4564 = vadd.f32 %v4482, %v4563
  %v4565 = vand.u32 %v4044, 4294901760
  %4566 = vmatmul.f32.gmra.mxu0 %v4565
  %v4567 = vpop.f32.mrf.mxu0
  %v4568 = vadd.f32 %v4490, %v4567
  %v4569 = vand.u32 %v4047, 4294901760
  %4570 = vmatmul.f32.gmra.mxu0 %v4569
  %v4571 = vpop.f32.mrf.mxu0
  %v4572 = vadd.f32 %v4498, %v4571
  %v4573 = vand.u32 %v4050, 4294901760
  %4574 = vmatmul.f32.gmra.mxu0 %v4573
  %v4575 = vpop.f32.mrf.mxu0
  %v4576 = vadd.f32 %v4506, %v4575
  %v4577 = vand.u32 %v4053, 4294901760
  %4578 = vmatmul.f32.gmra.mxu0 %v4577
  %v4579 = vpop.f32.mrf.mxu0
  %v4580 = vadd.f32 %v4514, %v4579
  %v4581 = vand.u32 %v4056, 4294901760
  %4582 = vmatmul.f32.gmra.mxu0 %v4581
  %v4583 = vpop.f32.mrf.mxu0
  %v4584 = vadd.f32 %v4522, %v4583
  %v4585 = vand.u32 %v4059, 4294901760
  %4586 = vmatmul.f32.gmra.mxu0 %v4585
  %v4587 = vpop.f32.mrf.mxu0
  %v4588 = vadd.f32 %v4530, %v4587
  %4589 = vdwg.mxu0
  %4590 = vmatpush.msra.mxu0 0.0
  %4591 = vmatpush.msra.mxu0 0.0
  %4592 = vmatpush.msra.mxu0 0.0
  %4593 = vmatpush.msra.mxu0 0.0
  %4594 = vmatpush.msra.mxu0 0.0
  %4595 = vmatpush.msra.mxu0 0.0
  %4596 = vmatpush.msra.mxu0 0.0
  %v4597 = vand.u32 %v59, 4294901760
  %v4598 = vsub.f32 %v59, %v4597
  %4599 = vmatpush.msra.mxu0 %v4598
  %4600 = vmatpush.msra.mxu0 0.0
  %4601 = vmatpush.msra.mxu0 0.0
  %4602 = vmatpush.msra.mxu0 0.0
  %4603 = vmatpush.msra.mxu0 0.0
  %4604 = vmatpush.msra.mxu0 0.0
  %4605 = vmatpush.msra.mxu0 0.0
  %4606 = vmatpush.msra.mxu0 0.0
  %4607 = vmatpush.msra.mxu0 0.0
  %v4608 = vand.u32 %v4035, 4294901760
  %v4609 = vsub.f32 %v4035, %v4608
  %4610 = vmatmul.f32.gmra.mxu0 %v4609
  %v4611 = vpop.f32.mrf.mxu0
  %v4612 = vadd.f32 %v4556, %v4611
  %v4613 = vand.u32 %v4038, 4294901760
  %v4614 = vsub.f32 %v4038, %v4613
  %4615 = vmatmul.f32.gmra.mxu0 %v4614
  %v4616 = vpop.f32.mrf.mxu0
  %v4617 = vadd.f32 %v4560, %v4616
  %v4618 = vand.u32 %v4041, 4294901760
  %v4619 = vsub.f32 %v4041, %v4618
  %4620 = vmatmul.f32.gmra.mxu0 %v4619
  %v4621 = vpop.f32.mrf.mxu0
  %v4622 = vadd.f32 %v4564, %v4621
  %v4623 = vand.u32 %v4044, 4294901760
  %v4624 = vsub.f32 %v4044, %v4623
  %4625 = vmatmul.f32.gmra.mxu0 %v4624
  %v4626 = vpop.f32.mrf.mxu0
  %v4627 = vadd.f32 %v4568, %v4626
  %v4628 = vand.u32 %v4047, 4294901760
  %v4629 = vsub.f32 %v4047, %v4628
  %4630 = vmatmul.f32.gmra.mxu0 %v4629
  %v4631 = vpop.f32.mrf.mxu0
  %v4632 = vadd.f32 %v4572, %v4631
  %v4633 = vand.u32 %v4050, 4294901760
  %v4634 = vsub.f32 %v4050, %v4633
  %4635 = vmatmul.f32.gmra.mxu0 %v4634
  %v4636 = vpop.f32.mrf.mxu0
  %v4637 = vadd.f32 %v4576, %v4636
  %v4638 = vand.u32 %v4053, 4294901760
  %v4639 = vsub.f32 %v4053, %v4638
  %4640 = vmatmul.f32.gmra.mxu0 %v4639
  %v4641 = vpop.f32.mrf.mxu0
  %v4642 = vadd.f32 %v4580, %v4641
  %v4643 = vand.u32 %v4056, 4294901760
  %v4644 = vsub.f32 %v4056, %v4643
  %4645 = vmatmul.f32.gmra.mxu0 %v4644
  %v4646 = vpop.f32.mrf.mxu0
  %v4647 = vadd.f32 %v4584, %v4646
  %v4648 = vand.u32 %v4059, 4294901760
  %v4649 = vsub.f32 %v4059, %v4648
  %4650 = vmatmul.f32.gmra.mxu0 %v4649
  %v4651 = vpop.f32.mrf.mxu0
  %v4652 = vadd.f32 %v4588, %v4651
  %4653 = vdwg.mxu0
  %4654 = vmatpush.msra.mxu0 0.0
  %4655 = vmatpush.msra.mxu0 0.0
  %4656 = vmatpush.msra.mxu0 0.0
  %4657 = vmatpush.msra.mxu0 0.0
  %4658 = vmatpush.msra.mxu0 0.0
  %4659 = vmatpush.msra.mxu0 0.0
  %4660 = vmatpush.msra.mxu0 0.0
  %v4661 = vand.u32 %v59, 4294901760
  %4662 = vmatpush.msra.mxu0 %v4661
  %4663 = vmatpush.msra.mxu0 1.0
  %4664 = vmatpush.msra.mxu0 1.0
  %4665 = vmatpush.msra.mxu0 1.0
  %4666 = vmatpush.msra.mxu0 1.0
  %4667 = vmatpush.msra.mxu0 1.0
  %4668 = vmatpush.msra.mxu0 1.0
  %4669 = vmatpush.msra.mxu0 1.0
  %4670 = vmatpush.msra.mxu0 1.0
  %v4671 = vand.u32 %v4035, 4294901760
  %v4672 = vsub.f32 %v4035, %v4671
  %v4673 = vand.u32 %v4672, 4294901760
  %4674 = vmatmul.f32.gmra.mxu0 %v4673
  %v4675 = vpop.f32.mrf.mxu0
  %v4676 = vadd.f32 %v4612, %v4675
  %v4677 = vand.u32 %v4038, 4294901760
  %v4678 = vsub.f32 %v4038, %v4677
  %v4679 = vand.u32 %v4678, 4294901760
  %4680 = vmatmul.f32.gmra.mxu0 %v4679
  %v4681 = vpop.f32.mrf.mxu0
  %v4682 = vadd.f32 %v4617, %v4681
  %v4683 = vand.u32 %v4041, 4294901760
  %v4684 = vsub.f32 %v4041, %v4683
  %v4685 = vand.u32 %v4684, 4294901760
  %4686 = vmatmul.f32.gmra.mxu0 %v4685
  %v4687 = vpop.f32.mrf.mxu0
  %v4688 = vadd.f32 %v4622, %v4687
  %v4689 = vand.u32 %v4044, 4294901760
  %v4690 = vsub.f32 %v4044, %v4689
  %v4691 = vand.u32 %v4690, 4294901760
  %4692 = vmatmul.f32.gmra.mxu0 %v4691
  %v4693 = vpop.f32.mrf.mxu0
  %v4694 = vadd.f32 %v4627, %v4693
  %v4695 = vand.u32 %v4047, 4294901760
  %v4696 = vsub.f32 %v4047, %v4695
  %v4697 = vand.u32 %v4696, 4294901760
  %4698 = vmatmul.f32.gmra.mxu0 %v4697
  %v4699 = vpop.f32.mrf.mxu0
  %v4700 = vadd.f32 %v4632, %v4699
  %v4701 = vand.u32 %v4050, 4294901760
  %v4702 = vsub.f32 %v4050, %v4701
  %v4703 = vand.u32 %v4702, 4294901760
  %4704 = vmatmul.f32.gmra.mxu0 %v4703
  %v4705 = vpop.f32.mrf.mxu0
  %v4706 = vadd.f32 %v4637, %v4705
  %v4707 = vand.u32 %v4053, 4294901760
  %v4708 = vsub.f32 %v4053, %v4707
  %v4709 = vand.u32 %v4708, 4294901760
  %4710 = vmatmul.f32.gmra.mxu0 %v4709
  %v4711 = vpop.f32.mrf.mxu0
  %v4712 = vadd.f32 %v4642, %v4711
  %v4713 = vand.u32 %v4056, 4294901760
  %v4714 = vsub.f32 %v4056, %v4713
  %v4715 = vand.u32 %v4714, 4294901760
  %4716 = vmatmul.f32.gmra.mxu0 %v4715
  %v4717 = vpop.f32.mrf.mxu0
  %v4718 = vadd.f32 %v4647, %v4717
  %v4719 = vand.u32 %v4059, 4294901760
  %v4720 = vsub.f32 %v4059, %v4719
  %v4721 = vand.u32 %v4720, 4294901760
  %4722 = vmatmul.f32.gmra.mxu0 %v4721
  %v4723 = vpop.f32.mrf.mxu0
  %v4724 = vadd.f32 %v4652, %v4723
  %4725 = vdwg.mxu0
  %4726 = vmatpush.msra.mxu0 0.0
  %4727 = vmatpush.msra.mxu0 0.0
  %4728 = vmatpush.msra.mxu0 0.0
  %4729 = vmatpush.msra.mxu0 0.0
  %4730 = vmatpush.msra.mxu0 0.0
  %4731 = vmatpush.msra.mxu0 0.0
  %4732 = vmatpush.msra.mxu0 0.0
  %v4733 = vand.u32 %v59, 4294901760
  %v4734 = vsub.f32 %v59, %v4733
  %v4735 = vand.u32 %v4734, 4294901760
  %4736 = vmatpush.msra.mxu0 %v4735
  %4737 = vmatpush.msra.mxu0 0.0
  %4738 = vmatpush.msra.mxu0 0.0
  %4739 = vmatpush.msra.mxu0 0.0
  %4740 = vmatpush.msra.mxu0 0.0
  %4741 = vmatpush.msra.mxu0 0.0
  %4742 = vmatpush.msra.mxu0 0.0
  %4743 = vmatpush.msra.mxu0 0.0
  %4744 = vmatpush.msra.mxu0 0.0
  %v4745 = vand.u32 %v4035, 4294901760
  %4746 = vmatmul.f32.gmra.mxu0 %v4745
  %v4747 = vpop.f32.mrf.mxu0
  %v4748 = vadd.f32 %v4676, %v4747
  %v4749 = vand.u32 %v4038, 4294901760
  %4750 = vmatmul.f32.gmra.mxu0 %v4749
  %v4751 = vpop.f32.mrf.mxu0
  %v4752 = vadd.f32 %v4682, %v4751
  %v4753 = vand.u32 %v4041, 4294901760
  %4754 = vmatmul.f32.gmra.mxu0 %v4753
  %v4755 = vpop.f32.mrf.mxu0
  %v4756 = vadd.f32 %v4688, %v4755
  %v4757 = vand.u32 %v4044, 4294901760
  %4758 = vmatmul.f32.gmra.mxu0 %v4757
  %v4759 = vpop.f32.mrf.mxu0
  %v4760 = vadd.f32 %v4694, %v4759
  %v4761 = vand.u32 %v4047, 4294901760
  %4762 = vmatmul.f32.gmra.mxu0 %v4761
  %v4763 = vpop.f32.mrf.mxu0
  %v4764 = vadd.f32 %v4700, %v4763
  %v4765 = vand.u32 %v4050, 4294901760
  %4766 = vmatmul.f32.gmra.mxu0 %v4765
  %v4767 = vpop.f32.mrf.mxu0
  %v4768 = vadd.f32 %v4706, %v4767
  %v4769 = vand.u32 %v4053, 4294901760
  %4770 = vmatmul.f32.gmra.mxu0 %v4769
  %v4771 = vpop.f32.mrf.mxu0
  %v4772 = vadd.f32 %v4712, %v4771
  %v4773 = vand.u32 %v4056, 4294901760
  %4774 = vmatmul.f32.gmra.mxu0 %v4773
  %v4775 = vpop.f32.mrf.mxu0
  %v4776 = vadd.f32 %v4718, %v4775
  %v4777 = vand.u32 %v4059, 4294901760
  %4778 = vmatmul.f32.gmra.mxu0 %v4777
  %v4779 = vpop.f32.mrf.mxu0
  %v4780 = vadd.f32 %v4724, %v4779
  %4781 = vdwg.mxu0
  %4782 = vmatpush.msra.mxu0 0.0
  %4783 = vmatpush.msra.mxu0 0.0
  %4784 = vmatpush.msra.mxu0 0.0
  %4785 = vmatpush.msra.mxu0 0.0
  %4786 = vmatpush.msra.mxu0 0.0
  %4787 = vmatpush.msra.mxu0 0.0
  %4788 = vmatpush.msra.mxu0 0.0
  %v4789 = vand.u32 %v59, 4294901760
  %4790 = vmatpush.msra.mxu0 %v4789
  %4791 = vmatpush.msra.mxu0 1.0
  %4792 = vmatpush.msra.mxu0 1.0
  %4793 = vmatpush.msra.mxu0 1.0
  %4794 = vmatpush.msra.mxu0 1.0
  %4795 = vmatpush.msra.mxu0 1.0
  %4796 = vmatpush.msra.mxu0 1.0
  %4797 = vmatpush.msra.mxu0 1.0
  %4798 = vmatpush.msra.mxu0 1.0
  %v4799 = vand.u32 %v4035, 4294901760
  %4800 = vmatmul.f32.gmra.mxu0 %v4799
  %v4801 = vpop.f32.mrf.mxu0
  %v4802 = vadd.f32 %v4748, %v4801
  %v4803 = vand.u32 %v4038, 4294901760
  %4804 = vmatmul.f32.gmra.mxu0 %v4803
  %v4805 = vpop.f32.mrf.mxu0
  %v4806 = vadd.f32 %v4752, %v4805
  %v4807 = vand.u32 %v4041, 4294901760
  %4808 = vmatmul.f32.gmra.mxu0 %v4807
  %v4809 = vpop.f32.mrf.mxu0
  %v4810 = vadd.f32 %v4756, %v4809
  %v4811 = vand.u32 %v4044, 4294901760
  %4812 = vmatmul.f32.gmra.mxu0 %v4811
  %v4813 = vpop.f32.mrf.mxu0
  %v4814 = vadd.f32 %v4760, %v4813
  %v4815 = vand.u32 %v4047, 4294901760
  %4816 = vmatmul.f32.gmra.mxu0 %v4815
  %v4817 = vpop.f32.mrf.mxu0
  %v4818 = vadd.f32 %v4764, %v4817
  %v4819 = vand.u32 %v4050, 4294901760
  %4820 = vmatmul.f32.gmra.mxu0 %v4819
  %v4821 = vpop.f32.mrf.mxu0
  %v4822 = vadd.f32 %v4768, %v4821
  %v4823 = vand.u32 %v4053, 4294901760
  %4824 = vmatmul.f32.gmra.mxu0 %v4823
  %v4825 = vpop.f32.mrf.mxu0
  %v4826 = vadd.f32 %v4772, %v4825
  %v4827 = vand.u32 %v4056, 4294901760
  %4828 = vmatmul.f32.gmra.mxu0 %v4827
  %v4829 = vpop.f32.mrf.mxu0
  %v4830 = vadd.f32 %v4776, %v4829
  %v4831 = vand.u32 %v4059, 4294901760
  %4832 = vmatmul.f32.gmra.mxu0 %v4831
  %v4833 = vpop.f32.mrf.mxu0
  %v4834 = vadd.f32 %v4780, %v4833
  %4835 = vdwg.mxu0
  %v4836 = vmul.f32 %v4016, %v4016
  %v4837 = vmul.f32 %v4017, %v4017
  %v4838 = vmul.f32 %v4018, %v4018
  %v4839 = vmul.f32 %v4019, %v4019
  %v4840 = vmul.f32 %v4020, %v4020
  %v4841 = vmul.f32 %v4021, %v4021
  %v4842 = vmul.f32 %v4022, %v4022
  %v4843 = vmul.f32 %v4023, %v4023
  %v4844 = vmul.f32 %v4024, %v4024
  %v4845 = vmul.f32 %v4025, %v4025
  %v4846 = vmul.f32 %v4026, %v4026
  %v4847 = vmul.f32 %v4027, %v4027
  %v4848 = vmul.f32 %v4028, %v4028
  %v4849 = vmul.f32 %v4029, %v4029
  %v4850 = vmul.f32 %v4030, %v4030
  %v4851 = vmul.f32 %v4031, %v4031
  %v4852 = vmul.f32 %v4032, %v4032
  %v4853 = vmul.f32 %v4033, %v4033
  %v4855 = vsel %vm29, %v4837, 0
  %v4858 = vsel %vm29, %v4839, 0
  %v4861 = vsel %vm29, %v4841, 0
  %v4864 = vsel %vm29, %v4843, 0
  %v4867 = vsel %vm29, %v4845, 0
  %v4870 = vsel %vm29, %v4847, 0
  %v4873 = vsel %vm29, %v4849, 0
  %v4876 = vsel %vm29, %v4851, 0
  %v4879 = vsel %vm29, %v4853, 0
  %4881 = vmatpush.msra.mxu0 1.0
  %4882 = vmatpush.msra.mxu0 1.0
  %4883 = vmatpush.msra.mxu0 1.0
  %4884 = vmatpush.msra.mxu0 1.0
  %4885 = vmatpush.msra.mxu0 1.0
  %4886 = vmatpush.msra.mxu0 1.0
  %4887 = vmatpush.msra.mxu0 1.0
  %4888 = vmatpush.msra.mxu0 1.0
  %4889 = vmatpush.msra.mxu0 1.0
  %4890 = vmatpush.msra.mxu0 1.0
  %4891 = vmatpush.msra.mxu0 1.0
  %4892 = vmatpush.msra.mxu0 1.0
  %4893 = vmatpush.msra.mxu0 1.0
  %4894 = vmatpush.msra.mxu0 1.0
  %4895 = vmatpush.msra.mxu0 1.0
  %4896 = vmatpush.msra.mxu0 1.0
  %v4897 = vand.u32 %v4836, 4294901760
  %v4898 = vsub.f32 %v4836, %v4897
  %v4899 = vand.u32 %v4898, 4294901760
  %v4900 = vsub.f32 %v4898, %v4899
  %v4901 = vand.u32 %v4900, 4294901760
  %4902 = vmatmul.f32.gmra.mxu0 %v4901
  %v4903 = vpop.f32.mrf.mxu0
  %v4904 = vadd.f32 0.0, %v4903
  %v4905 = vand.u32 %v4838, 4294901760
  %v4906 = vsub.f32 %v4838, %v4905
  %v4907 = vand.u32 %v4906, 4294901760
  %v4908 = vsub.f32 %v4906, %v4907
  %v4909 = vand.u32 %v4908, 4294901760
  %4910 = vmatmul.f32.gmra.mxu0 %v4909
  %v4911 = vpop.f32.mrf.mxu0
  %v4912 = vadd.f32 0.0, %v4911
  %v4913 = vand.u32 %v4840, 4294901760
  %v4914 = vsub.f32 %v4840, %v4913
  %v4915 = vand.u32 %v4914, 4294901760
  %v4916 = vsub.f32 %v4914, %v4915
  %v4917 = vand.u32 %v4916, 4294901760
  %4918 = vmatmul.f32.gmra.mxu0 %v4917
  %v4919 = vpop.f32.mrf.mxu0
  %v4920 = vadd.f32 0.0, %v4919
  %v4921 = vand.u32 %v4842, 4294901760
  %v4922 = vsub.f32 %v4842, %v4921
  %v4923 = vand.u32 %v4922, 4294901760
  %v4924 = vsub.f32 %v4922, %v4923
  %v4925 = vand.u32 %v4924, 4294901760
  %4926 = vmatmul.f32.gmra.mxu0 %v4925
  %v4927 = vpop.f32.mrf.mxu0
  %v4928 = vadd.f32 0.0, %v4927
  %v4929 = vand.u32 %v4844, 4294901760
  %v4930 = vsub.f32 %v4844, %v4929
  %v4931 = vand.u32 %v4930, 4294901760
  %v4932 = vsub.f32 %v4930, %v4931
  %v4933 = vand.u32 %v4932, 4294901760
  %4934 = vmatmul.f32.gmra.mxu0 %v4933
  %v4935 = vpop.f32.mrf.mxu0
  %v4936 = vadd.f32 0.0, %v4935
  %v4937 = vand.u32 %v4846, 4294901760
  %v4938 = vsub.f32 %v4846, %v4937
  %v4939 = vand.u32 %v4938, 4294901760
  %v4940 = vsub.f32 %v4938, %v4939
  %v4941 = vand.u32 %v4940, 4294901760
  %4942 = vmatmul.f32.gmra.mxu0 %v4941
  %v4943 = vpop.f32.mrf.mxu0
  %v4944 = vadd.f32 0.0, %v4943
  %v4945 = vand.u32 %v4848, 4294901760
  %v4946 = vsub.f32 %v4848, %v4945
  %v4947 = vand.u32 %v4946, 4294901760
  %v4948 = vsub.f32 %v4946, %v4947
  %v4949 = vand.u32 %v4948, 4294901760
  %4950 = vmatmul.f32.gmra.mxu0 %v4949
  %v4951 = vpop.f32.mrf.mxu0
  %v4952 = vadd.f32 0.0, %v4951
  %v4953 = vand.u32 %v4850, 4294901760
  %v4954 = vsub.f32 %v4850, %v4953
  %v4955 = vand.u32 %v4954, 4294901760
  %v4956 = vsub.f32 %v4954, %v4955
  %v4957 = vand.u32 %v4956, 4294901760
  %4958 = vmatmul.f32.gmra.mxu0 %v4957
  %v4959 = vpop.f32.mrf.mxu0
  %v4960 = vadd.f32 0.0, %v4959
  %v4961 = vand.u32 %v4852, 4294901760
  %v4962 = vsub.f32 %v4852, %v4961
  %v4963 = vand.u32 %v4962, 4294901760
  %v4964 = vsub.f32 %v4962, %v4963
  %v4965 = vand.u32 %v4964, 4294901760
  %4966 = vmatmul.f32.gmra.mxu0 %v4965
  %v4967 = vpop.f32.mrf.mxu0
  %v4968 = vadd.f32 0.0, %v4967
  %4969 = vdwg.mxu0
  %4970 = vmatpush.msra.mxu0 0.0
  %4971 = vmatpush.msra.mxu0 0.0
  %4972 = vmatpush.msra.mxu0 0.0
  %4973 = vmatpush.msra.mxu0 0.0
  %4974 = vmatpush.msra.mxu0 0.0
  %4975 = vmatpush.msra.mxu0 0.0
  %4976 = vmatpush.msra.mxu0 0.0
  %4977 = vmatpush.msra.mxu0 0.0
  %4978 = vmatpush.msra.mxu0 0.0
  %4979 = vmatpush.msra.mxu0 0.0
  %4980 = vmatpush.msra.mxu0 0.0
  %4981 = vmatpush.msra.mxu0 0.0
  %4982 = vmatpush.msra.mxu0 0.0
  %4983 = vmatpush.msra.mxu0 0.0
  %4984 = vmatpush.msra.mxu0 0.0
  %4985 = vmatpush.msra.mxu0 0.0
  %v4986 = vand.u32 %v4836, 4294901760
  %4987 = vmatmul.f32.gmra.mxu0 %v4986
  %v4988 = vpop.f32.mrf.mxu0
  %v4989 = vadd.f32 %v4904, %v4988
  %v4990 = vand.u32 %v4838, 4294901760
  %4991 = vmatmul.f32.gmra.mxu0 %v4990
  %v4992 = vpop.f32.mrf.mxu0
  %v4993 = vadd.f32 %v4912, %v4992
  %v4994 = vand.u32 %v4840, 4294901760
  %4995 = vmatmul.f32.gmra.mxu0 %v4994
  %v4996 = vpop.f32.mrf.mxu0
  %v4997 = vadd.f32 %v4920, %v4996
  %v4998 = vand.u32 %v4842, 4294901760
  %4999 = vmatmul.f32.gmra.mxu0 %v4998
  %v5000 = vpop.f32.mrf.mxu0
  %v5001 = vadd.f32 %v4928, %v5000
  %v5002 = vand.u32 %v4844, 4294901760
  %5003 = vmatmul.f32.gmra.mxu0 %v5002
  %v5004 = vpop.f32.mrf.mxu0
  %v5005 = vadd.f32 %v4936, %v5004
  %v5006 = vand.u32 %v4846, 4294901760
  %5007 = vmatmul.f32.gmra.mxu0 %v5006
  %v5008 = vpop.f32.mrf.mxu0
  %v5009 = vadd.f32 %v4944, %v5008
  %v5010 = vand.u32 %v4848, 4294901760
  %5011 = vmatmul.f32.gmra.mxu0 %v5010
  %v5012 = vpop.f32.mrf.mxu0
  %v5013 = vadd.f32 %v4952, %v5012
  %v5014 = vand.u32 %v4850, 4294901760
  %5015 = vmatmul.f32.gmra.mxu0 %v5014
  %v5016 = vpop.f32.mrf.mxu0
  %v5017 = vadd.f32 %v4960, %v5016
  %v5018 = vand.u32 %v4852, 4294901760
  %5019 = vmatmul.f32.gmra.mxu0 %v5018
  %v5020 = vpop.f32.mrf.mxu0
  %v5021 = vadd.f32 %v4968, %v5020
  %5022 = vdwg.mxu0
  %5023 = vmatpush.msra.mxu0 0.0
  %5024 = vmatpush.msra.mxu0 0.0
  %5025 = vmatpush.msra.mxu0 0.0
  %5026 = vmatpush.msra.mxu0 0.0
  %5027 = vmatpush.msra.mxu0 0.0
  %5028 = vmatpush.msra.mxu0 0.0
  %5029 = vmatpush.msra.mxu0 0.0
  %5030 = vmatpush.msra.mxu0 0.0
  %5031 = vmatpush.msra.mxu0 0.0
  %5032 = vmatpush.msra.mxu0 0.0
  %5033 = vmatpush.msra.mxu0 0.0
  %5034 = vmatpush.msra.mxu0 0.0
  %5035 = vmatpush.msra.mxu0 0.0
  %5036 = vmatpush.msra.mxu0 0.0
  %5037 = vmatpush.msra.mxu0 0.0
  %5038 = vmatpush.msra.mxu0 0.0
  %v5039 = vand.u32 %v4836, 4294901760
  %v5040 = vsub.f32 %v4836, %v5039
  %5041 = vmatmul.f32.gmra.mxu0 %v5040
  %v5042 = vpop.f32.mrf.mxu0
  %v5043 = vadd.f32 %v4989, %v5042
  %v5044 = vand.u32 %v4838, 4294901760
  %v5045 = vsub.f32 %v4838, %v5044
  %5046 = vmatmul.f32.gmra.mxu0 %v5045
  %v5047 = vpop.f32.mrf.mxu0
  %v5048 = vadd.f32 %v4993, %v5047
  %v5049 = vand.u32 %v4840, 4294901760
  %v5050 = vsub.f32 %v4840, %v5049
  %5051 = vmatmul.f32.gmra.mxu0 %v5050
  %v5052 = vpop.f32.mrf.mxu0
  %v5053 = vadd.f32 %v4997, %v5052
  %v5054 = vand.u32 %v4842, 4294901760
  %v5055 = vsub.f32 %v4842, %v5054
  %5056 = vmatmul.f32.gmra.mxu0 %v5055
  %v5057 = vpop.f32.mrf.mxu0
  %v5058 = vadd.f32 %v5001, %v5057
  %v5059 = vand.u32 %v4844, 4294901760
  %v5060 = vsub.f32 %v4844, %v5059
  %5061 = vmatmul.f32.gmra.mxu0 %v5060
  %v5062 = vpop.f32.mrf.mxu0
  %v5063 = vadd.f32 %v5005, %v5062
  %v5064 = vand.u32 %v4846, 4294901760
  %v5065 = vsub.f32 %v4846, %v5064
  %5066 = vmatmul.f32.gmra.mxu0 %v5065
  %v5067 = vpop.f32.mrf.mxu0
  %v5068 = vadd.f32 %v5009, %v5067
  %v5069 = vand.u32 %v4848, 4294901760
  %v5070 = vsub.f32 %v4848, %v5069
  %5071 = vmatmul.f32.gmra.mxu0 %v5070
  %v5072 = vpop.f32.mrf.mxu0
  %v5073 = vadd.f32 %v5013, %v5072
  %v5074 = vand.u32 %v4850, 4294901760
  %v5075 = vsub.f32 %v4850, %v5074
  %5076 = vmatmul.f32.gmra.mxu0 %v5075
  %v5077 = vpop.f32.mrf.mxu0
  %v5078 = vadd.f32 %v5017, %v5077
  %v5079 = vand.u32 %v4852, 4294901760
  %v5080 = vsub.f32 %v4852, %v5079
  %5081 = vmatmul.f32.gmra.mxu0 %v5080
  %v5082 = vpop.f32.mrf.mxu0
  %v5083 = vadd.f32 %v5021, %v5082
  %5084 = vdwg.mxu0
  %5085 = vmatpush.msra.mxu0 1.0
  %5086 = vmatpush.msra.mxu0 1.0
  %5087 = vmatpush.msra.mxu0 1.0
  %5088 = vmatpush.msra.mxu0 1.0
  %5089 = vmatpush.msra.mxu0 1.0
  %5090 = vmatpush.msra.mxu0 1.0
  %5091 = vmatpush.msra.mxu0 1.0
  %5092 = vmatpush.msra.mxu0 1.0
  %5093 = vmatpush.msra.mxu0 1.0
  %5094 = vmatpush.msra.mxu0 1.0
  %5095 = vmatpush.msra.mxu0 1.0
  %5096 = vmatpush.msra.mxu0 1.0
  %5097 = vmatpush.msra.mxu0 1.0
  %5098 = vmatpush.msra.mxu0 1.0
  %5099 = vmatpush.msra.mxu0 1.0
  %5100 = vmatpush.msra.mxu0 1.0
  %v5101 = vand.u32 %v4836, 4294901760
  %v5102 = vsub.f32 %v4836, %v5101
  %v5103 = vand.u32 %v5102, 4294901760
  %5104 = vmatmul.f32.gmra.mxu0 %v5103
  %v5105 = vpop.f32.mrf.mxu0
  %v5106 = vadd.f32 %v5043, %v5105
  %v5107 = vand.u32 %v4838, 4294901760
  %v5108 = vsub.f32 %v4838, %v5107
  %v5109 = vand.u32 %v5108, 4294901760
  %5110 = vmatmul.f32.gmra.mxu0 %v5109
  %v5111 = vpop.f32.mrf.mxu0
  %v5112 = vadd.f32 %v5048, %v5111
  %v5113 = vand.u32 %v4840, 4294901760
  %v5114 = vsub.f32 %v4840, %v5113
  %v5115 = vand.u32 %v5114, 4294901760
  %5116 = vmatmul.f32.gmra.mxu0 %v5115
  %v5117 = vpop.f32.mrf.mxu0
  %v5118 = vadd.f32 %v5053, %v5117
  %v5119 = vand.u32 %v4842, 4294901760
  %v5120 = vsub.f32 %v4842, %v5119
  %v5121 = vand.u32 %v5120, 4294901760
  %5122 = vmatmul.f32.gmra.mxu0 %v5121
  %v5123 = vpop.f32.mrf.mxu0
  %v5124 = vadd.f32 %v5058, %v5123
  %v5125 = vand.u32 %v4844, 4294901760
  %v5126 = vsub.f32 %v4844, %v5125
  %v5127 = vand.u32 %v5126, 4294901760
  %5128 = vmatmul.f32.gmra.mxu0 %v5127
  %v5129 = vpop.f32.mrf.mxu0
  %v5130 = vadd.f32 %v5063, %v5129
  %v5131 = vand.u32 %v4846, 4294901760
  %v5132 = vsub.f32 %v4846, %v5131
  %v5133 = vand.u32 %v5132, 4294901760
  %5134 = vmatmul.f32.gmra.mxu0 %v5133
  %v5135 = vpop.f32.mrf.mxu0
  %v5136 = vadd.f32 %v5068, %v5135
  %v5137 = vand.u32 %v4848, 4294901760
  %v5138 = vsub.f32 %v4848, %v5137
  %v5139 = vand.u32 %v5138, 4294901760
  %5140 = vmatmul.f32.gmra.mxu0 %v5139
  %v5141 = vpop.f32.mrf.mxu0
  %v5142 = vadd.f32 %v5073, %v5141
  %v5143 = vand.u32 %v4850, 4294901760
  %v5144 = vsub.f32 %v4850, %v5143
  %v5145 = vand.u32 %v5144, 4294901760
  %5146 = vmatmul.f32.gmra.mxu0 %v5145
  %v5147 = vpop.f32.mrf.mxu0
  %v5148 = vadd.f32 %v5078, %v5147
  %v5149 = vand.u32 %v4852, 4294901760
  %v5150 = vsub.f32 %v4852, %v5149
  %v5151 = vand.u32 %v5150, 4294901760
  %5152 = vmatmul.f32.gmra.mxu0 %v5151
  %v5153 = vpop.f32.mrf.mxu0
  %v5154 = vadd.f32 %v5083, %v5153
  %5155 = vdwg.mxu0
  %5156 = vmatpush.msra.mxu0 0.0
  %5157 = vmatpush.msra.mxu0 0.0
  %5158 = vmatpush.msra.mxu0 0.0
  %5159 = vmatpush.msra.mxu0 0.0
  %5160 = vmatpush.msra.mxu0 0.0
  %5161 = vmatpush.msra.mxu0 0.0
  %5162 = vmatpush.msra.mxu0 0.0
  %5163 = vmatpush.msra.mxu0 0.0
  %5164 = vmatpush.msra.mxu0 0.0
  %5165 = vmatpush.msra.mxu0 0.0
  %5166 = vmatpush.msra.mxu0 0.0
  %5167 = vmatpush.msra.mxu0 0.0
  %5168 = vmatpush.msra.mxu0 0.0
  %5169 = vmatpush.msra.mxu0 0.0
  %5170 = vmatpush.msra.mxu0 0.0
  %5171 = vmatpush.msra.mxu0 0.0
  %v5172 = vand.u32 %v4836, 4294901760
  %5173 = vmatmul.f32.gmra.mxu0 %v5172
  %v5174 = vpop.f32.mrf.mxu0
  %v5175 = vadd.f32 %v5106, %v5174
  %v5176 = vand.u32 %v4838, 4294901760
  %5177 = vmatmul.f32.gmra.mxu0 %v5176
  %v5178 = vpop.f32.mrf.mxu0
  %v5179 = vadd.f32 %v5112, %v5178
  %v5180 = vand.u32 %v4840, 4294901760
  %5181 = vmatmul.f32.gmra.mxu0 %v5180
  %v5182 = vpop.f32.mrf.mxu0
  %v5183 = vadd.f32 %v5118, %v5182
  %v5184 = vand.u32 %v4842, 4294901760
  %5185 = vmatmul.f32.gmra.mxu0 %v5184
  %v5186 = vpop.f32.mrf.mxu0
  %v5187 = vadd.f32 %v5124, %v5186
  %v5188 = vand.u32 %v4844, 4294901760
  %5189 = vmatmul.f32.gmra.mxu0 %v5188
  %v5190 = vpop.f32.mrf.mxu0
  %v5191 = vadd.f32 %v5130, %v5190
  %v5192 = vand.u32 %v4846, 4294901760
  %5193 = vmatmul.f32.gmra.mxu0 %v5192
  %v5194 = vpop.f32.mrf.mxu0
  %v5195 = vadd.f32 %v5136, %v5194
  %v5196 = vand.u32 %v4848, 4294901760
  %5197 = vmatmul.f32.gmra.mxu0 %v5196
  %v5198 = vpop.f32.mrf.mxu0
  %v5199 = vadd.f32 %v5142, %v5198
  %v5200 = vand.u32 %v4850, 4294901760
  %5201 = vmatmul.f32.gmra.mxu0 %v5200
  %v5202 = vpop.f32.mrf.mxu0
  %v5203 = vadd.f32 %v5148, %v5202
  %v5204 = vand.u32 %v4852, 4294901760
  %5205 = vmatmul.f32.gmra.mxu0 %v5204
  %v5206 = vpop.f32.mrf.mxu0
  %v5207 = vadd.f32 %v5154, %v5206
  %5208 = vdwg.mxu0
  %5209 = vmatpush.msra.mxu0 1.0
  %5210 = vmatpush.msra.mxu0 1.0
  %5211 = vmatpush.msra.mxu0 1.0
  %5212 = vmatpush.msra.mxu0 1.0
  %5213 = vmatpush.msra.mxu0 1.0
  %5214 = vmatpush.msra.mxu0 1.0
  %5215 = vmatpush.msra.mxu0 1.0
  %5216 = vmatpush.msra.mxu0 1.0
  %5217 = vmatpush.msra.mxu0 1.0
  %5218 = vmatpush.msra.mxu0 1.0
  %5219 = vmatpush.msra.mxu0 1.0
  %5220 = vmatpush.msra.mxu0 1.0
  %5221 = vmatpush.msra.mxu0 1.0
  %5222 = vmatpush.msra.mxu0 1.0
  %5223 = vmatpush.msra.mxu0 1.0
  %5224 = vmatpush.msra.mxu0 1.0
  %v5225 = vand.u32 %v4836, 4294901760
  %5226 = vmatmul.f32.gmra.mxu0 %v5225
  %v5227 = vpop.f32.mrf.mxu0
  %v5228 = vadd.f32 %v5175, %v5227
  %v5229 = vand.u32 %v4838, 4294901760
  %5230 = vmatmul.f32.gmra.mxu0 %v5229
  %v5231 = vpop.f32.mrf.mxu0
  %v5232 = vadd.f32 %v5179, %v5231
  %v5233 = vand.u32 %v4840, 4294901760
  %5234 = vmatmul.f32.gmra.mxu0 %v5233
  %v5235 = vpop.f32.mrf.mxu0
  %v5236 = vadd.f32 %v5183, %v5235
  %v5237 = vand.u32 %v4842, 4294901760
  %5238 = vmatmul.f32.gmra.mxu0 %v5237
  %v5239 = vpop.f32.mrf.mxu0
  %v5240 = vadd.f32 %v5187, %v5239
  %v5241 = vand.u32 %v4844, 4294901760
  %5242 = vmatmul.f32.gmra.mxu0 %v5241
  %v5243 = vpop.f32.mrf.mxu0
  %v5244 = vadd.f32 %v5191, %v5243
  %v5245 = vand.u32 %v4846, 4294901760
  %5246 = vmatmul.f32.gmra.mxu0 %v5245
  %v5247 = vpop.f32.mrf.mxu0
  %v5248 = vadd.f32 %v5195, %v5247
  %v5249 = vand.u32 %v4848, 4294901760
  %5250 = vmatmul.f32.gmra.mxu0 %v5249
  %v5251 = vpop.f32.mrf.mxu0
  %v5252 = vadd.f32 %v5199, %v5251
  %v5253 = vand.u32 %v4850, 4294901760
  %5254 = vmatmul.f32.gmra.mxu0 %v5253
  %v5255 = vpop.f32.mrf.mxu0
  %v5256 = vadd.f32 %v5203, %v5255
  %v5257 = vand.u32 %v4852, 4294901760
  %5258 = vmatmul.f32.gmra.mxu0 %v5257
  %v5259 = vpop.f32.mrf.mxu0
  %v5260 = vadd.f32 %v5207, %v5259
  %5261 = vdwg.mxu0
  %5262 = vmatpush.msra.mxu0 0.0
  %5263 = vmatpush.msra.mxu0 0.0
  %5264 = vmatpush.msra.mxu0 0.0
  %5265 = vmatpush.msra.mxu0 0.0
  %5266 = vmatpush.msra.mxu0 0.0
  %5267 = vmatpush.msra.mxu0 0.0
  %5268 = vmatpush.msra.mxu0 0.0
  %v5269 = vand.u32 %v59, 4294901760
  %5270 = vmatpush.msra.mxu0 %v5269
  %5271 = vmatpush.msra.mxu0 1.0
  %5272 = vmatpush.msra.mxu0 1.0
  %5273 = vmatpush.msra.mxu0 1.0
  %5274 = vmatpush.msra.mxu0 1.0
  %5275 = vmatpush.msra.mxu0 1.0
  %5276 = vmatpush.msra.mxu0 1.0
  %5277 = vmatpush.msra.mxu0 1.0
  %5278 = vmatpush.msra.mxu0 1.0
  %v5279 = vand.u32 %v4855, 4294901760
  %v5280 = vsub.f32 %v4855, %v5279
  %v5281 = vand.u32 %v5280, 4294901760
  %v5282 = vsub.f32 %v5280, %v5281
  %v5283 = vand.u32 %v5282, 4294901760
  %5284 = vmatmul.f32.gmra.mxu0 %v5283
  %v5285 = vpop.f32.mrf.mxu0
  %v5286 = vadd.f32 %v5228, %v5285
  %v5287 = vand.u32 %v4858, 4294901760
  %v5288 = vsub.f32 %v4858, %v5287
  %v5289 = vand.u32 %v5288, 4294901760
  %v5290 = vsub.f32 %v5288, %v5289
  %v5291 = vand.u32 %v5290, 4294901760
  %5292 = vmatmul.f32.gmra.mxu0 %v5291
  %v5293 = vpop.f32.mrf.mxu0
  %v5294 = vadd.f32 %v5232, %v5293
  %v5295 = vand.u32 %v4861, 4294901760
  %v5296 = vsub.f32 %v4861, %v5295
  %v5297 = vand.u32 %v5296, 4294901760
  %v5298 = vsub.f32 %v5296, %v5297
  %v5299 = vand.u32 %v5298, 4294901760
  %5300 = vmatmul.f32.gmra.mxu0 %v5299
  %v5301 = vpop.f32.mrf.mxu0
  %v5302 = vadd.f32 %v5236, %v5301
  %v5303 = vand.u32 %v4864, 4294901760
  %v5304 = vsub.f32 %v4864, %v5303
  %v5305 = vand.u32 %v5304, 4294901760
  %v5306 = vsub.f32 %v5304, %v5305
  %v5307 = vand.u32 %v5306, 4294901760
  %5308 = vmatmul.f32.gmra.mxu0 %v5307
  %v5309 = vpop.f32.mrf.mxu0
  %v5310 = vadd.f32 %v5240, %v5309
  %v5311 = vand.u32 %v4867, 4294901760
  %v5312 = vsub.f32 %v4867, %v5311
  %v5313 = vand.u32 %v5312, 4294901760
  %v5314 = vsub.f32 %v5312, %v5313
  %v5315 = vand.u32 %v5314, 4294901760
  %5316 = vmatmul.f32.gmra.mxu0 %v5315
  %v5317 = vpop.f32.mrf.mxu0
  %v5318 = vadd.f32 %v5244, %v5317
  %v5319 = vand.u32 %v4870, 4294901760
  %v5320 = vsub.f32 %v4870, %v5319
  %v5321 = vand.u32 %v5320, 4294901760
  %v5322 = vsub.f32 %v5320, %v5321
  %v5323 = vand.u32 %v5322, 4294901760
  %5324 = vmatmul.f32.gmra.mxu0 %v5323
  %v5325 = vpop.f32.mrf.mxu0
  %v5326 = vadd.f32 %v5248, %v5325
  %v5327 = vand.u32 %v4873, 4294901760
  %v5328 = vsub.f32 %v4873, %v5327
  %v5329 = vand.u32 %v5328, 4294901760
  %v5330 = vsub.f32 %v5328, %v5329
  %v5331 = vand.u32 %v5330, 4294901760
  %5332 = vmatmul.f32.gmra.mxu0 %v5331
  %v5333 = vpop.f32.mrf.mxu0
  %v5334 = vadd.f32 %v5252, %v5333
  %v5335 = vand.u32 %v4876, 4294901760
  %v5336 = vsub.f32 %v4876, %v5335
  %v5337 = vand.u32 %v5336, 4294901760
  %v5338 = vsub.f32 %v5336, %v5337
  %v5339 = vand.u32 %v5338, 4294901760
  %5340 = vmatmul.f32.gmra.mxu0 %v5339
  %v5341 = vpop.f32.mrf.mxu0
  %v5342 = vadd.f32 %v5256, %v5341
  %v5343 = vand.u32 %v4879, 4294901760
  %v5344 = vsub.f32 %v4879, %v5343
  %v5345 = vand.u32 %v5344, 4294901760
  %v5346 = vsub.f32 %v5344, %v5345
  %v5347 = vand.u32 %v5346, 4294901760
  %5348 = vmatmul.f32.gmra.mxu0 %v5347
  %v5349 = vpop.f32.mrf.mxu0
  %v5350 = vadd.f32 %v5260, %v5349
  %5351 = vdwg.mxu0
  %5352 = vmatpush.msra.mxu0 0.0
  %5353 = vmatpush.msra.mxu0 0.0
  %5354 = vmatpush.msra.mxu0 0.0
  %5355 = vmatpush.msra.mxu0 0.0
  %5356 = vmatpush.msra.mxu0 0.0
  %5357 = vmatpush.msra.mxu0 0.0
  %5358 = vmatpush.msra.mxu0 0.0
  %v5359 = vand.u32 %v59, 4294901760
  %v5360 = vsub.f32 %v59, %v5359
  %v5361 = vand.u32 %v5360, 4294901760
  %v5362 = vsub.f32 %v5360, %v5361
  %v5363 = vand.u32 %v5362, 4294901760
  %5364 = vmatpush.msra.mxu0 %v5363
  %5365 = vmatpush.msra.mxu0 0.0
  %5366 = vmatpush.msra.mxu0 0.0
  %5367 = vmatpush.msra.mxu0 0.0
  %5368 = vmatpush.msra.mxu0 0.0
  %5369 = vmatpush.msra.mxu0 0.0
  %5370 = vmatpush.msra.mxu0 0.0
  %5371 = vmatpush.msra.mxu0 0.0
  %5372 = vmatpush.msra.mxu0 0.0
  %v5373 = vand.u32 %v4855, 4294901760
  %5374 = vmatmul.f32.gmra.mxu0 %v5373
  %v5375 = vpop.f32.mrf.mxu0
  %v5376 = vadd.f32 %v5286, %v5375
  %v5377 = vand.u32 %v4858, 4294901760
  %5378 = vmatmul.f32.gmra.mxu0 %v5377
  %v5379 = vpop.f32.mrf.mxu0
  %v5380 = vadd.f32 %v5294, %v5379
  %v5381 = vand.u32 %v4861, 4294901760
  %5382 = vmatmul.f32.gmra.mxu0 %v5381
  %v5383 = vpop.f32.mrf.mxu0
  %v5384 = vadd.f32 %v5302, %v5383
  %v5385 = vand.u32 %v4864, 4294901760
  %5386 = vmatmul.f32.gmra.mxu0 %v5385
  %v5387 = vpop.f32.mrf.mxu0
  %v5388 = vadd.f32 %v5310, %v5387
  %v5389 = vand.u32 %v4867, 4294901760
  %5390 = vmatmul.f32.gmra.mxu0 %v5389
  %v5391 = vpop.f32.mrf.mxu0
  %v5392 = vadd.f32 %v5318, %v5391
  %v5393 = vand.u32 %v4870, 4294901760
  %5394 = vmatmul.f32.gmra.mxu0 %v5393
  %v5395 = vpop.f32.mrf.mxu0
  %v5396 = vadd.f32 %v5326, %v5395
  %v5397 = vand.u32 %v4873, 4294901760
  %5398 = vmatmul.f32.gmra.mxu0 %v5397
  %v5399 = vpop.f32.mrf.mxu0
  %v5400 = vadd.f32 %v5334, %v5399
  %v5401 = vand.u32 %v4876, 4294901760
  %5402 = vmatmul.f32.gmra.mxu0 %v5401
  %v5403 = vpop.f32.mrf.mxu0
  %v5404 = vadd.f32 %v5342, %v5403
  %v5405 = vand.u32 %v4879, 4294901760
  %5406 = vmatmul.f32.gmra.mxu0 %v5405
  %v5407 = vpop.f32.mrf.mxu0
  %v5408 = vadd.f32 %v5350, %v5407
  %5409 = vdwg.mxu0
  %5410 = vmatpush.msra.mxu0 0.0
  %5411 = vmatpush.msra.mxu0 0.0
  %5412 = vmatpush.msra.mxu0 0.0
  %5413 = vmatpush.msra.mxu0 0.0
  %5414 = vmatpush.msra.mxu0 0.0
  %5415 = vmatpush.msra.mxu0 0.0
  %5416 = vmatpush.msra.mxu0 0.0
  %v5417 = vand.u32 %v59, 4294901760
  %v5418 = vsub.f32 %v59, %v5417
  %5419 = vmatpush.msra.mxu0 %v5418
  %5420 = vmatpush.msra.mxu0 0.0
  %5421 = vmatpush.msra.mxu0 0.0
  %5422 = vmatpush.msra.mxu0 0.0
  %5423 = vmatpush.msra.mxu0 0.0
  %5424 = vmatpush.msra.mxu0 0.0
  %5425 = vmatpush.msra.mxu0 0.0
  %5426 = vmatpush.msra.mxu0 0.0
  %5427 = vmatpush.msra.mxu0 0.0
  %v5428 = vand.u32 %v4855, 4294901760
  %v5429 = vsub.f32 %v4855, %v5428
  %5430 = vmatmul.f32.gmra.mxu0 %v5429
  %v5431 = vpop.f32.mrf.mxu0
  %v5432 = vadd.f32 %v5376, %v5431
  %v5433 = vand.u32 %v4858, 4294901760
  %v5434 = vsub.f32 %v4858, %v5433
  %5435 = vmatmul.f32.gmra.mxu0 %v5434
  %v5436 = vpop.f32.mrf.mxu0
  %v5437 = vadd.f32 %v5380, %v5436
  %v5438 = vand.u32 %v4861, 4294901760
  %v5439 = vsub.f32 %v4861, %v5438
  %5440 = vmatmul.f32.gmra.mxu0 %v5439
  %v5441 = vpop.f32.mrf.mxu0
  %v5442 = vadd.f32 %v5384, %v5441
  %v5443 = vand.u32 %v4864, 4294901760
  %v5444 = vsub.f32 %v4864, %v5443
  %5445 = vmatmul.f32.gmra.mxu0 %v5444
  %v5446 = vpop.f32.mrf.mxu0
  %v5447 = vadd.f32 %v5388, %v5446
  %v5448 = vand.u32 %v4867, 4294901760
  %v5449 = vsub.f32 %v4867, %v5448
  %5450 = vmatmul.f32.gmra.mxu0 %v5449
  %v5451 = vpop.f32.mrf.mxu0
  %v5452 = vadd.f32 %v5392, %v5451
  %v5453 = vand.u32 %v4870, 4294901760
  %v5454 = vsub.f32 %v4870, %v5453
  %5455 = vmatmul.f32.gmra.mxu0 %v5454
  %v5456 = vpop.f32.mrf.mxu0
  %v5457 = vadd.f32 %v5396, %v5456
  %v5458 = vand.u32 %v4873, 4294901760
  %v5459 = vsub.f32 %v4873, %v5458
  %5460 = vmatmul.f32.gmra.mxu0 %v5459
  %v5461 = vpop.f32.mrf.mxu0
  %v5462 = vadd.f32 %v5400, %v5461
  %v5463 = vand.u32 %v4876, 4294901760
  %v5464 = vsub.f32 %v4876, %v5463
  %5465 = vmatmul.f32.gmra.mxu0 %v5464
  %v5466 = vpop.f32.mrf.mxu0
  %v5467 = vadd.f32 %v5404, %v5466
  %v5468 = vand.u32 %v4879, 4294901760
  %v5469 = vsub.f32 %v4879, %v5468
  %5470 = vmatmul.f32.gmra.mxu0 %v5469
  %v5471 = vpop.f32.mrf.mxu0
  %v5472 = vadd.f32 %v5408, %v5471
  %5473 = vdwg.mxu0
  %5474 = vmatpush.msra.mxu0 0.0
  %5475 = vmatpush.msra.mxu0 0.0
  %5476 = vmatpush.msra.mxu0 0.0
  %5477 = vmatpush.msra.mxu0 0.0
  %5478 = vmatpush.msra.mxu0 0.0
  %5479 = vmatpush.msra.mxu0 0.0
  %5480 = vmatpush.msra.mxu0 0.0
  %v5481 = vand.u32 %v59, 4294901760
  %5482 = vmatpush.msra.mxu0 %v5481
  %5483 = vmatpush.msra.mxu0 1.0
  %5484 = vmatpush.msra.mxu0 1.0
  %5485 = vmatpush.msra.mxu0 1.0
  %5486 = vmatpush.msra.mxu0 1.0
  %5487 = vmatpush.msra.mxu0 1.0
  %5488 = vmatpush.msra.mxu0 1.0
  %5489 = vmatpush.msra.mxu0 1.0
  %5490 = vmatpush.msra.mxu0 1.0
  %v5491 = vand.u32 %v4855, 4294901760
  %v5492 = vsub.f32 %v4855, %v5491
  %v5493 = vand.u32 %v5492, 4294901760
  %5494 = vmatmul.f32.gmra.mxu0 %v5493
  %v5495 = vpop.f32.mrf.mxu0
  %v5496 = vadd.f32 %v5432, %v5495
  %v5497 = vand.u32 %v4858, 4294901760
  %v5498 = vsub.f32 %v4858, %v5497
  %v5499 = vand.u32 %v5498, 4294901760
  %5500 = vmatmul.f32.gmra.mxu0 %v5499
  %v5501 = vpop.f32.mrf.mxu0
  %v5502 = vadd.f32 %v5437, %v5501
  %v5503 = vand.u32 %v4861, 4294901760
  %v5504 = vsub.f32 %v4861, %v5503
  %v5505 = vand.u32 %v5504, 4294901760
  %5506 = vmatmul.f32.gmra.mxu0 %v5505
  %v5507 = vpop.f32.mrf.mxu0
  %v5508 = vadd.f32 %v5442, %v5507
  %v5509 = vand.u32 %v4864, 4294901760
  %v5510 = vsub.f32 %v4864, %v5509
  %v5511 = vand.u32 %v5510, 4294901760
  %5512 = vmatmul.f32.gmra.mxu0 %v5511
  %v5513 = vpop.f32.mrf.mxu0
  %v5514 = vadd.f32 %v5447, %v5513
  %v5515 = vand.u32 %v4867, 4294901760
  %v5516 = vsub.f32 %v4867, %v5515
  %v5517 = vand.u32 %v5516, 4294901760
  %5518 = vmatmul.f32.gmra.mxu0 %v5517
  %v5519 = vpop.f32.mrf.mxu0
  %v5520 = vadd.f32 %v5452, %v5519
  %v5521 = vand.u32 %v4870, 4294901760
  %v5522 = vsub.f32 %v4870, %v5521
  %v5523 = vand.u32 %v5522, 4294901760
  %5524 = vmatmul.f32.gmra.mxu0 %v5523
  %v5525 = vpop.f32.mrf.mxu0
  %v5526 = vadd.f32 %v5457, %v5525
  %v5527 = vand.u32 %v4873, 4294901760
  %v5528 = vsub.f32 %v4873, %v5527
  %v5529 = vand.u32 %v5528, 4294901760
  %5530 = vmatmul.f32.gmra.mxu0 %v5529
  %v5531 = vpop.f32.mrf.mxu0
  %v5532 = vadd.f32 %v5462, %v5531
  %v5533 = vand.u32 %v4876, 4294901760
  %v5534 = vsub.f32 %v4876, %v5533
  %v5535 = vand.u32 %v5534, 4294901760
  %5536 = vmatmul.f32.gmra.mxu0 %v5535
  %v5537 = vpop.f32.mrf.mxu0
  %v5538 = vadd.f32 %v5467, %v5537
  %v5539 = vand.u32 %v4879, 4294901760
  %v5540 = vsub.f32 %v4879, %v5539
  %v5541 = vand.u32 %v5540, 4294901760
  %5542 = vmatmul.f32.gmra.mxu0 %v5541
  %v5543 = vpop.f32.mrf.mxu0
  %v5544 = vadd.f32 %v5472, %v5543
  %5545 = vdwg.mxu0
  %5546 = vmatpush.msra.mxu0 0.0
  %5547 = vmatpush.msra.mxu0 0.0
  %5548 = vmatpush.msra.mxu0 0.0
  %5549 = vmatpush.msra.mxu0 0.0
  %5550 = vmatpush.msra.mxu0 0.0
  %5551 = vmatpush.msra.mxu0 0.0
  %5552 = vmatpush.msra.mxu0 0.0
  %v5553 = vand.u32 %v59, 4294901760
  %v5554 = vsub.f32 %v59, %v5553
  %v5555 = vand.u32 %v5554, 4294901760
  %5556 = vmatpush.msra.mxu0 %v5555
  %5557 = vmatpush.msra.mxu0 0.0
  %5558 = vmatpush.msra.mxu0 0.0
  %5559 = vmatpush.msra.mxu0 0.0
  %5560 = vmatpush.msra.mxu0 0.0
  %5561 = vmatpush.msra.mxu0 0.0
  %5562 = vmatpush.msra.mxu0 0.0
  %5563 = vmatpush.msra.mxu0 0.0
  %5564 = vmatpush.msra.mxu0 0.0
  %v5565 = vand.u32 %v4855, 4294901760
  %5566 = vmatmul.f32.gmra.mxu0 %v5565
  %v5567 = vpop.f32.mrf.mxu0
  %v5568 = vadd.f32 %v5496, %v5567
  %v5569 = vand.u32 %v4858, 4294901760
  %5570 = vmatmul.f32.gmra.mxu0 %v5569
  %v5571 = vpop.f32.mrf.mxu0
  %v5572 = vadd.f32 %v5502, %v5571
  %v5573 = vand.u32 %v4861, 4294901760
  %5574 = vmatmul.f32.gmra.mxu0 %v5573
  %v5575 = vpop.f32.mrf.mxu0
  %v5576 = vadd.f32 %v5508, %v5575
  %v5577 = vand.u32 %v4864, 4294901760
  %5578 = vmatmul.f32.gmra.mxu0 %v5577
  %v5579 = vpop.f32.mrf.mxu0
  %v5580 = vadd.f32 %v5514, %v5579
  %v5581 = vand.u32 %v4867, 4294901760
  %5582 = vmatmul.f32.gmra.mxu0 %v5581
  %v5583 = vpop.f32.mrf.mxu0
  %v5584 = vadd.f32 %v5520, %v5583
  %v5585 = vand.u32 %v4870, 4294901760
  %5586 = vmatmul.f32.gmra.mxu0 %v5585
  %v5587 = vpop.f32.mrf.mxu0
  %v5588 = vadd.f32 %v5526, %v5587
  %v5589 = vand.u32 %v4873, 4294901760
  %5590 = vmatmul.f32.gmra.mxu0 %v5589
  %v5591 = vpop.f32.mrf.mxu0
  %v5592 = vadd.f32 %v5532, %v5591
  %v5593 = vand.u32 %v4876, 4294901760
  %5594 = vmatmul.f32.gmra.mxu0 %v5593
  %v5595 = vpop.f32.mrf.mxu0
  %v5596 = vadd.f32 %v5538, %v5595
  %v5597 = vand.u32 %v4879, 4294901760
  %5598 = vmatmul.f32.gmra.mxu0 %v5597
  %v5599 = vpop.f32.mrf.mxu0
  %v5600 = vadd.f32 %v5544, %v5599
  %5601 = vdwg.mxu0
  %5602 = vmatpush.msra.mxu0 0.0
  %5603 = vmatpush.msra.mxu0 0.0
  %5604 = vmatpush.msra.mxu0 0.0
  %5605 = vmatpush.msra.mxu0 0.0
  %5606 = vmatpush.msra.mxu0 0.0
  %5607 = vmatpush.msra.mxu0 0.0
  %5608 = vmatpush.msra.mxu0 0.0
  %v5609 = vand.u32 %v59, 4294901760
  %5610 = vmatpush.msra.mxu0 %v5609
  %5611 = vmatpush.msra.mxu0 1.0
  %5612 = vmatpush.msra.mxu0 1.0
  %5613 = vmatpush.msra.mxu0 1.0
  %5614 = vmatpush.msra.mxu0 1.0
  %5615 = vmatpush.msra.mxu0 1.0
  %5616 = vmatpush.msra.mxu0 1.0
  %5617 = vmatpush.msra.mxu0 1.0
  %5618 = vmatpush.msra.mxu0 1.0
  %v5619 = vand.u32 %v4855, 4294901760
  %5620 = vmatmul.f32.gmra.mxu0 %v5619
  %v5621 = vpop.f32.mrf.mxu0
  %v5622 = vadd.f32 %v5568, %v5621
  %v5623 = vand.u32 %v4858, 4294901760
  %5624 = vmatmul.f32.gmra.mxu0 %v5623
  %v5625 = vpop.f32.mrf.mxu0
  %v5626 = vadd.f32 %v5572, %v5625
  %v5627 = vand.u32 %v4861, 4294901760
  %5628 = vmatmul.f32.gmra.mxu0 %v5627
  %v5629 = vpop.f32.mrf.mxu0
  %v5630 = vadd.f32 %v5576, %v5629
  %v5631 = vand.u32 %v4864, 4294901760
  %5632 = vmatmul.f32.gmra.mxu0 %v5631
  %v5633 = vpop.f32.mrf.mxu0
  %v5634 = vadd.f32 %v5580, %v5633
  %v5635 = vand.u32 %v4867, 4294901760
  %5636 = vmatmul.f32.gmra.mxu0 %v5635
  %v5637 = vpop.f32.mrf.mxu0
  %v5638 = vadd.f32 %v5584, %v5637
  %v5639 = vand.u32 %v4870, 4294901760
  %5640 = vmatmul.f32.gmra.mxu0 %v5639
  %v5641 = vpop.f32.mrf.mxu0
  %v5642 = vadd.f32 %v5588, %v5641
  %v5643 = vand.u32 %v4873, 4294901760
  %5644 = vmatmul.f32.gmra.mxu0 %v5643
  %v5645 = vpop.f32.mrf.mxu0
  %v5646 = vadd.f32 %v5592, %v5645
  %v5647 = vand.u32 %v4876, 4294901760
  %5648 = vmatmul.f32.gmra.mxu0 %v5647
  %v5649 = vpop.f32.mrf.mxu0
  %v5650 = vadd.f32 %v5596, %v5649
  %v5651 = vand.u32 %v4879, 4294901760
  %5652 = vmatmul.f32.gmra.mxu0 %v5651
  %v5653 = vpop.f32.mrf.mxu0
  %v5654 = vadd.f32 %v5600, %v5653
  %5655 = vdwg.mxu0
  %v5656 = vmul.f32 %v4802, 0.0051020407
  %v5657 = vmul.f32 %v4806, 0.0051020407
  %v5658 = vmul.f32 %v4810, 0.0051020407
  %v5659 = vmul.f32 %v4814, 0.0051020407
  %v5660 = vmul.f32 %v4818, 0.0051020407
  %v5661 = vmul.f32 %v4822, 0.0051020407
  %v5662 = vmul.f32 %v4826, 0.0051020407
  %v5663 = vmul.f32 %v4830, 0.0051020407
  %v5664 = vmul.f32 %v4834, 0.0051020407
  %v5665 = vmul.f32 %v5622, 0.0051020407
  %v5666 = vmul.f32 %v5626, 0.0051020407
  %v5667 = vmul.f32 %v5630, 0.0051020407
  %v5668 = vmul.f32 %v5634, 0.0051020407
  %v5669 = vmul.f32 %v5638, 0.0051020407
  %v5670 = vmul.f32 %v5642, 0.0051020407
  %v5671 = vmul.f32 %v5646, 0.0051020407
  %v5672 = vmul.f32 %v5650, 0.0051020407
  %v5673 = vmul.f32 %v5654, 0.0051020407
  %v5674 = vmul.f32 %v5656, %v5656
  %v5675 = vmul.f32 %v5657, %v5657
  %v5676 = vmul.f32 %v5658, %v5658
  %v5677 = vmul.f32 %v5659, %v5659
  %v5678 = vmul.f32 %v5660, %v5660
  %v5679 = vmul.f32 %v5661, %v5661
  %v5680 = vmul.f32 %v5662, %v5662
  %v5681 = vmul.f32 %v5663, %v5663
  %v5682 = vmul.f32 %v5664, %v5664
  %v5683 = vsub.f32 %v5665, %v5674
  %v5684 = vsub.f32 %v5666, %v5675
  %v5685 = vsub.f32 %v5667, %v5676
  %v5686 = vsub.f32 %v5668, %v5677
  %v5687 = vsub.f32 %v5669, %v5678
  %v5688 = vsub.f32 %v5670, %v5679
  %v5689 = vsub.f32 %v5671, %v5680
  %v5690 = vsub.f32 %v5672, %v5681
  %v5691 = vsub.f32 %v5673, %v5682
  %v5692 = vmax.f32 %v5683, 0.0
  %v5693 = vmax.f32 %v5684, 0.0
  %v5694 = vmax.f32 %v5685, 0.0
  %v5695 = vmax.f32 %v5686, 0.0
  %v5696 = vmax.f32 %v5687, 0.0
  %v5697 = vmax.f32 %v5688, 0.0
  %v5698 = vmax.f32 %v5689, 0.0
  %v5699 = vmax.f32 %v5690, 0.0
  %v5700 = vmax.f32 %v5691, 0.0
  %v5701 = vadd.f32 %v5692, 1e-05
  %v5702 = vadd.f32 %v5693, 1e-05
  %v5703 = vadd.f32 %v5694, 1e-05
  %v5704 = vadd.f32 %v5695, 1e-05
  %v5705 = vadd.f32 %v5696, 1e-05
  %v5706 = vadd.f32 %v5697, 1e-05
  %v5707 = vadd.f32 %v5698, 1e-05
  %v5708 = vadd.f32 %v5699, 1e-05
  %v5709 = vadd.f32 %v5700, 1e-05
  %v5710 = vrsqrt.pop %v5701
  %v5711 = vmul.f32 %v5710, %v5701
  %v5712 = vmul.f32 %v5711, %v5710
  %v5713 = vmul.f32 0.5, %v5712
  %v5714 = vsub.f32 1.5, %v5713
  %v5715 = vmul.f32 %v5710, %v5714
  %vm5716 = vweird.f32 %v5701
  %vm5717 = vweird.f32 %v5710
  %vm5718 = vmor %vm5716, %vm5717
  %v5719 = vsel %vm5718, %v5710, %v5715
  %v5720 = vrsqrt.pop %v5702
  %v5721 = vmul.f32 %v5720, %v5702
  %v5722 = vmul.f32 %v5721, %v5720
  %v5723 = vmul.f32 0.5, %v5722
  %v5724 = vsub.f32 1.5, %v5723
  %v5725 = vmul.f32 %v5720, %v5724
  %vm5726 = vweird.f32 %v5702
  %vm5727 = vweird.f32 %v5720
  %vm5728 = vmor %vm5726, %vm5727
  %v5729 = vsel %vm5728, %v5720, %v5725
  %v5730 = vrsqrt.pop %v5703
  %v5731 = vmul.f32 %v5730, %v5703
  %v5732 = vmul.f32 %v5731, %v5730
  %v5733 = vmul.f32 0.5, %v5732
  %v5734 = vsub.f32 1.5, %v5733
  %v5735 = vmul.f32 %v5730, %v5734
  %vm5736 = vweird.f32 %v5703
  %vm5737 = vweird.f32 %v5730
  %vm5738 = vmor %vm5736, %vm5737
  %v5739 = vsel %vm5738, %v5730, %v5735
  %v5740 = vrsqrt.pop %v5704
  %v5741 = vmul.f32 %v5740, %v5704
  %v5742 = vmul.f32 %v5741, %v5740
  %v5743 = vmul.f32 0.5, %v5742
  %v5744 = vsub.f32 1.5, %v5743
  %v5745 = vmul.f32 %v5740, %v5744
  %vm5746 = vweird.f32 %v5704
  %vm5747 = vweird.f32 %v5740
  %vm5748 = vmor %vm5746, %vm5747
  %v5749 = vsel %vm5748, %v5740, %v5745
  %v5750 = vrsqrt.pop %v5705
  %v5751 = vmul.f32 %v5750, %v5705
  %v5752 = vmul.f32 %v5751, %v5750
  %v5753 = vmul.f32 0.5, %v5752
  %v5754 = vsub.f32 1.5, %v5753
  %v5755 = vmul.f32 %v5750, %v5754
  %vm5756 = vweird.f32 %v5705
  %vm5757 = vweird.f32 %v5750
  %vm5758 = vmor %vm5756, %vm5757
  %v5759 = vsel %vm5758, %v5750, %v5755
  %v5760 = vrsqrt.pop %v5706
  %v5761 = vmul.f32 %v5760, %v5706
  %v5762 = vmul.f32 %v5761, %v5760
  %v5763 = vmul.f32 0.5, %v5762
  %v5764 = vsub.f32 1.5, %v5763
  %v5765 = vmul.f32 %v5760, %v5764
  %vm5766 = vweird.f32 %v5706
  %vm5767 = vweird.f32 %v5760
  %vm5768 = vmor %vm5766, %vm5767
  %v5769 = vsel %vm5768, %v5760, %v5765
  %v5770 = vrsqrt.pop %v5707
  %v5771 = vmul.f32 %v5770, %v5707
  %v5772 = vmul.f32 %v5771, %v5770
  %v5773 = vmul.f32 0.5, %v5772
  %v5774 = vsub.f32 1.5, %v5773
  %v5775 = vmul.f32 %v5770, %v5774
  %vm5776 = vweird.f32 %v5707
  %vm5777 = vweird.f32 %v5770
  %vm5778 = vmor %vm5776, %vm5777
  %v5779 = vsel %vm5778, %v5770, %v5775
  %v5780 = vrsqrt.pop %v5708
  %v5781 = vmul.f32 %v5780, %v5708
  %v5782 = vmul.f32 %v5781, %v5780
  %v5783 = vmul.f32 0.5, %v5782
  %v5784 = vsub.f32 1.5, %v5783
  %v5785 = vmul.f32 %v5780, %v5784
  %vm5786 = vweird.f32 %v5708
  %vm5787 = vweird.f32 %v5780
  %vm5788 = vmor %vm5786, %vm5787
  %v5789 = vsel %vm5788, %v5780, %v5785
  %v5790 = vrsqrt.pop %v5709
  %v5791 = vmul.f32 %v5790, %v5709
  %v5792 = vmul.f32 %v5791, %v5790
  %v5793 = vmul.f32 0.5, %v5792
  %v5794 = vsub.f32 1.5, %v5793
  %v5795 = vmul.f32 %v5790, %v5794
  %vm5796 = vweird.f32 %v5709
  %vm5797 = vweird.f32 %v5790
  %vm5798 = vmor %vm5796, %vm5797
  %v5799 = vsel %vm5798, %v5790, %v5795
  %v5800 = vld [vmem:[%s1 + $0x90] sm:$0xff]
  %v5801 = vld [vmem:[%s1 + $0x98] sm:$0xff]
  %v5802 = vld [vmem:[%s1 + $0xa0] sm:$0xff]
  %v5803 = vld [vmem:[%s1 + $0xa8] sm:$0xff]
  %v5804 = vld [vmem:[%s1 + $0xb0] sm:$0xff]
  %v5805 = vld [vmem:[%s1 + $0xb8] sm:$0xff]
  %v5806 = vld [vmem:[%s1 + $0xc0] sm:$0xff]
  %v5807 = vld [vmem:[%s1 + $0xc8] sm:$0xff]
  %v5808 = vld [vmem:[%s1 + $0xd0] sm:$0xff]
  %v5809 = vmul.f32 %v5800, %v5719
  %v5810 = vmul.f32 %v5801, %v5729
  %v5811 = vmul.f32 %v5802, %v5739
  %v5812 = vmul.f32 %v5803, %v5749
  %v5813 = vmul.f32 %v5804, %v5759
  %v5814 = vmul.f32 %v5805, %v5769
  %v5815 = vmul.f32 %v5806, %v5779
  %v5816 = vmul.f32 %v5807, %v5789
  %v5817 = vmul.f32 %v5808, %v5799
  %v5818 = vmul.f32 %v5656, %v5809
  %v5819 = vmul.f32 %v5657, %v5810
  %v5820 = vmul.f32 %v5658, %v5811
  %v5821 = vmul.f32 %v5659, %v5812
  %v5822 = vmul.f32 %v5660, %v5813
  %v5823 = vmul.f32 %v5661, %v5814
  %v5824 = vmul.f32 %v5662, %v5815
  %v5825 = vmul.f32 %v5663, %v5816
  %v5826 = vmul.f32 %v5664, %v5817
  %5836 = vrot.lane.b32.xlu0 %v5818, 1
  %v5837 = vpop.permute.xlu0 %5836
  %5838 = vrot.lane.b32.xlu0 %v5819, 1
  %v5839 = vpop.permute.xlu0 %5838
  %5840 = vrot.lane.b32.xlu0 %v5820, 1
  %v5841 = vpop.permute.xlu0 %5840
  %5842 = vrot.lane.b32.xlu0 %v5821, 1
  %v5843 = vpop.permute.xlu0 %5842
  %5844 = vrot.lane.b32.xlu0 %v5822, 1
  %v5845 = vpop.permute.xlu0 %5844
  %5846 = vrot.lane.b32.xlu0 %v5823, 1
  %v5847 = vpop.permute.xlu0 %5846
  %5848 = vrot.lane.b32.xlu0 %v5824, 1
  %v5849 = vpop.permute.xlu0 %5848
  %5850 = vrot.lane.b32.xlu0 %v5825, 1
  %v5851 = vpop.permute.xlu0 %5850
  %5852 = vrot.lane.b32.xlu0 %v5826, 1
  %v5853 = vpop.permute.xlu0 %5852
  %v5863 = vsub.f32 %v5800, %v5837
  %v5864 = vsub.f32 %v5801, %v5839
  %v5865 = vsub.f32 %v5802, %v5841
  %v5866 = vsub.f32 %v5803, %v5843
  %v5867 = vsub.f32 %v5804, %v5845
  %v5868 = vsub.f32 %v5805, %v5847
  %v5869 = vsub.f32 %v5806, %v5849
  %v5870 = vsub.f32 %v5807, %v5851
  %v5871 = vsub.f32 %v5808, %v5853
  %5873 = vset.pattern.permute.xlu0 0
  %5874 = vperm.xlu0 %5873, %v5809
  %v5875 = vpop.permute.xlu0 %5874
  %5878 = vset.pattern.permute.xlu0 0
  %5879 = vperm.xlu0 %5878, %v5810
  %v5880 = vpop.permute.xlu0 %5879
  %5883 = vset.pattern.permute.xlu0 0
  %5884 = vperm.xlu0 %5883, %v5811
  %v5885 = vpop.permute.xlu0 %5884
  %5888 = vset.pattern.permute.xlu0 0
  %5889 = vperm.xlu0 %5888, %v5812
  %v5890 = vpop.permute.xlu0 %5889
  %5893 = vset.pattern.permute.xlu0 0
  %5894 = vperm.xlu0 %5893, %v5813
  %v5895 = vpop.permute.xlu0 %5894
  %5898 = vset.pattern.permute.xlu0 0
  %5899 = vperm.xlu0 %5898, %v5814
  %v5900 = vpop.permute.xlu0 %5899
  %5903 = vset.pattern.permute.xlu0 0
  %5904 = vperm.xlu0 %5903, %v5815
  %v5905 = vpop.permute.xlu0 %5904
  %5908 = vset.pattern.permute.xlu0 0
  %5909 = vperm.xlu0 %5908, %v5816
  %v5910 = vpop.permute.xlu0 %5909
  %5913 = vset.pattern.permute.xlu0 0
  %5914 = vperm.xlu0 %5913, %v5817
  %v5915 = vpop.permute.xlu0 %5914
  %v5917 = vmul.f32 %v4016, %v5875
  %v5918 = vmul.f32 %v4017, %v5875
  %v5919 = vmul.f32 %v4018, %v5880
  %v5920 = vmul.f32 %v4019, %v5880
  %v5921 = vmul.f32 %v4020, %v5885
  %v5922 = vmul.f32 %v4021, %v5885
  %v5923 = vmul.f32 %v4022, %v5890
  %v5924 = vmul.f32 %v4023, %v5890
  %v5925 = vmul.f32 %v4024, %v5895
  %v5926 = vmul.f32 %v4025, %v5895
  %v5927 = vmul.f32 %v4026, %v5900
  %v5928 = vmul.f32 %v4027, %v5900
  %v5929 = vmul.f32 %v4028, %v5905
  %v5930 = vmul.f32 %v4029, %v5905
  %v5931 = vmul.f32 %v4030, %v5910
  %v5932 = vmul.f32 %v4031, %v5910
  %v5933 = vmul.f32 %v4032, %v5915
  %v5934 = vmul.f32 %v4033, %v5915
  %5936 = vset.pattern.permute.xlu0 1
  %5937 = vperm.xlu0 %5936, %v5863
  %v5938 = vpop.permute.xlu0 %5937
  %5941 = vset.pattern.permute.xlu0 1
  %5942 = vperm.xlu0 %5941, %v5864
  %v5943 = vpop.permute.xlu0 %5942
  %5946 = vset.pattern.permute.xlu0 1
  %5947 = vperm.xlu0 %5946, %v5865
  %v5948 = vpop.permute.xlu0 %5947
  %5951 = vset.pattern.permute.xlu0 1
  %5952 = vperm.xlu0 %5951, %v5866
  %v5953 = vpop.permute.xlu0 %5952
  %5956 = vset.pattern.permute.xlu0 1
  %5957 = vperm.xlu0 %5956, %v5867
  %v5958 = vpop.permute.xlu0 %5957
  %5961 = vset.pattern.permute.xlu0 1
  %5962 = vperm.xlu0 %5961, %v5868
  %v5963 = vpop.permute.xlu0 %5962
  %5966 = vset.pattern.permute.xlu0 1
  %5967 = vperm.xlu0 %5966, %v5869
  %v5968 = vpop.permute.xlu0 %5967
  %5971 = vset.pattern.permute.xlu0 1
  %5972 = vperm.xlu0 %5971, %v5870
  %v5973 = vpop.permute.xlu0 %5972
  %5976 = vset.pattern.permute.xlu0 1
  %5977 = vperm.xlu0 %5976, %v5871
  %v5978 = vpop.permute.xlu0 %5977
  %v5980 = vadd.f32 %v5917, %v5938
  %v5981 = vadd.f32 %v5918, %v5938
  %v5982 = vadd.f32 %v5919, %v5943
  %v5983 = vadd.f32 %v5920, %v5943
  %v5984 = vadd.f32 %v5921, %v5948
  %v5985 = vadd.f32 %v5922, %v5948
  %v5986 = vadd.f32 %v5923, %v5953
  %v5987 = vadd.f32 %v5924, %v5953
  %v5988 = vadd.f32 %v5925, %v5958
  %v5989 = vadd.f32 %v5926, %v5958
  %v5990 = vadd.f32 %v5927, %v5963
  %v5991 = vadd.f32 %v5928, %v5963
  %v5992 = vadd.f32 %v5929, %v5968
  %v5993 = vadd.f32 %v5930, %v5968
  %v5994 = vadd.f32 %v5931, %v5973
  %v5995 = vadd.f32 %v5932, %v5973
  %v5996 = vadd.f32 %v5933, %v5978
  %v5997 = vadd.f32 %v5934, %v5978
  %5998 = vst [vmem:[%s2 + $0x120] sm:$0xff] %v5980
  %5999 = vst.msk [vmem:[%s2 + $0x128] sm:$0xff] %vm29, %v5981
  %6000 = vst [vmem:[%s2 + $0x130] sm:$0xff] %v5982
  %6001 = vst.msk [vmem:[%s2 + $0x138] sm:$0xff] %vm29, %v5983
  %6002 = vst [vmem:[%s2 + $0x140] sm:$0xff] %v5984
  %6003 = vst.msk [vmem:[%s2 + $0x148] sm:$0xff] %vm29, %v5985
  %6004 = vst [vmem:[%s2 + $0x150] sm:$0xff] %v5986
  %6005 = vst.msk [vmem:[%s2 + $0x158] sm:$0xff] %vm29, %v5987
  %6006 = vst [vmem:[%s2 + $0x160] sm:$0xff] %v5988
  %6007 = vst.msk [vmem:[%s2 + $0x168] sm:$0xff] %vm29, %v5989
  %6008 = vst [vmem:[%s2 + $0x170] sm:$0xff] %v5990
  %6009 = vst.msk [vmem:[%s2 + $0x178] sm:$0xff] %vm29, %v5991
  %6010 = vst [vmem:[%s2 + $0x180] sm:$0xff] %v5992
  %6011 = vst.msk [vmem:[%s2 + $0x188] sm:$0xff] %vm29, %v5993
  %6012 = vst [vmem:[%s2 + $0x190] sm:$0xff] %v5994
  %6013 = vst.msk [vmem:[%s2 + $0x198] sm:$0xff] %vm29, %v5995
  %6014 = vst [vmem:[%s2 + $0x1a0] sm:$0xff] %v5996
  %6015 = vst.msk [vmem:[%s2 + $0x1a8] sm:$0xff] %vm29, %v5997
  %v6016 = vld [vmem:[%s0 + $0x1b0] sm:$0xff]
  %v6017 = vld [vmem:[%s0 + $0x1b8] sm:$0xff]
  %v6018 = vld [vmem:[%s0 + $0x1c0] sm:$0xff]
  %v6019 = vld [vmem:[%s0 + $0x1c8] sm:$0xff]
  %v6020 = vld [vmem:[%s0 + $0x1d0] sm:$0xff]
  %v6021 = vld [vmem:[%s0 + $0x1d8] sm:$0xff]
  %v6022 = vld [vmem:[%s0 + $0x1e0] sm:$0xff]
  %v6023 = vld [vmem:[%s0 + $0x1e8] sm:$0xff]
  %v6024 = vld [vmem:[%s0 + $0x1f0] sm:$0xff]
  %v6025 = vld [vmem:[%s0 + $0x1f8] sm:$0xff]
  %v6026 = vld [vmem:[%s0 + $0x200] sm:$0xff]
  %v6027 = vld [vmem:[%s0 + $0x208] sm:$0xff]
  %v6028 = vld [vmem:[%s0 + $0x210] sm:$0xff]
  %v6029 = vld [vmem:[%s0 + $0x218] sm:$0xff]
  %v6030 = vld [vmem:[%s0 + $0x220] sm:$0xff]
  %v6031 = vld [vmem:[%s0 + $0x228] sm:$0xff]
  %v6032 = vld [vmem:[%s0 + $0x230] sm:$0xff]
  %v6033 = vld [vmem:[%s0 + $0x238] sm:$0xff]
  %v6035 = vsel %vm29, %v6017, 0
  %v6038 = vsel %vm29, %v6019, 0
  %v6041 = vsel %vm29, %v6021, 0
  %v6044 = vsel %vm29, %v6023, 0
  %v6047 = vsel %vm29, %v6025, 0
  %v6050 = vsel %vm29, %v6027, 0
  %v6053 = vsel %vm29, %v6029, 0
  %v6056 = vsel %vm29, %v6031, 0
  %v6059 = vsel %vm29, %v6033, 0
  %6061 = vmatpush.msra.mxu0 1.0
  %6062 = vmatpush.msra.mxu0 1.0
  %6063 = vmatpush.msra.mxu0 1.0
  %6064 = vmatpush.msra.mxu0 1.0
  %6065 = vmatpush.msra.mxu0 1.0
  %6066 = vmatpush.msra.mxu0 1.0
  %6067 = vmatpush.msra.mxu0 1.0
  %6068 = vmatpush.msra.mxu0 1.0
  %6069 = vmatpush.msra.mxu0 1.0
  %6070 = vmatpush.msra.mxu0 1.0
  %6071 = vmatpush.msra.mxu0 1.0
  %6072 = vmatpush.msra.mxu0 1.0
  %6073 = vmatpush.msra.mxu0 1.0
  %6074 = vmatpush.msra.mxu0 1.0
  %6075 = vmatpush.msra.mxu0 1.0
  %6076 = vmatpush.msra.mxu0 1.0
  %v6077 = vand.u32 %v6016, 4294901760
  %v6078 = vsub.f32 %v6016, %v6077
  %v6079 = vand.u32 %v6078, 4294901760
  %v6080 = vsub.f32 %v6078, %v6079
  %v6081 = vand.u32 %v6080, 4294901760
  %6082 = vmatmul.f32.gmra.mxu0 %v6081
  %v6083 = vpop.f32.mrf.mxu0
  %v6084 = vadd.f32 0.0, %v6083
  %v6085 = vand.u32 %v6018, 4294901760
  %v6086 = vsub.f32 %v6018, %v6085
  %v6087 = vand.u32 %v6086, 4294901760
  %v6088 = vsub.f32 %v6086, %v6087
  %v6089 = vand.u32 %v6088, 4294901760
  %6090 = vmatmul.f32.gmra.mxu0 %v6089
  %v6091 = vpop.f32.mrf.mxu0
  %v6092 = vadd.f32 0.0, %v6091
  %v6093 = vand.u32 %v6020, 4294901760
  %v6094 = vsub.f32 %v6020, %v6093
  %v6095 = vand.u32 %v6094, 4294901760
  %v6096 = vsub.f32 %v6094, %v6095
  %v6097 = vand.u32 %v6096, 4294901760
  %6098 = vmatmul.f32.gmra.mxu0 %v6097
  %v6099 = vpop.f32.mrf.mxu0
  %v6100 = vadd.f32 0.0, %v6099
  %v6101 = vand.u32 %v6022, 4294901760
  %v6102 = vsub.f32 %v6022, %v6101
  %v6103 = vand.u32 %v6102, 4294901760
  %v6104 = vsub.f32 %v6102, %v6103
  %v6105 = vand.u32 %v6104, 4294901760
  %6106 = vmatmul.f32.gmra.mxu0 %v6105
  %v6107 = vpop.f32.mrf.mxu0
  %v6108 = vadd.f32 0.0, %v6107
  %v6109 = vand.u32 %v6024, 4294901760
  %v6110 = vsub.f32 %v6024, %v6109
  %v6111 = vand.u32 %v6110, 4294901760
  %v6112 = vsub.f32 %v6110, %v6111
  %v6113 = vand.u32 %v6112, 4294901760
  %6114 = vmatmul.f32.gmra.mxu0 %v6113
  %v6115 = vpop.f32.mrf.mxu0
  %v6116 = vadd.f32 0.0, %v6115
  %v6117 = vand.u32 %v6026, 4294901760
  %v6118 = vsub.f32 %v6026, %v6117
  %v6119 = vand.u32 %v6118, 4294901760
  %v6120 = vsub.f32 %v6118, %v6119
  %v6121 = vand.u32 %v6120, 4294901760
  %6122 = vmatmul.f32.gmra.mxu0 %v6121
  %v6123 = vpop.f32.mrf.mxu0
  %v6124 = vadd.f32 0.0, %v6123
  %v6125 = vand.u32 %v6028, 4294901760
  %v6126 = vsub.f32 %v6028, %v6125
  %v6127 = vand.u32 %v6126, 4294901760
  %v6128 = vsub.f32 %v6126, %v6127
  %v6129 = vand.u32 %v6128, 4294901760
  %6130 = vmatmul.f32.gmra.mxu0 %v6129
  %v6131 = vpop.f32.mrf.mxu0
  %v6132 = vadd.f32 0.0, %v6131
  %v6133 = vand.u32 %v6030, 4294901760
  %v6134 = vsub.f32 %v6030, %v6133
  %v6135 = vand.u32 %v6134, 4294901760
  %v6136 = vsub.f32 %v6134, %v6135
  %v6137 = vand.u32 %v6136, 4294901760
  %6138 = vmatmul.f32.gmra.mxu0 %v6137
  %v6139 = vpop.f32.mrf.mxu0
  %v6140 = vadd.f32 0.0, %v6139
  %v6141 = vand.u32 %v6032, 4294901760
  %v6142 = vsub.f32 %v6032, %v6141
  %v6143 = vand.u32 %v6142, 4294901760
  %v6144 = vsub.f32 %v6142, %v6143
  %v6145 = vand.u32 %v6144, 4294901760
  %6146 = vmatmul.f32.gmra.mxu0 %v6145
  %v6147 = vpop.f32.mrf.mxu0
  %v6148 = vadd.f32 0.0, %v6147
  %6149 = vdwg.mxu0
  %6150 = vmatpush.msra.mxu0 0.0
  %6151 = vmatpush.msra.mxu0 0.0
  %6152 = vmatpush.msra.mxu0 0.0
  %6153 = vmatpush.msra.mxu0 0.0
  %6154 = vmatpush.msra.mxu0 0.0
  %6155 = vmatpush.msra.mxu0 0.0
  %6156 = vmatpush.msra.mxu0 0.0
  %6157 = vmatpush.msra.mxu0 0.0
  %6158 = vmatpush.msra.mxu0 0.0
  %6159 = vmatpush.msra.mxu0 0.0
  %6160 = vmatpush.msra.mxu0 0.0
  %6161 = vmatpush.msra.mxu0 0.0
  %6162 = vmatpush.msra.mxu0 0.0
  %6163 = vmatpush.msra.mxu0 0.0
  %6164 = vmatpush.msra.mxu0 0.0
  %6165 = vmatpush.msra.mxu0 0.0
  %v6166 = vand.u32 %v6016, 4294901760
  %6167 = vmatmul.f32.gmra.mxu0 %v6166
  %v6168 = vpop.f32.mrf.mxu0
  %v6169 = vadd.f32 %v6084, %v6168
  %v6170 = vand.u32 %v6018, 4294901760
  %6171 = vmatmul.f32.gmra.mxu0 %v6170
  %v6172 = vpop.f32.mrf.mxu0
  %v6173 = vadd.f32 %v6092, %v6172
  %v6174 = vand.u32 %v6020, 4294901760
  %6175 = vmatmul.f32.gmra.mxu0 %v6174
  %v6176 = vpop.f32.mrf.mxu0
  %v6177 = vadd.f32 %v6100, %v6176
  %v6178 = vand.u32 %v6022, 4294901760
  %6179 = vmatmul.f32.gmra.mxu0 %v6178
  %v6180 = vpop.f32.mrf.mxu0
  %v6181 = vadd.f32 %v6108, %v6180
  %v6182 = vand.u32 %v6024, 4294901760
  %6183 = vmatmul.f32.gmra.mxu0 %v6182
  %v6184 = vpop.f32.mrf.mxu0
  %v6185 = vadd.f32 %v6116, %v6184
  %v6186 = vand.u32 %v6026, 4294901760
  %6187 = vmatmul.f32.gmra.mxu0 %v6186
  %v6188 = vpop.f32.mrf.mxu0
  %v6189 = vadd.f32 %v6124, %v6188
  %v6190 = vand.u32 %v6028, 4294901760
  %6191 = vmatmul.f32.gmra.mxu0 %v6190
  %v6192 = vpop.f32.mrf.mxu0
  %v6193 = vadd.f32 %v6132, %v6192
  %v6194 = vand.u32 %v6030, 4294901760
  %6195 = vmatmul.f32.gmra.mxu0 %v6194
  %v6196 = vpop.f32.mrf.mxu0
  %v6197 = vadd.f32 %v6140, %v6196
  %v6198 = vand.u32 %v6032, 4294901760
  %6199 = vmatmul.f32.gmra.mxu0 %v6198
  %v6200 = vpop.f32.mrf.mxu0
  %v6201 = vadd.f32 %v6148, %v6200
  %6202 = vdwg.mxu0
  %6203 = vmatpush.msra.mxu0 0.0
  %6204 = vmatpush.msra.mxu0 0.0
  %6205 = vmatpush.msra.mxu0 0.0
  %6206 = vmatpush.msra.mxu0 0.0
  %6207 = vmatpush.msra.mxu0 0.0
  %6208 = vmatpush.msra.mxu0 0.0
  %6209 = vmatpush.msra.mxu0 0.0
  %6210 = vmatpush.msra.mxu0 0.0
  %6211 = vmatpush.msra.mxu0 0.0
  %6212 = vmatpush.msra.mxu0 0.0
  %6213 = vmatpush.msra.mxu0 0.0
  %6214 = vmatpush.msra.mxu0 0.0
  %6215 = vmatpush.msra.mxu0 0.0
  %6216 = vmatpush.msra.mxu0 0.0
  %6217 = vmatpush.msra.mxu0 0.0
  %6218 = vmatpush.msra.mxu0 0.0
  %v6219 = vand.u32 %v6016, 4294901760
  %v6220 = vsub.f32 %v6016, %v6219
  %6221 = vmatmul.f32.gmra.mxu0 %v6220
  %v6222 = vpop.f32.mrf.mxu0
  %v6223 = vadd.f32 %v6169, %v6222
  %v6224 = vand.u32 %v6018, 4294901760
  %v6225 = vsub.f32 %v6018, %v6224
  %6226 = vmatmul.f32.gmra.mxu0 %v6225
  %v6227 = vpop.f32.mrf.mxu0
  %v6228 = vadd.f32 %v6173, %v6227
  %v6229 = vand.u32 %v6020, 4294901760
  %v6230 = vsub.f32 %v6020, %v6229
  %6231 = vmatmul.f32.gmra.mxu0 %v6230
  %v6232 = vpop.f32.mrf.mxu0
  %v6233 = vadd.f32 %v6177, %v6232
  %v6234 = vand.u32 %v6022, 4294901760
  %v6235 = vsub.f32 %v6022, %v6234
  %6236 = vmatmul.f32.gmra.mxu0 %v6235
  %v6237 = vpop.f32.mrf.mxu0
  %v6238 = vadd.f32 %v6181, %v6237
  %v6239 = vand.u32 %v6024, 4294901760
  %v6240 = vsub.f32 %v6024, %v6239
  %6241 = vmatmul.f32.gmra.mxu0 %v6240
  %v6242 = vpop.f32.mrf.mxu0
  %v6243 = vadd.f32 %v6185, %v6242
  %v6244 = vand.u32 %v6026, 4294901760
  %v6245 = vsub.f32 %v6026, %v6244
  %6246 = vmatmul.f32.gmra.mxu0 %v6245
  %v6247 = vpop.f32.mrf.mxu0
  %v6248 = vadd.f32 %v6189, %v6247
  %v6249 = vand.u32 %v6028, 4294901760
  %v6250 = vsub.f32 %v6028, %v6249
  %6251 = vmatmul.f32.gmra.mxu0 %v6250
  %v6252 = vpop.f32.mrf.mxu0
  %v6253 = vadd.f32 %v6193, %v6252
  %v6254 = vand.u32 %v6030, 4294901760
  %v6255 = vsub.f32 %v6030, %v6254
  %6256 = vmatmul.f32.gmra.mxu0 %v6255
  %v6257 = vpop.f32.mrf.mxu0
  %v6258 = vadd.f32 %v6197, %v6257
  %v6259 = vand.u32 %v6032, 4294901760
  %v6260 = vsub.f32 %v6032, %v6259
  %6261 = vmatmul.f32.gmra.mxu0 %v6260
  %v6262 = vpop.f32.mrf.mxu0
  %v6263 = vadd.f32 %v6201, %v6262
  %6264 = vdwg.mxu0
  %6265 = vmatpush.msra.mxu0 1.0
  %6266 = vmatpush.msra.mxu0 1.0
  %6267 = vmatpush.msra.mxu0 1.0
  %6268 = vmatpush.msra.mxu0 1.0
  %6269 = vmatpush.msra.mxu0 1.0
  %6270 = vmatpush.msra.mxu0 1.0
  %6271 = vmatpush.msra.mxu0 1.0
  %6272 = vmatpush.msra.mxu0 1.0
  %6273 = vmatpush.msra.mxu0 1.0
  %6274 = vmatpush.msra.mxu0 1.0
  %6275 = vmatpush.msra.mxu0 1.0
  %6276 = vmatpush.msra.mxu0 1.0
  %6277 = vmatpush.msra.mxu0 1.0
  %6278 = vmatpush.msra.mxu0 1.0
  %6279 = vmatpush.msra.mxu0 1.0
  %6280 = vmatpush.msra.mxu0 1.0
  %v6281 = vand.u32 %v6016, 4294901760
  %v6282 = vsub.f32 %v6016, %v6281
  %v6283 = vand.u32 %v6282, 4294901760
  %6284 = vmatmul.f32.gmra.mxu0 %v6283
  %v6285 = vpop.f32.mrf.mxu0
  %v6286 = vadd.f32 %v6223, %v6285
  %v6287 = vand.u32 %v6018, 4294901760
  %v6288 = vsub.f32 %v6018, %v6287
  %v6289 = vand.u32 %v6288, 4294901760
  %6290 = vmatmul.f32.gmra.mxu0 %v6289
  %v6291 = vpop.f32.mrf.mxu0
  %v6292 = vadd.f32 %v6228, %v6291
  %v6293 = vand.u32 %v6020, 4294901760
  %v6294 = vsub.f32 %v6020, %v6293
  %v6295 = vand.u32 %v6294, 4294901760
  %6296 = vmatmul.f32.gmra.mxu0 %v6295
  %v6297 = vpop.f32.mrf.mxu0
  %v6298 = vadd.f32 %v6233, %v6297
  %v6299 = vand.u32 %v6022, 4294901760
  %v6300 = vsub.f32 %v6022, %v6299
  %v6301 = vand.u32 %v6300, 4294901760
  %6302 = vmatmul.f32.gmra.mxu0 %v6301
  %v6303 = vpop.f32.mrf.mxu0
  %v6304 = vadd.f32 %v6238, %v6303
  %v6305 = vand.u32 %v6024, 4294901760
  %v6306 = vsub.f32 %v6024, %v6305
  %v6307 = vand.u32 %v6306, 4294901760
  %6308 = vmatmul.f32.gmra.mxu0 %v6307
  %v6309 = vpop.f32.mrf.mxu0
  %v6310 = vadd.f32 %v6243, %v6309
  %v6311 = vand.u32 %v6026, 4294901760
  %v6312 = vsub.f32 %v6026, %v6311
  %v6313 = vand.u32 %v6312, 4294901760
  %6314 = vmatmul.f32.gmra.mxu0 %v6313
  %v6315 = vpop.f32.mrf.mxu0
  %v6316 = vadd.f32 %v6248, %v6315
  %v6317 = vand.u32 %v6028, 4294901760
  %v6318 = vsub.f32 %v6028, %v6317
  %v6319 = vand.u32 %v6318, 4294901760
  %6320 = vmatmul.f32.gmra.mxu0 %v6319
  %v6321 = vpop.f32.mrf.mxu0
  %v6322 = vadd.f32 %v6253, %v6321
  %v6323 = vand.u32 %v6030, 4294901760
  %v6324 = vsub.f32 %v6030, %v6323
  %v6325 = vand.u32 %v6324, 4294901760
  %6326 = vmatmul.f32.gmra.mxu0 %v6325
  %v6327 = vpop.f32.mrf.mxu0
  %v6328 = vadd.f32 %v6258, %v6327
  %v6329 = vand.u32 %v6032, 4294901760
  %v6330 = vsub.f32 %v6032, %v6329
  %v6331 = vand.u32 %v6330, 4294901760
  %6332 = vmatmul.f32.gmra.mxu0 %v6331
  %v6333 = vpop.f32.mrf.mxu0
  %v6334 = vadd.f32 %v6263, %v6333
  %6335 = vdwg.mxu0
  %6336 = vmatpush.msra.mxu0 0.0
  %6337 = vmatpush.msra.mxu0 0.0
  %6338 = vmatpush.msra.mxu0 0.0
  %6339 = vmatpush.msra.mxu0 0.0
  %6340 = vmatpush.msra.mxu0 0.0
  %6341 = vmatpush.msra.mxu0 0.0
  %6342 = vmatpush.msra.mxu0 0.0
  %6343 = vmatpush.msra.mxu0 0.0
  %6344 = vmatpush.msra.mxu0 0.0
  %6345 = vmatpush.msra.mxu0 0.0
  %6346 = vmatpush.msra.mxu0 0.0
  %6347 = vmatpush.msra.mxu0 0.0
  %6348 = vmatpush.msra.mxu0 0.0
  %6349 = vmatpush.msra.mxu0 0.0
  %6350 = vmatpush.msra.mxu0 0.0
  %6351 = vmatpush.msra.mxu0 0.0
  %v6352 = vand.u32 %v6016, 4294901760
  %6353 = vmatmul.f32.gmra.mxu0 %v6352
  %v6354 = vpop.f32.mrf.mxu0
  %v6355 = vadd.f32 %v6286, %v6354
  %v6356 = vand.u32 %v6018, 4294901760
  %6357 = vmatmul.f32.gmra.mxu0 %v6356
  %v6358 = vpop.f32.mrf.mxu0
  %v6359 = vadd.f32 %v6292, %v6358
  %v6360 = vand.u32 %v6020, 4294901760
  %6361 = vmatmul.f32.gmra.mxu0 %v6360
  %v6362 = vpop.f32.mrf.mxu0
  %v6363 = vadd.f32 %v6298, %v6362
  %v6364 = vand.u32 %v6022, 4294901760
  %6365 = vmatmul.f32.gmra.mxu0 %v6364
  %v6366 = vpop.f32.mrf.mxu0
  %v6367 = vadd.f32 %v6304, %v6366
  %v6368 = vand.u32 %v6024, 4294901760
  %6369 = vmatmul.f32.gmra.mxu0 %v6368
  %v6370 = vpop.f32.mrf.mxu0
  %v6371 = vadd.f32 %v6310, %v6370
  %v6372 = vand.u32 %v6026, 4294901760
  %6373 = vmatmul.f32.gmra.mxu0 %v6372
  %v6374 = vpop.f32.mrf.mxu0
  %v6375 = vadd.f32 %v6316, %v6374
  %v6376 = vand.u32 %v6028, 4294901760
  %6377 = vmatmul.f32.gmra.mxu0 %v6376
  %v6378 = vpop.f32.mrf.mxu0
  %v6379 = vadd.f32 %v6322, %v6378
  %v6380 = vand.u32 %v6030, 4294901760
  %6381 = vmatmul.f32.gmra.mxu0 %v6380
  %v6382 = vpop.f32.mrf.mxu0
  %v6383 = vadd.f32 %v6328, %v6382
  %v6384 = vand.u32 %v6032, 4294901760
  %6385 = vmatmul.f32.gmra.mxu0 %v6384
  %v6386 = vpop.f32.mrf.mxu0
  %v6387 = vadd.f32 %v6334, %v6386
  %6388 = vdwg.mxu0
  %6389 = vmatpush.msra.mxu0 1.0
  %6390 = vmatpush.msra.mxu0 1.0
  %6391 = vmatpush.msra.mxu0 1.0
  %6392 = vmatpush.msra.mxu0 1.0
  %6393 = vmatpush.msra.mxu0 1.0
  %6394 = vmatpush.msra.mxu0 1.0
  %6395 = vmatpush.msra.mxu0 1.0
  %6396 = vmatpush.msra.mxu0 1.0
  %6397 = vmatpush.msra.mxu0 1.0
  %6398 = vmatpush.msra.mxu0 1.0
  %6399 = vmatpush.msra.mxu0 1.0
  %6400 = vmatpush.msra.mxu0 1.0
  %6401 = vmatpush.msra.mxu0 1.0
  %6402 = vmatpush.msra.mxu0 1.0
  %6403 = vmatpush.msra.mxu0 1.0
  %6404 = vmatpush.msra.mxu0 1.0
  %v6405 = vand.u32 %v6016, 4294901760
  %6406 = vmatmul.f32.gmra.mxu0 %v6405
  %v6407 = vpop.f32.mrf.mxu0
  %v6408 = vadd.f32 %v6355, %v6407
  %v6409 = vand.u32 %v6018, 4294901760
  %6410 = vmatmul.f32.gmra.mxu0 %v6409
  %v6411 = vpop.f32.mrf.mxu0
  %v6412 = vadd.f32 %v6359, %v6411
  %v6413 = vand.u32 %v6020, 4294901760
  %6414 = vmatmul.f32.gmra.mxu0 %v6413
  %v6415 = vpop.f32.mrf.mxu0
  %v6416 = vadd.f32 %v6363, %v6415
  %v6417 = vand.u32 %v6022, 4294901760
  %6418 = vmatmul.f32.gmra.mxu0 %v6417
  %v6419 = vpop.f32.mrf.mxu0
  %v6420 = vadd.f32 %v6367, %v6419
  %v6421 = vand.u32 %v6024, 4294901760
  %6422 = vmatmul.f32.gmra.mxu0 %v6421
  %v6423 = vpop.f32.mrf.mxu0
  %v6424 = vadd.f32 %v6371, %v6423
  %v6425 = vand.u32 %v6026, 4294901760
  %6426 = vmatmul.f32.gmra.mxu0 %v6425
  %v6427 = vpop.f32.mrf.mxu0
  %v6428 = vadd.f32 %v6375, %v6427
  %v6429 = vand.u32 %v6028, 4294901760
  %6430 = vmatmul.f32.gmra.mxu0 %v6429
  %v6431 = vpop.f32.mrf.mxu0
  %v6432 = vadd.f32 %v6379, %v6431
  %v6433 = vand.u32 %v6030, 4294901760
  %6434 = vmatmul.f32.gmra.mxu0 %v6433
  %v6435 = vpop.f32.mrf.mxu0
  %v6436 = vadd.f32 %v6383, %v6435
  %v6437 = vand.u32 %v6032, 4294901760
  %6438 = vmatmul.f32.gmra.mxu0 %v6437
  %v6439 = vpop.f32.mrf.mxu0
  %v6440 = vadd.f32 %v6387, %v6439
  %6441 = vdwg.mxu0
  %6442 = vmatpush.msra.mxu0 0.0
  %6443 = vmatpush.msra.mxu0 0.0
  %6444 = vmatpush.msra.mxu0 0.0
  %6445 = vmatpush.msra.mxu0 0.0
  %6446 = vmatpush.msra.mxu0 0.0
  %6447 = vmatpush.msra.mxu0 0.0
  %6448 = vmatpush.msra.mxu0 0.0
  %v6449 = vand.u32 %v59, 4294901760
  %6450 = vmatpush.msra.mxu0 %v6449
  %6451 = vmatpush.msra.mxu0 1.0
  %6452 = vmatpush.msra.mxu0 1.0
  %6453 = vmatpush.msra.mxu0 1.0
  %6454 = vmatpush.msra.mxu0 1.0
  %6455 = vmatpush.msra.mxu0 1.0
  %6456 = vmatpush.msra.mxu0 1.0
  %6457 = vmatpush.msra.mxu0 1.0
  %6458 = vmatpush.msra.mxu0 1.0
  %v6459 = vand.u32 %v6035, 4294901760
  %v6460 = vsub.f32 %v6035, %v6459
  %v6461 = vand.u32 %v6460, 4294901760
  %v6462 = vsub.f32 %v6460, %v6461
  %v6463 = vand.u32 %v6462, 4294901760
  %6464 = vmatmul.f32.gmra.mxu0 %v6463
  %v6465 = vpop.f32.mrf.mxu0
  %v6466 = vadd.f32 %v6408, %v6465
  %v6467 = vand.u32 %v6038, 4294901760
  %v6468 = vsub.f32 %v6038, %v6467
  %v6469 = vand.u32 %v6468, 4294901760
  %v6470 = vsub.f32 %v6468, %v6469
  %v6471 = vand.u32 %v6470, 4294901760
  %6472 = vmatmul.f32.gmra.mxu0 %v6471
  %v6473 = vpop.f32.mrf.mxu0
  %v6474 = vadd.f32 %v6412, %v6473
  %v6475 = vand.u32 %v6041, 4294901760
  %v6476 = vsub.f32 %v6041, %v6475
  %v6477 = vand.u32 %v6476, 4294901760
  %v6478 = vsub.f32 %v6476, %v6477
  %v6479 = vand.u32 %v6478, 4294901760
  %6480 = vmatmul.f32.gmra.mxu0 %v6479
  %v6481 = vpop.f32.mrf.mxu0
  %v6482 = vadd.f32 %v6416, %v6481
  %v6483 = vand.u32 %v6044, 4294901760
  %v6484 = vsub.f32 %v6044, %v6483
  %v6485 = vand.u32 %v6484, 4294901760
  %v6486 = vsub.f32 %v6484, %v6485
  %v6487 = vand.u32 %v6486, 4294901760
  %6488 = vmatmul.f32.gmra.mxu0 %v6487
  %v6489 = vpop.f32.mrf.mxu0
  %v6490 = vadd.f32 %v6420, %v6489
  %v6491 = vand.u32 %v6047, 4294901760
  %v6492 = vsub.f32 %v6047, %v6491
  %v6493 = vand.u32 %v6492, 4294901760
  %v6494 = vsub.f32 %v6492, %v6493
  %v6495 = vand.u32 %v6494, 4294901760
  %6496 = vmatmul.f32.gmra.mxu0 %v6495
  %v6497 = vpop.f32.mrf.mxu0
  %v6498 = vadd.f32 %v6424, %v6497
  %v6499 = vand.u32 %v6050, 4294901760
  %v6500 = vsub.f32 %v6050, %v6499
  %v6501 = vand.u32 %v6500, 4294901760
  %v6502 = vsub.f32 %v6500, %v6501
  %v6503 = vand.u32 %v6502, 4294901760
  %6504 = vmatmul.f32.gmra.mxu0 %v6503
  %v6505 = vpop.f32.mrf.mxu0
  %v6506 = vadd.f32 %v6428, %v6505
  %v6507 = vand.u32 %v6053, 4294901760
  %v6508 = vsub.f32 %v6053, %v6507
  %v6509 = vand.u32 %v6508, 4294901760
  %v6510 = vsub.f32 %v6508, %v6509
  %v6511 = vand.u32 %v6510, 4294901760
  %6512 = vmatmul.f32.gmra.mxu0 %v6511
  %v6513 = vpop.f32.mrf.mxu0
  %v6514 = vadd.f32 %v6432, %v6513
  %v6515 = vand.u32 %v6056, 4294901760
  %v6516 = vsub.f32 %v6056, %v6515
  %v6517 = vand.u32 %v6516, 4294901760
  %v6518 = vsub.f32 %v6516, %v6517
  %v6519 = vand.u32 %v6518, 4294901760
  %6520 = vmatmul.f32.gmra.mxu0 %v6519
  %v6521 = vpop.f32.mrf.mxu0
  %v6522 = vadd.f32 %v6436, %v6521
  %v6523 = vand.u32 %v6059, 4294901760
  %v6524 = vsub.f32 %v6059, %v6523
  %v6525 = vand.u32 %v6524, 4294901760
  %v6526 = vsub.f32 %v6524, %v6525
  %v6527 = vand.u32 %v6526, 4294901760
  %6528 = vmatmul.f32.gmra.mxu0 %v6527
  %v6529 = vpop.f32.mrf.mxu0
  %v6530 = vadd.f32 %v6440, %v6529
  %6531 = vdwg.mxu0
  %6532 = vmatpush.msra.mxu0 0.0
  %6533 = vmatpush.msra.mxu0 0.0
  %6534 = vmatpush.msra.mxu0 0.0
  %6535 = vmatpush.msra.mxu0 0.0
  %6536 = vmatpush.msra.mxu0 0.0
  %6537 = vmatpush.msra.mxu0 0.0
  %6538 = vmatpush.msra.mxu0 0.0
  %v6539 = vand.u32 %v59, 4294901760
  %v6540 = vsub.f32 %v59, %v6539
  %v6541 = vand.u32 %v6540, 4294901760
  %v6542 = vsub.f32 %v6540, %v6541
  %v6543 = vand.u32 %v6542, 4294901760
  %6544 = vmatpush.msra.mxu0 %v6543
  %6545 = vmatpush.msra.mxu0 0.0
  %6546 = vmatpush.msra.mxu0 0.0
  %6547 = vmatpush.msra.mxu0 0.0
  %6548 = vmatpush.msra.mxu0 0.0
  %6549 = vmatpush.msra.mxu0 0.0
  %6550 = vmatpush.msra.mxu0 0.0
  %6551 = vmatpush.msra.mxu0 0.0
  %6552 = vmatpush.msra.mxu0 0.0
  %v6553 = vand.u32 %v6035, 4294901760
  %6554 = vmatmul.f32.gmra.mxu0 %v6553
  %v6555 = vpop.f32.mrf.mxu0
  %v6556 = vadd.f32 %v6466, %v6555
  %v6557 = vand.u32 %v6038, 4294901760
  %6558 = vmatmul.f32.gmra.mxu0 %v6557
  %v6559 = vpop.f32.mrf.mxu0
  %v6560 = vadd.f32 %v6474, %v6559
  %v6561 = vand.u32 %v6041, 4294901760
  %6562 = vmatmul.f32.gmra.mxu0 %v6561
  %v6563 = vpop.f32.mrf.mxu0
  %v6564 = vadd.f32 %v6482, %v6563
  %v6565 = vand.u32 %v6044, 4294901760
  %6566 = vmatmul.f32.gmra.mxu0 %v6565
  %v6567 = vpop.f32.mrf.mxu0
  %v6568 = vadd.f32 %v6490, %v6567
  %v6569 = vand.u32 %v6047, 4294901760
  %6570 = vmatmul.f32.gmra.mxu0 %v6569
  %v6571 = vpop.f32.mrf.mxu0
  %v6572 = vadd.f32 %v6498, %v6571
  %v6573 = vand.u32 %v6050, 4294901760
  %6574 = vmatmul.f32.gmra.mxu0 %v6573
  %v6575 = vpop.f32.mrf.mxu0
  %v6576 = vadd.f32 %v6506, %v6575
  %v6577 = vand.u32 %v6053, 4294901760
  %6578 = vmatmul.f32.gmra.mxu0 %v6577
  %v6579 = vpop.f32.mrf.mxu0
  %v6580 = vadd.f32 %v6514, %v6579
  %v6581 = vand.u32 %v6056, 4294901760
  %6582 = vmatmul.f32.gmra.mxu0 %v6581
  %v6583 = vpop.f32.mrf.mxu0
  %v6584 = vadd.f32 %v6522, %v6583
  %v6585 = vand.u32 %v6059, 4294901760
  %6586 = vmatmul.f32.gmra.mxu0 %v6585
  %v6587 = vpop.f32.mrf.mxu0
  %v6588 = vadd.f32 %v6530, %v6587
  %6589 = vdwg.mxu0
  %6590 = vmatpush.msra.mxu0 0.0
  %6591 = vmatpush.msra.mxu0 0.0
  %6592 = vmatpush.msra.mxu0 0.0
  %6593 = vmatpush.msra.mxu0 0.0
  %6594 = vmatpush.msra.mxu0 0.0
  %6595 = vmatpush.msra.mxu0 0.0
  %6596 = vmatpush.msra.mxu0 0.0
  %v6597 = vand.u32 %v59, 4294901760
  %v6598 = vsub.f32 %v59, %v6597
  %6599 = vmatpush.msra.mxu0 %v6598
  %6600 = vmatpush.msra.mxu0 0.0
  %6601 = vmatpush.msra.mxu0 0.0
  %6602 = vmatpush.msra.mxu0 0.0
  %6603 = vmatpush.msra.mxu0 0.0
  %6604 = vmatpush.msra.mxu0 0.0
  %6605 = vmatpush.msra.mxu0 0.0
  %6606 = vmatpush.msra.mxu0 0.0
  %6607 = vmatpush.msra.mxu0 0.0
  %v6608 = vand.u32 %v6035, 4294901760
  %v6609 = vsub.f32 %v6035, %v6608
  %6610 = vmatmul.f32.gmra.mxu0 %v6609
  %v6611 = vpop.f32.mrf.mxu0
  %v6612 = vadd.f32 %v6556, %v6611
  %v6613 = vand.u32 %v6038, 4294901760
  %v6614 = vsub.f32 %v6038, %v6613
  %6615 = vmatmul.f32.gmra.mxu0 %v6614
  %v6616 = vpop.f32.mrf.mxu0
  %v6617 = vadd.f32 %v6560, %v6616
  %v6618 = vand.u32 %v6041, 4294901760
  %v6619 = vsub.f32 %v6041, %v6618
  %6620 = vmatmul.f32.gmra.mxu0 %v6619
  %v6621 = vpop.f32.mrf.mxu0
  %v6622 = vadd.f32 %v6564, %v6621
  %v6623 = vand.u32 %v6044, 4294901760
  %v6624 = vsub.f32 %v6044, %v6623
  %6625 = vmatmul.f32.gmra.mxu0 %v6624
  %v6626 = vpop.f32.mrf.mxu0
  %v6627 = vadd.f32 %v6568, %v6626
  %v6628 = vand.u32 %v6047, 4294901760
  %v6629 = vsub.f32 %v6047, %v6628
  %6630 = vmatmul.f32.gmra.mxu0 %v6629
  %v6631 = vpop.f32.mrf.mxu0
  %v6632 = vadd.f32 %v6572, %v6631
  %v6633 = vand.u32 %v6050, 4294901760
  %v6634 = vsub.f32 %v6050, %v6633
  %6635 = vmatmul.f32.gmra.mxu0 %v6634
  %v6636 = vpop.f32.mrf.mxu0
  %v6637 = vadd.f32 %v6576, %v6636
  %v6638 = vand.u32 %v6053, 4294901760
  %v6639 = vsub.f32 %v6053, %v6638
  %6640 = vmatmul.f32.gmra.mxu0 %v6639
  %v6641 = vpop.f32.mrf.mxu0
  %v6642 = vadd.f32 %v6580, %v6641
  %v6643 = vand.u32 %v6056, 4294901760
  %v6644 = vsub.f32 %v6056, %v6643
  %6645 = vmatmul.f32.gmra.mxu0 %v6644
  %v6646 = vpop.f32.mrf.mxu0
  %v6647 = vadd.f32 %v6584, %v6646
  %v6648 = vand.u32 %v6059, 4294901760
  %v6649 = vsub.f32 %v6059, %v6648
  %6650 = vmatmul.f32.gmra.mxu0 %v6649
  %v6651 = vpop.f32.mrf.mxu0
  %v6652 = vadd.f32 %v6588, %v6651
  %6653 = vdwg.mxu0
  %6654 = vmatpush.msra.mxu0 0.0
  %6655 = vmatpush.msra.mxu0 0.0
  %6656 = vmatpush.msra.mxu0 0.0
  %6657 = vmatpush.msra.mxu0 0.0
  %6658 = vmatpush.msra.mxu0 0.0
  %6659 = vmatpush.msra.mxu0 0.0
  %6660 = vmatpush.msra.mxu0 0.0
  %v6661 = vand.u32 %v59, 4294901760
  %6662 = vmatpush.msra.mxu0 %v6661
  %6663 = vmatpush.msra.mxu0 1.0
  %6664 = vmatpush.msra.mxu0 1.0
  %6665 = vmatpush.msra.mxu0 1.0
  %6666 = vmatpush.msra.mxu0 1.0
  %6667 = vmatpush.msra.mxu0 1.0
  %6668 = vmatpush.msra.mxu0 1.0
  %6669 = vmatpush.msra.mxu0 1.0
  %6670 = vmatpush.msra.mxu0 1.0
  %v6671 = vand.u32 %v6035, 4294901760
  %v6672 = vsub.f32 %v6035, %v6671
  %v6673 = vand.u32 %v6672, 4294901760
  %6674 = vmatmul.f32.gmra.mxu0 %v6673
  %v6675 = vpop.f32.mrf.mxu0
  %v6676 = vadd.f32 %v6612, %v6675
  %v6677 = vand.u32 %v6038, 4294901760
  %v6678 = vsub.f32 %v6038, %v6677
  %v6679 = vand.u32 %v6678, 4294901760
  %6680 = vmatmul.f32.gmra.mxu0 %v6679
  %v6681 = vpop.f32.mrf.mxu0
  %v6682 = vadd.f32 %v6617, %v6681
  %v6683 = vand.u32 %v6041, 4294901760
  %v6684 = vsub.f32 %v6041, %v6683
  %v6685 = vand.u32 %v6684, 4294901760
  %6686 = vmatmul.f32.gmra.mxu0 %v6685
  %v6687 = vpop.f32.mrf.mxu0
  %v6688 = vadd.f32 %v6622, %v6687
  %v6689 = vand.u32 %v6044, 4294901760
  %v6690 = vsub.f32 %v6044, %v6689
  %v6691 = vand.u32 %v6690, 4294901760
  %6692 = vmatmul.f32.gmra.mxu0 %v6691
  %v6693 = vpop.f32.mrf.mxu0
  %v6694 = vadd.f32 %v6627, %v6693
  %v6695 = vand.u32 %v6047, 4294901760
  %v6696 = vsub.f32 %v6047, %v6695
  %v6697 = vand.u32 %v6696, 4294901760
  %6698 = vmatmul.f32.gmra.mxu0 %v6697
  %v6699 = vpop.f32.mrf.mxu0
  %v6700 = vadd.f32 %v6632, %v6699
  %v6701 = vand.u32 %v6050, 4294901760
  %v6702 = vsub.f32 %v6050, %v6701
  %v6703 = vand.u32 %v6702, 4294901760
  %6704 = vmatmul.f32.gmra.mxu0 %v6703
  %v6705 = vpop.f32.mrf.mxu0
  %v6706 = vadd.f32 %v6637, %v6705
  %v6707 = vand.u32 %v6053, 4294901760
  %v6708 = vsub.f32 %v6053, %v6707
  %v6709 = vand.u32 %v6708, 4294901760
  %6710 = vmatmul.f32.gmra.mxu0 %v6709
  %v6711 = vpop.f32.mrf.mxu0
  %v6712 = vadd.f32 %v6642, %v6711
  %v6713 = vand.u32 %v6056, 4294901760
  %v6714 = vsub.f32 %v6056, %v6713
  %v6715 = vand.u32 %v6714, 4294901760
  %6716 = vmatmul.f32.gmra.mxu0 %v6715
  %v6717 = vpop.f32.mrf.mxu0
  %v6718 = vadd.f32 %v6647, %v6717
  %v6719 = vand.u32 %v6059, 4294901760
  %v6720 = vsub.f32 %v6059, %v6719
  %v6721 = vand.u32 %v6720, 4294901760
  %6722 = vmatmul.f32.gmra.mxu0 %v6721
  %v6723 = vpop.f32.mrf.mxu0
  %v6724 = vadd.f32 %v6652, %v6723
  %6725 = vdwg.mxu0
  %6726 = vmatpush.msra.mxu0 0.0
  %6727 = vmatpush.msra.mxu0 0.0
  %6728 = vmatpush.msra.mxu0 0.0
  %6729 = vmatpush.msra.mxu0 0.0
  %6730 = vmatpush.msra.mxu0 0.0
  %6731 = vmatpush.msra.mxu0 0.0
  %6732 = vmatpush.msra.mxu0 0.0
  %v6733 = vand.u32 %v59, 4294901760
  %v6734 = vsub.f32 %v59, %v6733
  %v6735 = vand.u32 %v6734, 4294901760
  %6736 = vmatpush.msra.mxu0 %v6735
  %6737 = vmatpush.msra.mxu0 0.0
  %6738 = vmatpush.msra.mxu0 0.0
  %6739 = vmatpush.msra.mxu0 0.0
  %6740 = vmatpush.msra.mxu0 0.0
  %6741 = vmatpush.msra.mxu0 0.0
  %6742 = vmatpush.msra.mxu0 0.0
  %6743 = vmatpush.msra.mxu0 0.0
  %6744 = vmatpush.msra.mxu0 0.0
  %v6745 = vand.u32 %v6035, 4294901760
  %6746 = vmatmul.f32.gmra.mxu0 %v6745
  %v6747 = vpop.f32.mrf.mxu0
  %v6748 = vadd.f32 %v6676, %v6747
  %v6749 = vand.u32 %v6038, 4294901760
  %6750 = vmatmul.f32.gmra.mxu0 %v6749
  %v6751 = vpop.f32.mrf.mxu0
  %v6752 = vadd.f32 %v6682, %v6751
  %v6753 = vand.u32 %v6041, 4294901760
  %6754 = vmatmul.f32.gmra.mxu0 %v6753
  %v6755 = vpop.f32.mrf.mxu0
  %v6756 = vadd.f32 %v6688, %v6755
  %v6757 = vand.u32 %v6044, 4294901760
  %6758 = vmatmul.f32.gmra.mxu0 %v6757
  %v6759 = vpop.f32.mrf.mxu0
  %v6760 = vadd.f32 %v6694, %v6759
  %v6761 = vand.u32 %v6047, 4294901760
  %6762 = vmatmul.f32.gmra.mxu0 %v6761
  %v6763 = vpop.f32.mrf.mxu0
  %v6764 = vadd.f32 %v6700, %v6763
  %v6765 = vand.u32 %v6050, 4294901760
  %6766 = vmatmul.f32.gmra.mxu0 %v6765
  %v6767 = vpop.f32.mrf.mxu0
  %v6768 = vadd.f32 %v6706, %v6767
  %v6769 = vand.u32 %v6053, 4294901760
  %6770 = vmatmul.f32.gmra.mxu0 %v6769
  %v6771 = vpop.f32.mrf.mxu0
  %v6772 = vadd.f32 %v6712, %v6771
  %v6773 = vand.u32 %v6056, 4294901760
  %6774 = vmatmul.f32.gmra.mxu0 %v6773
  %v6775 = vpop.f32.mrf.mxu0
  %v6776 = vadd.f32 %v6718, %v6775
  %v6777 = vand.u32 %v6059, 4294901760
  %6778 = vmatmul.f32.gmra.mxu0 %v6777
  %v6779 = vpop.f32.mrf.mxu0
  %v6780 = vadd.f32 %v6724, %v6779
  %6781 = vdwg.mxu0
  %6782 = vmatpush.msra.mxu0 0.0
  %6783 = vmatpush.msra.mxu0 0.0
  %6784 = vmatpush.msra.mxu0 0.0
  %6785 = vmatpush.msra.mxu0 0.0
  %6786 = vmatpush.msra.mxu0 0.0
  %6787 = vmatpush.msra.mxu0 0.0
  %6788 = vmatpush.msra.mxu0 0.0
  %v6789 = vand.u32 %v59, 4294901760
  %6790 = vmatpush.msra.mxu0 %v6789
  %6791 = vmatpush.msra.mxu0 1.0
  %6792 = vmatpush.msra.mxu0 1.0
  %6793 = vmatpush.msra.mxu0 1.0
  %6794 = vmatpush.msra.mxu0 1.0
  %6795 = vmatpush.msra.mxu0 1.0
  %6796 = vmatpush.msra.mxu0 1.0
  %6797 = vmatpush.msra.mxu0 1.0
  %6798 = vmatpush.msra.mxu0 1.0
  %v6799 = vand.u32 %v6035, 4294901760
  %6800 = vmatmul.f32.gmra.mxu0 %v6799
  %v6801 = vpop.f32.mrf.mxu0
  %v6802 = vadd.f32 %v6748, %v6801
  %v6803 = vand.u32 %v6038, 4294901760
  %6804 = vmatmul.f32.gmra.mxu0 %v6803
  %v6805 = vpop.f32.mrf.mxu0
  %v6806 = vadd.f32 %v6752, %v6805
  %v6807 = vand.u32 %v6041, 4294901760
  %6808 = vmatmul.f32.gmra.mxu0 %v6807
  %v6809 = vpop.f32.mrf.mxu0
  %v6810 = vadd.f32 %v6756, %v6809
  %v6811 = vand.u32 %v6044, 4294901760
  %6812 = vmatmul.f32.gmra.mxu0 %v6811
  %v6813 = vpop.f32.mrf.mxu0
  %v6814 = vadd.f32 %v6760, %v6813
  %v6815 = vand.u32 %v6047, 4294901760
  %6816 = vmatmul.f32.gmra.mxu0 %v6815
  %v6817 = vpop.f32.mrf.mxu0
  %v6818 = vadd.f32 %v6764, %v6817
  %v6819 = vand.u32 %v6050, 4294901760
  %6820 = vmatmul.f32.gmra.mxu0 %v6819
  %v6821 = vpop.f32.mrf.mxu0
  %v6822 = vadd.f32 %v6768, %v6821
  %v6823 = vand.u32 %v6053, 4294901760
  %6824 = vmatmul.f32.gmra.mxu0 %v6823
  %v6825 = vpop.f32.mrf.mxu0
  %v6826 = vadd.f32 %v6772, %v6825
  %v6827 = vand.u32 %v6056, 4294901760
  %6828 = vmatmul.f32.gmra.mxu0 %v6827
  %v6829 = vpop.f32.mrf.mxu0
  %v6830 = vadd.f32 %v6776, %v6829
  %v6831 = vand.u32 %v6059, 4294901760
  %6832 = vmatmul.f32.gmra.mxu0 %v6831
  %v6833 = vpop.f32.mrf.mxu0
  %v6834 = vadd.f32 %v6780, %v6833
  %6835 = vdwg.mxu0
  %v6836 = vmul.f32 %v6016, %v6016
  %v6837 = vmul.f32 %v6017, %v6017
  %v6838 = vmul.f32 %v6018, %v6018
  %v6839 = vmul.f32 %v6019, %v6019
  %v6840 = vmul.f32 %v6020, %v6020
  %v6841 = vmul.f32 %v6021, %v6021
  %v6842 = vmul.f32 %v6022, %v6022
  %v6843 = vmul.f32 %v6023, %v6023
  %v6844 = vmul.f32 %v6024, %v6024
  %v6845 = vmul.f32 %v6025, %v6025
  %v6846 = vmul.f32 %v6026, %v6026
  %v6847 = vmul.f32 %v6027, %v6027
  %v6848 = vmul.f32 %v6028, %v6028
  %v6849 = vmul.f32 %v6029, %v6029
  %v6850 = vmul.f32 %v6030, %v6030
  %v6851 = vmul.f32 %v6031, %v6031
  %v6852 = vmul.f32 %v6032, %v6032
  %v6853 = vmul.f32 %v6033, %v6033
  %v6855 = vsel %vm29, %v6837, 0
  %v6858 = vsel %vm29, %v6839, 0
  %v6861 = vsel %vm29, %v6841, 0
  %v6864 = vsel %vm29, %v6843, 0
  %v6867 = vsel %vm29, %v6845, 0
  %v6870 = vsel %vm29, %v6847, 0
  %v6873 = vsel %vm29, %v6849, 0
  %v6876 = vsel %vm29, %v6851, 0
  %v6879 = vsel %vm29, %v6853, 0
  %6881 = vmatpush.msra.mxu0 1.0
  %6882 = vmatpush.msra.mxu0 1.0
  %6883 = vmatpush.msra.mxu0 1.0
  %6884 = vmatpush.msra.mxu0 1.0
  %6885 = vmatpush.msra.mxu0 1.0
  %6886 = vmatpush.msra.mxu0 1.0
  %6887 = vmatpush.msra.mxu0 1.0
  %6888 = vmatpush.msra.mxu0 1.0
  %6889 = vmatpush.msra.mxu0 1.0
  %6890 = vmatpush.msra.mxu0 1.0
  %6891 = vmatpush.msra.mxu0 1.0
  %6892 = vmatpush.msra.mxu0 1.0
  %6893 = vmatpush.msra.mxu0 1.0
  %6894 = vmatpush.msra.mxu0 1.0
  %6895 = vmatpush.msra.mxu0 1.0
  %6896 = vmatpush.msra.mxu0 1.0
  %v6897 = vand.u32 %v6836, 4294901760
  %v6898 = vsub.f32 %v6836, %v6897
  %v6899 = vand.u32 %v6898, 4294901760
  %v6900 = vsub.f32 %v6898, %v6899
  %v6901 = vand.u32 %v6900, 4294901760
  %6902 = vmatmul.f32.gmra.mxu0 %v6901
  %v6903 = vpop.f32.mrf.mxu0
  %v6904 = vadd.f32 0.0, %v6903
  %v6905 = vand.u32 %v6838, 4294901760
  %v6906 = vsub.f32 %v6838, %v6905
  %v6907 = vand.u32 %v6906, 4294901760
  %v6908 = vsub.f32 %v6906, %v6907
  %v6909 = vand.u32 %v6908, 4294901760
  %6910 = vmatmul.f32.gmra.mxu0 %v6909
  %v6911 = vpop.f32.mrf.mxu0
  %v6912 = vadd.f32 0.0, %v6911
  %v6913 = vand.u32 %v6840, 4294901760
  %v6914 = vsub.f32 %v6840, %v6913
  %v6915 = vand.u32 %v6914, 4294901760
  %v6916 = vsub.f32 %v6914, %v6915
  %v6917 = vand.u32 %v6916, 4294901760
  %6918 = vmatmul.f32.gmra.mxu0 %v6917
  %v6919 = vpop.f32.mrf.mxu0
  %v6920 = vadd.f32 0.0, %v6919
  %v6921 = vand.u32 %v6842, 4294901760
  %v6922 = vsub.f32 %v6842, %v6921
  %v6923 = vand.u32 %v6922, 4294901760
  %v6924 = vsub.f32 %v6922, %v6923
  %v6925 = vand.u32 %v6924, 4294901760
  %6926 = vmatmul.f32.gmra.mxu0 %v6925
  %v6927 = vpop.f32.mrf.mxu0
  %v6928 = vadd.f32 0.0, %v6927
  %v6929 = vand.u32 %v6844, 4294901760
  %v6930 = vsub.f32 %v6844, %v6929
  %v6931 = vand.u32 %v6930, 4294901760
  %v6932 = vsub.f32 %v6930, %v6931
  %v6933 = vand.u32 %v6932, 4294901760
  %6934 = vmatmul.f32.gmra.mxu0 %v6933
  %v6935 = vpop.f32.mrf.mxu0
  %v6936 = vadd.f32 0.0, %v6935
  %v6937 = vand.u32 %v6846, 4294901760
  %v6938 = vsub.f32 %v6846, %v6937
  %v6939 = vand.u32 %v6938, 4294901760
  %v6940 = vsub.f32 %v6938, %v6939
  %v6941 = vand.u32 %v6940, 4294901760
  %6942 = vmatmul.f32.gmra.mxu0 %v6941
  %v6943 = vpop.f32.mrf.mxu0
  %v6944 = vadd.f32 0.0, %v6943
  %v6945 = vand.u32 %v6848, 4294901760
  %v6946 = vsub.f32 %v6848, %v6945
  %v6947 = vand.u32 %v6946, 4294901760
  %v6948 = vsub.f32 %v6946, %v6947
  %v6949 = vand.u32 %v6948, 4294901760
  %6950 = vmatmul.f32.gmra.mxu0 %v6949
  %v6951 = vpop.f32.mrf.mxu0
  %v6952 = vadd.f32 0.0, %v6951
  %v6953 = vand.u32 %v6850, 4294901760
  %v6954 = vsub.f32 %v6850, %v6953
  %v6955 = vand.u32 %v6954, 4294901760
  %v6956 = vsub.f32 %v6954, %v6955
  %v6957 = vand.u32 %v6956, 4294901760
  %6958 = vmatmul.f32.gmra.mxu0 %v6957
  %v6959 = vpop.f32.mrf.mxu0
  %v6960 = vadd.f32 0.0, %v6959
  %v6961 = vand.u32 %v6852, 4294901760
  %v6962 = vsub.f32 %v6852, %v6961
  %v6963 = vand.u32 %v6962, 4294901760
  %v6964 = vsub.f32 %v6962, %v6963
  %v6965 = vand.u32 %v6964, 4294901760
  %6966 = vmatmul.f32.gmra.mxu0 %v6965
  %v6967 = vpop.f32.mrf.mxu0
  %v6968 = vadd.f32 0.0, %v6967
  %6969 = vdwg.mxu0
  %6970 = vmatpush.msra.mxu0 0.0
  %6971 = vmatpush.msra.mxu0 0.0
  %6972 = vmatpush.msra.mxu0 0.0
  %6973 = vmatpush.msra.mxu0 0.0
  %6974 = vmatpush.msra.mxu0 0.0
  %6975 = vmatpush.msra.mxu0 0.0
  %6976 = vmatpush.msra.mxu0 0.0
  %6977 = vmatpush.msra.mxu0 0.0
  %6978 = vmatpush.msra.mxu0 0.0
  %6979 = vmatpush.msra.mxu0 0.0
  %6980 = vmatpush.msra.mxu0 0.0
  %6981 = vmatpush.msra.mxu0 0.0
  %6982 = vmatpush.msra.mxu0 0.0
  %6983 = vmatpush.msra.mxu0 0.0
  %6984 = vmatpush.msra.mxu0 0.0
  %6985 = vmatpush.msra.mxu0 0.0
  %v6986 = vand.u32 %v6836, 4294901760
  %6987 = vmatmul.f32.gmra.mxu0 %v6986
  %v6988 = vpop.f32.mrf.mxu0
  %v6989 = vadd.f32 %v6904, %v6988
  %v6990 = vand.u32 %v6838, 4294901760
  %6991 = vmatmul.f32.gmra.mxu0 %v6990
  %v6992 = vpop.f32.mrf.mxu0
  %v6993 = vadd.f32 %v6912, %v6992
  %v6994 = vand.u32 %v6840, 4294901760
  %6995 = vmatmul.f32.gmra.mxu0 %v6994
  %v6996 = vpop.f32.mrf.mxu0
  %v6997 = vadd.f32 %v6920, %v6996
  %v6998 = vand.u32 %v6842, 4294901760
  %6999 = vmatmul.f32.gmra.mxu0 %v6998
  %v7000 = vpop.f32.mrf.mxu0
  %v7001 = vadd.f32 %v6928, %v7000
  %v7002 = vand.u32 %v6844, 4294901760
  %7003 = vmatmul.f32.gmra.mxu0 %v7002
  %v7004 = vpop.f32.mrf.mxu0
  %v7005 = vadd.f32 %v6936, %v7004
  %v7006 = vand.u32 %v6846, 4294901760
  %7007 = vmatmul.f32.gmra.mxu0 %v7006
  %v7008 = vpop.f32.mrf.mxu0
  %v7009 = vadd.f32 %v6944, %v7008
  %v7010 = vand.u32 %v6848, 4294901760
  %7011 = vmatmul.f32.gmra.mxu0 %v7010
  %v7012 = vpop.f32.mrf.mxu0
  %v7013 = vadd.f32 %v6952, %v7012
  %v7014 = vand.u32 %v6850, 4294901760
  %7015 = vmatmul.f32.gmra.mxu0 %v7014
  %v7016 = vpop.f32.mrf.mxu0
  %v7017 = vadd.f32 %v6960, %v7016
  %v7018 = vand.u32 %v6852, 4294901760
  %7019 = vmatmul.f32.gmra.mxu0 %v7018
  %v7020 = vpop.f32.mrf.mxu0
  %v7021 = vadd.f32 %v6968, %v7020
  %7022 = vdwg.mxu0
  %7023 = vmatpush.msra.mxu0 0.0
  %7024 = vmatpush.msra.mxu0 0.0
  %7025 = vmatpush.msra.mxu0 0.0
  %7026 = vmatpush.msra.mxu0 0.0
  %7027 = vmatpush.msra.mxu0 0.0
  %7028 = vmatpush.msra.mxu0 0.0
  %7029 = vmatpush.msra.mxu0 0.0
  %7030 = vmatpush.msra.mxu0 0.0
  %7031 = vmatpush.msra.mxu0 0.0
  %7032 = vmatpush.msra.mxu0 0.0
  %7033 = vmatpush.msra.mxu0 0.0
  %7034 = vmatpush.msra.mxu0 0.0
  %7035 = vmatpush.msra.mxu0 0.0
  %7036 = vmatpush.msra.mxu0 0.0
  %7037 = vmatpush.msra.mxu0 0.0
  %7038 = vmatpush.msra.mxu0 0.0
  %v7039 = vand.u32 %v6836, 4294901760
  %v7040 = vsub.f32 %v6836, %v7039
  %7041 = vmatmul.f32.gmra.mxu0 %v7040
  %v7042 = vpop.f32.mrf.mxu0
  %v7043 = vadd.f32 %v6989, %v7042
  %v7044 = vand.u32 %v6838, 4294901760
  %v7045 = vsub.f32 %v6838, %v7044
  %7046 = vmatmul.f32.gmra.mxu0 %v7045
  %v7047 = vpop.f32.mrf.mxu0
  %v7048 = vadd.f32 %v6993, %v7047
  %v7049 = vand.u32 %v6840, 4294901760
  %v7050 = vsub.f32 %v6840, %v7049
  %7051 = vmatmul.f32.gmra.mxu0 %v7050
  %v7052 = vpop.f32.mrf.mxu0
  %v7053 = vadd.f32 %v6997, %v7052
  %v7054 = vand.u32 %v6842, 4294901760
  %v7055 = vsub.f32 %v6842, %v7054
  %7056 = vmatmul.f32.gmra.mxu0 %v7055
  %v7057 = vpop.f32.mrf.mxu0
  %v7058 = vadd.f32 %v7001, %v7057
  %v7059 = vand.u32 %v6844, 4294901760
  %v7060 = vsub.f32 %v6844, %v7059
  %7061 = vmatmul.f32.gmra.mxu0 %v7060
  %v7062 = vpop.f32.mrf.mxu0
  %v7063 = vadd.f32 %v7005, %v7062
  %v7064 = vand.u32 %v6846, 4294901760
  %v7065 = vsub.f32 %v6846, %v7064
  %7066 = vmatmul.f32.gmra.mxu0 %v7065
  %v7067 = vpop.f32.mrf.mxu0
  %v7068 = vadd.f32 %v7009, %v7067
  %v7069 = vand.u32 %v6848, 4294901760
  %v7070 = vsub.f32 %v6848, %v7069
  %7071 = vmatmul.f32.gmra.mxu0 %v7070
  %v7072 = vpop.f32.mrf.mxu0
  %v7073 = vadd.f32 %v7013, %v7072
  %v7074 = vand.u32 %v6850, 4294901760
  %v7075 = vsub.f32 %v6850, %v7074
  %7076 = vmatmul.f32.gmra.mxu0 %v7075
  %v7077 = vpop.f32.mrf.mxu0
  %v7078 = vadd.f32 %v7017, %v7077
  %v7079 = vand.u32 %v6852, 4294901760
  %v7080 = vsub.f32 %v6852, %v7079
  %7081 = vmatmul.f32.gmra.mxu0 %v7080
  %v7082 = vpop.f32.mrf.mxu0
  %v7083 = vadd.f32 %v7021, %v7082
  %7084 = vdwg.mxu0
  %7085 = vmatpush.msra.mxu0 1.0
  %7086 = vmatpush.msra.mxu0 1.0
  %7087 = vmatpush.msra.mxu0 1.0
  %7088 = vmatpush.msra.mxu0 1.0
  %7089 = vmatpush.msra.mxu0 1.0
  %7090 = vmatpush.msra.mxu0 1.0
  %7091 = vmatpush.msra.mxu0 1.0
  %7092 = vmatpush.msra.mxu0 1.0
  %7093 = vmatpush.msra.mxu0 1.0
  %7094 = vmatpush.msra.mxu0 1.0
  %7095 = vmatpush.msra.mxu0 1.0
  %7096 = vmatpush.msra.mxu0 1.0
  %7097 = vmatpush.msra.mxu0 1.0
  %7098 = vmatpush.msra.mxu0 1.0
  %7099 = vmatpush.msra.mxu0 1.0
  %7100 = vmatpush.msra.mxu0 1.0
  %v7101 = vand.u32 %v6836, 4294901760
  %v7102 = vsub.f32 %v6836, %v7101
  %v7103 = vand.u32 %v7102, 4294901760
  %7104 = vmatmul.f32.gmra.mxu0 %v7103
  %v7105 = vpop.f32.mrf.mxu0
  %v7106 = vadd.f32 %v7043, %v7105
  %v7107 = vand.u32 %v6838, 4294901760
  %v7108 = vsub.f32 %v6838, %v7107
  %v7109 = vand.u32 %v7108, 4294901760
  %7110 = vmatmul.f32.gmra.mxu0 %v7109
  %v7111 = vpop.f32.mrf.mxu0
  %v7112 = vadd.f32 %v7048, %v7111
  %v7113 = vand.u32 %v6840, 4294901760
  %v7114 = vsub.f32 %v6840, %v7113
  %v7115 = vand.u32 %v7114, 4294901760
  %7116 = vmatmul.f32.gmra.mxu0 %v7115
  %v7117 = vpop.f32.mrf.mxu0
  %v7118 = vadd.f32 %v7053, %v7117
  %v7119 = vand.u32 %v6842, 4294901760
  %v7120 = vsub.f32 %v6842, %v7119
  %v7121 = vand.u32 %v7120, 4294901760
  %7122 = vmatmul.f32.gmra.mxu0 %v7121
  %v7123 = vpop.f32.mrf.mxu0
  %v7124 = vadd.f32 %v7058, %v7123
  %v7125 = vand.u32 %v6844, 4294901760
  %v7126 = vsub.f32 %v6844, %v7125
  %v7127 = vand.u32 %v7126, 4294901760
  %7128 = vmatmul.f32.gmra.mxu0 %v7127
  %v7129 = vpop.f32.mrf.mxu0
  %v7130 = vadd.f32 %v7063, %v7129
  %v7131 = vand.u32 %v6846, 4294901760
  %v7132 = vsub.f32 %v6846, %v7131
  %v7133 = vand.u32 %v7132, 4294901760
  %7134 = vmatmul.f32.gmra.mxu0 %v7133
  %v7135 = vpop.f32.mrf.mxu0
  %v7136 = vadd.f32 %v7068, %v7135
  %v7137 = vand.u32 %v6848, 4294901760
  %v7138 = vsub.f32 %v6848, %v7137
  %v7139 = vand.u32 %v7138, 4294901760
  %7140 = vmatmul.f32.gmra.mxu0 %v7139
  %v7141 = vpop.f32.mrf.mxu0
  %v7142 = vadd.f32 %v7073, %v7141
  %v7143 = vand.u32 %v6850, 4294901760
  %v7144 = vsub.f32 %v6850, %v7143
  %v7145 = vand.u32 %v7144, 4294901760
  %7146 = vmatmul.f32.gmra.mxu0 %v7145
  %v7147 = vpop.f32.mrf.mxu0
  %v7148 = vadd.f32 %v7078, %v7147
  %v7149 = vand.u32 %v6852, 4294901760
  %v7150 = vsub.f32 %v6852, %v7149
  %v7151 = vand.u32 %v7150, 4294901760
  %7152 = vmatmul.f32.gmra.mxu0 %v7151
  %v7153 = vpop.f32.mrf.mxu0
  %v7154 = vadd.f32 %v7083, %v7153
  %7155 = vdwg.mxu0
  %7156 = vmatpush.msra.mxu0 0.0
  %7157 = vmatpush.msra.mxu0 0.0
  %7158 = vmatpush.msra.mxu0 0.0
  %7159 = vmatpush.msra.mxu0 0.0
  %7160 = vmatpush.msra.mxu0 0.0
  %7161 = vmatpush.msra.mxu0 0.0
  %7162 = vmatpush.msra.mxu0 0.0
  %7163 = vmatpush.msra.mxu0 0.0
  %7164 = vmatpush.msra.mxu0 0.0
  %7165 = vmatpush.msra.mxu0 0.0
  %7166 = vmatpush.msra.mxu0 0.0
  %7167 = vmatpush.msra.mxu0 0.0
  %7168 = vmatpush.msra.mxu0 0.0
  %7169 = vmatpush.msra.mxu0 0.0
  %7170 = vmatpush.msra.mxu0 0.0
  %7171 = vmatpush.msra.mxu0 0.0
  %v7172 = vand.u32 %v6836, 4294901760
  %7173 = vmatmul.f32.gmra.mxu0 %v7172
  %v7174 = vpop.f32.mrf.mxu0
  %v7175 = vadd.f32 %v7106, %v7174
  %v7176 = vand.u32 %v6838, 4294901760
  %7177 = vmatmul.f32.gmra.mxu0 %v7176
  %v7178 = vpop.f32.mrf.mxu0
  %v7179 = vadd.f32 %v7112, %v7178
  %v7180 = vand.u32 %v6840, 4294901760
  %7181 = vmatmul.f32.gmra.mxu0 %v7180
  %v7182 = vpop.f32.mrf.mxu0
  %v7183 = vadd.f32 %v7118, %v7182
  %v7184 = vand.u32 %v6842, 4294901760
  %7185 = vmatmul.f32.gmra.mxu0 %v7184
  %v7186 = vpop.f32.mrf.mxu0
  %v7187 = vadd.f32 %v7124, %v7186
  %v7188 = vand.u32 %v6844, 4294901760
  %7189 = vmatmul.f32.gmra.mxu0 %v7188
  %v7190 = vpop.f32.mrf.mxu0
  %v7191 = vadd.f32 %v7130, %v7190
  %v7192 = vand.u32 %v6846, 4294901760
  %7193 = vmatmul.f32.gmra.mxu0 %v7192
  %v7194 = vpop.f32.mrf.mxu0
  %v7195 = vadd.f32 %v7136, %v7194
  %v7196 = vand.u32 %v6848, 4294901760
  %7197 = vmatmul.f32.gmra.mxu0 %v7196
  %v7198 = vpop.f32.mrf.mxu0
  %v7199 = vadd.f32 %v7142, %v7198
  %v7200 = vand.u32 %v6850, 4294901760
  %7201 = vmatmul.f32.gmra.mxu0 %v7200
  %v7202 = vpop.f32.mrf.mxu0
  %v7203 = vadd.f32 %v7148, %v7202
  %v7204 = vand.u32 %v6852, 4294901760
  %7205 = vmatmul.f32.gmra.mxu0 %v7204
  %v7206 = vpop.f32.mrf.mxu0
  %v7207 = vadd.f32 %v7154, %v7206
  %7208 = vdwg.mxu0
  %7209 = vmatpush.msra.mxu0 1.0
  %7210 = vmatpush.msra.mxu0 1.0
  %7211 = vmatpush.msra.mxu0 1.0
  %7212 = vmatpush.msra.mxu0 1.0
  %7213 = vmatpush.msra.mxu0 1.0
  %7214 = vmatpush.msra.mxu0 1.0
  %7215 = vmatpush.msra.mxu0 1.0
  %7216 = vmatpush.msra.mxu0 1.0
  %7217 = vmatpush.msra.mxu0 1.0
  %7218 = vmatpush.msra.mxu0 1.0
  %7219 = vmatpush.msra.mxu0 1.0
  %7220 = vmatpush.msra.mxu0 1.0
  %7221 = vmatpush.msra.mxu0 1.0
  %7222 = vmatpush.msra.mxu0 1.0
  %7223 = vmatpush.msra.mxu0 1.0
  %7224 = vmatpush.msra.mxu0 1.0
  %v7225 = vand.u32 %v6836, 4294901760
  %7226 = vmatmul.f32.gmra.mxu0 %v7225
  %v7227 = vpop.f32.mrf.mxu0
  %v7228 = vadd.f32 %v7175, %v7227
  %v7229 = vand.u32 %v6838, 4294901760
  %7230 = vmatmul.f32.gmra.mxu0 %v7229
  %v7231 = vpop.f32.mrf.mxu0
  %v7232 = vadd.f32 %v7179, %v7231
  %v7233 = vand.u32 %v6840, 4294901760
  %7234 = vmatmul.f32.gmra.mxu0 %v7233
  %v7235 = vpop.f32.mrf.mxu0
  %v7236 = vadd.f32 %v7183, %v7235
  %v7237 = vand.u32 %v6842, 4294901760
  %7238 = vmatmul.f32.gmra.mxu0 %v7237
  %v7239 = vpop.f32.mrf.mxu0
  %v7240 = vadd.f32 %v7187, %v7239
  %v7241 = vand.u32 %v6844, 4294901760
  %7242 = vmatmul.f32.gmra.mxu0 %v7241
  %v7243 = vpop.f32.mrf.mxu0
  %v7244 = vadd.f32 %v7191, %v7243
  %v7245 = vand.u32 %v6846, 4294901760
  %7246 = vmatmul.f32.gmra.mxu0 %v7245
  %v7247 = vpop.f32.mrf.mxu0
  %v7248 = vadd.f32 %v7195, %v7247
  %v7249 = vand.u32 %v6848, 4294901760
  %7250 = vmatmul.f32.gmra.mxu0 %v7249
  %v7251 = vpop.f32.mrf.mxu0
  %v7252 = vadd.f32 %v7199, %v7251
  %v7253 = vand.u32 %v6850, 4294901760
  %7254 = vmatmul.f32.gmra.mxu0 %v7253
  %v7255 = vpop.f32.mrf.mxu0
  %v7256 = vadd.f32 %v7203, %v7255
  %v7257 = vand.u32 %v6852, 4294901760
  %7258 = vmatmul.f32.gmra.mxu0 %v7257
  %v7259 = vpop.f32.mrf.mxu0
  %v7260 = vadd.f32 %v7207, %v7259
  %7261 = vdwg.mxu0
  %7262 = vmatpush.msra.mxu0 0.0
  %7263 = vmatpush.msra.mxu0 0.0
  %7264 = vmatpush.msra.mxu0 0.0
  %7265 = vmatpush.msra.mxu0 0.0
  %7266 = vmatpush.msra.mxu0 0.0
  %7267 = vmatpush.msra.mxu0 0.0
  %7268 = vmatpush.msra.mxu0 0.0
  %v7269 = vand.u32 %v59, 4294901760
  %7270 = vmatpush.msra.mxu0 %v7269
  %7271 = vmatpush.msra.mxu0 1.0
  %7272 = vmatpush.msra.mxu0 1.0
  %7273 = vmatpush.msra.mxu0 1.0
  %7274 = vmatpush.msra.mxu0 1.0
  %7275 = vmatpush.msra.mxu0 1.0
  %7276 = vmatpush.msra.mxu0 1.0
  %7277 = vmatpush.msra.mxu0 1.0
  %7278 = vmatpush.msra.mxu0 1.0
  %v7279 = vand.u32 %v6855, 4294901760
  %v7280 = vsub.f32 %v6855, %v7279
  %v7281 = vand.u32 %v7280, 4294901760
  %v7282 = vsub.f32 %v7280, %v7281
  %v7283 = vand.u32 %v7282, 4294901760
  %7284 = vmatmul.f32.gmra.mxu0 %v7283
  %v7285 = vpop.f32.mrf.mxu0
  %v7286 = vadd.f32 %v7228, %v7285
  %v7287 = vand.u32 %v6858, 4294901760
  %v7288 = vsub.f32 %v6858, %v7287
  %v7289 = vand.u32 %v7288, 4294901760
  %v7290 = vsub.f32 %v7288, %v7289
  %v7291 = vand.u32 %v7290, 4294901760
  %7292 = vmatmul.f32.gmra.mxu0 %v7291
  %v7293 = vpop.f32.mrf.mxu0
  %v7294 = vadd.f32 %v7232, %v7293
  %v7295 = vand.u32 %v6861, 4294901760
  %v7296 = vsub.f32 %v6861, %v7295
  %v7297 = vand.u32 %v7296, 4294901760
  %v7298 = vsub.f32 %v7296, %v7297
  %v7299 = vand.u32 %v7298, 4294901760
  %7300 = vmatmul.f32.gmra.mxu0 %v7299
  %v7301 = vpop.f32.mrf.mxu0
  %v7302 = vadd.f32 %v7236, %v7301
  %v7303 = vand.u32 %v6864, 4294901760
  %v7304 = vsub.f32 %v6864, %v7303
  %v7305 = vand.u32 %v7304, 4294901760
  %v7306 = vsub.f32 %v7304, %v7305
  %v7307 = vand.u32 %v7306, 4294901760
  %7308 = vmatmul.f32.gmra.mxu0 %v7307
  %v7309 = vpop.f32.mrf.mxu0
  %v7310 = vadd.f32 %v7240, %v7309
  %v7311 = vand.u32 %v6867, 4294901760
  %v7312 = vsub.f32 %v6867, %v7311
  %v7313 = vand.u32 %v7312, 4294901760
  %v7314 = vsub.f32 %v7312, %v7313
  %v7315 = vand.u32 %v7314, 4294901760
  %7316 = vmatmul.f32.gmra.mxu0 %v7315
  %v7317 = vpop.f32.mrf.mxu0
  %v7318 = vadd.f32 %v7244, %v7317
  %v7319 = vand.u32 %v6870, 4294901760
  %v7320 = vsub.f32 %v6870, %v7319
  %v7321 = vand.u32 %v7320, 4294901760
  %v7322 = vsub.f32 %v7320, %v7321
  %v7323 = vand.u32 %v7322, 4294901760
  %7324 = vmatmul.f32.gmra.mxu0 %v7323
  %v7325 = vpop.f32.mrf.mxu0
  %v7326 = vadd.f32 %v7248, %v7325
  %v7327 = vand.u32 %v6873, 4294901760
  %v7328 = vsub.f32 %v6873, %v7327
  %v7329 = vand.u32 %v7328, 4294901760
  %v7330 = vsub.f32 %v7328, %v7329
  %v7331 = vand.u32 %v7330, 4294901760
  %7332 = vmatmul.f32.gmra.mxu0 %v7331
  %v7333 = vpop.f32.mrf.mxu0
  %v7334 = vadd.f32 %v7252, %v7333
  %v7335 = vand.u32 %v6876, 4294901760
  %v7336 = vsub.f32 %v6876, %v7335
  %v7337 = vand.u32 %v7336, 4294901760
  %v7338 = vsub.f32 %v7336, %v7337
  %v7339 = vand.u32 %v7338, 4294901760
  %7340 = vmatmul.f32.gmra.mxu0 %v7339
  %v7341 = vpop.f32.mrf.mxu0
  %v7342 = vadd.f32 %v7256, %v7341
  %v7343 = vand.u32 %v6879, 4294901760
  %v7344 = vsub.f32 %v6879, %v7343
  %v7345 = vand.u32 %v7344, 4294901760
  %v7346 = vsub.f32 %v7344, %v7345
  %v7347 = vand.u32 %v7346, 4294901760
  %7348 = vmatmul.f32.gmra.mxu0 %v7347
  %v7349 = vpop.f32.mrf.mxu0
  %v7350 = vadd.f32 %v7260, %v7349
  %7351 = vdwg.mxu0
  %7352 = vmatpush.msra.mxu0 0.0
  %7353 = vmatpush.msra.mxu0 0.0
  %7354 = vmatpush.msra.mxu0 0.0
  %7355 = vmatpush.msra.mxu0 0.0
  %7356 = vmatpush.msra.mxu0 0.0
  %7357 = vmatpush.msra.mxu0 0.0
  %7358 = vmatpush.msra.mxu0 0.0
  %v7359 = vand.u32 %v59, 4294901760
  %v7360 = vsub.f32 %v59, %v7359
  %v7361 = vand.u32 %v7360, 4294901760
  %v7362 = vsub.f32 %v7360, %v7361
  %v7363 = vand.u32 %v7362, 4294901760
  %7364 = vmatpush.msra.mxu0 %v7363
  %7365 = vmatpush.msra.mxu0 0.0
  %7366 = vmatpush.msra.mxu0 0.0
  %7367 = vmatpush.msra.mxu0 0.0
  %7368 = vmatpush.msra.mxu0 0.0
  %7369 = vmatpush.msra.mxu0 0.0
  %7370 = vmatpush.msra.mxu0 0.0
  %7371 = vmatpush.msra.mxu0 0.0
  %7372 = vmatpush.msra.mxu0 0.0
  %v7373 = vand.u32 %v6855, 4294901760
  %7374 = vmatmul.f32.gmra.mxu0 %v7373
  %v7375 = vpop.f32.mrf.mxu0
  %v7376 = vadd.f32 %v7286, %v7375
  %v7377 = vand.u32 %v6858, 4294901760
  %7378 = vmatmul.f32.gmra.mxu0 %v7377
  %v7379 = vpop.f32.mrf.mxu0
  %v7380 = vadd.f32 %v7294, %v7379
  %v7381 = vand.u32 %v6861, 4294901760
  %7382 = vmatmul.f32.gmra.mxu0 %v7381
  %v7383 = vpop.f32.mrf.mxu0
  %v7384 = vadd.f32 %v7302, %v7383
  %v7385 = vand.u32 %v6864, 4294901760
  %7386 = vmatmul.f32.gmra.mxu0 %v7385
  %v7387 = vpop.f32.mrf.mxu0
  %v7388 = vadd.f32 %v7310, %v7387
  %v7389 = vand.u32 %v6867, 4294901760
  %7390 = vmatmul.f32.gmra.mxu0 %v7389
  %v7391 = vpop.f32.mrf.mxu0
  %v7392 = vadd.f32 %v7318, %v7391
  %v7393 = vand.u32 %v6870, 4294901760
  %7394 = vmatmul.f32.gmra.mxu0 %v7393
  %v7395 = vpop.f32.mrf.mxu0
  %v7396 = vadd.f32 %v7326, %v7395
  %v7397 = vand.u32 %v6873, 4294901760
  %7398 = vmatmul.f32.gmra.mxu0 %v7397
  %v7399 = vpop.f32.mrf.mxu0
  %v7400 = vadd.f32 %v7334, %v7399
  %v7401 = vand.u32 %v6876, 4294901760
  %7402 = vmatmul.f32.gmra.mxu0 %v7401
  %v7403 = vpop.f32.mrf.mxu0
  %v7404 = vadd.f32 %v7342, %v7403
  %v7405 = vand.u32 %v6879, 4294901760
  %7406 = vmatmul.f32.gmra.mxu0 %v7405
  %v7407 = vpop.f32.mrf.mxu0
  %v7408 = vadd.f32 %v7350, %v7407
  %7409 = vdwg.mxu0
  %7410 = vmatpush.msra.mxu0 0.0
  %7411 = vmatpush.msra.mxu0 0.0
  %7412 = vmatpush.msra.mxu0 0.0
  %7413 = vmatpush.msra.mxu0 0.0
  %7414 = vmatpush.msra.mxu0 0.0
  %7415 = vmatpush.msra.mxu0 0.0
  %7416 = vmatpush.msra.mxu0 0.0
  %v7417 = vand.u32 %v59, 4294901760
  %v7418 = vsub.f32 %v59, %v7417
  %7419 = vmatpush.msra.mxu0 %v7418
  %7420 = vmatpush.msra.mxu0 0.0
  %7421 = vmatpush.msra.mxu0 0.0
  %7422 = vmatpush.msra.mxu0 0.0
  %7423 = vmatpush.msra.mxu0 0.0
  %7424 = vmatpush.msra.mxu0 0.0
  %7425 = vmatpush.msra.mxu0 0.0
  %7426 = vmatpush.msra.mxu0 0.0
  %7427 = vmatpush.msra.mxu0 0.0
  %v7428 = vand.u32 %v6855, 4294901760
  %v7429 = vsub.f32 %v6855, %v7428
  %7430 = vmatmul.f32.gmra.mxu0 %v7429
  %v7431 = vpop.f32.mrf.mxu0
  %v7432 = vadd.f32 %v7376, %v7431
  %v7433 = vand.u32 %v6858, 4294901760
  %v7434 = vsub.f32 %v6858, %v7433
  %7435 = vmatmul.f32.gmra.mxu0 %v7434
  %v7436 = vpop.f32.mrf.mxu0
  %v7437 = vadd.f32 %v7380, %v7436
  %v7438 = vand.u32 %v6861, 4294901760
  %v7439 = vsub.f32 %v6861, %v7438
  %7440 = vmatmul.f32.gmra.mxu0 %v7439
  %v7441 = vpop.f32.mrf.mxu0
  %v7442 = vadd.f32 %v7384, %v7441
  %v7443 = vand.u32 %v6864, 4294901760
  %v7444 = vsub.f32 %v6864, %v7443
  %7445 = vmatmul.f32.gmra.mxu0 %v7444
  %v7446 = vpop.f32.mrf.mxu0
  %v7447 = vadd.f32 %v7388, %v7446
  %v7448 = vand.u32 %v6867, 4294901760
  %v7449 = vsub.f32 %v6867, %v7448
  %7450 = vmatmul.f32.gmra.mxu0 %v7449
  %v7451 = vpop.f32.mrf.mxu0
  %v7452 = vadd.f32 %v7392, %v7451
  %v7453 = vand.u32 %v6870, 4294901760
  %v7454 = vsub.f32 %v6870, %v7453
  %7455 = vmatmul.f32.gmra.mxu0 %v7454
  %v7456 = vpop.f32.mrf.mxu0
  %v7457 = vadd.f32 %v7396, %v7456
  %v7458 = vand.u32 %v6873, 4294901760
  %v7459 = vsub.f32 %v6873, %v7458
  %7460 = vmatmul.f32.gmra.mxu0 %v7459
  %v7461 = vpop.f32.mrf.mxu0
  %v7462 = vadd.f32 %v7400, %v7461
  %v7463 = vand.u32 %v6876, 4294901760
  %v7464 = vsub.f32 %v6876, %v7463
  %7465 = vmatmul.f32.gmra.mxu0 %v7464
  %v7466 = vpop.f32.mrf.mxu0
  %v7467 = vadd.f32 %v7404, %v7466
  %v7468 = vand.u32 %v6879, 4294901760
  %v7469 = vsub.f32 %v6879, %v7468
  %7470 = vmatmul.f32.gmra.mxu0 %v7469
  %v7471 = vpop.f32.mrf.mxu0
  %v7472 = vadd.f32 %v7408, %v7471
  %7473 = vdwg.mxu0
  %7474 = vmatpush.msra.mxu0 0.0
  %7475 = vmatpush.msra.mxu0 0.0
  %7476 = vmatpush.msra.mxu0 0.0
  %7477 = vmatpush.msra.mxu0 0.0
  %7478 = vmatpush.msra.mxu0 0.0
  %7479 = vmatpush.msra.mxu0 0.0
  %7480 = vmatpush.msra.mxu0 0.0
  %v7481 = vand.u32 %v59, 4294901760
  %7482 = vmatpush.msra.mxu0 %v7481
  %7483 = vmatpush.msra.mxu0 1.0
  %7484 = vmatpush.msra.mxu0 1.0
  %7485 = vmatpush.msra.mxu0 1.0
  %7486 = vmatpush.msra.mxu0 1.0
  %7487 = vmatpush.msra.mxu0 1.0
  %7488 = vmatpush.msra.mxu0 1.0
  %7489 = vmatpush.msra.mxu0 1.0
  %7490 = vmatpush.msra.mxu0 1.0
  %v7491 = vand.u32 %v6855, 4294901760
  %v7492 = vsub.f32 %v6855, %v7491
  %v7493 = vand.u32 %v7492, 4294901760
  %7494 = vmatmul.f32.gmra.mxu0 %v7493
  %v7495 = vpop.f32.mrf.mxu0
  %v7496 = vadd.f32 %v7432, %v7495
  %v7497 = vand.u32 %v6858, 4294901760
  %v7498 = vsub.f32 %v6858, %v7497
  %v7499 = vand.u32 %v7498, 4294901760
  %7500 = vmatmul.f32.gmra.mxu0 %v7499
  %v7501 = vpop.f32.mrf.mxu0
  %v7502 = vadd.f32 %v7437, %v7501
  %v7503 = vand.u32 %v6861, 4294901760
  %v7504 = vsub.f32 %v6861, %v7503
  %v7505 = vand.u32 %v7504, 4294901760
  %7506 = vmatmul.f32.gmra.mxu0 %v7505
  %v7507 = vpop.f32.mrf.mxu0
  %v7508 = vadd.f32 %v7442, %v7507
  %v7509 = vand.u32 %v6864, 4294901760
  %v7510 = vsub.f32 %v6864, %v7509
  %v7511 = vand.u32 %v7510, 4294901760
  %7512 = vmatmul.f32.gmra.mxu0 %v7511
  %v7513 = vpop.f32.mrf.mxu0
  %v7514 = vadd.f32 %v7447, %v7513
  %v7515 = vand.u32 %v6867, 4294901760
  %v7516 = vsub.f32 %v6867, %v7515
  %v7517 = vand.u32 %v7516, 4294901760
  %7518 = vmatmul.f32.gmra.mxu0 %v7517
  %v7519 = vpop.f32.mrf.mxu0
  %v7520 = vadd.f32 %v7452, %v7519
  %v7521 = vand.u32 %v6870, 4294901760
  %v7522 = vsub.f32 %v6870, %v7521
  %v7523 = vand.u32 %v7522, 4294901760
  %7524 = vmatmul.f32.gmra.mxu0 %v7523
  %v7525 = vpop.f32.mrf.mxu0
  %v7526 = vadd.f32 %v7457, %v7525
  %v7527 = vand.u32 %v6873, 4294901760
  %v7528 = vsub.f32 %v6873, %v7527
  %v7529 = vand.u32 %v7528, 4294901760
  %7530 = vmatmul.f32.gmra.mxu0 %v7529
  %v7531 = vpop.f32.mrf.mxu0
  %v7532 = vadd.f32 %v7462, %v7531
  %v7533 = vand.u32 %v6876, 4294901760
  %v7534 = vsub.f32 %v6876, %v7533
  %v7535 = vand.u32 %v7534, 4294901760
  %7536 = vmatmul.f32.gmra.mxu0 %v7535
  %v7537 = vpop.f32.mrf.mxu0
  %v7538 = vadd.f32 %v7467, %v7537
  %v7539 = vand.u32 %v6879, 4294901760
  %v7540 = vsub.f32 %v6879, %v7539
  %v7541 = vand.u32 %v7540, 4294901760
  %7542 = vmatmul.f32.gmra.mxu0 %v7541
  %v7543 = vpop.f32.mrf.mxu0
  %v7544 = vadd.f32 %v7472, %v7543
  %7545 = vdwg.mxu0
  %7546 = vmatpush.msra.mxu0 0.0
  %7547 = vmatpush.msra.mxu0 0.0
  %7548 = vmatpush.msra.mxu0 0.0
  %7549 = vmatpush.msra.mxu0 0.0
  %7550 = vmatpush.msra.mxu0 0.0
  %7551 = vmatpush.msra.mxu0 0.0
  %7552 = vmatpush.msra.mxu0 0.0
  %v7553 = vand.u32 %v59, 4294901760
  %v7554 = vsub.f32 %v59, %v7553
  %v7555 = vand.u32 %v7554, 4294901760
  %7556 = vmatpush.msra.mxu0 %v7555
  %7557 = vmatpush.msra.mxu0 0.0
  %7558 = vmatpush.msra.mxu0 0.0
  %7559 = vmatpush.msra.mxu0 0.0
  %7560 = vmatpush.msra.mxu0 0.0
  %7561 = vmatpush.msra.mxu0 0.0
  %7562 = vmatpush.msra.mxu0 0.0
  %7563 = vmatpush.msra.mxu0 0.0
  %7564 = vmatpush.msra.mxu0 0.0
  %v7565 = vand.u32 %v6855, 4294901760
  %7566 = vmatmul.f32.gmra.mxu0 %v7565
  %v7567 = vpop.f32.mrf.mxu0
  %v7568 = vadd.f32 %v7496, %v7567
  %v7569 = vand.u32 %v6858, 4294901760
  %7570 = vmatmul.f32.gmra.mxu0 %v7569
  %v7571 = vpop.f32.mrf.mxu0
  %v7572 = vadd.f32 %v7502, %v7571
  %v7573 = vand.u32 %v6861, 4294901760
  %7574 = vmatmul.f32.gmra.mxu0 %v7573
  %v7575 = vpop.f32.mrf.mxu0
  %v7576 = vadd.f32 %v7508, %v7575
  %v7577 = vand.u32 %v6864, 4294901760
  %7578 = vmatmul.f32.gmra.mxu0 %v7577
  %v7579 = vpop.f32.mrf.mxu0
  %v7580 = vadd.f32 %v7514, %v7579
  %v7581 = vand.u32 %v6867, 4294901760
  %7582 = vmatmul.f32.gmra.mxu0 %v7581
  %v7583 = vpop.f32.mrf.mxu0
  %v7584 = vadd.f32 %v7520, %v7583
  %v7585 = vand.u32 %v6870, 4294901760
  %7586 = vmatmul.f32.gmra.mxu0 %v7585
  %v7587 = vpop.f32.mrf.mxu0
  %v7588 = vadd.f32 %v7526, %v7587
  %v7589 = vand.u32 %v6873, 4294901760
  %7590 = vmatmul.f32.gmra.mxu0 %v7589
  %v7591 = vpop.f32.mrf.mxu0
  %v7592 = vadd.f32 %v7532, %v7591
  %v7593 = vand.u32 %v6876, 4294901760
  %7594 = vmatmul.f32.gmra.mxu0 %v7593
  %v7595 = vpop.f32.mrf.mxu0
  %v7596 = vadd.f32 %v7538, %v7595
  %v7597 = vand.u32 %v6879, 4294901760
  %7598 = vmatmul.f32.gmra.mxu0 %v7597
  %v7599 = vpop.f32.mrf.mxu0
  %v7600 = vadd.f32 %v7544, %v7599
  %7601 = vdwg.mxu0
  %7602 = vmatpush.msra.mxu0 0.0
  %7603 = vmatpush.msra.mxu0 0.0
  %7604 = vmatpush.msra.mxu0 0.0
  %7605 = vmatpush.msra.mxu0 0.0
  %7606 = vmatpush.msra.mxu0 0.0
  %7607 = vmatpush.msra.mxu0 0.0
  %7608 = vmatpush.msra.mxu0 0.0
  %v7609 = vand.u32 %v59, 4294901760
  %7610 = vmatpush.msra.mxu0 %v7609
  %7611 = vmatpush.msra.mxu0 1.0
  %7612 = vmatpush.msra.mxu0 1.0
  %7613 = vmatpush.msra.mxu0 1.0
  %7614 = vmatpush.msra.mxu0 1.0
  %7615 = vmatpush.msra.mxu0 1.0
  %7616 = vmatpush.msra.mxu0 1.0
  %7617 = vmatpush.msra.mxu0 1.0
  %7618 = vmatpush.msra.mxu0 1.0
  %v7619 = vand.u32 %v6855, 4294901760
  %7620 = vmatmul.f32.gmra.mxu0 %v7619
  %v7621 = vpop.f32.mrf.mxu0
  %v7622 = vadd.f32 %v7568, %v7621
  %v7623 = vand.u32 %v6858, 4294901760
  %7624 = vmatmul.f32.gmra.mxu0 %v7623
  %v7625 = vpop.f32.mrf.mxu0
  %v7626 = vadd.f32 %v7572, %v7625
  %v7627 = vand.u32 %v6861, 4294901760
  %7628 = vmatmul.f32.gmra.mxu0 %v7627
  %v7629 = vpop.f32.mrf.mxu0
  %v7630 = vadd.f32 %v7576, %v7629
  %v7631 = vand.u32 %v6864, 4294901760
  %7632 = vmatmul.f32.gmra.mxu0 %v7631
  %v7633 = vpop.f32.mrf.mxu0
  %v7634 = vadd.f32 %v7580, %v7633
  %v7635 = vand.u32 %v6867, 4294901760
  %7636 = vmatmul.f32.gmra.mxu0 %v7635
  %v7637 = vpop.f32.mrf.mxu0
  %v7638 = vadd.f32 %v7584, %v7637
  %v7639 = vand.u32 %v6870, 4294901760
  %7640 = vmatmul.f32.gmra.mxu0 %v7639
  %v7641 = vpop.f32.mrf.mxu0
  %v7642 = vadd.f32 %v7588, %v7641
  %v7643 = vand.u32 %v6873, 4294901760
  %7644 = vmatmul.f32.gmra.mxu0 %v7643
  %v7645 = vpop.f32.mrf.mxu0
  %v7646 = vadd.f32 %v7592, %v7645
  %v7647 = vand.u32 %v6876, 4294901760
  %7648 = vmatmul.f32.gmra.mxu0 %v7647
  %v7649 = vpop.f32.mrf.mxu0
  %v7650 = vadd.f32 %v7596, %v7649
  %v7651 = vand.u32 %v6879, 4294901760
  %7652 = vmatmul.f32.gmra.mxu0 %v7651
  %v7653 = vpop.f32.mrf.mxu0
  %v7654 = vadd.f32 %v7600, %v7653
  %7655 = vdwg.mxu0
  %v7656 = vmul.f32 %v6802, 0.0051020407
  %v7657 = vmul.f32 %v6806, 0.0051020407
  %v7658 = vmul.f32 %v6810, 0.0051020407
  %v7659 = vmul.f32 %v6814, 0.0051020407
  %v7660 = vmul.f32 %v6818, 0.0051020407
  %v7661 = vmul.f32 %v6822, 0.0051020407
  %v7662 = vmul.f32 %v6826, 0.0051020407
  %v7663 = vmul.f32 %v6830, 0.0051020407
  %v7664 = vmul.f32 %v6834, 0.0051020407
  %v7665 = vmul.f32 %v7622, 0.0051020407
  %v7666 = vmul.f32 %v7626, 0.0051020407
  %v7667 = vmul.f32 %v7630, 0.0051020407
  %v7668 = vmul.f32 %v7634, 0.0051020407
  %v7669 = vmul.f32 %v7638, 0.0051020407
  %v7670 = vmul.f32 %v7642, 0.0051020407
  %v7671 = vmul.f32 %v7646, 0.0051020407
  %v7672 = vmul.f32 %v7650, 0.0051020407
  %v7673 = vmul.f32 %v7654, 0.0051020407
  %v7674 = vmul.f32 %v7656, %v7656
  %v7675 = vmul.f32 %v7657, %v7657
  %v7676 = vmul.f32 %v7658, %v7658
  %v7677 = vmul.f32 %v7659, %v7659
  %v7678 = vmul.f32 %v7660, %v7660
  %v7679 = vmul.f32 %v7661, %v7661
  %v7680 = vmul.f32 %v7662, %v7662
  %v7681 = vmul.f32 %v7663, %v7663
  %v7682 = vmul.f32 %v7664, %v7664
  %v7683 = vsub.f32 %v7665, %v7674
  %v7684 = vsub.f32 %v7666, %v7675
  %v7685 = vsub.f32 %v7667, %v7676
  %v7686 = vsub.f32 %v7668, %v7677
  %v7687 = vsub.f32 %v7669, %v7678
  %v7688 = vsub.f32 %v7670, %v7679
  %v7689 = vsub.f32 %v7671, %v7680
  %v7690 = vsub.f32 %v7672, %v7681
  %v7691 = vsub.f32 %v7673, %v7682
  %v7692 = vmax.f32 %v7683, 0.0
  %v7693 = vmax.f32 %v7684, 0.0
  %v7694 = vmax.f32 %v7685, 0.0
  %v7695 = vmax.f32 %v7686, 0.0
  %v7696 = vmax.f32 %v7687, 0.0
  %v7697 = vmax.f32 %v7688, 0.0
  %v7698 = vmax.f32 %v7689, 0.0
  %v7699 = vmax.f32 %v7690, 0.0
  %v7700 = vmax.f32 %v7691, 0.0
  %v7701 = vadd.f32 %v7692, 1e-05
  %v7702 = vadd.f32 %v7693, 1e-05
  %v7703 = vadd.f32 %v7694, 1e-05
  %v7704 = vadd.f32 %v7695, 1e-05
  %v7705 = vadd.f32 %v7696, 1e-05
  %v7706 = vadd.f32 %v7697, 1e-05
  %v7707 = vadd.f32 %v7698, 1e-05
  %v7708 = vadd.f32 %v7699, 1e-05
  %v7709 = vadd.f32 %v7700, 1e-05
  %v7710 = vrsqrt.pop %v7701
  %v7711 = vmul.f32 %v7710, %v7701
  %v7712 = vmul.f32 %v7711, %v7710
  %v7713 = vmul.f32 0.5, %v7712
  %v7714 = vsub.f32 1.5, %v7713
  %v7715 = vmul.f32 %v7710, %v7714
  %vm7716 = vweird.f32 %v7701
  %vm7717 = vweird.f32 %v7710
  %vm7718 = vmor %vm7716, %vm7717
  %v7719 = vsel %vm7718, %v7710, %v7715
  %v7720 = vrsqrt.pop %v7702
  %v7721 = vmul.f32 %v7720, %v7702
  %v7722 = vmul.f32 %v7721, %v7720
  %v7723 = vmul.f32 0.5, %v7722
  %v7724 = vsub.f32 1.5, %v7723
  %v7725 = vmul.f32 %v7720, %v7724
  %vm7726 = vweird.f32 %v7702
  %vm7727 = vweird.f32 %v7720
  %vm7728 = vmor %vm7726, %vm7727
  %v7729 = vsel %vm7728, %v7720, %v7725
  %v7730 = vrsqrt.pop %v7703
  %v7731 = vmul.f32 %v7730, %v7703
  %v7732 = vmul.f32 %v7731, %v7730
  %v7733 = vmul.f32 0.5, %v7732
  %v7734 = vsub.f32 1.5, %v7733
  %v7735 = vmul.f32 %v7730, %v7734
  %vm7736 = vweird.f32 %v7703
  %vm7737 = vweird.f32 %v7730
  %vm7738 = vmor %vm7736, %vm7737
  %v7739 = vsel %vm7738, %v7730, %v7735
  %v7740 = vrsqrt.pop %v7704
  %v7741 = vmul.f32 %v7740, %v7704
  %v7742 = vmul.f32 %v7741, %v7740
  %v7743 = vmul.f32 0.5, %v7742
  %v7744 = vsub.f32 1.5, %v7743
  %v7745 = vmul.f32 %v7740, %v7744
  %vm7746 = vweird.f32 %v7704
  %vm7747 = vweird.f32 %v7740
  %vm7748 = vmor %vm7746, %vm7747
  %v7749 = vsel %vm7748, %v7740, %v7745
  %v7750 = vrsqrt.pop %v7705
  %v7751 = vmul.f32 %v7750, %v7705
  %v7752 = vmul.f32 %v7751, %v7750
  %v7753 = vmul.f32 0.5, %v7752
  %v7754 = vsub.f32 1.5, %v7753
  %v7755 = vmul.f32 %v7750, %v7754
  %vm7756 = vweird.f32 %v7705
  %vm7757 = vweird.f32 %v7750
  %vm7758 = vmor %vm7756, %vm7757
  %v7759 = vsel %vm7758, %v7750, %v7755
  %v7760 = vrsqrt.pop %v7706
  %v7761 = vmul.f32 %v7760, %v7706
  %v7762 = vmul.f32 %v7761, %v7760
  %v7763 = vmul.f32 0.5, %v7762
  %v7764 = vsub.f32 1.5, %v7763
  %v7765 = vmul.f32 %v7760, %v7764
  %vm7766 = vweird.f32 %v7706
  %vm7767 = vweird.f32 %v7760
  %vm7768 = vmor %vm7766, %vm7767
  %v7769 = vsel %vm7768, %v7760, %v7765
  %v7770 = vrsqrt.pop %v7707
  %v7771 = vmul.f32 %v7770, %v7707
  %v7772 = vmul.f32 %v7771, %v7770
  %v7773 = vmul.f32 0.5, %v7772
  %v7774 = vsub.f32 1.5, %v7773
  %v7775 = vmul.f32 %v7770, %v7774
  %vm7776 = vweird.f32 %v7707
  %vm7777 = vweird.f32 %v7770
  %vm7778 = vmor %vm7776, %vm7777
  %v7779 = vsel %vm7778, %v7770, %v7775
  %v7780 = vrsqrt.pop %v7708
  %v7781 = vmul.f32 %v7780, %v7708
  %v7782 = vmul.f32 %v7781, %v7780
  %v7783 = vmul.f32 0.5, %v7782
  %v7784 = vsub.f32 1.5, %v7783
  %v7785 = vmul.f32 %v7780, %v7784
  %vm7786 = vweird.f32 %v7708
  %vm7787 = vweird.f32 %v7780
  %vm7788 = vmor %vm7786, %vm7787
  %v7789 = vsel %vm7788, %v7780, %v7785
  %v7790 = vrsqrt.pop %v7709
  %v7791 = vmul.f32 %v7790, %v7709
  %v7792 = vmul.f32 %v7791, %v7790
  %v7793 = vmul.f32 0.5, %v7792
  %v7794 = vsub.f32 1.5, %v7793
  %v7795 = vmul.f32 %v7790, %v7794
  %vm7796 = vweird.f32 %v7709
  %vm7797 = vweird.f32 %v7790
  %vm7798 = vmor %vm7796, %vm7797
  %v7799 = vsel %vm7798, %v7790, %v7795
  %v7800 = vld [vmem:[%s1 + $0xd8] sm:$0xff]
  %v7801 = vld [vmem:[%s1 + $0xe0] sm:$0xff]
  %v7802 = vld [vmem:[%s1 + $0xe8] sm:$0xff]
  %v7803 = vld [vmem:[%s1 + $0xf0] sm:$0xff]
  %v7804 = vld [vmem:[%s1 + $0xf8] sm:$0xff]
  %v7805 = vld [vmem:[%s1 + $0x100] sm:$0xff]
  %v7806 = vld [vmem:[%s1 + $0x108] sm:$0xff]
  %v7807 = vld [vmem:[%s1 + $0x110] sm:$0xff]
  %v7808 = vld [vmem:[%s1 + $0x118] sm:$0xff]
  %v7809 = vmul.f32 %v7800, %v7719
  %v7810 = vmul.f32 %v7801, %v7729
  %v7811 = vmul.f32 %v7802, %v7739
  %v7812 = vmul.f32 %v7803, %v7749
  %v7813 = vmul.f32 %v7804, %v7759
  %v7814 = vmul.f32 %v7805, %v7769
  %v7815 = vmul.f32 %v7806, %v7779
  %v7816 = vmul.f32 %v7807, %v7789
  %v7817 = vmul.f32 %v7808, %v7799
  %v7818 = vmul.f32 %v7656, %v7809
  %v7819 = vmul.f32 %v7657, %v7810
  %v7820 = vmul.f32 %v7658, %v7811
  %v7821 = vmul.f32 %v7659, %v7812
  %v7822 = vmul.f32 %v7660, %v7813
  %v7823 = vmul.f32 %v7661, %v7814
  %v7824 = vmul.f32 %v7662, %v7815
  %v7825 = vmul.f32 %v7663, %v7816
  %v7826 = vmul.f32 %v7664, %v7817
  %7836 = vrot.lane.b32.xlu0 %v7818, 1
  %v7837 = vpop.permute.xlu0 %7836
  %7838 = vrot.lane.b32.xlu0 %v7819, 1
  %v7839 = vpop.permute.xlu0 %7838
  %7840 = vrot.lane.b32.xlu0 %v7820, 1
  %v7841 = vpop.permute.xlu0 %7840
  %7842 = vrot.lane.b32.xlu0 %v7821, 1
  %v7843 = vpop.permute.xlu0 %7842
  %7844 = vrot.lane.b32.xlu0 %v7822, 1
  %v7845 = vpop.permute.xlu0 %7844
  %7846 = vrot.lane.b32.xlu0 %v7823, 1
  %v7847 = vpop.permute.xlu0 %7846
  %7848 = vrot.lane.b32.xlu0 %v7824, 1
  %v7849 = vpop.permute.xlu0 %7848
  %7850 = vrot.lane.b32.xlu0 %v7825, 1
  %v7851 = vpop.permute.xlu0 %7850
  %7852 = vrot.lane.b32.xlu0 %v7826, 1
  %v7853 = vpop.permute.xlu0 %7852
  %v7863 = vsub.f32 %v7800, %v7837
  %v7864 = vsub.f32 %v7801, %v7839
  %v7865 = vsub.f32 %v7802, %v7841
  %v7866 = vsub.f32 %v7803, %v7843
  %v7867 = vsub.f32 %v7804, %v7845
  %v7868 = vsub.f32 %v7805, %v7847
  %v7869 = vsub.f32 %v7806, %v7849
  %v7870 = vsub.f32 %v7807, %v7851
  %v7871 = vsub.f32 %v7808, %v7853
  %7873 = vset.pattern.permute.xlu0 0
  %7874 = vperm.xlu0 %7873, %v7809
  %v7875 = vpop.permute.xlu0 %7874
  %7878 = vset.pattern.permute.xlu0 0
  %7879 = vperm.xlu0 %7878, %v7810
  %v7880 = vpop.permute.xlu0 %7879
  %7883 = vset.pattern.permute.xlu0 0
  %7884 = vperm.xlu0 %7883, %v7811
  %v7885 = vpop.permute.xlu0 %7884
  %7888 = vset.pattern.permute.xlu0 0
  %7889 = vperm.xlu0 %7888, %v7812
  %v7890 = vpop.permute.xlu0 %7889
  %7893 = vset.pattern.permute.xlu0 0
  %7894 = vperm.xlu0 %7893, %v7813
  %v7895 = vpop.permute.xlu0 %7894
  %7898 = vset.pattern.permute.xlu0 0
  %7899 = vperm.xlu0 %7898, %v7814
  %v7900 = vpop.permute.xlu0 %7899
  %7903 = vset.pattern.permute.xlu0 0
  %7904 = vperm.xlu0 %7903, %v7815
  %v7905 = vpop.permute.xlu0 %7904
  %7908 = vset.pattern.permute.xlu0 0
  %7909 = vperm.xlu0 %7908, %v7816
  %v7910 = vpop.permute.xlu0 %7909
  %7913 = vset.pattern.permute.xlu0 0
  %7914 = vperm.xlu0 %7913, %v7817
  %v7915 = vpop.permute.xlu0 %7914
  %v7917 = vmul.f32 %v6016, %v7875
  %v7918 = vmul.f32 %v6017, %v7875
  %v7919 = vmul.f32 %v6018, %v7880
  %v7920 = vmul.f32 %v6019, %v7880
  %v7921 = vmul.f32 %v6020, %v7885
  %v7922 = vmul.f32 %v6021, %v7885
  %v7923 = vmul.f32 %v6022, %v7890
  %v7924 = vmul.f32 %v6023, %v7890
  %v7925 = vmul.f32 %v6024, %v7895
  %v7926 = vmul.f32 %v6025, %v7895
  %v7927 = vmul.f32 %v6026, %v7900
  %v7928 = vmul.f32 %v6027, %v7900
  %v7929 = vmul.f32 %v6028, %v7905
  %v7930 = vmul.f32 %v6029, %v7905
  %v7931 = vmul.f32 %v6030, %v7910
  %v7932 = vmul.f32 %v6031, %v7910
  %v7933 = vmul.f32 %v6032, %v7915
  %v7934 = vmul.f32 %v6033, %v7915
  %7936 = vset.pattern.permute.xlu0 1
  %7937 = vperm.xlu0 %7936, %v7863
  %v7938 = vpop.permute.xlu0 %7937
  %7941 = vset.pattern.permute.xlu0 1
  %7942 = vperm.xlu0 %7941, %v7864
  %v7943 = vpop.permute.xlu0 %7942
  %7946 = vset.pattern.permute.xlu0 1
  %7947 = vperm.xlu0 %7946, %v7865
  %v7948 = vpop.permute.xlu0 %7947
  %7951 = vset.pattern.permute.xlu0 1
  %7952 = vperm.xlu0 %7951, %v7866
  %v7953 = vpop.permute.xlu0 %7952
  %7956 = vset.pattern.permute.xlu0 1
  %7957 = vperm.xlu0 %7956, %v7867
  %v7958 = vpop.permute.xlu0 %7957
  %7961 = vset.pattern.permute.xlu0 1
  %7962 = vperm.xlu0 %7961, %v7868
  %v7963 = vpop.permute.xlu0 %7962
  %7966 = vset.pattern.permute.xlu0 1
  %7967 = vperm.xlu0 %7966, %v7869
  %v7968 = vpop.permute.xlu0 %7967
  %7971 = vset.pattern.permute.xlu0 1
  %7972 = vperm.xlu0 %7971, %v7870
  %v7973 = vpop.permute.xlu0 %7972
  %7976 = vset.pattern.permute.xlu0 1
  %7977 = vperm.xlu0 %7976, %v7871
  %v7978 = vpop.permute.xlu0 %7977
  %v7980 = vadd.f32 %v7917, %v7938
  %v7981 = vadd.f32 %v7918, %v7938
  %v7982 = vadd.f32 %v7919, %v7943
  %v7983 = vadd.f32 %v7920, %v7943
  %v7984 = vadd.f32 %v7921, %v7948
  %v7985 = vadd.f32 %v7922, %v7948
  %v7986 = vadd.f32 %v7923, %v7953
  %v7987 = vadd.f32 %v7924, %v7953
  %v7988 = vadd.f32 %v7925, %v7958
  %v7989 = vadd.f32 %v7926, %v7958
  %v7990 = vadd.f32 %v7927, %v7963
  %v7991 = vadd.f32 %v7928, %v7963
  %v7992 = vadd.f32 %v7929, %v7968
  %v7993 = vadd.f32 %v7930, %v7968
  %v7994 = vadd.f32 %v7931, %v7973
  %v7995 = vadd.f32 %v7932, %v7973
  %v7996 = vadd.f32 %v7933, %v7978
  %v7997 = vadd.f32 %v7934, %v7978
  %7998 = vst [vmem:[%s2 + $0x1b0] sm:$0xff] %v7980
  %7999 = vst.msk [vmem:[%s2 + $0x1b8] sm:$0xff] %vm29, %v7981
  %8000 = vst [vmem:[%s2 + $0x1c0] sm:$0xff] %v7982
  %8001 = vst.msk [vmem:[%s2 + $0x1c8] sm:$0xff] %vm29, %v7983
  %8002 = vst [vmem:[%s2 + $0x1d0] sm:$0xff] %v7984
  %8003 = vst.msk [vmem:[%s2 + $0x1d8] sm:$0xff] %vm29, %v7985
  %8004 = vst [vmem:[%s2 + $0x1e0] sm:$0xff] %v7986
  %8005 = vst.msk [vmem:[%s2 + $0x1e8] sm:$0xff] %vm29, %v7987
  %8006 = vst [vmem:[%s2 + $0x1f0] sm:$0xff] %v7988
  %8007 = vst.msk [vmem:[%s2 + $0x1f8] sm:$0xff] %vm29, %v7989
  %8008 = vst [vmem:[%s2 + $0x200] sm:$0xff] %v7990
  %8009 = vst.msk [vmem:[%s2 + $0x208] sm:$0xff] %vm29, %v7991
  %8010 = vst [vmem:[%s2 + $0x210] sm:$0xff] %v7992
  %8011 = vst.msk [vmem:[%s2 + $0x218] sm:$0xff] %vm29, %v7993
  %8012 = vst [vmem:[%s2 + $0x220] sm:$0xff] %v7994
  %8013 = vst.msk [vmem:[%s2 + $0x228] sm:$0xff] %vm29, %v7995
  %8014 = vst [vmem:[%s2 + $0x230] sm:$0xff] %v7996
  %8015 = vst.msk [vmem:[%s2 + $0x238] sm:$0xff] %vm29, %v7997
  %v8016 = vld [vmem:[%s0 + $0x240] sm:$0xff]
  %v8017 = vld [vmem:[%s0 + $0x248] sm:$0xff]
  %v8018 = vld [vmem:[%s0 + $0x250] sm:$0xff]
  %v8019 = vld [vmem:[%s0 + $0x258] sm:$0xff]
  %v8020 = vld [vmem:[%s0 + $0x260] sm:$0xff]
  %v8021 = vld [vmem:[%s0 + $0x268] sm:$0xff]
  %v8022 = vld [vmem:[%s0 + $0x270] sm:$0xff]
  %v8023 = vld [vmem:[%s0 + $0x278] sm:$0xff]
  %v8024 = vld [vmem:[%s0 + $0x280] sm:$0xff]
  %v8025 = vld [vmem:[%s0 + $0x288] sm:$0xff]
  %v8026 = vld [vmem:[%s0 + $0x290] sm:$0xff]
  %v8027 = vld [vmem:[%s0 + $0x298] sm:$0xff]
  %v8028 = vld [vmem:[%s0 + $0x2a0] sm:$0xff]
  %v8029 = vld [vmem:[%s0 + $0x2a8] sm:$0xff]
  %v8030 = vld [vmem:[%s0 + $0x2b0] sm:$0xff]
  %v8031 = vld [vmem:[%s0 + $0x2b8] sm:$0xff]
  %v8032 = vld [vmem:[%s0 + $0x2c0] sm:$0xff]
  %v8033 = vld [vmem:[%s0 + $0x2c8] sm:$0xff]
  %v8035 = vsel %vm29, %v8017, 0
  %v8038 = vsel %vm29, %v8019, 0
  %v8041 = vsel %vm29, %v8021, 0
  %v8044 = vsel %vm29, %v8023, 0
  %v8047 = vsel %vm29, %v8025, 0
  %v8050 = vsel %vm29, %v8027, 0
  %v8053 = vsel %vm29, %v8029, 0
  %v8056 = vsel %vm29, %v8031, 0
  %v8059 = vsel %vm29, %v8033, 0
  %8061 = vmatpush.msra.mxu0 1.0
  %8062 = vmatpush.msra.mxu0 1.0
  %8063 = vmatpush.msra.mxu0 1.0
  %8064 = vmatpush.msra.mxu0 1.0
  %8065 = vmatpush.msra.mxu0 1.0
  %8066 = vmatpush.msra.mxu0 1.0
  %8067 = vmatpush.msra.mxu0 1.0
  %8068 = vmatpush.msra.mxu0 1.0
  %8069 = vmatpush.msra.mxu0 1.0
  %8070 = vmatpush.msra.mxu0 1.0
  %8071 = vmatpush.msra.mxu0 1.0
  %8072 = vmatpush.msra.mxu0 1.0
  %8073 = vmatpush.msra.mxu0 1.0
  %8074 = vmatpush.msra.mxu0 1.0
  %8075 = vmatpush.msra.mxu0 1.0
  %8076 = vmatpush.msra.mxu0 1.0
  %v8077 = vand.u32 %v8016, 4294901760
  %v8078 = vsub.f32 %v8016, %v8077
  %v8079 = vand.u32 %v8078, 4294901760
  %v8080 = vsub.f32 %v8078, %v8079
  %v8081 = vand.u32 %v8080, 4294901760
  %8082 = vmatmul.f32.gmra.mxu0 %v8081
  %v8083 = vpop.f32.mrf.mxu0
  %v8084 = vadd.f32 0.0, %v8083
  %v8085 = vand.u32 %v8018, 4294901760
  %v8086 = vsub.f32 %v8018, %v8085
  %v8087 = vand.u32 %v8086, 4294901760
  %v8088 = vsub.f32 %v8086, %v8087
  %v8089 = vand.u32 %v8088, 4294901760
  %8090 = vmatmul.f32.gmra.mxu0 %v8089
  %v8091 = vpop.f32.mrf.mxu0
  %v8092 = vadd.f32 0.0, %v8091
  %v8093 = vand.u32 %v8020, 4294901760
  %v8094 = vsub.f32 %v8020, %v8093
  %v8095 = vand.u32 %v8094, 4294901760
  %v8096 = vsub.f32 %v8094, %v8095
  %v8097 = vand.u32 %v8096, 4294901760
  %8098 = vmatmul.f32.gmra.mxu0 %v8097
  %v8099 = vpop.f32.mrf.mxu0
  %v8100 = vadd.f32 0.0, %v8099
  %v8101 = vand.u32 %v8022, 4294901760
  %v8102 = vsub.f32 %v8022, %v8101
  %v8103 = vand.u32 %v8102, 4294901760
  %v8104 = vsub.f32 %v8102, %v8103
  %v8105 = vand.u32 %v8104, 4294901760
  %8106 = vmatmul.f32.gmra.mxu0 %v8105
  %v8107 = vpop.f32.mrf.mxu0
  %v8108 = vadd.f32 0.0, %v8107
  %v8109 = vand.u32 %v8024, 4294901760
  %v8110 = vsub.f32 %v8024, %v8109
  %v8111 = vand.u32 %v8110, 4294901760
  %v8112 = vsub.f32 %v8110, %v8111
  %v8113 = vand.u32 %v8112, 4294901760
  %8114 = vmatmul.f32.gmra.mxu0 %v8113
  %v8115 = vpop.f32.mrf.mxu0
  %v8116 = vadd.f32 0.0, %v8115
  %v8117 = vand.u32 %v8026, 4294901760
  %v8118 = vsub.f32 %v8026, %v8117
  %v8119 = vand.u32 %v8118, 4294901760
  %v8120 = vsub.f32 %v8118, %v8119
  %v8121 = vand.u32 %v8120, 4294901760
  %8122 = vmatmul.f32.gmra.mxu0 %v8121
  %v8123 = vpop.f32.mrf.mxu0
  %v8124 = vadd.f32 0.0, %v8123
  %v8125 = vand.u32 %v8028, 4294901760
  %v8126 = vsub.f32 %v8028, %v8125
  %v8127 = vand.u32 %v8126, 4294901760
  %v8128 = vsub.f32 %v8126, %v8127
  %v8129 = vand.u32 %v8128, 4294901760
  %8130 = vmatmul.f32.gmra.mxu0 %v8129
  %v8131 = vpop.f32.mrf.mxu0
  %v8132 = vadd.f32 0.0, %v8131
  %v8133 = vand.u32 %v8030, 4294901760
  %v8134 = vsub.f32 %v8030, %v8133
  %v8135 = vand.u32 %v8134, 4294901760
  %v8136 = vsub.f32 %v8134, %v8135
  %v8137 = vand.u32 %v8136, 4294901760
  %8138 = vmatmul.f32.gmra.mxu0 %v8137
  %v8139 = vpop.f32.mrf.mxu0
  %v8140 = vadd.f32 0.0, %v8139
  %v8141 = vand.u32 %v8032, 4294901760
  %v8142 = vsub.f32 %v8032, %v8141
  %v8143 = vand.u32 %v8142, 4294901760
  %v8144 = vsub.f32 %v8142, %v8143
  %v8145 = vand.u32 %v8144, 4294901760
  %8146 = vmatmul.f32.gmra.mxu0 %v8145
  %v8147 = vpop.f32.mrf.mxu0
  %v8148 = vadd.f32 0.0, %v8147
  %8149 = vdwg.mxu0
  %8150 = vmatpush.msra.mxu0 0.0
  %8151 = vmatpush.msra.mxu0 0.0
  %8152 = vmatpush.msra.mxu0 0.0
  %8153 = vmatpush.msra.mxu0 0.0
  %8154 = vmatpush.msra.mxu0 0.0
  %8155 = vmatpush.msra.mxu0 0.0
  %8156 = vmatpush.msra.mxu0 0.0
  %8157 = vmatpush.msra.mxu0 0.0
  %8158 = vmatpush.msra.mxu0 0.0
  %8159 = vmatpush.msra.mxu0 0.0
  %8160 = vmatpush.msra.mxu0 0.0
  %8161 = vmatpush.msra.mxu0 0.0
  %8162 = vmatpush.msra.mxu0 0.0
  %8163 = vmatpush.msra.mxu0 0.0
  %8164 = vmatpush.msra.mxu0 0.0
  %8165 = vmatpush.msra.mxu0 0.0
  %v8166 = vand.u32 %v8016, 4294901760
  %8167 = vmatmul.f32.gmra.mxu0 %v8166
  %v8168 = vpop.f32.mrf.mxu0
  %v8169 = vadd.f32 %v8084, %v8168
  %v8170 = vand.u32 %v8018, 4294901760
  %8171 = vmatmul.f32.gmra.mxu0 %v8170
  %v8172 = vpop.f32.mrf.mxu0
  %v8173 = vadd.f32 %v8092, %v8172
  %v8174 = vand.u32 %v8020, 4294901760
  %8175 = vmatmul.f32.gmra.mxu0 %v8174
  %v8176 = vpop.f32.mrf.mxu0
  %v8177 = vadd.f32 %v8100, %v8176
  %v8178 = vand.u32 %v8022, 4294901760
  %8179 = vmatmul.f32.gmra.mxu0 %v8178
  %v8180 = vpop.f32.mrf.mxu0
  %v8181 = vadd.f32 %v8108, %v8180
  %v8182 = vand.u32 %v8024, 4294901760
  %8183 = vmatmul.f32.gmra.mxu0 %v8182
  %v8184 = vpop.f32.mrf.mxu0
  %v8185 = vadd.f32 %v8116, %v8184
  %v8186 = vand.u32 %v8026, 4294901760
  %8187 = vmatmul.f32.gmra.mxu0 %v8186
  %v8188 = vpop.f32.mrf.mxu0
  %v8189 = vadd.f32 %v8124, %v8188
  %v8190 = vand.u32 %v8028, 4294901760
  %8191 = vmatmul.f32.gmra.mxu0 %v8190
  %v8192 = vpop.f32.mrf.mxu0
  %v8193 = vadd.f32 %v8132, %v8192
  %v8194 = vand.u32 %v8030, 4294901760
  %8195 = vmatmul.f32.gmra.mxu0 %v8194
  %v8196 = vpop.f32.mrf.mxu0
  %v8197 = vadd.f32 %v8140, %v8196
  %v8198 = vand.u32 %v8032, 4294901760
  %8199 = vmatmul.f32.gmra.mxu0 %v8198
  %v8200 = vpop.f32.mrf.mxu0
  %v8201 = vadd.f32 %v8148, %v8200
  %8202 = vdwg.mxu0
  %8203 = vmatpush.msra.mxu0 0.0
  %8204 = vmatpush.msra.mxu0 0.0
  %8205 = vmatpush.msra.mxu0 0.0
  %8206 = vmatpush.msra.mxu0 0.0
  %8207 = vmatpush.msra.mxu0 0.0
  %8208 = vmatpush.msra.mxu0 0.0
  %8209 = vmatpush.msra.mxu0 0.0
  %8210 = vmatpush.msra.mxu0 0.0
  %8211 = vmatpush.msra.mxu0 0.0
  %8212 = vmatpush.msra.mxu0 0.0
  %8213 = vmatpush.msra.mxu0 0.0
  %8214 = vmatpush.msra.mxu0 0.0
  %8215 = vmatpush.msra.mxu0 0.0
  %8216 = vmatpush.msra.mxu0 0.0
  %8217 = vmatpush.msra.mxu0 0.0
  %8218 = vmatpush.msra.mxu0 0.0
  %v8219 = vand.u32 %v8016, 4294901760
  %v8220 = vsub.f32 %v8016, %v8219
  %8221 = vmatmul.f32.gmra.mxu0 %v8220
  %v8222 = vpop.f32.mrf.mxu0
  %v8223 = vadd.f32 %v8169, %v8222
  %v8224 = vand.u32 %v8018, 4294901760
  %v8225 = vsub.f32 %v8018, %v8224
  %8226 = vmatmul.f32.gmra.mxu0 %v8225
  %v8227 = vpop.f32.mrf.mxu0
  %v8228 = vadd.f32 %v8173, %v8227
  %v8229 = vand.u32 %v8020, 4294901760
  %v8230 = vsub.f32 %v8020, %v8229
  %8231 = vmatmul.f32.gmra.mxu0 %v8230
  %v8232 = vpop.f32.mrf.mxu0
  %v8233 = vadd.f32 %v8177, %v8232
  %v8234 = vand.u32 %v8022, 4294901760
  %v8235 = vsub.f32 %v8022, %v8234
  %8236 = vmatmul.f32.gmra.mxu0 %v8235
  %v8237 = vpop.f32.mrf.mxu0
  %v8238 = vadd.f32 %v8181, %v8237
  %v8239 = vand.u32 %v8024, 4294901760
  %v8240 = vsub.f32 %v8024, %v8239
  %8241 = vmatmul.f32.gmra.mxu0 %v8240
  %v8242 = vpop.f32.mrf.mxu0
  %v8243 = vadd.f32 %v8185, %v8242
  %v8244 = vand.u32 %v8026, 4294901760
  %v8245 = vsub.f32 %v8026, %v8244
  %8246 = vmatmul.f32.gmra.mxu0 %v8245
  %v8247 = vpop.f32.mrf.mxu0
  %v8248 = vadd.f32 %v8189, %v8247
  %v8249 = vand.u32 %v8028, 4294901760
  %v8250 = vsub.f32 %v8028, %v8249
  %8251 = vmatmul.f32.gmra.mxu0 %v8250
  %v8252 = vpop.f32.mrf.mxu0
  %v8253 = vadd.f32 %v8193, %v8252
  %v8254 = vand.u32 %v8030, 4294901760
  %v8255 = vsub.f32 %v8030, %v8254
  %8256 = vmatmul.f32.gmra.mxu0 %v8255
  %v8257 = vpop.f32.mrf.mxu0
  %v8258 = vadd.f32 %v8197, %v8257
  %v8259 = vand.u32 %v8032, 4294901760
  %v8260 = vsub.f32 %v8032, %v8259
  %8261 = vmatmul.f32.gmra.mxu0 %v8260
  %v8262 = vpop.f32.mrf.mxu0
  %v8263 = vadd.f32 %v8201, %v8262
  %8264 = vdwg.mxu0
  %8265 = vmatpush.msra.mxu0 1.0
  %8266 = vmatpush.msra.mxu0 1.0
  %8267 = vmatpush.msra.mxu0 1.0
  %8268 = vmatpush.msra.mxu0 1.0
  %8269 = vmatpush.msra.mxu0 1.0
  %8270 = vmatpush.msra.mxu0 1.0
  %8271 = vmatpush.msra.mxu0 1.0
  %8272 = vmatpush.msra.mxu0 1.0
  %8273 = vmatpush.msra.mxu0 1.0
  %8274 = vmatpush.msra.mxu0 1.0
  %8275 = vmatpush.msra.mxu0 1.0
  %8276 = vmatpush.msra.mxu0 1.0
  %8277 = vmatpush.msra.mxu0 1.0
  %8278 = vmatpush.msra.mxu0 1.0
  %8279 = vmatpush.msra.mxu0 1.0
  %8280 = vmatpush.msra.mxu0 1.0
  %v8281 = vand.u32 %v8016, 4294901760
  %v8282 = vsub.f32 %v8016, %v8281
  %v8283 = vand.u32 %v8282, 4294901760
  %8284 = vmatmul.f32.gmra.mxu0 %v8283
  %v8285 = vpop.f32.mrf.mxu0
  %v8286 = vadd.f32 %v8223, %v8285
  %v8287 = vand.u32 %v8018, 4294901760
  %v8288 = vsub.f32 %v8018, %v8287
  %v8289 = vand.u32 %v8288, 4294901760
  %8290 = vmatmul.f32.gmra.mxu0 %v8289
  %v8291 = vpop.f32.mrf.mxu0
  %v8292 = vadd.f32 %v8228, %v8291
  %v8293 = vand.u32 %v8020, 4294901760
  %v8294 = vsub.f32 %v8020, %v8293
  %v8295 = vand.u32 %v8294, 4294901760
  %8296 = vmatmul.f32.gmra.mxu0 %v8295
  %v8297 = vpop.f32.mrf.mxu0
  %v8298 = vadd.f32 %v8233, %v8297
  %v8299 = vand.u32 %v8022, 4294901760
  %v8300 = vsub.f32 %v8022, %v8299
  %v8301 = vand.u32 %v8300, 4294901760
  %8302 = vmatmul.f32.gmra.mxu0 %v8301
  %v8303 = vpop.f32.mrf.mxu0
  %v8304 = vadd.f32 %v8238, %v8303
  %v8305 = vand.u32 %v8024, 4294901760
  %v8306 = vsub.f32 %v8024, %v8305
  %v8307 = vand.u32 %v8306, 4294901760
  %8308 = vmatmul.f32.gmra.mxu0 %v8307
  %v8309 = vpop.f32.mrf.mxu0
  %v8310 = vadd.f32 %v8243, %v8309
  %v8311 = vand.u32 %v8026, 4294901760
  %v8312 = vsub.f32 %v8026, %v8311
  %v8313 = vand.u32 %v8312, 4294901760
  %8314 = vmatmul.f32.gmra.mxu0 %v8313
  %v8315 = vpop.f32.mrf.mxu0
  %v8316 = vadd.f32 %v8248, %v8315
  %v8317 = vand.u32 %v8028, 4294901760
  %v8318 = vsub.f32 %v8028, %v8317
  %v8319 = vand.u32 %v8318, 4294901760
  %8320 = vmatmul.f32.gmra.mxu0 %v8319
  %v8321 = vpop.f32.mrf.mxu0
  %v8322 = vadd.f32 %v8253, %v8321
  %v8323 = vand.u32 %v8030, 4294901760
  %v8324 = vsub.f32 %v8030, %v8323
  %v8325 = vand.u32 %v8324, 4294901760
  %8326 = vmatmul.f32.gmra.mxu0 %v8325
  %v8327 = vpop.f32.mrf.mxu0
  %v8328 = vadd.f32 %v8258, %v8327
  %v8329 = vand.u32 %v8032, 4294901760
  %v8330 = vsub.f32 %v8032, %v8329
  %v8331 = vand.u32 %v8330, 4294901760
  %8332 = vmatmul.f32.gmra.mxu0 %v8331
  %v8333 = vpop.f32.mrf.mxu0
  %v8334 = vadd.f32 %v8263, %v8333
  %8335 = vdwg.mxu0
  %8336 = vmatpush.msra.mxu0 0.0
  %8337 = vmatpush.msra.mxu0 0.0
  %8338 = vmatpush.msra.mxu0 0.0
  %8339 = vmatpush.msra.mxu0 0.0
  %8340 = vmatpush.msra.mxu0 0.0
  %8341 = vmatpush.msra.mxu0 0.0
  %8342 = vmatpush.msra.mxu0 0.0
  %8343 = vmatpush.msra.mxu0 0.0
  %8344 = vmatpush.msra.mxu0 0.0
  %8345 = vmatpush.msra.mxu0 0.0
  %8346 = vmatpush.msra.mxu0 0.0
  %8347 = vmatpush.msra.mxu0 0.0
  %8348 = vmatpush.msra.mxu0 0.0
  %8349 = vmatpush.msra.mxu0 0.0
  %8350 = vmatpush.msra.mxu0 0.0
  %8351 = vmatpush.msra.mxu0 0.0
  %v8352 = vand.u32 %v8016, 4294901760
  %8353 = vmatmul.f32.gmra.mxu0 %v8352
  %v8354 = vpop.f32.mrf.mxu0
  %v8355 = vadd.f32 %v8286, %v8354
  %v8356 = vand.u32 %v8018, 4294901760
  %8357 = vmatmul.f32.gmra.mxu0 %v8356
  %v8358 = vpop.f32.mrf.mxu0
  %v8359 = vadd.f32 %v8292, %v8358
  %v8360 = vand.u32 %v8020, 4294901760
  %8361 = vmatmul.f32.gmra.mxu0 %v8360
  %v8362 = vpop.f32.mrf.mxu0
  %v8363 = vadd.f32 %v8298, %v8362
  %v8364 = vand.u32 %v8022, 4294901760
  %8365 = vmatmul.f32.gmra.mxu0 %v8364
  %v8366 = vpop.f32.mrf.mxu0
  %v8367 = vadd.f32 %v8304, %v8366
  %v8368 = vand.u32 %v8024, 4294901760
  %8369 = vmatmul.f32.gmra.mxu0 %v8368
  %v8370 = vpop.f32.mrf.mxu0
  %v8371 = vadd.f32 %v8310, %v8370
  %v8372 = vand.u32 %v8026, 4294901760
  %8373 = vmatmul.f32.gmra.mxu0 %v8372
  %v8374 = vpop.f32.mrf.mxu0
  %v8375 = vadd.f32 %v8316, %v8374
  %v8376 = vand.u32 %v8028, 4294901760
  %8377 = vmatmul.f32.gmra.mxu0 %v8376
  %v8378 = vpop.f32.mrf.mxu0
  %v8379 = vadd.f32 %v8322, %v8378
  %v8380 = vand.u32 %v8030, 4294901760
  %8381 = vmatmul.f32.gmra.mxu0 %v8380
  %v8382 = vpop.f32.mrf.mxu0
  %v8383 = vadd.f32 %v8328, %v8382
  %v8384 = vand.u32 %v8032, 4294901760
  %8385 = vmatmul.f32.gmra.mxu0 %v8384
  %v8386 = vpop.f32.mrf.mxu0
  %v8387 = vadd.f32 %v8334, %v8386
  %8388 = vdwg.mxu0
  %8389 = vmatpush.msra.mxu0 1.0
  %8390 = vmatpush.msra.mxu0 1.0
  %8391 = vmatpush.msra.mxu0 1.0
  %8392 = vmatpush.msra.mxu0 1.0
  %8393 = vmatpush.msra.mxu0 1.0
  %8394 = vmatpush.msra.mxu0 1.0
  %8395 = vmatpush.msra.mxu0 1.0
  %8396 = vmatpush.msra.mxu0 1.0
  %8397 = vmatpush.msra.mxu0 1.0
  %8398 = vmatpush.msra.mxu0 1.0
  %8399 = vmatpush.msra.mxu0 1.0
  %8400 = vmatpush.msra.mxu0 1.0
  %8401 = vmatpush.msra.mxu0 1.0
  %8402 = vmatpush.msra.mxu0 1.0
  %8403 = vmatpush.msra.mxu0 1.0
  %8404 = vmatpush.msra.mxu0 1.0
  %v8405 = vand.u32 %v8016, 4294901760
  %8406 = vmatmul.f32.gmra.mxu0 %v8405
  %v8407 = vpop.f32.mrf.mxu0
  %v8408 = vadd.f32 %v8355, %v8407
  %v8409 = vand.u32 %v8018, 4294901760
  %8410 = vmatmul.f32.gmra.mxu0 %v8409
  %v8411 = vpop.f32.mrf.mxu0
  %v8412 = vadd.f32 %v8359, %v8411
  %v8413 = vand.u32 %v8020, 4294901760
  %8414 = vmatmul.f32.gmra.mxu0 %v8413
  %v8415 = vpop.f32.mrf.mxu0
  %v8416 = vadd.f32 %v8363, %v8415
  %v8417 = vand.u32 %v8022, 4294901760
  %8418 = vmatmul.f32.gmra.mxu0 %v8417
  %v8419 = vpop.f32.mrf.mxu0
  %v8420 = vadd.f32 %v8367, %v8419
  %v8421 = vand.u32 %v8024, 4294901760
  %8422 = vmatmul.f32.gmra.mxu0 %v8421
  %v8423 = vpop.f32.mrf.mxu0
  %v8424 = vadd.f32 %v8371, %v8423
  %v8425 = vand.u32 %v8026, 4294901760
  %8426 = vmatmul.f32.gmra.mxu0 %v8425
  %v8427 = vpop.f32.mrf.mxu0
  %v8428 = vadd.f32 %v8375, %v8427
  %v8429 = vand.u32 %v8028, 4294901760
  %8430 = vmatmul.f32.gmra.mxu0 %v8429
  %v8431 = vpop.f32.mrf.mxu0
  %v8432 = vadd.f32 %v8379, %v8431
  %v8433 = vand.u32 %v8030, 4294901760
  %8434 = vmatmul.f32.gmra.mxu0 %v8433
  %v8435 = vpop.f32.mrf.mxu0
  %v8436 = vadd.f32 %v8383, %v8435
  %v8437 = vand.u32 %v8032, 4294901760
  %8438 = vmatmul.f32.gmra.mxu0 %v8437
  %v8439 = vpop.f32.mrf.mxu0
  %v8440 = vadd.f32 %v8387, %v8439
  %8441 = vdwg.mxu0
  %8442 = vmatpush.msra.mxu0 0.0
  %8443 = vmatpush.msra.mxu0 0.0
  %8444 = vmatpush.msra.mxu0 0.0
  %8445 = vmatpush.msra.mxu0 0.0
  %8446 = vmatpush.msra.mxu0 0.0
  %8447 = vmatpush.msra.mxu0 0.0
  %8448 = vmatpush.msra.mxu0 0.0
  %v8449 = vand.u32 %v59, 4294901760
  %8450 = vmatpush.msra.mxu0 %v8449
  %8451 = vmatpush.msra.mxu0 1.0
  %8452 = vmatpush.msra.mxu0 1.0
  %8453 = vmatpush.msra.mxu0 1.0
  %8454 = vmatpush.msra.mxu0 1.0
  %8455 = vmatpush.msra.mxu0 1.0
  %8456 = vmatpush.msra.mxu0 1.0
  %8457 = vmatpush.msra.mxu0 1.0
  %8458 = vmatpush.msra.mxu0 1.0
  %v8459 = vand.u32 %v8035, 4294901760
  %v8460 = vsub.f32 %v8035, %v8459
  %v8461 = vand.u32 %v8460, 4294901760
  %v8462 = vsub.f32 %v8460, %v8461
  %v8463 = vand.u32 %v8462, 4294901760
  %8464 = vmatmul.f32.gmra.mxu0 %v8463
  %v8465 = vpop.f32.mrf.mxu0
  %v8466 = vadd.f32 %v8408, %v8465
  %v8467 = vand.u32 %v8038, 4294901760
  %v8468 = vsub.f32 %v8038, %v8467
  %v8469 = vand.u32 %v8468, 4294901760
  %v8470 = vsub.f32 %v8468, %v8469
  %v8471 = vand.u32 %v8470, 4294901760
  %8472 = vmatmul.f32.gmra.mxu0 %v8471
  %v8473 = vpop.f32.mrf.mxu0
  %v8474 = vadd.f32 %v8412, %v8473
  %v8475 = vand.u32 %v8041, 4294901760
  %v8476 = vsub.f32 %v8041, %v8475
  %v8477 = vand.u32 %v8476, 4294901760
  %v8478 = vsub.f32 %v8476, %v8477
  %v8479 = vand.u32 %v8478, 4294901760
  %8480 = vmatmul.f32.gmra.mxu0 %v8479
  %v8481 = vpop.f32.mrf.mxu0
  %v8482 = vadd.f32 %v8416, %v8481
  %v8483 = vand.u32 %v8044, 4294901760
  %v8484 = vsub.f32 %v8044, %v8483
  %v8485 = vand.u32 %v8484, 4294901760
  %v8486 = vsub.f32 %v8484, %v8485
  %v8487 = vand.u32 %v8486, 4294901760
  %8488 = vmatmul.f32.gmra.mxu0 %v8487
  %v8489 = vpop.f32.mrf.mxu0
  %v8490 = vadd.f32 %v8420, %v8489
  %v8491 = vand.u32 %v8047, 4294901760
  %v8492 = vsub.f32 %v8047, %v8491
  %v8493 = vand.u32 %v8492, 4294901760
  %v8494 = vsub.f32 %v8492, %v8493
  %v8495 = vand.u32 %v8494, 4294901760
  %8496 = vmatmul.f32.gmra.mxu0 %v8495
  %v8497 = vpop.f32.mrf.mxu0
  %v8498 = vadd.f32 %v8424, %v8497
  %v8499 = vand.u32 %v8050, 4294901760
  %v8500 = vsub.f32 %v8050, %v8499
  %v8501 = vand.u32 %v8500, 4294901760
  %v8502 = vsub.f32 %v8500, %v8501
  %v8503 = vand.u32 %v8502, 4294901760
  %8504 = vmatmul.f32.gmra.mxu0 %v8503
  %v8505 = vpop.f32.mrf.mxu0
  %v8506 = vadd.f32 %v8428, %v8505
  %v8507 = vand.u32 %v8053, 4294901760
  %v8508 = vsub.f32 %v8053, %v8507
  %v8509 = vand.u32 %v8508, 4294901760
  %v8510 = vsub.f32 %v8508, %v8509
  %v8511 = vand.u32 %v8510, 4294901760
  %8512 = vmatmul.f32.gmra.mxu0 %v8511
  %v8513 = vpop.f32.mrf.mxu0
  %v8514 = vadd.f32 %v8432, %v8513
  %v8515 = vand.u32 %v8056, 4294901760
  %v8516 = vsub.f32 %v8056, %v8515
  %v8517 = vand.u32 %v8516, 4294901760
  %v8518 = vsub.f32 %v8516, %v8517
  %v8519 = vand.u32 %v8518, 4294901760
  %8520 = vmatmul.f32.gmra.mxu0 %v8519
  %v8521 = vpop.f32.mrf.mxu0
  %v8522 = vadd.f32 %v8436, %v8521
  %v8523 = vand.u32 %v8059, 4294901760
  %v8524 = vsub.f32 %v8059, %v8523
  %v8525 = vand.u32 %v8524, 4294901760
  %v8526 = vsub.f32 %v8524, %v8525
  %v8527 = vand.u32 %v8526, 4294901760
  %8528 = vmatmul.f32.gmra.mxu0 %v8527
  %v8529 = vpop.f32.mrf.mxu0
  %v8530 = vadd.f32 %v8440, %v8529
  %8531 = vdwg.mxu0
  %8532 = vmatpush.msra.mxu0 0.0
  %8533 = vmatpush.msra.mxu0 0.0
  %8534 = vmatpush.msra.mxu0 0.0
  %8535 = vmatpush.msra.mxu0 0.0
  %8536 = vmatpush.msra.mxu0 0.0
  %8537 = vmatpush.msra.mxu0 0.0
  %8538 = vmatpush.msra.mxu0 0.0
  %v8539 = vand.u32 %v59, 4294901760
  %v8540 = vsub.f32 %v59, %v8539
  %v8541 = vand.u32 %v8540, 4294901760
  %v8542 = vsub.f32 %v8540, %v8541
  %v8543 = vand.u32 %v8542, 4294901760
  %8544 = vmatpush.msra.mxu0 %v8543
  %8545 = vmatpush.msra.mxu0 0.0
  %8546 = vmatpush.msra.mxu0 0.0
  %8547 = vmatpush.msra.mxu0 0.0
  %8548 = vmatpush.msra.mxu0 0.0
  %8549 = vmatpush.msra.mxu0 0.0
  %8550 = vmatpush.msra.mxu0 0.0
  %8551 = vmatpush.msra.mxu0 0.0
  %8552 = vmatpush.msra.mxu0 0.0
  %v8553 = vand.u32 %v8035, 4294901760
  %8554 = vmatmul.f32.gmra.mxu0 %v8553
  %v8555 = vpop.f32.mrf.mxu0
  %v8556 = vadd.f32 %v8466, %v8555
  %v8557 = vand.u32 %v8038, 4294901760
  %8558 = vmatmul.f32.gmra.mxu0 %v8557
  %v8559 = vpop.f32.mrf.mxu0
  %v8560 = vadd.f32 %v8474, %v8559
  %v8561 = vand.u32 %v8041, 4294901760
  %8562 = vmatmul.f32.gmra.mxu0 %v8561
  %v8563 = vpop.f32.mrf.mxu0
  %v8564 = vadd.f32 %v8482, %v8563
  %v8565 = vand.u32 %v8044, 4294901760
  %8566 = vmatmul.f32.gmra.mxu0 %v8565
  %v8567 = vpop.f32.mrf.mxu0
  %v8568 = vadd.f32 %v8490, %v8567
  %v8569 = vand.u32 %v8047, 4294901760
  %8570 = vmatmul.f32.gmra.mxu0 %v8569
  %v8571 = vpop.f32.mrf.mxu0
  %v8572 = vadd.f32 %v8498, %v8571
  %v8573 = vand.u32 %v8050, 4294901760
  %8574 = vmatmul.f32.gmra.mxu0 %v8573
  %v8575 = vpop.f32.mrf.mxu0
  %v8576 = vadd.f32 %v8506, %v8575
  %v8577 = vand.u32 %v8053, 4294901760
  %8578 = vmatmul.f32.gmra.mxu0 %v8577
  %v8579 = vpop.f32.mrf.mxu0
  %v8580 = vadd.f32 %v8514, %v8579
  %v8581 = vand.u32 %v8056, 4294901760
  %8582 = vmatmul.f32.gmra.mxu0 %v8581
  %v8583 = vpop.f32.mrf.mxu0
  %v8584 = vadd.f32 %v8522, %v8583
  %v8585 = vand.u32 %v8059, 4294901760
  %8586 = vmatmul.f32.gmra.mxu0 %v8585
  %v8587 = vpop.f32.mrf.mxu0
  %v8588 = vadd.f32 %v8530, %v8587
  %8589 = vdwg.mxu0
  %8590 = vmatpush.msra.mxu0 0.0
  %8591 = vmatpush.msra.mxu0 0.0
  %8592 = vmatpush.msra.mxu0 0.0
  %8593 = vmatpush.msra.mxu0 0.0
  %8594 = vmatpush.msra.mxu0 0.0
  %8595 = vmatpush.msra.mxu0 0.0
  %8596 = vmatpush.msra.mxu0 0.0
  %v8597 = vand.u32 %v59, 4294901760
  %v8598 = vsub.f32 %v59, %v8597
  %8599 = vmatpush.msra.mxu0 %v8598
  %8600 = vmatpush.msra.mxu0 0.0
  %8601 = vmatpush.msra.mxu0 0.0
  %8602 = vmatpush.msra.mxu0 0.0
  %8603 = vmatpush.msra.mxu0 0.0
  %8604 = vmatpush.msra.mxu0 0.0
  %8605 = vmatpush.msra.mxu0 0.0
  %8606 = vmatpush.msra.mxu0 0.0
  %8607 = vmatpush.msra.mxu0 0.0
  %v8608 = vand.u32 %v8035, 4294901760
  %v8609 = vsub.f32 %v8035, %v8608
  %8610 = vmatmul.f32.gmra.mxu0 %v8609
  %v8611 = vpop.f32.mrf.mxu0
  %v8612 = vadd.f32 %v8556, %v8611
  %v8613 = vand.u32 %v8038, 4294901760
  %v8614 = vsub.f32 %v8038, %v8613
  %8615 = vmatmul.f32.gmra.mxu0 %v8614
  %v8616 = vpop.f32.mrf.mxu0
  %v8617 = vadd.f32 %v8560, %v8616
  %v8618 = vand.u32 %v8041, 4294901760
  %v8619 = vsub.f32 %v8041, %v8618
  %8620 = vmatmul.f32.gmra.mxu0 %v8619
  %v8621 = vpop.f32.mrf.mxu0
  %v8622 = vadd.f32 %v8564, %v8621
  %v8623 = vand.u32 %v8044, 4294901760
  %v8624 = vsub.f32 %v8044, %v8623
  %8625 = vmatmul.f32.gmra.mxu0 %v8624
  %v8626 = vpop.f32.mrf.mxu0
  %v8627 = vadd.f32 %v8568, %v8626
  %v8628 = vand.u32 %v8047, 4294901760
  %v8629 = vsub.f32 %v8047, %v8628
  %8630 = vmatmul.f32.gmra.mxu0 %v8629
  %v8631 = vpop.f32.mrf.mxu0
  %v8632 = vadd.f32 %v8572, %v8631
  %v8633 = vand.u32 %v8050, 4294901760
  %v8634 = vsub.f32 %v8050, %v8633
  %8635 = vmatmul.f32.gmra.mxu0 %v8634
  %v8636 = vpop.f32.mrf.mxu0
  %v8637 = vadd.f32 %v8576, %v8636
  %v8638 = vand.u32 %v8053, 4294901760
  %v8639 = vsub.f32 %v8053, %v8638
  %8640 = vmatmul.f32.gmra.mxu0 %v8639
  %v8641 = vpop.f32.mrf.mxu0
  %v8642 = vadd.f32 %v8580, %v8641
  %v8643 = vand.u32 %v8056, 4294901760
  %v8644 = vsub.f32 %v8056, %v8643
  %8645 = vmatmul.f32.gmra.mxu0 %v8644
  %v8646 = vpop.f32.mrf.mxu0
  %v8647 = vadd.f32 %v8584, %v8646
  %v8648 = vand.u32 %v8059, 4294901760
  %v8649 = vsub.f32 %v8059, %v8648
  %8650 = vmatmul.f32.gmra.mxu0 %v8649
  %v8651 = vpop.f32.mrf.mxu0
  %v8652 = vadd.f32 %v8588, %v8651
  %8653 = vdwg.mxu0
  %8654 = vmatpush.msra.mxu0 0.0
  %8655 = vmatpush.msra.mxu0 0.0
  %8656 = vmatpush.msra.mxu0 0.0
  %8657 = vmatpush.msra.mxu0 0.0
  %8658 = vmatpush.msra.mxu0 0.0
  %8659 = vmatpush.msra.mxu0 0.0
  %8660 = vmatpush.msra.mxu0 0.0
  %v8661 = vand.u32 %v59, 4294901760
  %8662 = vmatpush.msra.mxu0 %v8661
  %8663 = vmatpush.msra.mxu0 1.0
  %8664 = vmatpush.msra.mxu0 1.0
  %8665 = vmatpush.msra.mxu0 1.0
  %8666 = vmatpush.msra.mxu0 1.0
  %8667 = vmatpush.msra.mxu0 1.0
  %8668 = vmatpush.msra.mxu0 1.0
  %8669 = vmatpush.msra.mxu0 1.0
  %8670 = vmatpush.msra.mxu0 1.0
  %v8671 = vand.u32 %v8035, 4294901760
  %v8672 = vsub.f32 %v8035, %v8671
  %v8673 = vand.u32 %v8672, 4294901760
  %8674 = vmatmul.f32.gmra.mxu0 %v8673
  %v8675 = vpop.f32.mrf.mxu0
  %v8676 = vadd.f32 %v8612, %v8675
  %v8677 = vand.u32 %v8038, 4294901760
  %v8678 = vsub.f32 %v8038, %v8677
  %v8679 = vand.u32 %v8678, 4294901760
  %8680 = vmatmul.f32.gmra.mxu0 %v8679
  %v8681 = vpop.f32.mrf.mxu0
  %v8682 = vadd.f32 %v8617, %v8681
  %v8683 = vand.u32 %v8041, 4294901760
  %v8684 = vsub.f32 %v8041, %v8683
  %v8685 = vand.u32 %v8684, 4294901760
  %8686 = vmatmul.f32.gmra.mxu0 %v8685
  %v8687 = vpop.f32.mrf.mxu0
  %v8688 = vadd.f32 %v8622, %v8687
  %v8689 = vand.u32 %v8044, 4294901760
  %v8690 = vsub.f32 %v8044, %v8689
  %v8691 = vand.u32 %v8690, 4294901760
  %8692 = vmatmul.f32.gmra.mxu0 %v8691
  %v8693 = vpop.f32.mrf.mxu0
  %v8694 = vadd.f32 %v8627, %v8693
  %v8695 = vand.u32 %v8047, 4294901760
  %v8696 = vsub.f32 %v8047, %v8695
  %v8697 = vand.u32 %v8696, 4294901760
  %8698 = vmatmul.f32.gmra.mxu0 %v8697
  %v8699 = vpop.f32.mrf.mxu0
  %v8700 = vadd.f32 %v8632, %v8699
  %v8701 = vand.u32 %v8050, 4294901760
  %v8702 = vsub.f32 %v8050, %v8701
  %v8703 = vand.u32 %v8702, 4294901760
  %8704 = vmatmul.f32.gmra.mxu0 %v8703
  %v8705 = vpop.f32.mrf.mxu0
  %v8706 = vadd.f32 %v8637, %v8705
  %v8707 = vand.u32 %v8053, 4294901760
  %v8708 = vsub.f32 %v8053, %v8707
  %v8709 = vand.u32 %v8708, 4294901760
  %8710 = vmatmul.f32.gmra.mxu0 %v8709
  %v8711 = vpop.f32.mrf.mxu0
  %v8712 = vadd.f32 %v8642, %v8711
  %v8713 = vand.u32 %v8056, 4294901760
  %v8714 = vsub.f32 %v8056, %v8713
  %v8715 = vand.u32 %v8714, 4294901760
  %8716 = vmatmul.f32.gmra.mxu0 %v8715
  %v8717 = vpop.f32.mrf.mxu0
  %v8718 = vadd.f32 %v8647, %v8717
  %v8719 = vand.u32 %v8059, 4294901760
  %v8720 = vsub.f32 %v8059, %v8719
  %v8721 = vand.u32 %v8720, 4294901760
  %8722 = vmatmul.f32.gmra.mxu0 %v8721
  %v8723 = vpop.f32.mrf.mxu0
  %v8724 = vadd.f32 %v8652, %v8723
  %8725 = vdwg.mxu0
  %8726 = vmatpush.msra.mxu0 0.0
  %8727 = vmatpush.msra.mxu0 0.0
  %8728 = vmatpush.msra.mxu0 0.0
  %8729 = vmatpush.msra.mxu0 0.0
  %8730 = vmatpush.msra.mxu0 0.0
  %8731 = vmatpush.msra.mxu0 0.0
  %8732 = vmatpush.msra.mxu0 0.0
  %v8733 = vand.u32 %v59, 4294901760
  %v8734 = vsub.f32 %v59, %v8733
  %v8735 = vand.u32 %v8734, 4294901760
  %8736 = vmatpush.msra.mxu0 %v8735
  %8737 = vmatpush.msra.mxu0 0.0
  %8738 = vmatpush.msra.mxu0 0.0
  %8739 = vmatpush.msra.mxu0 0.0
  %8740 = vmatpush.msra.mxu0 0.0
  %8741 = vmatpush.msra.mxu0 0.0
  %8742 = vmatpush.msra.mxu0 0.0
  %8743 = vmatpush.msra.mxu0 0.0
  %8744 = vmatpush.msra.mxu0 0.0
  %v8745 = vand.u32 %v8035, 4294901760
  %8746 = vmatmul.f32.gmra.mxu0 %v8745
  %v8747 = vpop.f32.mrf.mxu0
  %v8748 = vadd.f32 %v8676, %v8747
  %v8749 = vand.u32 %v8038, 4294901760
  %8750 = vmatmul.f32.gmra.mxu0 %v8749
  %v8751 = vpop.f32.mrf.mxu0
  %v8752 = vadd.f32 %v8682, %v8751
  %v8753 = vand.u32 %v8041, 4294901760
  %8754 = vmatmul.f32.gmra.mxu0 %v8753
  %v8755 = vpop.f32.mrf.mxu0
  %v8756 = vadd.f32 %v8688, %v8755
  %v8757 = vand.u32 %v8044, 4294901760
  %8758 = vmatmul.f32.gmra.mxu0 %v8757
  %v8759 = vpop.f32.mrf.mxu0
  %v8760 = vadd.f32 %v8694, %v8759
  %v8761 = vand.u32 %v8047, 4294901760
  %8762 = vmatmul.f32.gmra.mxu0 %v8761
  %v8763 = vpop.f32.mrf.mxu0
  %v8764 = vadd.f32 %v8700, %v8763
  %v8765 = vand.u32 %v8050, 4294901760
  %8766 = vmatmul.f32.gmra.mxu0 %v8765
  %v8767 = vpop.f32.mrf.mxu0
  %v8768 = vadd.f32 %v8706, %v8767
  %v8769 = vand.u32 %v8053, 4294901760
  %8770 = vmatmul.f32.gmra.mxu0 %v8769
  %v8771 = vpop.f32.mrf.mxu0
  %v8772 = vadd.f32 %v8712, %v8771
  %v8773 = vand.u32 %v8056, 4294901760
  %8774 = vmatmul.f32.gmra.mxu0 %v8773
  %v8775 = vpop.f32.mrf.mxu0
  %v8776 = vadd.f32 %v8718, %v8775
  %v8777 = vand.u32 %v8059, 4294901760
  %8778 = vmatmul.f32.gmra.mxu0 %v8777
  %v8779 = vpop.f32.mrf.mxu0
  %v8780 = vadd.f32 %v8724, %v8779
  %8781 = vdwg.mxu0
  %8782 = vmatpush.msra.mxu0 0.0
  %8783 = vmatpush.msra.mxu0 0.0
  %8784 = vmatpush.msra.mxu0 0.0
  %8785 = vmatpush.msra.mxu0 0.0
  %8786 = vmatpush.msra.mxu0 0.0
  %8787 = vmatpush.msra.mxu0 0.0
  %8788 = vmatpush.msra.mxu0 0.0
  %v8789 = vand.u32 %v59, 4294901760
  %8790 = vmatpush.msra.mxu0 %v8789
  %8791 = vmatpush.msra.mxu0 1.0
  %8792 = vmatpush.msra.mxu0 1.0
  %8793 = vmatpush.msra.mxu0 1.0
  %8794 = vmatpush.msra.mxu0 1.0
  %8795 = vmatpush.msra.mxu0 1.0
  %8796 = vmatpush.msra.mxu0 1.0
  %8797 = vmatpush.msra.mxu0 1.0
  %8798 = vmatpush.msra.mxu0 1.0
  %v8799 = vand.u32 %v8035, 4294901760
  %8800 = vmatmul.f32.gmra.mxu0 %v8799
  %v8801 = vpop.f32.mrf.mxu0
  %v8802 = vadd.f32 %v8748, %v8801
  %v8803 = vand.u32 %v8038, 4294901760
  %8804 = vmatmul.f32.gmra.mxu0 %v8803
  %v8805 = vpop.f32.mrf.mxu0
  %v8806 = vadd.f32 %v8752, %v8805
  %v8807 = vand.u32 %v8041, 4294901760
  %8808 = vmatmul.f32.gmra.mxu0 %v8807
  %v8809 = vpop.f32.mrf.mxu0
  %v8810 = vadd.f32 %v8756, %v8809
  %v8811 = vand.u32 %v8044, 4294901760
  %8812 = vmatmul.f32.gmra.mxu0 %v8811
  %v8813 = vpop.f32.mrf.mxu0
  %v8814 = vadd.f32 %v8760, %v8813
  %v8815 = vand.u32 %v8047, 4294901760
  %8816 = vmatmul.f32.gmra.mxu0 %v8815
  %v8817 = vpop.f32.mrf.mxu0
  %v8818 = vadd.f32 %v8764, %v8817
  %v8819 = vand.u32 %v8050, 4294901760
  %8820 = vmatmul.f32.gmra.mxu0 %v8819
  %v8821 = vpop.f32.mrf.mxu0
  %v8822 = vadd.f32 %v8768, %v8821
  %v8823 = vand.u32 %v8053, 4294901760
  %8824 = vmatmul.f32.gmra.mxu0 %v8823
  %v8825 = vpop.f32.mrf.mxu0
  %v8826 = vadd.f32 %v8772, %v8825
  %v8827 = vand.u32 %v8056, 4294901760
  %8828 = vmatmul.f32.gmra.mxu0 %v8827
  %v8829 = vpop.f32.mrf.mxu0
  %v8830 = vadd.f32 %v8776, %v8829
  %v8831 = vand.u32 %v8059, 4294901760
  %8832 = vmatmul.f32.gmra.mxu0 %v8831
  %v8833 = vpop.f32.mrf.mxu0
  %v8834 = vadd.f32 %v8780, %v8833
  %8835 = vdwg.mxu0
  %v8836 = vmul.f32 %v8016, %v8016
  %v8837 = vmul.f32 %v8017, %v8017
  %v8838 = vmul.f32 %v8018, %v8018
  %v8839 = vmul.f32 %v8019, %v8019
  %v8840 = vmul.f32 %v8020, %v8020
  %v8841 = vmul.f32 %v8021, %v8021
  %v8842 = vmul.f32 %v8022, %v8022
  %v8843 = vmul.f32 %v8023, %v8023
  %v8844 = vmul.f32 %v8024, %v8024
  %v8845 = vmul.f32 %v8025, %v8025
  %v8846 = vmul.f32 %v8026, %v8026
  %v8847 = vmul.f32 %v8027, %v8027
  %v8848 = vmul.f32 %v8028, %v8028
  %v8849 = vmul.f32 %v8029, %v8029
  %v8850 = vmul.f32 %v8030, %v8030
  %v8851 = vmul.f32 %v8031, %v8031
  %v8852 = vmul.f32 %v8032, %v8032
  %v8853 = vmul.f32 %v8033, %v8033
  %v8855 = vsel %vm29, %v8837, 0
  %v8858 = vsel %vm29, %v8839, 0
  %v8861 = vsel %vm29, %v8841, 0
  %v8864 = vsel %vm29, %v8843, 0
  %v8867 = vsel %vm29, %v8845, 0
  %v8870 = vsel %vm29, %v8847, 0
  %v8873 = vsel %vm29, %v8849, 0
  %v8876 = vsel %vm29, %v8851, 0
  %v8879 = vsel %vm29, %v8853, 0
  %8881 = vmatpush.msra.mxu0 1.0
  %8882 = vmatpush.msra.mxu0 1.0
  %8883 = vmatpush.msra.mxu0 1.0
  %8884 = vmatpush.msra.mxu0 1.0
  %8885 = vmatpush.msra.mxu0 1.0
  %8886 = vmatpush.msra.mxu0 1.0
  %8887 = vmatpush.msra.mxu0 1.0
  %8888 = vmatpush.msra.mxu0 1.0
  %8889 = vmatpush.msra.mxu0 1.0
  %8890 = vmatpush.msra.mxu0 1.0
  %8891 = vmatpush.msra.mxu0 1.0
  %8892 = vmatpush.msra.mxu0 1.0
  %8893 = vmatpush.msra.mxu0 1.0
  %8894 = vmatpush.msra.mxu0 1.0
  %8895 = vmatpush.msra.mxu0 1.0
  %8896 = vmatpush.msra.mxu0 1.0
  %v8897 = vand.u32 %v8836, 4294901760
  %v8898 = vsub.f32 %v8836, %v8897
  %v8899 = vand.u32 %v8898, 4294901760
  %v8900 = vsub.f32 %v8898, %v8899
  %v8901 = vand.u32 %v8900, 4294901760
  %8902 = vmatmul.f32.gmra.mxu0 %v8901
  %v8903 = vpop.f32.mrf.mxu0
  %v8904 = vadd.f32 0.0, %v8903
  %v8905 = vand.u32 %v8838, 4294901760
  %v8906 = vsub.f32 %v8838, %v8905
  %v8907 = vand.u32 %v8906, 4294901760
  %v8908 = vsub.f32 %v8906, %v8907
  %v8909 = vand.u32 %v8908, 4294901760
  %8910 = vmatmul.f32.gmra.mxu0 %v8909
  %v8911 = vpop.f32.mrf.mxu0
  %v8912 = vadd.f32 0.0, %v8911
  %v8913 = vand.u32 %v8840, 4294901760
  %v8914 = vsub.f32 %v8840, %v8913
  %v8915 = vand.u32 %v8914, 4294901760
  %v8916 = vsub.f32 %v8914, %v8915
  %v8917 = vand.u32 %v8916, 4294901760
  %8918 = vmatmul.f32.gmra.mxu0 %v8917
  %v8919 = vpop.f32.mrf.mxu0
  %v8920 = vadd.f32 0.0, %v8919
  %v8921 = vand.u32 %v8842, 4294901760
  %v8922 = vsub.f32 %v8842, %v8921
  %v8923 = vand.u32 %v8922, 4294901760
  %v8924 = vsub.f32 %v8922, %v8923
  %v8925 = vand.u32 %v8924, 4294901760
  %8926 = vmatmul.f32.gmra.mxu0 %v8925
  %v8927 = vpop.f32.mrf.mxu0
  %v8928 = vadd.f32 0.0, %v8927
  %v8929 = vand.u32 %v8844, 4294901760
  %v8930 = vsub.f32 %v8844, %v8929
  %v8931 = vand.u32 %v8930, 4294901760
  %v8932 = vsub.f32 %v8930, %v8931
  %v8933 = vand.u32 %v8932, 4294901760
  %8934 = vmatmul.f32.gmra.mxu0 %v8933
  %v8935 = vpop.f32.mrf.mxu0
  %v8936 = vadd.f32 0.0, %v8935
  %v8937 = vand.u32 %v8846, 4294901760
  %v8938 = vsub.f32 %v8846, %v8937
  %v8939 = vand.u32 %v8938, 4294901760
  %v8940 = vsub.f32 %v8938, %v8939
  %v8941 = vand.u32 %v8940, 4294901760
  %8942 = vmatmul.f32.gmra.mxu0 %v8941
  %v8943 = vpop.f32.mrf.mxu0
  %v8944 = vadd.f32 0.0, %v8943
  %v8945 = vand.u32 %v8848, 4294901760
  %v8946 = vsub.f32 %v8848, %v8945
  %v8947 = vand.u32 %v8946, 4294901760
  %v8948 = vsub.f32 %v8946, %v8947
  %v8949 = vand.u32 %v8948, 4294901760
  %8950 = vmatmul.f32.gmra.mxu0 %v8949
  %v8951 = vpop.f32.mrf.mxu0
  %v8952 = vadd.f32 0.0, %v8951
  %v8953 = vand.u32 %v8850, 4294901760
  %v8954 = vsub.f32 %v8850, %v8953
  %v8955 = vand.u32 %v8954, 4294901760
  %v8956 = vsub.f32 %v8954, %v8955
  %v8957 = vand.u32 %v8956, 4294901760
  %8958 = vmatmul.f32.gmra.mxu0 %v8957
  %v8959 = vpop.f32.mrf.mxu0
  %v8960 = vadd.f32 0.0, %v8959
  %v8961 = vand.u32 %v8852, 4294901760
  %v8962 = vsub.f32 %v8852, %v8961
  %v8963 = vand.u32 %v8962, 4294901760
  %v8964 = vsub.f32 %v8962, %v8963
  %v8965 = vand.u32 %v8964, 4294901760
  %8966 = vmatmul.f32.gmra.mxu0 %v8965
  %v8967 = vpop.f32.mrf.mxu0
  %v8968 = vadd.f32 0.0, %v8967
  %8969 = vdwg.mxu0
  %8970 = vmatpush.msra.mxu0 0.0
  %8971 = vmatpush.msra.mxu0 0.0
  %8972 = vmatpush.msra.mxu0 0.0
  %8973 = vmatpush.msra.mxu0 0.0
  %8974 = vmatpush.msra.mxu0 0.0
  %8975 = vmatpush.msra.mxu0 0.0
  %8976 = vmatpush.msra.mxu0 0.0
  %8977 = vmatpush.msra.mxu0 0.0
  %8978 = vmatpush.msra.mxu0 0.0
  %8979 = vmatpush.msra.mxu0 0.0
  %8980 = vmatpush.msra.mxu0 0.0
  %8981 = vmatpush.msra.mxu0 0.0
  %8982 = vmatpush.msra.mxu0 0.0
  %8983 = vmatpush.msra.mxu0 0.0
  %8984 = vmatpush.msra.mxu0 0.0
  %8985 = vmatpush.msra.mxu0 0.0
  %v8986 = vand.u32 %v8836, 4294901760
  %8987 = vmatmul.f32.gmra.mxu0 %v8986
  %v8988 = vpop.f32.mrf.mxu0
  %v8989 = vadd.f32 %v8904, %v8988
  %v8990 = vand.u32 %v8838, 4294901760
  %8991 = vmatmul.f32.gmra.mxu0 %v8990
  %v8992 = vpop.f32.mrf.mxu0
  %v8993 = vadd.f32 %v8912, %v8992
  %v8994 = vand.u32 %v8840, 4294901760
  %8995 = vmatmul.f32.gmra.mxu0 %v8994
  %v8996 = vpop.f32.mrf.mxu0
  %v8997 = vadd.f32 %v8920, %v8996
  %v8998 = vand.u32 %v8842, 4294901760
  %8999 = vmatmul.f32.gmra.mxu0 %v8998
  %v9000 = vpop.f32.mrf.mxu0
  %v9001 = vadd.f32 %v8928, %v9000
  %v9002 = vand.u32 %v8844, 4294901760
  %9003 = vmatmul.f32.gmra.mxu0 %v9002
  %v9004 = vpop.f32.mrf.mxu0
  %v9005 = vadd.f32 %v8936, %v9004
  %v9006 = vand.u32 %v8846, 4294901760
  %9007 = vmatmul.f32.gmra.mxu0 %v9006
  %v9008 = vpop.f32.mrf.mxu0
  %v9009 = vadd.f32 %v8944, %v9008
  %v9010 = vand.u32 %v8848, 4294901760
  %9011 = vmatmul.f32.gmra.mxu0 %v9010
  %v9012 = vpop.f32.mrf.mxu0
  %v9013 = vadd.f32 %v8952, %v9012
  %v9014 = vand.u32 %v8850, 4294901760
  %9015 = vmatmul.f32.gmra.mxu0 %v9014
  %v9016 = vpop.f32.mrf.mxu0
  %v9017 = vadd.f32 %v8960, %v9016
  %v9018 = vand.u32 %v8852, 4294901760
  %9019 = vmatmul.f32.gmra.mxu0 %v9018
  %v9020 = vpop.f32.mrf.mxu0
  %v9021 = vadd.f32 %v8968, %v9020
  %9022 = vdwg.mxu0
  %9023 = vmatpush.msra.mxu0 0.0
  %9024 = vmatpush.msra.mxu0 0.0
  %9025 = vmatpush.msra.mxu0 0.0
  %9026 = vmatpush.msra.mxu0 0.0
  %9027 = vmatpush.msra.mxu0 0.0
  %9028 = vmatpush.msra.mxu0 0.0
  %9029 = vmatpush.msra.mxu0 0.0
  %9030 = vmatpush.msra.mxu0 0.0
  %9031 = vmatpush.msra.mxu0 0.0
  %9032 = vmatpush.msra.mxu0 0.0
  %9033 = vmatpush.msra.mxu0 0.0
  %9034 = vmatpush.msra.mxu0 0.0
  %9035 = vmatpush.msra.mxu0 0.0
  %9036 = vmatpush.msra.mxu0 0.0
  %9037 = vmatpush.msra.mxu0 0.0
  %9038 = vmatpush.msra.mxu0 0.0
  %v9039 = vand.u32 %v8836, 4294901760
  %v9040 = vsub.f32 %v8836, %v9039
  %9041 = vmatmul.f32.gmra.mxu0 %v9040
  %v9042 = vpop.f32.mrf.mxu0
  %v9043 = vadd.f32 %v8989, %v9042
  %v9044 = vand.u32 %v8838, 4294901760
  %v9045 = vsub.f32 %v8838, %v9044
  %9046 = vmatmul.f32.gmra.mxu0 %v9045
  %v9047 = vpop.f32.mrf.mxu0
  %v9048 = vadd.f32 %v8993, %v9047
  %v9049 = vand.u32 %v8840, 4294901760
  %v9050 = vsub.f32 %v8840, %v9049
  %9051 = vmatmul.f32.gmra.mxu0 %v9050
  %v9052 = vpop.f32.mrf.mxu0
  %v9053 = vadd.f32 %v8997, %v9052
  %v9054 = vand.u32 %v8842, 4294901760
  %v9055 = vsub.f32 %v8842, %v9054
  %9056 = vmatmul.f32.gmra.mxu0 %v9055
  %v9057 = vpop.f32.mrf.mxu0
  %v9058 = vadd.f32 %v9001, %v9057
  %v9059 = vand.u32 %v8844, 4294901760
  %v9060 = vsub.f32 %v8844, %v9059
  %9061 = vmatmul.f32.gmra.mxu0 %v9060
  %v9062 = vpop.f32.mrf.mxu0
  %v9063 = vadd.f32 %v9005, %v9062
  %v9064 = vand.u32 %v8846, 4294901760
  %v9065 = vsub.f32 %v8846, %v9064
  %9066 = vmatmul.f32.gmra.mxu0 %v9065
  %v9067 = vpop.f32.mrf.mxu0
  %v9068 = vadd.f32 %v9009, %v9067
  %v9069 = vand.u32 %v8848, 4294901760
  %v9070 = vsub.f32 %v8848, %v9069
  %9071 = vmatmul.f32.gmra.mxu0 %v9070
  %v9072 = vpop.f32.mrf.mxu0
  %v9073 = vadd.f32 %v9013, %v9072
  %v9074 = vand.u32 %v8850, 4294901760
  %v9075 = vsub.f32 %v8850, %v9074
  %9076 = vmatmul.f32.gmra.mxu0 %v9075
  %v9077 = vpop.f32.mrf.mxu0
  %v9078 = vadd.f32 %v9017, %v9077
  %v9079 = vand.u32 %v8852, 4294901760
  %v9080 = vsub.f32 %v8852, %v9079
  %9081 = vmatmul.f32.gmra.mxu0 %v9080
  %v9082 = vpop.f32.mrf.mxu0
  %v9083 = vadd.f32 %v9021, %v9082
  %9084 = vdwg.mxu0
  %9085 = vmatpush.msra.mxu0 1.0
  %9086 = vmatpush.msra.mxu0 1.0
  %9087 = vmatpush.msra.mxu0 1.0
  %9088 = vmatpush.msra.mxu0 1.0
  %9089 = vmatpush.msra.mxu0 1.0
  %9090 = vmatpush.msra.mxu0 1.0
  %9091 = vmatpush.msra.mxu0 1.0
  %9092 = vmatpush.msra.mxu0 1.0
  %9093 = vmatpush.msra.mxu0 1.0
  %9094 = vmatpush.msra.mxu0 1.0
  %9095 = vmatpush.msra.mxu0 1.0
  %9096 = vmatpush.msra.mxu0 1.0
  %9097 = vmatpush.msra.mxu0 1.0
  %9098 = vmatpush.msra.mxu0 1.0
  %9099 = vmatpush.msra.mxu0 1.0
  %9100 = vmatpush.msra.mxu0 1.0
  %v9101 = vand.u32 %v8836, 4294901760
  %v9102 = vsub.f32 %v8836, %v9101
  %v9103 = vand.u32 %v9102, 4294901760
  %9104 = vmatmul.f32.gmra.mxu0 %v9103
  %v9105 = vpop.f32.mrf.mxu0
  %v9106 = vadd.f32 %v9043, %v9105
  %v9107 = vand.u32 %v8838, 4294901760
  %v9108 = vsub.f32 %v8838, %v9107
  %v9109 = vand.u32 %v9108, 4294901760
  %9110 = vmatmul.f32.gmra.mxu0 %v9109
  %v9111 = vpop.f32.mrf.mxu0
  %v9112 = vadd.f32 %v9048, %v9111
  %v9113 = vand.u32 %v8840, 4294901760
  %v9114 = vsub.f32 %v8840, %v9113
  %v9115 = vand.u32 %v9114, 4294901760
  %9116 = vmatmul.f32.gmra.mxu0 %v9115
  %v9117 = vpop.f32.mrf.mxu0
  %v9118 = vadd.f32 %v9053, %v9117
  %v9119 = vand.u32 %v8842, 4294901760
  %v9120 = vsub.f32 %v8842, %v9119
  %v9121 = vand.u32 %v9120, 4294901760
  %9122 = vmatmul.f32.gmra.mxu0 %v9121
  %v9123 = vpop.f32.mrf.mxu0
  %v9124 = vadd.f32 %v9058, %v9123
  %v9125 = vand.u32 %v8844, 4294901760
  %v9126 = vsub.f32 %v8844, %v9125
  %v9127 = vand.u32 %v9126, 4294901760
  %9128 = vmatmul.f32.gmra.mxu0 %v9127
  %v9129 = vpop.f32.mrf.mxu0
  %v9130 = vadd.f32 %v9063, %v9129
  %v9131 = vand.u32 %v8846, 4294901760
  %v9132 = vsub.f32 %v8846, %v9131
  %v9133 = vand.u32 %v9132, 4294901760
  %9134 = vmatmul.f32.gmra.mxu0 %v9133
  %v9135 = vpop.f32.mrf.mxu0
  %v9136 = vadd.f32 %v9068, %v9135
  %v9137 = vand.u32 %v8848, 4294901760
  %v9138 = vsub.f32 %v8848, %v9137
  %v9139 = vand.u32 %v9138, 4294901760
  %9140 = vmatmul.f32.gmra.mxu0 %v9139
  %v9141 = vpop.f32.mrf.mxu0
  %v9142 = vadd.f32 %v9073, %v9141
  %v9143 = vand.u32 %v8850, 4294901760
  %v9144 = vsub.f32 %v8850, %v9143
  %v9145 = vand.u32 %v9144, 4294901760
  %9146 = vmatmul.f32.gmra.mxu0 %v9145
  %v9147 = vpop.f32.mrf.mxu0
  %v9148 = vadd.f32 %v9078, %v9147
  %v9149 = vand.u32 %v8852, 4294901760
  %v9150 = vsub.f32 %v8852, %v9149
  %v9151 = vand.u32 %v9150, 4294901760
  %9152 = vmatmul.f32.gmra.mxu0 %v9151
  %v9153 = vpop.f32.mrf.mxu0
  %v9154 = vadd.f32 %v9083, %v9153
  %9155 = vdwg.mxu0
  %9156 = vmatpush.msra.mxu0 0.0
  %9157 = vmatpush.msra.mxu0 0.0
  %9158 = vmatpush.msra.mxu0 0.0
  %9159 = vmatpush.msra.mxu0 0.0
  %9160 = vmatpush.msra.mxu0 0.0
  %9161 = vmatpush.msra.mxu0 0.0
  %9162 = vmatpush.msra.mxu0 0.0
  %9163 = vmatpush.msra.mxu0 0.0
  %9164 = vmatpush.msra.mxu0 0.0
  %9165 = vmatpush.msra.mxu0 0.0
  %9166 = vmatpush.msra.mxu0 0.0
  %9167 = vmatpush.msra.mxu0 0.0
  %9168 = vmatpush.msra.mxu0 0.0
  %9169 = vmatpush.msra.mxu0 0.0
  %9170 = vmatpush.msra.mxu0 0.0
  %9171 = vmatpush.msra.mxu0 0.0
  %v9172 = vand.u32 %v8836, 4294901760
  %9173 = vmatmul.f32.gmra.mxu0 %v9172
  %v9174 = vpop.f32.mrf.mxu0
  %v9175 = vadd.f32 %v9106, %v9174
  %v9176 = vand.u32 %v8838, 4294901760
  %9177 = vmatmul.f32.gmra.mxu0 %v9176
  %v9178 = vpop.f32.mrf.mxu0
  %v9179 = vadd.f32 %v9112, %v9178
  %v9180 = vand.u32 %v8840, 4294901760
  %9181 = vmatmul.f32.gmra.mxu0 %v9180
  %v9182 = vpop.f32.mrf.mxu0
  %v9183 = vadd.f32 %v9118, %v9182
  %v9184 = vand.u32 %v8842, 4294901760
  %9185 = vmatmul.f32.gmra.mxu0 %v9184
  %v9186 = vpop.f32.mrf.mxu0
  %v9187 = vadd.f32 %v9124, %v9186
  %v9188 = vand.u32 %v8844, 4294901760
  %9189 = vmatmul.f32.gmra.mxu0 %v9188
  %v9190 = vpop.f32.mrf.mxu0
  %v9191 = vadd.f32 %v9130, %v9190
  %v9192 = vand.u32 %v8846, 4294901760
  %9193 = vmatmul.f32.gmra.mxu0 %v9192
  %v9194 = vpop.f32.mrf.mxu0
  %v9195 = vadd.f32 %v9136, %v9194
  %v9196 = vand.u32 %v8848, 4294901760
  %9197 = vmatmul.f32.gmra.mxu0 %v9196
  %v9198 = vpop.f32.mrf.mxu0
  %v9199 = vadd.f32 %v9142, %v9198
  %v9200 = vand.u32 %v8850, 4294901760
  %9201 = vmatmul.f32.gmra.mxu0 %v9200
  %v9202 = vpop.f32.mrf.mxu0
  %v9203 = vadd.f32 %v9148, %v9202
  %v9204 = vand.u32 %v8852, 4294901760
  %9205 = vmatmul.f32.gmra.mxu0 %v9204
  %v9206 = vpop.f32.mrf.mxu0
  %v9207 = vadd.f32 %v9154, %v9206
  %9208 = vdwg.mxu0
  %9209 = vmatpush.msra.mxu0 1.0
  %9210 = vmatpush.msra.mxu0 1.0
  %9211 = vmatpush.msra.mxu0 1.0
  %9212 = vmatpush.msra.mxu0 1.0
  %9213 = vmatpush.msra.mxu0 1.0
  %9214 = vmatpush.msra.mxu0 1.0
  %9215 = vmatpush.msra.mxu0 1.0
  %9216 = vmatpush.msra.mxu0 1.0
  %9217 = vmatpush.msra.mxu0 1.0
  %9218 = vmatpush.msra.mxu0 1.0
  %9219 = vmatpush.msra.mxu0 1.0
  %9220 = vmatpush.msra.mxu0 1.0
  %9221 = vmatpush.msra.mxu0 1.0
  %9222 = vmatpush.msra.mxu0 1.0
  %9223 = vmatpush.msra.mxu0 1.0
  %9224 = vmatpush.msra.mxu0 1.0
  %v9225 = vand.u32 %v8836, 4294901760
  %9226 = vmatmul.f32.gmra.mxu0 %v9225
  %v9227 = vpop.f32.mrf.mxu0
  %v9228 = vadd.f32 %v9175, %v9227
  %v9229 = vand.u32 %v8838, 4294901760
  %9230 = vmatmul.f32.gmra.mxu0 %v9229
  %v9231 = vpop.f32.mrf.mxu0
  %v9232 = vadd.f32 %v9179, %v9231
  %v9233 = vand.u32 %v8840, 4294901760
  %9234 = vmatmul.f32.gmra.mxu0 %v9233
  %v9235 = vpop.f32.mrf.mxu0
  %v9236 = vadd.f32 %v9183, %v9235
  %v9237 = vand.u32 %v8842, 4294901760
  %9238 = vmatmul.f32.gmra.mxu0 %v9237
  %v9239 = vpop.f32.mrf.mxu0
  %v9240 = vadd.f32 %v9187, %v9239
  %v9241 = vand.u32 %v8844, 4294901760
  %9242 = vmatmul.f32.gmra.mxu0 %v9241
  %v9243 = vpop.f32.mrf.mxu0
  %v9244 = vadd.f32 %v9191, %v9243
  %v9245 = vand.u32 %v8846, 4294901760
  %9246 = vmatmul.f32.gmra.mxu0 %v9245
  %v9247 = vpop.f32.mrf.mxu0
  %v9248 = vadd.f32 %v9195, %v9247
  %v9249 = vand.u32 %v8848, 4294901760
  %9250 = vmatmul.f32.gmra.mxu0 %v9249
  %v9251 = vpop.f32.mrf.mxu0
  %v9252 = vadd.f32 %v9199, %v9251
  %v9253 = vand.u32 %v8850, 4294901760
  %9254 = vmatmul.f32.gmra.mxu0 %v9253
  %v9255 = vpop.f32.mrf.mxu0
  %v9256 = vadd.f32 %v9203, %v9255
  %v9257 = vand.u32 %v8852, 4294901760
  %9258 = vmatmul.f32.gmra.mxu0 %v9257
  %v9259 = vpop.f32.mrf.mxu0
  %v9260 = vadd.f32 %v9207, %v9259
  %9261 = vdwg.mxu0
  %9262 = vmatpush.msra.mxu0 0.0
  %9263 = vmatpush.msra.mxu0 0.0
  %9264 = vmatpush.msra.mxu0 0.0
  %9265 = vmatpush.msra.mxu0 0.0
  %9266 = vmatpush.msra.mxu0 0.0
  %9267 = vmatpush.msra.mxu0 0.0
  %9268 = vmatpush.msra.mxu0 0.0
  %v9269 = vand.u32 %v59, 4294901760
  %9270 = vmatpush.msra.mxu0 %v9269
  %9271 = vmatpush.msra.mxu0 1.0
  %9272 = vmatpush.msra.mxu0 1.0
  %9273 = vmatpush.msra.mxu0 1.0
  %9274 = vmatpush.msra.mxu0 1.0
  %9275 = vmatpush.msra.mxu0 1.0
  %9276 = vmatpush.msra.mxu0 1.0
  %9277 = vmatpush.msra.mxu0 1.0
  %9278 = vmatpush.msra.mxu0 1.0
  %v9279 = vand.u32 %v8855, 4294901760
  %v9280 = vsub.f32 %v8855, %v9279
  %v9281 = vand.u32 %v9280, 4294901760
  %v9282 = vsub.f32 %v9280, %v9281
  %v9283 = vand.u32 %v9282, 4294901760
  %9284 = vmatmul.f32.gmra.mxu0 %v9283
  %v9285 = vpop.f32.mrf.mxu0
  %v9286 = vadd.f32 %v9228, %v9285
  %v9287 = vand.u32 %v8858, 4294901760
  %v9288 = vsub.f32 %v8858, %v9287
  %v9289 = vand.u32 %v9288, 4294901760
  %v9290 = vsub.f32 %v9288, %v9289
  %v9291 = vand.u32 %v9290, 4294901760
  %9292 = vmatmul.f32.gmra.mxu0 %v9291
  %v9293 = vpop.f32.mrf.mxu0
  %v9294 = vadd.f32 %v9232, %v9293
  %v9295 = vand.u32 %v8861, 4294901760
  %v9296 = vsub.f32 %v8861, %v9295
  %v9297 = vand.u32 %v9296, 4294901760
  %v9298 = vsub.f32 %v9296, %v9297
  %v9299 = vand.u32 %v9298, 4294901760
  %9300 = vmatmul.f32.gmra.mxu0 %v9299
  %v9301 = vpop.f32.mrf.mxu0
  %v9302 = vadd.f32 %v9236, %v9301
  %v9303 = vand.u32 %v8864, 4294901760
  %v9304 = vsub.f32 %v8864, %v9303
  %v9305 = vand.u32 %v9304, 4294901760
  %v9306 = vsub.f32 %v9304, %v9305
  %v9307 = vand.u32 %v9306, 4294901760
  %9308 = vmatmul.f32.gmra.mxu0 %v9307
  %v9309 = vpop.f32.mrf.mxu0
  %v9310 = vadd.f32 %v9240, %v9309
  %v9311 = vand.u32 %v8867, 4294901760
  %v9312 = vsub.f32 %v8867, %v9311
  %v9313 = vand.u32 %v9312, 4294901760
  %v9314 = vsub.f32 %v9312, %v9313
  %v9315 = vand.u32 %v9314, 4294901760
  %9316 = vmatmul.f32.gmra.mxu0 %v9315
  %v9317 = vpop.f32.mrf.mxu0
  %v9318 = vadd.f32 %v9244, %v9317
  %v9319 = vand.u32 %v8870, 4294901760
  %v9320 = vsub.f32 %v8870, %v9319
  %v9321 = vand.u32 %v9320, 4294901760
  %v9322 = vsub.f32 %v9320, %v9321
  %v9323 = vand.u32 %v9322, 4294901760
  %9324 = vmatmul.f32.gmra.mxu0 %v9323
  %v9325 = vpop.f32.mrf.mxu0
  %v9326 = vadd.f32 %v9248, %v9325
  %v9327 = vand.u32 %v8873, 4294901760
  %v9328 = vsub.f32 %v8873, %v9327
  %v9329 = vand.u32 %v9328, 4294901760
  %v9330 = vsub.f32 %v9328, %v9329
  %v9331 = vand.u32 %v9330, 4294901760
  %9332 = vmatmul.f32.gmra.mxu0 %v9331
  %v9333 = vpop.f32.mrf.mxu0
  %v9334 = vadd.f32 %v9252, %v9333
  %v9335 = vand.u32 %v8876, 4294901760
  %v9336 = vsub.f32 %v8876, %v9335
  %v9337 = vand.u32 %v9336, 4294901760
  %v9338 = vsub.f32 %v9336, %v9337
  %v9339 = vand.u32 %v9338, 4294901760
  %9340 = vmatmul.f32.gmra.mxu0 %v9339
  %v9341 = vpop.f32.mrf.mxu0
  %v9342 = vadd.f32 %v9256, %v9341
  %v9343 = vand.u32 %v8879, 4294901760
  %v9344 = vsub.f32 %v8879, %v9343
  %v9345 = vand.u32 %v9344, 4294901760
  %v9346 = vsub.f32 %v9344, %v9345
  %v9347 = vand.u32 %v9346, 4294901760
  %9348 = vmatmul.f32.gmra.mxu0 %v9347
  %v9349 = vpop.f32.mrf.mxu0
  %v9350 = vadd.f32 %v9260, %v9349
  %9351 = vdwg.mxu0
  %9352 = vmatpush.msra.mxu0 0.0
  %9353 = vmatpush.msra.mxu0 0.0
  %9354 = vmatpush.msra.mxu0 0.0
  %9355 = vmatpush.msra.mxu0 0.0
  %9356 = vmatpush.msra.mxu0 0.0
  %9357 = vmatpush.msra.mxu0 0.0
  %9358 = vmatpush.msra.mxu0 0.0
  %v9359 = vand.u32 %v59, 4294901760
  %v9360 = vsub.f32 %v59, %v9359
  %v9361 = vand.u32 %v9360, 4294901760
  %v9362 = vsub.f32 %v9360, %v9361
  %v9363 = vand.u32 %v9362, 4294901760
  %9364 = vmatpush.msra.mxu0 %v9363
  %9365 = vmatpush.msra.mxu0 0.0
  %9366 = vmatpush.msra.mxu0 0.0
  %9367 = vmatpush.msra.mxu0 0.0
  %9368 = vmatpush.msra.mxu0 0.0
  %9369 = vmatpush.msra.mxu0 0.0
  %9370 = vmatpush.msra.mxu0 0.0
  %9371 = vmatpush.msra.mxu0 0.0
  %9372 = vmatpush.msra.mxu0 0.0
  %v9373 = vand.u32 %v8855, 4294901760
  %9374 = vmatmul.f32.gmra.mxu0 %v9373
  %v9375 = vpop.f32.mrf.mxu0
  %v9376 = vadd.f32 %v9286, %v9375
  %v9377 = vand.u32 %v8858, 4294901760
  %9378 = vmatmul.f32.gmra.mxu0 %v9377
  %v9379 = vpop.f32.mrf.mxu0
  %v9380 = vadd.f32 %v9294, %v9379
  %v9381 = vand.u32 %v8861, 4294901760
  %9382 = vmatmul.f32.gmra.mxu0 %v9381
  %v9383 = vpop.f32.mrf.mxu0
  %v9384 = vadd.f32 %v9302, %v9383
  %v9385 = vand.u32 %v8864, 4294901760
  %9386 = vmatmul.f32.gmra.mxu0 %v9385
  %v9387 = vpop.f32.mrf.mxu0
  %v9388 = vadd.f32 %v9310, %v9387
  %v9389 = vand.u32 %v8867, 4294901760
  %9390 = vmatmul.f32.gmra.mxu0 %v9389
  %v9391 = vpop.f32.mrf.mxu0
  %v9392 = vadd.f32 %v9318, %v9391
  %v9393 = vand.u32 %v8870, 4294901760
  %9394 = vmatmul.f32.gmra.mxu0 %v9393
  %v9395 = vpop.f32.mrf.mxu0
  %v9396 = vadd.f32 %v9326, %v9395
  %v9397 = vand.u32 %v8873, 4294901760
  %9398 = vmatmul.f32.gmra.mxu0 %v9397
  %v9399 = vpop.f32.mrf.mxu0
  %v9400 = vadd.f32 %v9334, %v9399
  %v9401 = vand.u32 %v8876, 4294901760
  %9402 = vmatmul.f32.gmra.mxu0 %v9401
  %v9403 = vpop.f32.mrf.mxu0
  %v9404 = vadd.f32 %v9342, %v9403
  %v9405 = vand.u32 %v8879, 4294901760
  %9406 = vmatmul.f32.gmra.mxu0 %v9405
  %v9407 = vpop.f32.mrf.mxu0
  %v9408 = vadd.f32 %v9350, %v9407
  %9409 = vdwg.mxu0
  %9410 = vmatpush.msra.mxu0 0.0
  %9411 = vmatpush.msra.mxu0 0.0
  %9412 = vmatpush.msra.mxu0 0.0
  %9413 = vmatpush.msra.mxu0 0.0
  %9414 = vmatpush.msra.mxu0 0.0
  %9415 = vmatpush.msra.mxu0 0.0
  %9416 = vmatpush.msra.mxu0 0.0
  %v9417 = vand.u32 %v59, 4294901760
  %v9418 = vsub.f32 %v59, %v9417
  %9419 = vmatpush.msra.mxu0 %v9418
  %9420 = vmatpush.msra.mxu0 0.0
  %9421 = vmatpush.msra.mxu0 0.0
  %9422 = vmatpush.msra.mxu0 0.0
  %9423 = vmatpush.msra.mxu0 0.0
  %9424 = vmatpush.msra.mxu0 0.0
  %9425 = vmatpush.msra.mxu0 0.0
  %9426 = vmatpush.msra.mxu0 0.0
  %9427 = vmatpush.msra.mxu0 0.0
  %v9428 = vand.u32 %v8855, 4294901760
  %v9429 = vsub.f32 %v8855, %v9428
  %9430 = vmatmul.f32.gmra.mxu0 %v9429
  %v9431 = vpop.f32.mrf.mxu0
  %v9432 = vadd.f32 %v9376, %v9431
  %v9433 = vand.u32 %v8858, 4294901760
  %v9434 = vsub.f32 %v8858, %v9433
  %9435 = vmatmul.f32.gmra.mxu0 %v9434
  %v9436 = vpop.f32.mrf.mxu0
  %v9437 = vadd.f32 %v9380, %v9436
  %v9438 = vand.u32 %v8861, 4294901760
  %v9439 = vsub.f32 %v8861, %v9438
  %9440 = vmatmul.f32.gmra.mxu0 %v9439
  %v9441 = vpop.f32.mrf.mxu0
  %v9442 = vadd.f32 %v9384, %v9441
  %v9443 = vand.u32 %v8864, 4294901760
  %v9444 = vsub.f32 %v8864, %v9443
  %9445 = vmatmul.f32.gmra.mxu0 %v9444
  %v9446 = vpop.f32.mrf.mxu0
  %v9447 = vadd.f32 %v9388, %v9446
  %v9448 = vand.u32 %v8867, 4294901760
  %v9449 = vsub.f32 %v8867, %v9448
  %9450 = vmatmul.f32.gmra.mxu0 %v9449
  %v9451 = vpop.f32.mrf.mxu0
  %v9452 = vadd.f32 %v9392, %v9451
  %v9453 = vand.u32 %v8870, 4294901760
  %v9454 = vsub.f32 %v8870, %v9453
  %9455 = vmatmul.f32.gmra.mxu0 %v9454
  %v9456 = vpop.f32.mrf.mxu0
  %v9457 = vadd.f32 %v9396, %v9456
  %v9458 = vand.u32 %v8873, 4294901760
  %v9459 = vsub.f32 %v8873, %v9458
  %9460 = vmatmul.f32.gmra.mxu0 %v9459
  %v9461 = vpop.f32.mrf.mxu0
  %v9462 = vadd.f32 %v9400, %v9461
  %v9463 = vand.u32 %v8876, 4294901760
  %v9464 = vsub.f32 %v8876, %v9463
  %9465 = vmatmul.f32.gmra.mxu0 %v9464
  %v9466 = vpop.f32.mrf.mxu0
  %v9467 = vadd.f32 %v9404, %v9466
  %v9468 = vand.u32 %v8879, 4294901760
  %v9469 = vsub.f32 %v8879, %v9468
  %9470 = vmatmul.f32.gmra.mxu0 %v9469
  %v9471 = vpop.f32.mrf.mxu0
  %v9472 = vadd.f32 %v9408, %v9471
  %9473 = vdwg.mxu0
  %9474 = vmatpush.msra.mxu0 0.0
  %9475 = vmatpush.msra.mxu0 0.0
  %9476 = vmatpush.msra.mxu0 0.0
  %9477 = vmatpush.msra.mxu0 0.0
  %9478 = vmatpush.msra.mxu0 0.0
  %9479 = vmatpush.msra.mxu0 0.0
  %9480 = vmatpush.msra.mxu0 0.0
  %v9481 = vand.u32 %v59, 4294901760
  %9482 = vmatpush.msra.mxu0 %v9481
  %9483 = vmatpush.msra.mxu0 1.0
  %9484 = vmatpush.msra.mxu0 1.0
  %9485 = vmatpush.msra.mxu0 1.0
  %9486 = vmatpush.msra.mxu0 1.0
  %9487 = vmatpush.msra.mxu0 1.0
  %9488 = vmatpush.msra.mxu0 1.0
  %9489 = vmatpush.msra.mxu0 1.0
  %9490 = vmatpush.msra.mxu0 1.0
  %v9491 = vand.u32 %v8855, 4294901760
  %v9492 = vsub.f32 %v8855, %v9491
  %v9493 = vand.u32 %v9492, 4294901760
  %9494 = vmatmul.f32.gmra.mxu0 %v9493
  %v9495 = vpop.f32.mrf.mxu0
  %v9496 = vadd.f32 %v9432, %v9495
  %v9497 = vand.u32 %v8858, 4294901760
  %v9498 = vsub.f32 %v8858, %v9497
  %v9499 = vand.u32 %v9498, 4294901760
  %9500 = vmatmul.f32.gmra.mxu0 %v9499
  %v9501 = vpop.f32.mrf.mxu0
  %v9502 = vadd.f32 %v9437, %v9501
  %v9503 = vand.u32 %v8861, 4294901760
  %v9504 = vsub.f32 %v8861, %v9503
  %v9505 = vand.u32 %v9504, 4294901760
  %9506 = vmatmul.f32.gmra.mxu0 %v9505
  %v9507 = vpop.f32.mrf.mxu0
  %v9508 = vadd.f32 %v9442, %v9507
  %v9509 = vand.u32 %v8864, 4294901760
  %v9510 = vsub.f32 %v8864, %v9509
  %v9511 = vand.u32 %v9510, 4294901760
  %9512 = vmatmul.f32.gmra.mxu0 %v9511
  %v9513 = vpop.f32.mrf.mxu0
  %v9514 = vadd.f32 %v9447, %v9513
  %v9515 = vand.u32 %v8867, 4294901760
  %v9516 = vsub.f32 %v8867, %v9515
  %v9517 = vand.u32 %v9516, 4294901760
  %9518 = vmatmul.f32.gmra.mxu0 %v9517
  %v9519 = vpop.f32.mrf.mxu0
  %v9520 = vadd.f32 %v9452, %v9519
  %v9521 = vand.u32 %v8870, 4294901760
  %v9522 = vsub.f32 %v8870, %v9521
  %v9523 = vand.u32 %v9522, 4294901760
  %9524 = vmatmul.f32.gmra.mxu0 %v9523
  %v9525 = vpop.f32.mrf.mxu0
  %v9526 = vadd.f32 %v9457, %v9525
  %v9527 = vand.u32 %v8873, 4294901760
  %v9528 = vsub.f32 %v8873, %v9527
  %v9529 = vand.u32 %v9528, 4294901760
  %9530 = vmatmul.f32.gmra.mxu0 %v9529
  %v9531 = vpop.f32.mrf.mxu0
  %v9532 = vadd.f32 %v9462, %v9531
  %v9533 = vand.u32 %v8876, 4294901760
  %v9534 = vsub.f32 %v8876, %v9533
  %v9535 = vand.u32 %v9534, 4294901760
  %9536 = vmatmul.f32.gmra.mxu0 %v9535
  %v9537 = vpop.f32.mrf.mxu0
  %v9538 = vadd.f32 %v9467, %v9537
  %v9539 = vand.u32 %v8879, 4294901760
  %v9540 = vsub.f32 %v8879, %v9539
  %v9541 = vand.u32 %v9540, 4294901760
  %9542 = vmatmul.f32.gmra.mxu0 %v9541
  %v9543 = vpop.f32.mrf.mxu0
  %v9544 = vadd.f32 %v9472, %v9543
  %9545 = vdwg.mxu0
  %9546 = vmatpush.msra.mxu0 0.0
  %9547 = vmatpush.msra.mxu0 0.0
  %9548 = vmatpush.msra.mxu0 0.0
  %9549 = vmatpush.msra.mxu0 0.0
  %9550 = vmatpush.msra.mxu0 0.0
  %9551 = vmatpush.msra.mxu0 0.0
  %9552 = vmatpush.msra.mxu0 0.0
  %v9553 = vand.u32 %v59, 4294901760
  %v9554 = vsub.f32 %v59, %v9553
  %v9555 = vand.u32 %v9554, 4294901760
  %9556 = vmatpush.msra.mxu0 %v9555
  %9557 = vmatpush.msra.mxu0 0.0
  %9558 = vmatpush.msra.mxu0 0.0
  %9559 = vmatpush.msra.mxu0 0.0
  %9560 = vmatpush.msra.mxu0 0.0
  %9561 = vmatpush.msra.mxu0 0.0
  %9562 = vmatpush.msra.mxu0 0.0
  %9563 = vmatpush.msra.mxu0 0.0
  %9564 = vmatpush.msra.mxu0 0.0
  %v9565 = vand.u32 %v8855, 4294901760
  %9566 = vmatmul.f32.gmra.mxu0 %v9565
  %v9567 = vpop.f32.mrf.mxu0
  %v9568 = vadd.f32 %v9496, %v9567
  %v9569 = vand.u32 %v8858, 4294901760
  %9570 = vmatmul.f32.gmra.mxu0 %v9569
  %v9571 = vpop.f32.mrf.mxu0
  %v9572 = vadd.f32 %v9502, %v9571
  %v9573 = vand.u32 %v8861, 4294901760
  %9574 = vmatmul.f32.gmra.mxu0 %v9573
  %v9575 = vpop.f32.mrf.mxu0
  %v9576 = vadd.f32 %v9508, %v9575
  %v9577 = vand.u32 %v8864, 4294901760
  %9578 = vmatmul.f32.gmra.mxu0 %v9577
  %v9579 = vpop.f32.mrf.mxu0
  %v9580 = vadd.f32 %v9514, %v9579
  %v9581 = vand.u32 %v8867, 4294901760
  %9582 = vmatmul.f32.gmra.mxu0 %v9581
  %v9583 = vpop.f32.mrf.mxu0
  %v9584 = vadd.f32 %v9520, %v9583
  %v9585 = vand.u32 %v8870, 4294901760
  %9586 = vmatmul.f32.gmra.mxu0 %v9585
  %v9587 = vpop.f32.mrf.mxu0
  %v9588 = vadd.f32 %v9526, %v9587
  %v9589 = vand.u32 %v8873, 4294901760
  %9590 = vmatmul.f32.gmra.mxu0 %v9589
  %v9591 = vpop.f32.mrf.mxu0
  %v9592 = vadd.f32 %v9532, %v9591
  %v9593 = vand.u32 %v8876, 4294901760
  %9594 = vmatmul.f32.gmra.mxu0 %v9593
  %v9595 = vpop.f32.mrf.mxu0
  %v9596 = vadd.f32 %v9538, %v9595
  %v9597 = vand.u32 %v8879, 4294901760
  %9598 = vmatmul.f32.gmra.mxu0 %v9597
  %v9599 = vpop.f32.mrf.mxu0
  %v9600 = vadd.f32 %v9544, %v9599
  %9601 = vdwg.mxu0
  %9602 = vmatpush.msra.mxu0 0.0
  %9603 = vmatpush.msra.mxu0 0.0
  %9604 = vmatpush.msra.mxu0 0.0
  %9605 = vmatpush.msra.mxu0 0.0
  %9606 = vmatpush.msra.mxu0 0.0
  %9607 = vmatpush.msra.mxu0 0.0
  %9608 = vmatpush.msra.mxu0 0.0
  %v9609 = vand.u32 %v59, 4294901760
  %9610 = vmatpush.msra.mxu0 %v9609
  %9611 = vmatpush.msra.mxu0 1.0
  %9612 = vmatpush.msra.mxu0 1.0
  %9613 = vmatpush.msra.mxu0 1.0
  %9614 = vmatpush.msra.mxu0 1.0
  %9615 = vmatpush.msra.mxu0 1.0
  %9616 = vmatpush.msra.mxu0 1.0
  %9617 = vmatpush.msra.mxu0 1.0
  %9618 = vmatpush.msra.mxu0 1.0
  %v9619 = vand.u32 %v8855, 4294901760
  %9620 = vmatmul.f32.gmra.mxu0 %v9619
  %v9621 = vpop.f32.mrf.mxu0
  %v9622 = vadd.f32 %v9568, %v9621
  %v9623 = vand.u32 %v8858, 4294901760
  %9624 = vmatmul.f32.gmra.mxu0 %v9623
  %v9625 = vpop.f32.mrf.mxu0
  %v9626 = vadd.f32 %v9572, %v9625
  %v9627 = vand.u32 %v8861, 4294901760
  %9628 = vmatmul.f32.gmra.mxu0 %v9627
  %v9629 = vpop.f32.mrf.mxu0
  %v9630 = vadd.f32 %v9576, %v9629
  %v9631 = vand.u32 %v8864, 4294901760
  %9632 = vmatmul.f32.gmra.mxu0 %v9631
  %v9633 = vpop.f32.mrf.mxu0
  %v9634 = vadd.f32 %v9580, %v9633
  %v9635 = vand.u32 %v8867, 4294901760
  %9636 = vmatmul.f32.gmra.mxu0 %v9635
  %v9637 = vpop.f32.mrf.mxu0
  %v9638 = vadd.f32 %v9584, %v9637
  %v9639 = vand.u32 %v8870, 4294901760
  %9640 = vmatmul.f32.gmra.mxu0 %v9639
  %v9641 = vpop.f32.mrf.mxu0
  %v9642 = vadd.f32 %v9588, %v9641
  %v9643 = vand.u32 %v8873, 4294901760
  %9644 = vmatmul.f32.gmra.mxu0 %v9643
  %v9645 = vpop.f32.mrf.mxu0
  %v9646 = vadd.f32 %v9592, %v9645
  %v9647 = vand.u32 %v8876, 4294901760
  %9648 = vmatmul.f32.gmra.mxu0 %v9647
  %v9649 = vpop.f32.mrf.mxu0
  %v9650 = vadd.f32 %v9596, %v9649
  %v9651 = vand.u32 %v8879, 4294901760
  %9652 = vmatmul.f32.gmra.mxu0 %v9651
  %v9653 = vpop.f32.mrf.mxu0
  %v9654 = vadd.f32 %v9600, %v9653
  %9655 = vdwg.mxu0
  %v9656 = vmul.f32 %v8802, 0.0051020407
  %v9657 = vmul.f32 %v8806, 0.0051020407
  %v9658 = vmul.f32 %v8810, 0.0051020407
  %v9659 = vmul.f32 %v8814, 0.0051020407
  %v9660 = vmul.f32 %v8818, 0.0051020407
  %v9661 = vmul.f32 %v8822, 0.0051020407
  %v9662 = vmul.f32 %v8826, 0.0051020407
  %v9663 = vmul.f32 %v8830, 0.0051020407
  %v9664 = vmul.f32 %v8834, 0.0051020407
  %v9665 = vmul.f32 %v9622, 0.0051020407
  %v9666 = vmul.f32 %v9626, 0.0051020407
  %v9667 = vmul.f32 %v9630, 0.0051020407
  %v9668 = vmul.f32 %v9634, 0.0051020407
  %v9669 = vmul.f32 %v9638, 0.0051020407
  %v9670 = vmul.f32 %v9642, 0.0051020407
  %v9671 = vmul.f32 %v9646, 0.0051020407
  %v9672 = vmul.f32 %v9650, 0.0051020407
  %v9673 = vmul.f32 %v9654, 0.0051020407
  %v9674 = vmul.f32 %v9656, %v9656
  %v9675 = vmul.f32 %v9657, %v9657
  %v9676 = vmul.f32 %v9658, %v9658
  %v9677 = vmul.f32 %v9659, %v9659
  %v9678 = vmul.f32 %v9660, %v9660
  %v9679 = vmul.f32 %v9661, %v9661
  %v9680 = vmul.f32 %v9662, %v9662
  %v9681 = vmul.f32 %v9663, %v9663
  %v9682 = vmul.f32 %v9664, %v9664
  %v9683 = vsub.f32 %v9665, %v9674
  %v9684 = vsub.f32 %v9666, %v9675
  %v9685 = vsub.f32 %v9667, %v9676
  %v9686 = vsub.f32 %v9668, %v9677
  %v9687 = vsub.f32 %v9669, %v9678
  %v9688 = vsub.f32 %v9670, %v9679
  %v9689 = vsub.f32 %v9671, %v9680
  %v9690 = vsub.f32 %v9672, %v9681
  %v9691 = vsub.f32 %v9673, %v9682
  %v9692 = vmax.f32 %v9683, 0.0
  %v9693 = vmax.f32 %v9684, 0.0
  %v9694 = vmax.f32 %v9685, 0.0
  %v9695 = vmax.f32 %v9686, 0.0
  %v9696 = vmax.f32 %v9687, 0.0
  %v9697 = vmax.f32 %v9688, 0.0
  %v9698 = vmax.f32 %v9689, 0.0
  %v9699 = vmax.f32 %v9690, 0.0
  %v9700 = vmax.f32 %v9691, 0.0
  %v9701 = vadd.f32 %v9692, 1e-05
  %v9702 = vadd.f32 %v9693, 1e-05
  %v9703 = vadd.f32 %v9694, 1e-05
  %v9704 = vadd.f32 %v9695, 1e-05
  %v9705 = vadd.f32 %v9696, 1e-05
  %v9706 = vadd.f32 %v9697, 1e-05
  %v9707 = vadd.f32 %v9698, 1e-05
  %v9708 = vadd.f32 %v9699, 1e-05
  %v9709 = vadd.f32 %v9700, 1e-05
  %v9710 = vrsqrt.pop %v9701
  %v9711 = vmul.f32 %v9710, %v9701
  %v9712 = vmul.f32 %v9711, %v9710
  %v9713 = vmul.f32 0.5, %v9712
  %v9714 = vsub.f32 1.5, %v9713
  %v9715 = vmul.f32 %v9710, %v9714
  %vm9716 = vweird.f32 %v9701
  %vm9717 = vweird.f32 %v9710
  %vm9718 = vmor %vm9716, %vm9717
  %v9719 = vsel %vm9718, %v9710, %v9715
  %v9720 = vrsqrt.pop %v9702
  %v9721 = vmul.f32 %v9720, %v9702
  %v9722 = vmul.f32 %v9721, %v9720
  %v9723 = vmul.f32 0.5, %v9722
  %v9724 = vsub.f32 1.5, %v9723
  %v9725 = vmul.f32 %v9720, %v9724
  %vm9726 = vweird.f32 %v9702
  %vm9727 = vweird.f32 %v9720
  %vm9728 = vmor %vm9726, %vm9727
  %v9729 = vsel %vm9728, %v9720, %v9725
  %v9730 = vrsqrt.pop %v9703
  %v9731 = vmul.f32 %v9730, %v9703
  %v9732 = vmul.f32 %v9731, %v9730
  %v9733 = vmul.f32 0.5, %v9732
  %v9734 = vsub.f32 1.5, %v9733
  %v9735 = vmul.f32 %v9730, %v9734
  %vm9736 = vweird.f32 %v9703
  %vm9737 = vweird.f32 %v9730
  %vm9738 = vmor %vm9736, %vm9737
  %v9739 = vsel %vm9738, %v9730, %v9735
  %v9740 = vrsqrt.pop %v9704
  %v9741 = vmul.f32 %v9740, %v9704
  %v9742 = vmul.f32 %v9741, %v9740
  %v9743 = vmul.f32 0.5, %v9742
  %v9744 = vsub.f32 1.5, %v9743
  %v9745 = vmul.f32 %v9740, %v9744
  %vm9746 = vweird.f32 %v9704
  %vm9747 = vweird.f32 %v9740
  %vm9748 = vmor %vm9746, %vm9747
  %v9749 = vsel %vm9748, %v9740, %v9745
  %v9750 = vrsqrt.pop %v9705
  %v9751 = vmul.f32 %v9750, %v9705
  %v9752 = vmul.f32 %v9751, %v9750
  %v9753 = vmul.f32 0.5, %v9752
  %v9754 = vsub.f32 1.5, %v9753
  %v9755 = vmul.f32 %v9750, %v9754
  %vm9756 = vweird.f32 %v9705
  %vm9757 = vweird.f32 %v9750
  %vm9758 = vmor %vm9756, %vm9757
  %v9759 = vsel %vm9758, %v9750, %v9755
  %v9760 = vrsqrt.pop %v9706
  %v9761 = vmul.f32 %v9760, %v9706
  %v9762 = vmul.f32 %v9761, %v9760
  %v9763 = vmul.f32 0.5, %v9762
  %v9764 = vsub.f32 1.5, %v9763
  %v9765 = vmul.f32 %v9760, %v9764
  %vm9766 = vweird.f32 %v9706
  %vm9767 = vweird.f32 %v9760
  %vm9768 = vmor %vm9766, %vm9767
  %v9769 = vsel %vm9768, %v9760, %v9765
  %v9770 = vrsqrt.pop %v9707
  %v9771 = vmul.f32 %v9770, %v9707
  %v9772 = vmul.f32 %v9771, %v9770
  %v9773 = vmul.f32 0.5, %v9772
  %v9774 = vsub.f32 1.5, %v9773
  %v9775 = vmul.f32 %v9770, %v9774
  %vm9776 = vweird.f32 %v9707
  %vm9777 = vweird.f32 %v9770
  %vm9778 = vmor %vm9776, %vm9777
  %v9779 = vsel %vm9778, %v9770, %v9775
  %v9780 = vrsqrt.pop %v9708
  %v9781 = vmul.f32 %v9780, %v9708
  %v9782 = vmul.f32 %v9781, %v9780
  %v9783 = vmul.f32 0.5, %v9782
  %v9784 = vsub.f32 1.5, %v9783
  %v9785 = vmul.f32 %v9780, %v9784
  %vm9786 = vweird.f32 %v9708
  %vm9787 = vweird.f32 %v9780
  %vm9788 = vmor %vm9786, %vm9787
  %v9789 = vsel %vm9788, %v9780, %v9785
  %v9790 = vrsqrt.pop %v9709
  %v9791 = vmul.f32 %v9790, %v9709
  %v9792 = vmul.f32 %v9791, %v9790
  %v9793 = vmul.f32 0.5, %v9792
  %v9794 = vsub.f32 1.5, %v9793
  %v9795 = vmul.f32 %v9790, %v9794
  %vm9796 = vweird.f32 %v9709
  %vm9797 = vweird.f32 %v9790
  %vm9798 = vmor %vm9796, %vm9797
  %v9799 = vsel %vm9798, %v9790, %v9795
  %v9800 = vld [vmem:[%s1 + $0x120] sm:$0xff]
  %v9801 = vld [vmem:[%s1 + $0x128] sm:$0xff]
  %v9802 = vld [vmem:[%s1 + $0x130] sm:$0xff]
  %v9803 = vld [vmem:[%s1 + $0x138] sm:$0xff]
  %v9804 = vld [vmem:[%s1 + $0x140] sm:$0xff]
  %v9805 = vld [vmem:[%s1 + $0x148] sm:$0xff]
  %v9806 = vld [vmem:[%s1 + $0x150] sm:$0xff]
  %v9807 = vld [vmem:[%s1 + $0x158] sm:$0xff]
  %v9808 = vld [vmem:[%s1 + $0x160] sm:$0xff]
  %v9809 = vmul.f32 %v9800, %v9719
  %v9810 = vmul.f32 %v9801, %v9729
  %v9811 = vmul.f32 %v9802, %v9739
  %v9812 = vmul.f32 %v9803, %v9749
  %v9813 = vmul.f32 %v9804, %v9759
  %v9814 = vmul.f32 %v9805, %v9769
  %v9815 = vmul.f32 %v9806, %v9779
  %v9816 = vmul.f32 %v9807, %v9789
  %v9817 = vmul.f32 %v9808, %v9799
  %v9818 = vmul.f32 %v9656, %v9809
  %v9819 = vmul.f32 %v9657, %v9810
  %v9820 = vmul.f32 %v9658, %v9811
  %v9821 = vmul.f32 %v9659, %v9812
  %v9822 = vmul.f32 %v9660, %v9813
  %v9823 = vmul.f32 %v9661, %v9814
  %v9824 = vmul.f32 %v9662, %v9815
  %v9825 = vmul.f32 %v9663, %v9816
  %v9826 = vmul.f32 %v9664, %v9817
  %9836 = vrot.lane.b32.xlu0 %v9818, 1
  %v9837 = vpop.permute.xlu0 %9836
  %9838 = vrot.lane.b32.xlu0 %v9819, 1
  %v9839 = vpop.permute.xlu0 %9838
  %9840 = vrot.lane.b32.xlu0 %v9820, 1
  %v9841 = vpop.permute.xlu0 %9840
  %9842 = vrot.lane.b32.xlu0 %v9821, 1
  %v9843 = vpop.permute.xlu0 %9842
  %9844 = vrot.lane.b32.xlu0 %v9822, 1
  %v9845 = vpop.permute.xlu0 %9844
  %9846 = vrot.lane.b32.xlu0 %v9823, 1
  %v9847 = vpop.permute.xlu0 %9846
  %9848 = vrot.lane.b32.xlu0 %v9824, 1
  %v9849 = vpop.permute.xlu0 %9848
  %9850 = vrot.lane.b32.xlu0 %v9825, 1
  %v9851 = vpop.permute.xlu0 %9850
  %9852 = vrot.lane.b32.xlu0 %v9826, 1
  %v9853 = vpop.permute.xlu0 %9852
  %v9863 = vsub.f32 %v9800, %v9837
  %v9864 = vsub.f32 %v9801, %v9839
  %v9865 = vsub.f32 %v9802, %v9841
  %v9866 = vsub.f32 %v9803, %v9843
  %v9867 = vsub.f32 %v9804, %v9845
  %v9868 = vsub.f32 %v9805, %v9847
  %v9869 = vsub.f32 %v9806, %v9849
  %v9870 = vsub.f32 %v9807, %v9851
  %v9871 = vsub.f32 %v9808, %v9853
  %9873 = vset.pattern.permute.xlu0 0
  %9874 = vperm.xlu0 %9873, %v9809
  %v9875 = vpop.permute.xlu0 %9874
  %9878 = vset.pattern.permute.xlu0 0
  %9879 = vperm.xlu0 %9878, %v9810
  %v9880 = vpop.permute.xlu0 %9879
  %9883 = vset.pattern.permute.xlu0 0
  %9884 = vperm.xlu0 %9883, %v9811
  %v9885 = vpop.permute.xlu0 %9884
  %9888 = vset.pattern.permute.xlu0 0
  %9889 = vperm.xlu0 %9888, %v9812
  %v9890 = vpop.permute.xlu0 %9889
  %9893 = vset.pattern.permute.xlu0 0
  %9894 = vperm.xlu0 %9893, %v9813
  %v9895 = vpop.permute.xlu0 %9894
  %9898 = vset.pattern.permute.xlu0 0
  %9899 = vperm.xlu0 %9898, %v9814
  %v9900 = vpop.permute.xlu0 %9899
  %9903 = vset.pattern.permute.xlu0 0
  %9904 = vperm.xlu0 %9903, %v9815
  %v9905 = vpop.permute.xlu0 %9904
  %9908 = vset.pattern.permute.xlu0 0
  %9909 = vperm.xlu0 %9908, %v9816
  %v9910 = vpop.permute.xlu0 %9909
  %9913 = vset.pattern.permute.xlu0 0
  %9914 = vperm.xlu0 %9913, %v9817
  %v9915 = vpop.permute.xlu0 %9914
  %v9917 = vmul.f32 %v8016, %v9875
  %v9918 = vmul.f32 %v8017, %v9875
  %v9919 = vmul.f32 %v8018, %v9880
  %v9920 = vmul.f32 %v8019, %v9880
  %v9921 = vmul.f32 %v8020, %v9885
  %v9922 = vmul.f32 %v8021, %v9885
  %v9923 = vmul.f32 %v8022, %v9890
  %v9924 = vmul.f32 %v8023, %v9890
  %v9925 = vmul.f32 %v8024, %v9895
  %v9926 = vmul.f32 %v8025, %v9895
  %v9927 = vmul.f32 %v8026, %v9900
  %v9928 = vmul.f32 %v8027, %v9900
  %v9929 = vmul.f32 %v8028, %v9905
  %v9930 = vmul.f32 %v8029, %v9905
  %v9931 = vmul.f32 %v8030, %v9910
  %v9932 = vmul.f32 %v8031, %v9910
  %v9933 = vmul.f32 %v8032, %v9915
  %v9934 = vmul.f32 %v8033, %v9915
  %9936 = vset.pattern.permute.xlu0 1
  %9937 = vperm.xlu0 %9936, %v9863
  %v9938 = vpop.permute.xlu0 %9937
  %9941 = vset.pattern.permute.xlu0 1
  %9942 = vperm.xlu0 %9941, %v9864
  %v9943 = vpop.permute.xlu0 %9942
  %9946 = vset.pattern.permute.xlu0 1
  %9947 = vperm.xlu0 %9946, %v9865
  %v9948 = vpop.permute.xlu0 %9947
  %9951 = vset.pattern.permute.xlu0 1
  %9952 = vperm.xlu0 %9951, %v9866
  %v9953 = vpop.permute.xlu0 %9952
  %9956 = vset.pattern.permute.xlu0 1
  %9957 = vperm.xlu0 %9956, %v9867
  %v9958 = vpop.permute.xlu0 %9957
  %9961 = vset.pattern.permute.xlu0 1
  %9962 = vperm.xlu0 %9961, %v9868
  %v9963 = vpop.permute.xlu0 %9962
  %9966 = vset.pattern.permute.xlu0 1
  %9967 = vperm.xlu0 %9966, %v9869
  %v9968 = vpop.permute.xlu0 %9967
  %9971 = vset.pattern.permute.xlu0 1
  %9972 = vperm.xlu0 %9971, %v9870
  %v9973 = vpop.permute.xlu0 %9972
  %9976 = vset.pattern.permute.xlu0 1
  %9977 = vperm.xlu0 %9976, %v9871
  %v9978 = vpop.permute.xlu0 %9977
  %v9980 = vadd.f32 %v9917, %v9938
  %v9981 = vadd.f32 %v9918, %v9938
  %v9982 = vadd.f32 %v9919, %v9943
  %v9983 = vadd.f32 %v9920, %v9943
  %v9984 = vadd.f32 %v9921, %v9948
  %v9985 = vadd.f32 %v9922, %v9948
  %v9986 = vadd.f32 %v9923, %v9953
  %v9987 = vadd.f32 %v9924, %v9953
  %v9988 = vadd.f32 %v9925, %v9958
  %v9989 = vadd.f32 %v9926, %v9958
  %v9990 = vadd.f32 %v9927, %v9963
  %v9991 = vadd.f32 %v9928, %v9963
  %v9992 = vadd.f32 %v9929, %v9968
  %v9993 = vadd.f32 %v9930, %v9968
  %v9994 = vadd.f32 %v9931, %v9973
  %v9995 = vadd.f32 %v9932, %v9973
  %v9996 = vadd.f32 %v9933, %v9978
  %v9997 = vadd.f32 %v9934, %v9978
  %9998 = vst [vmem:[%s2 + $0x240] sm:$0xff] %v9980
  %9999 = vst.msk [vmem:[%s2 + $0x248] sm:$0xff] %vm29, %v9981
  %10000 = vst [vmem:[%s2 + $0x250] sm:$0xff] %v9982
  %10001 = vst.msk [vmem:[%s2 + $0x258] sm:$0xff] %vm29, %v9983
  %10002 = vst [vmem:[%s2 + $0x260] sm:$0xff] %v9984
  %10003 = vst.msk [vmem:[%s2 + $0x268] sm:$0xff] %vm29, %v9985
  %10004 = vst [vmem:[%s2 + $0x270] sm:$0xff] %v9986
  %10005 = vst.msk [vmem:[%s2 + $0x278] sm:$0xff] %vm29, %v9987
  %10006 = vst [vmem:[%s2 + $0x280] sm:$0xff] %v9988
  %10007 = vst.msk [vmem:[%s2 + $0x288] sm:$0xff] %vm29, %v9989
  %10008 = vst [vmem:[%s2 + $0x290] sm:$0xff] %v9990
  %10009 = vst.msk [vmem:[%s2 + $0x298] sm:$0xff] %vm29, %v9991
  %10010 = vst [vmem:[%s2 + $0x2a0] sm:$0xff] %v9992
  %10011 = vst.msk [vmem:[%s2 + $0x2a8] sm:$0xff] %vm29, %v9993
  %10012 = vst [vmem:[%s2 + $0x2b0] sm:$0xff] %v9994
  %10013 = vst.msk [vmem:[%s2 + $0x2b8] sm:$0xff] %vm29, %v9995
  %10014 = vst [vmem:[%s2 + $0x2c0] sm:$0xff] %v9996
  %10015 = vst.msk [vmem:[%s2 + $0x2c8] sm:$0xff] %vm29, %v9997
  %v10016 = vld [vmem:[%s0 + $0x2d0] sm:$0xff]
  %v10017 = vld [vmem:[%s0 + $0x2d8] sm:$0xff]
  %v10018 = vld [vmem:[%s0 + $0x2e0] sm:$0xff]
  %v10019 = vld [vmem:[%s0 + $0x2e8] sm:$0xff]
  %v10020 = vld [vmem:[%s0 + $0x2f0] sm:$0xff]
  %v10021 = vld [vmem:[%s0 + $0x2f8] sm:$0xff]
  %v10022 = vld [vmem:[%s0 + $0x300] sm:$0xff]
  %v10023 = vld [vmem:[%s0 + $0x308] sm:$0xff]
  %v10024 = vld [vmem:[%s0 + $0x310] sm:$0xff]
  %v10025 = vld [vmem:[%s0 + $0x318] sm:$0xff]
  %v10026 = vld [vmem:[%s0 + $0x320] sm:$0xff]
  %v10027 = vld [vmem:[%s0 + $0x328] sm:$0xff]
  %v10028 = vld [vmem:[%s0 + $0x330] sm:$0xff]
  %v10029 = vld [vmem:[%s0 + $0x338] sm:$0xff]
  %v10030 = vld [vmem:[%s0 + $0x340] sm:$0xff]
  %v10031 = vld [vmem:[%s0 + $0x348] sm:$0xff]
  %v10032 = vld [vmem:[%s0 + $0x350] sm:$0xff]
  %v10033 = vld [vmem:[%s0 + $0x358] sm:$0xff]
  %v10035 = vsel %vm29, %v10017, 0
  %v10038 = vsel %vm29, %v10019, 0
  %v10041 = vsel %vm29, %v10021, 0
  %v10044 = vsel %vm29, %v10023, 0
  %v10047 = vsel %vm29, %v10025, 0
  %v10050 = vsel %vm29, %v10027, 0
  %v10053 = vsel %vm29, %v10029, 0
  %v10056 = vsel %vm29, %v10031, 0
  %v10059 = vsel %vm29, %v10033, 0
  %10061 = vmatpush.msra.mxu0 1.0
  %10062 = vmatpush.msra.mxu0 1.0
  %10063 = vmatpush.msra.mxu0 1.0
  %10064 = vmatpush.msra.mxu0 1.0
  %10065 = vmatpush.msra.mxu0 1.0
  %10066 = vmatpush.msra.mxu0 1.0
  %10067 = vmatpush.msra.mxu0 1.0
  %10068 = vmatpush.msra.mxu0 1.0
  %10069 = vmatpush.msra.mxu0 1.0
  %10070 = vmatpush.msra.mxu0 1.0
  %10071 = vmatpush.msra.mxu0 1.0
  %10072 = vmatpush.msra.mxu0 1.0
  %10073 = vmatpush.msra.mxu0 1.0
  %10074 = vmatpush.msra.mxu0 1.0
  %10075 = vmatpush.msra.mxu0 1.0
  %10076 = vmatpush.msra.mxu0 1.0
  %v10077 = vand.u32 %v10016, 4294901760
  %v10078 = vsub.f32 %v10016, %v10077
  %v10079 = vand.u32 %v10078, 4294901760
  %v10080 = vsub.f32 %v10078, %v10079
  %v10081 = vand.u32 %v10080, 4294901760
  %10082 = vmatmul.f32.gmra.mxu0 %v10081
  %v10083 = vpop.f32.mrf.mxu0
  %v10084 = vadd.f32 0.0, %v10083
  %v10085 = vand.u32 %v10018, 4294901760
  %v10086 = vsub.f32 %v10018, %v10085
  %v10087 = vand.u32 %v10086, 4294901760
  %v10088 = vsub.f32 %v10086, %v10087
  %v10089 = vand.u32 %v10088, 4294901760
  %10090 = vmatmul.f32.gmra.mxu0 %v10089
  %v10091 = vpop.f32.mrf.mxu0
  %v10092 = vadd.f32 0.0, %v10091
  %v10093 = vand.u32 %v10020, 4294901760
  %v10094 = vsub.f32 %v10020, %v10093
  %v10095 = vand.u32 %v10094, 4294901760
  %v10096 = vsub.f32 %v10094, %v10095
  %v10097 = vand.u32 %v10096, 4294901760
  %10098 = vmatmul.f32.gmra.mxu0 %v10097
  %v10099 = vpop.f32.mrf.mxu0
  %v10100 = vadd.f32 0.0, %v10099
  %v10101 = vand.u32 %v10022, 4294901760
  %v10102 = vsub.f32 %v10022, %v10101
  %v10103 = vand.u32 %v10102, 4294901760
  %v10104 = vsub.f32 %v10102, %v10103
  %v10105 = vand.u32 %v10104, 4294901760
  %10106 = vmatmul.f32.gmra.mxu0 %v10105
  %v10107 = vpop.f32.mrf.mxu0
  %v10108 = vadd.f32 0.0, %v10107
  %v10109 = vand.u32 %v10024, 4294901760
  %v10110 = vsub.f32 %v10024, %v10109
  %v10111 = vand.u32 %v10110, 4294901760
  %v10112 = vsub.f32 %v10110, %v10111
  %v10113 = vand.u32 %v10112, 4294901760
  %10114 = vmatmul.f32.gmra.mxu0 %v10113
  %v10115 = vpop.f32.mrf.mxu0
  %v10116 = vadd.f32 0.0, %v10115
  %v10117 = vand.u32 %v10026, 4294901760
  %v10118 = vsub.f32 %v10026, %v10117
  %v10119 = vand.u32 %v10118, 4294901760
  %v10120 = vsub.f32 %v10118, %v10119
  %v10121 = vand.u32 %v10120, 4294901760
  %10122 = vmatmul.f32.gmra.mxu0 %v10121
  %v10123 = vpop.f32.mrf.mxu0
  %v10124 = vadd.f32 0.0, %v10123
  %v10125 = vand.u32 %v10028, 4294901760
  %v10126 = vsub.f32 %v10028, %v10125
  %v10127 = vand.u32 %v10126, 4294901760
  %v10128 = vsub.f32 %v10126, %v10127
  %v10129 = vand.u32 %v10128, 4294901760
  %10130 = vmatmul.f32.gmra.mxu0 %v10129
  %v10131 = vpop.f32.mrf.mxu0
  %v10132 = vadd.f32 0.0, %v10131
  %v10133 = vand.u32 %v10030, 4294901760
  %v10134 = vsub.f32 %v10030, %v10133
  %v10135 = vand.u32 %v10134, 4294901760
  %v10136 = vsub.f32 %v10134, %v10135
  %v10137 = vand.u32 %v10136, 4294901760
  %10138 = vmatmul.f32.gmra.mxu0 %v10137
  %v10139 = vpop.f32.mrf.mxu0
  %v10140 = vadd.f32 0.0, %v10139
  %v10141 = vand.u32 %v10032, 4294901760
  %v10142 = vsub.f32 %v10032, %v10141
  %v10143 = vand.u32 %v10142, 4294901760
  %v10144 = vsub.f32 %v10142, %v10143
  %v10145 = vand.u32 %v10144, 4294901760
  %10146 = vmatmul.f32.gmra.mxu0 %v10145
  %v10147 = vpop.f32.mrf.mxu0
  %v10148 = vadd.f32 0.0, %v10147
  %10149 = vdwg.mxu0
  %10150 = vmatpush.msra.mxu0 0.0
  %10151 = vmatpush.msra.mxu0 0.0
  %10152 = vmatpush.msra.mxu0 0.0
  %10153 = vmatpush.msra.mxu0 0.0
  %10154 = vmatpush.msra.mxu0 0.0
  %10155 = vmatpush.msra.mxu0 0.0
  %10156 = vmatpush.msra.mxu0 0.0
  %10157 = vmatpush.msra.mxu0 0.0
  %10158 = vmatpush.msra.mxu0 0.0
  %10159 = vmatpush.msra.mxu0 0.0
  %10160 = vmatpush.msra.mxu0 0.0
  %10161 = vmatpush.msra.mxu0 0.0
  %10162 = vmatpush.msra.mxu0 0.0
  %10163 = vmatpush.msra.mxu0 0.0
  %10164 = vmatpush.msra.mxu0 0.0
  %10165 = vmatpush.msra.mxu0 0.0
  %v10166 = vand.u32 %v10016, 4294901760
  %10167 = vmatmul.f32.gmra.mxu0 %v10166
  %v10168 = vpop.f32.mrf.mxu0
  %v10169 = vadd.f32 %v10084, %v10168
  %v10170 = vand.u32 %v10018, 4294901760
  %10171 = vmatmul.f32.gmra.mxu0 %v10170
  %v10172 = vpop.f32.mrf.mxu0
  %v10173 = vadd.f32 %v10092, %v10172
  %v10174 = vand.u32 %v10020, 4294901760
  %10175 = vmatmul.f32.gmra.mxu0 %v10174
  %v10176 = vpop.f32.mrf.mxu0
  %v10177 = vadd.f32 %v10100, %v10176
  %v10178 = vand.u32 %v10022, 4294901760
  %10179 = vmatmul.f32.gmra.mxu0 %v10178
  %v10180 = vpop.f32.mrf.mxu0
  %v10181 = vadd.f32 %v10108, %v10180
  %v10182 = vand.u32 %v10024, 4294901760
  %10183 = vmatmul.f32.gmra.mxu0 %v10182
  %v10184 = vpop.f32.mrf.mxu0
  %v10185 = vadd.f32 %v10116, %v10184
  %v10186 = vand.u32 %v10026, 4294901760
  %10187 = vmatmul.f32.gmra.mxu0 %v10186
  %v10188 = vpop.f32.mrf.mxu0
  %v10189 = vadd.f32 %v10124, %v10188
  %v10190 = vand.u32 %v10028, 4294901760
  %10191 = vmatmul.f32.gmra.mxu0 %v10190
  %v10192 = vpop.f32.mrf.mxu0
  %v10193 = vadd.f32 %v10132, %v10192
  %v10194 = vand.u32 %v10030, 4294901760
  %10195 = vmatmul.f32.gmra.mxu0 %v10194
  %v10196 = vpop.f32.mrf.mxu0
  %v10197 = vadd.f32 %v10140, %v10196
  %v10198 = vand.u32 %v10032, 4294901760
  %10199 = vmatmul.f32.gmra.mxu0 %v10198
  %v10200 = vpop.f32.mrf.mxu0
  %v10201 = vadd.f32 %v10148, %v10200
  %10202 = vdwg.mxu0
  %10203 = vmatpush.msra.mxu0 0.0
  %10204 = vmatpush.msra.mxu0 0.0
  %10205 = vmatpush.msra.mxu0 0.0
  %10206 = vmatpush.msra.mxu0 0.0
  %10207 = vmatpush.msra.mxu0 0.0
  %10208 = vmatpush.msra.mxu0 0.0
  %10209 = vmatpush.msra.mxu0 0.0
  %10210 = vmatpush.msra.mxu0 0.0
  %10211 = vmatpush.msra.mxu0 0.0
  %10212 = vmatpush.msra.mxu0 0.0
  %10213 = vmatpush.msra.mxu0 0.0
  %10214 = vmatpush.msra.mxu0 0.0
  %10215 = vmatpush.msra.mxu0 0.0
  %10216 = vmatpush.msra.mxu0 0.0
  %10217 = vmatpush.msra.mxu0 0.0
  %10218 = vmatpush.msra.mxu0 0.0
  %v10219 = vand.u32 %v10016, 4294901760
  %v10220 = vsub.f32 %v10016, %v10219
  %10221 = vmatmul.f32.gmra.mxu0 %v10220
  %v10222 = vpop.f32.mrf.mxu0
  %v10223 = vadd.f32 %v10169, %v10222
  %v10224 = vand.u32 %v10018, 4294901760
  %v10225 = vsub.f32 %v10018, %v10224
  %10226 = vmatmul.f32.gmra.mxu0 %v10225
  %v10227 = vpop.f32.mrf.mxu0
  %v10228 = vadd.f32 %v10173, %v10227
  %v10229 = vand.u32 %v10020, 4294901760
  %v10230 = vsub.f32 %v10020, %v10229
  %10231 = vmatmul.f32.gmra.mxu0 %v10230
  %v10232 = vpop.f32.mrf.mxu0
  %v10233 = vadd.f32 %v10177, %v10232
  %v10234 = vand.u32 %v10022, 4294901760
  %v10235 = vsub.f32 %v10022, %v10234
  %10236 = vmatmul.f32.gmra.mxu0 %v10235
  %v10237 = vpop.f32.mrf.mxu0
  %v10238 = vadd.f32 %v10181, %v10237
  %v10239 = vand.u32 %v10024, 4294901760
  %v10240 = vsub.f32 %v10024, %v10239
  %10241 = vmatmul.f32.gmra.mxu0 %v10240
  %v10242 = vpop.f32.mrf.mxu0
  %v10243 = vadd.f32 %v10185, %v10242
  %v10244 = vand.u32 %v10026, 4294901760
  %v10245 = vsub.f32 %v10026, %v10244
  %10246 = vmatmul.f32.gmra.mxu0 %v10245
  %v10247 = vpop.f32.mrf.mxu0
  %v10248 = vadd.f32 %v10189, %v10247
  %v10249 = vand.u32 %v10028, 4294901760
  %v10250 = vsub.f32 %v10028, %v10249
  %10251 = vmatmul.f32.gmra.mxu0 %v10250
  %v10252 = vpop.f32.mrf.mxu0
  %v10253 = vadd.f32 %v10193, %v10252
  %v10254 = vand.u32 %v10030, 4294901760
  %v10255 = vsub.f32 %v10030, %v10254
  %10256 = vmatmul.f32.gmra.mxu0 %v10255
  %v10257 = vpop.f32.mrf.mxu0
  %v10258 = vadd.f32 %v10197, %v10257
  %v10259 = vand.u32 %v10032, 4294901760
  %v10260 = vsub.f32 %v10032, %v10259
  %10261 = vmatmul.f32.gmra.mxu0 %v10260
  %v10262 = vpop.f32.mrf.mxu0
  %v10263 = vadd.f32 %v10201, %v10262
  %10264 = vdwg.mxu0
  %10265 = vmatpush.msra.mxu0 1.0
  %10266 = vmatpush.msra.mxu0 1.0
  %10267 = vmatpush.msra.mxu0 1.0
  %10268 = vmatpush.msra.mxu0 1.0
  %10269 = vmatpush.msra.mxu0 1.0
  %10270 = vmatpush.msra.mxu0 1.0
  %10271 = vmatpush.msra.mxu0 1.0
  %10272 = vmatpush.msra.mxu0 1.0
  %10273 = vmatpush.msra.mxu0 1.0
  %10274 = vmatpush.msra.mxu0 1.0
  %10275 = vmatpush.msra.mxu0 1.0
  %10276 = vmatpush.msra.mxu0 1.0
  %10277 = vmatpush.msra.mxu0 1.0
  %10278 = vmatpush.msra.mxu0 1.0
  %10279 = vmatpush.msra.mxu0 1.0
  %10280 = vmatpush.msra.mxu0 1.0
  %v10281 = vand.u32 %v10016, 4294901760
  %v10282 = vsub.f32 %v10016, %v10281
  %v10283 = vand.u32 %v10282, 4294901760
  %10284 = vmatmul.f32.gmra.mxu0 %v10283
  %v10285 = vpop.f32.mrf.mxu0
  %v10286 = vadd.f32 %v10223, %v10285
  %v10287 = vand.u32 %v10018, 4294901760
  %v10288 = vsub.f32 %v10018, %v10287
  %v10289 = vand.u32 %v10288, 4294901760
  %10290 = vmatmul.f32.gmra.mxu0 %v10289
  %v10291 = vpop.f32.mrf.mxu0
  %v10292 = vadd.f32 %v10228, %v10291
  %v10293 = vand.u32 %v10020, 4294901760
  %v10294 = vsub.f32 %v10020, %v10293
  %v10295 = vand.u32 %v10294, 4294901760
  %10296 = vmatmul.f32.gmra.mxu0 %v10295
  %v10297 = vpop.f32.mrf.mxu0
  %v10298 = vadd.f32 %v10233, %v10297
  %v10299 = vand.u32 %v10022, 4294901760
  %v10300 = vsub.f32 %v10022, %v10299
  %v10301 = vand.u32 %v10300, 4294901760
  %10302 = vmatmul.f32.gmra.mxu0 %v10301
  %v10303 = vpop.f32.mrf.mxu0
  %v10304 = vadd.f32 %v10238, %v10303
  %v10305 = vand.u32 %v10024, 4294901760
  %v10306 = vsub.f32 %v10024, %v10305
  %v10307 = vand.u32 %v10306, 4294901760
  %10308 = vmatmul.f32.gmra.mxu0 %v10307
  %v10309 = vpop.f32.mrf.mxu0
  %v10310 = vadd.f32 %v10243, %v10309
  %v10311 = vand.u32 %v10026, 4294901760
  %v10312 = vsub.f32 %v10026, %v10311
  %v10313 = vand.u32 %v10312, 4294901760
  %10314 = vmatmul.f32.gmra.mxu0 %v10313
  %v10315 = vpop.f32.mrf.mxu0
  %v10316 = vadd.f32 %v10248, %v10315
  %v10317 = vand.u32 %v10028, 4294901760
  %v10318 = vsub.f32 %v10028, %v10317
  %v10319 = vand.u32 %v10318, 4294901760
  %10320 = vmatmul.f32.gmra.mxu0 %v10319
  %v10321 = vpop.f32.mrf.mxu0
  %v10322 = vadd.f32 %v10253, %v10321
  %v10323 = vand.u32 %v10030, 4294901760
  %v10324 = vsub.f32 %v10030, %v10323
  %v10325 = vand.u32 %v10324, 4294901760
  %10326 = vmatmul.f32.gmra.mxu0 %v10325
  %v10327 = vpop.f32.mrf.mxu0
  %v10328 = vadd.f32 %v10258, %v10327
  %v10329 = vand.u32 %v10032, 4294901760
  %v10330 = vsub.f32 %v10032, %v10329
  %v10331 = vand.u32 %v10330, 4294901760
  %10332 = vmatmul.f32.gmra.mxu0 %v10331
  %v10333 = vpop.f32.mrf.mxu0
  %v10334 = vadd.f32 %v10263, %v10333
  %10335 = vdwg.mxu0
  %10336 = vmatpush.msra.mxu0 0.0
  %10337 = vmatpush.msra.mxu0 0.0
  %10338 = vmatpush.msra.mxu0 0.0
  %10339 = vmatpush.msra.mxu0 0.0
  %10340 = vmatpush.msra.mxu0 0.0
  %10341 = vmatpush.msra.mxu0 0.0
  %10342 = vmatpush.msra.mxu0 0.0
  %10343 = vmatpush.msra.mxu0 0.0
  %10344 = vmatpush.msra.mxu0 0.0
  %10345 = vmatpush.msra.mxu0 0.0
  %10346 = vmatpush.msra.mxu0 0.0
  %10347 = vmatpush.msra.mxu0 0.0
  %10348 = vmatpush.msra.mxu0 0.0
  %10349 = vmatpush.msra.mxu0 0.0
  %10350 = vmatpush.msra.mxu0 0.0
  %10351 = vmatpush.msra.mxu0 0.0
  %v10352 = vand.u32 %v10016, 4294901760
  %10353 = vmatmul.f32.gmra.mxu0 %v10352
  %v10354 = vpop.f32.mrf.mxu0
  %v10355 = vadd.f32 %v10286, %v10354
  %v10356 = vand.u32 %v10018, 4294901760
  %10357 = vmatmul.f32.gmra.mxu0 %v10356
  %v10358 = vpop.f32.mrf.mxu0
  %v10359 = vadd.f32 %v10292, %v10358
  %v10360 = vand.u32 %v10020, 4294901760
  %10361 = vmatmul.f32.gmra.mxu0 %v10360
  %v10362 = vpop.f32.mrf.mxu0
  %v10363 = vadd.f32 %v10298, %v10362
  %v10364 = vand.u32 %v10022, 4294901760
  %10365 = vmatmul.f32.gmra.mxu0 %v10364
  %v10366 = vpop.f32.mrf.mxu0
  %v10367 = vadd.f32 %v10304, %v10366
  %v10368 = vand.u32 %v10024, 4294901760
  %10369 = vmatmul.f32.gmra.mxu0 %v10368
  %v10370 = vpop.f32.mrf.mxu0
  %v10371 = vadd.f32 %v10310, %v10370
  %v10372 = vand.u32 %v10026, 4294901760
  %10373 = vmatmul.f32.gmra.mxu0 %v10372
  %v10374 = vpop.f32.mrf.mxu0
  %v10375 = vadd.f32 %v10316, %v10374
  %v10376 = vand.u32 %v10028, 4294901760
  %10377 = vmatmul.f32.gmra.mxu0 %v10376
  %v10378 = vpop.f32.mrf.mxu0
  %v10379 = vadd.f32 %v10322, %v10378
  %v10380 = vand.u32 %v10030, 4294901760
  %10381 = vmatmul.f32.gmra.mxu0 %v10380
  %v10382 = vpop.f32.mrf.mxu0
  %v10383 = vadd.f32 %v10328, %v10382
  %v10384 = vand.u32 %v10032, 4294901760
  %10385 = vmatmul.f32.gmra.mxu0 %v10384
  %v10386 = vpop.f32.mrf.mxu0
  %v10387 = vadd.f32 %v10334, %v10386
  %10388 = vdwg.mxu0
  %10389 = vmatpush.msra.mxu0 1.0
  %10390 = vmatpush.msra.mxu0 1.0
  %10391 = vmatpush.msra.mxu0 1.0
  %10392 = vmatpush.msra.mxu0 1.0
  %10393 = vmatpush.msra.mxu0 1.0
  %10394 = vmatpush.msra.mxu0 1.0
  %10395 = vmatpush.msra.mxu0 1.0
  %10396 = vmatpush.msra.mxu0 1.0
  %10397 = vmatpush.msra.mxu0 1.0
  %10398 = vmatpush.msra.mxu0 1.0
  %10399 = vmatpush.msra.mxu0 1.0
  %10400 = vmatpush.msra.mxu0 1.0
  %10401 = vmatpush.msra.mxu0 1.0
  %10402 = vmatpush.msra.mxu0 1.0
  %10403 = vmatpush.msra.mxu0 1.0
  %10404 = vmatpush.msra.mxu0 1.0
  %v10405 = vand.u32 %v10016, 4294901760
  %10406 = vmatmul.f32.gmra.mxu0 %v10405
  %v10407 = vpop.f32.mrf.mxu0
  %v10408 = vadd.f32 %v10355, %v10407
  %v10409 = vand.u32 %v10018, 4294901760
  %10410 = vmatmul.f32.gmra.mxu0 %v10409
  %v10411 = vpop.f32.mrf.mxu0
  %v10412 = vadd.f32 %v10359, %v10411
  %v10413 = vand.u32 %v10020, 4294901760
  %10414 = vmatmul.f32.gmra.mxu0 %v10413
  %v10415 = vpop.f32.mrf.mxu0
  %v10416 = vadd.f32 %v10363, %v10415
  %v10417 = vand.u32 %v10022, 4294901760
  %10418 = vmatmul.f32.gmra.mxu0 %v10417
  %v10419 = vpop.f32.mrf.mxu0
  %v10420 = vadd.f32 %v10367, %v10419
  %v10421 = vand.u32 %v10024, 4294901760
  %10422 = vmatmul.f32.gmra.mxu0 %v10421
  %v10423 = vpop.f32.mrf.mxu0
  %v10424 = vadd.f32 %v10371, %v10423
  %v10425 = vand.u32 %v10026, 4294901760
  %10426 = vmatmul.f32.gmra.mxu0 %v10425
  %v10427 = vpop.f32.mrf.mxu0
  %v10428 = vadd.f32 %v10375, %v10427
  %v10429 = vand.u32 %v10028, 4294901760
  %10430 = vmatmul.f32.gmra.mxu0 %v10429
  %v10431 = vpop.f32.mrf.mxu0
  %v10432 = vadd.f32 %v10379, %v10431
  %v10433 = vand.u32 %v10030, 4294901760
  %10434 = vmatmul.f32.gmra.mxu0 %v10433
  %v10435 = vpop.f32.mrf.mxu0
  %v10436 = vadd.f32 %v10383, %v10435
  %v10437 = vand.u32 %v10032, 4294901760
  %10438 = vmatmul.f32.gmra.mxu0 %v10437
  %v10439 = vpop.f32.mrf.mxu0
  %v10440 = vadd.f32 %v10387, %v10439
  %10441 = vdwg.mxu0
  %10442 = vmatpush.msra.mxu0 0.0
  %10443 = vmatpush.msra.mxu0 0.0
  %10444 = vmatpush.msra.mxu0 0.0
  %10445 = vmatpush.msra.mxu0 0.0
  %10446 = vmatpush.msra.mxu0 0.0
  %10447 = vmatpush.msra.mxu0 0.0
  %10448 = vmatpush.msra.mxu0 0.0
  %v10449 = vand.u32 %v59, 4294901760
  %10450 = vmatpush.msra.mxu0 %v10449
  %10451 = vmatpush.msra.mxu0 1.0
  %10452 = vmatpush.msra.mxu0 1.0
  %10453 = vmatpush.msra.mxu0 1.0
  %10454 = vmatpush.msra.mxu0 1.0
  %10455 = vmatpush.msra.mxu0 1.0
  %10456 = vmatpush.msra.mxu0 1.0
  %10457 = vmatpush.msra.mxu0 1.0
  %10458 = vmatpush.msra.mxu0 1.0
  %v10459 = vand.u32 %v10035, 4294901760
  %v10460 = vsub.f32 %v10035, %v10459
  %v10461 = vand.u32 %v10460, 4294901760
  %v10462 = vsub.f32 %v10460, %v10461
  %v10463 = vand.u32 %v10462, 4294901760
  %10464 = vmatmul.f32.gmra.mxu0 %v10463
  %v10465 = vpop.f32.mrf.mxu0
  %v10466 = vadd.f32 %v10408, %v10465
  %v10467 = vand.u32 %v10038, 4294901760
  %v10468 = vsub.f32 %v10038, %v10467
  %v10469 = vand.u32 %v10468, 4294901760
  %v10470 = vsub.f32 %v10468, %v10469
  %v10471 = vand.u32 %v10470, 4294901760
  %10472 = vmatmul.f32.gmra.mxu0 %v10471
  %v10473 = vpop.f32.mrf.mxu0
  %v10474 = vadd.f32 %v10412, %v10473
  %v10475 = vand.u32 %v10041, 4294901760
  %v10476 = vsub.f32 %v10041, %v10475
  %v10477 = vand.u32 %v10476, 4294901760
  %v10478 = vsub.f32 %v10476, %v10477
  %v10479 = vand.u32 %v10478, 4294901760
  %10480 = vmatmul.f32.gmra.mxu0 %v10479
  %v10481 = vpop.f32.mrf.mxu0
  %v10482 = vadd.f32 %v10416, %v10481
  %v10483 = vand.u32 %v10044, 4294901760
  %v10484 = vsub.f32 %v10044, %v10483
  %v10485 = vand.u32 %v10484, 4294901760
  %v10486 = vsub.f32 %v10484, %v10485
  %v10487 = vand.u32 %v10486, 4294901760
  %10488 = vmatmul.f32.gmra.mxu0 %v10487
  %v10489 = vpop.f32.mrf.mxu0
  %v10490 = vadd.f32 %v10420, %v10489
  %v10491 = vand.u32 %v10047, 4294901760
  %v10492 = vsub.f32 %v10047, %v10491
  %v10493 = vand.u32 %v10492, 4294901760
  %v10494 = vsub.f32 %v10492, %v10493
  %v10495 = vand.u32 %v10494, 4294901760
  %10496 = vmatmul.f32.gmra.mxu0 %v10495
  %v10497 = vpop.f32.mrf.mxu0
  %v10498 = vadd.f32 %v10424, %v10497
  %v10499 = vand.u32 %v10050, 4294901760
  %v10500 = vsub.f32 %v10050, %v10499
  %v10501 = vand.u32 %v10500, 4294901760
  %v10502 = vsub.f32 %v10500, %v10501
  %v10503 = vand.u32 %v10502, 4294901760
  %10504 = vmatmul.f32.gmra.mxu0 %v10503
  %v10505 = vpop.f32.mrf.mxu0
  %v10506 = vadd.f32 %v10428, %v10505
  %v10507 = vand.u32 %v10053, 4294901760
  %v10508 = vsub.f32 %v10053, %v10507
  %v10509 = vand.u32 %v10508, 4294901760
  %v10510 = vsub.f32 %v10508, %v10509
  %v10511 = vand.u32 %v10510, 4294901760
  %10512 = vmatmul.f32.gmra.mxu0 %v10511
  %v10513 = vpop.f32.mrf.mxu0
  %v10514 = vadd.f32 %v10432, %v10513
  %v10515 = vand.u32 %v10056, 4294901760
  %v10516 = vsub.f32 %v10056, %v10515
  %v10517 = vand.u32 %v10516, 4294901760
  %v10518 = vsub.f32 %v10516, %v10517
  %v10519 = vand.u32 %v10518, 4294901760
  %10520 = vmatmul.f32.gmra.mxu0 %v10519
  %v10521 = vpop.f32.mrf.mxu0
  %v10522 = vadd.f32 %v10436, %v10521
  %v10523 = vand.u32 %v10059, 4294901760
  %v10524 = vsub.f32 %v10059, %v10523
  %v10525 = vand.u32 %v10524, 4294901760
  %v10526 = vsub.f32 %v10524, %v10525
  %v10527 = vand.u32 %v10526, 4294901760
  %10528 = vmatmul.f32.gmra.mxu0 %v10527
  %v10529 = vpop.f32.mrf.mxu0
  %v10530 = vadd.f32 %v10440, %v10529
  %10531 = vdwg.mxu0
  %10532 = vmatpush.msra.mxu0 0.0
  %10533 = vmatpush.msra.mxu0 0.0
  %10534 = vmatpush.msra.mxu0 0.0
  %10535 = vmatpush.msra.mxu0 0.0
  %10536 = vmatpush.msra.mxu0 0.0
  %10537 = vmatpush.msra.mxu0 0.0
  %10538 = vmatpush.msra.mxu0 0.0
  %v10539 = vand.u32 %v59, 4294901760
  %v10540 = vsub.f32 %v59, %v10539
  %v10541 = vand.u32 %v10540, 4294901760
  %v10542 = vsub.f32 %v10540, %v10541
  %v10543 = vand.u32 %v10542, 4294901760
  %10544 = vmatpush.msra.mxu0 %v10543
  %10545 = vmatpush.msra.mxu0 0.0
  %10546 = vmatpush.msra.mxu0 0.0
  %10547 = vmatpush.msra.mxu0 0.0
  %10548 = vmatpush.msra.mxu0 0.0
  %10549 = vmatpush.msra.mxu0 0.0
  %10550 = vmatpush.msra.mxu0 0.0
  %10551 = vmatpush.msra.mxu0 0.0
  %10552 = vmatpush.msra.mxu0 0.0
  %v10553 = vand.u32 %v10035, 4294901760
  %10554 = vmatmul.f32.gmra.mxu0 %v10553
  %v10555 = vpop.f32.mrf.mxu0
  %v10556 = vadd.f32 %v10466, %v10555
  %v10557 = vand.u32 %v10038, 4294901760
  %10558 = vmatmul.f32.gmra.mxu0 %v10557
  %v10559 = vpop.f32.mrf.mxu0
  %v10560 = vadd.f32 %v10474, %v10559
  %v10561 = vand.u32 %v10041, 4294901760
  %10562 = vmatmul.f32.gmra.mxu0 %v10561
  %v10563 = vpop.f32.mrf.mxu0
  %v10564 = vadd.f32 %v10482, %v10563
  %v10565 = vand.u32 %v10044, 4294901760
  %10566 = vmatmul.f32.gmra.mxu0 %v10565
  %v10567 = vpop.f32.mrf.mxu0
  %v10568 = vadd.f32 %v10490, %v10567
  %v10569 = vand.u32 %v10047, 4294901760
  %10570 = vmatmul.f32.gmra.mxu0 %v10569
  %v10571 = vpop.f32.mrf.mxu0
  %v10572 = vadd.f32 %v10498, %v10571
  %v10573 = vand.u32 %v10050, 4294901760
  %10574 = vmatmul.f32.gmra.mxu0 %v10573
  %v10575 = vpop.f32.mrf.mxu0
  %v10576 = vadd.f32 %v10506, %v10575
  %v10577 = vand.u32 %v10053, 4294901760
  %10578 = vmatmul.f32.gmra.mxu0 %v10577
  %v10579 = vpop.f32.mrf.mxu0
  %v10580 = vadd.f32 %v10514, %v10579
  %v10581 = vand.u32 %v10056, 4294901760
  %10582 = vmatmul.f32.gmra.mxu0 %v10581
  %v10583 = vpop.f32.mrf.mxu0
  %v10584 = vadd.f32 %v10522, %v10583
  %v10585 = vand.u32 %v10059, 4294901760
  %10586 = vmatmul.f32.gmra.mxu0 %v10585
  %v10587 = vpop.f32.mrf.mxu0
  %v10588 = vadd.f32 %v10530, %v10587
  %10589 = vdwg.mxu0
  %10590 = vmatpush.msra.mxu0 0.0
  %10591 = vmatpush.msra.mxu0 0.0
  %10592 = vmatpush.msra.mxu0 0.0
  %10593 = vmatpush.msra.mxu0 0.0
  %10594 = vmatpush.msra.mxu0 0.0
  %10595 = vmatpush.msra.mxu0 0.0
  %10596 = vmatpush.msra.mxu0 0.0
  %v10597 = vand.u32 %v59, 4294901760
  %v10598 = vsub.f32 %v59, %v10597
  %10599 = vmatpush.msra.mxu0 %v10598
  %10600 = vmatpush.msra.mxu0 0.0
  %10601 = vmatpush.msra.mxu0 0.0
  %10602 = vmatpush.msra.mxu0 0.0
  %10603 = vmatpush.msra.mxu0 0.0
  %10604 = vmatpush.msra.mxu0 0.0
  %10605 = vmatpush.msra.mxu0 0.0
  %10606 = vmatpush.msra.mxu0 0.0
  %10607 = vmatpush.msra.mxu0 0.0
  %v10608 = vand.u32 %v10035, 4294901760
  %v10609 = vsub.f32 %v10035, %v10608
  %10610 = vmatmul.f32.gmra.mxu0 %v10609
  %v10611 = vpop.f32.mrf.mxu0
  %v10612 = vadd.f32 %v10556, %v10611
  %v10613 = vand.u32 %v10038, 4294901760
  %v10614 = vsub.f32 %v10038, %v10613
  %10615 = vmatmul.f32.gmra.mxu0 %v10614
  %v10616 = vpop.f32.mrf.mxu0
  %v10617 = vadd.f32 %v10560, %v10616
  %v10618 = vand.u32 %v10041, 4294901760
  %v10619 = vsub.f32 %v10041, %v10618
  %10620 = vmatmul.f32.gmra.mxu0 %v10619
  %v10621 = vpop.f32.mrf.mxu0
  %v10622 = vadd.f32 %v10564, %v10621
  %v10623 = vand.u32 %v10044, 4294901760
  %v10624 = vsub.f32 %v10044, %v10623
  %10625 = vmatmul.f32.gmra.mxu0 %v10624
  %v10626 = vpop.f32.mrf.mxu0
  %v10627 = vadd.f32 %v10568, %v10626
  %v10628 = vand.u32 %v10047, 4294901760
  %v10629 = vsub.f32 %v10047, %v10628
  %10630 = vmatmul.f32.gmra.mxu0 %v10629
  %v10631 = vpop.f32.mrf.mxu0
  %v10632 = vadd.f32 %v10572, %v10631
  %v10633 = vand.u32 %v10050, 4294901760
  %v10634 = vsub.f32 %v10050, %v10633
  %10635 = vmatmul.f32.gmra.mxu0 %v10634
  %v10636 = vpop.f32.mrf.mxu0
  %v10637 = vadd.f32 %v10576, %v10636
  %v10638 = vand.u32 %v10053, 4294901760
  %v10639 = vsub.f32 %v10053, %v10638
  %10640 = vmatmul.f32.gmra.mxu0 %v10639
  %v10641 = vpop.f32.mrf.mxu0
  %v10642 = vadd.f32 %v10580, %v10641
  %v10643 = vand.u32 %v10056, 4294901760
  %v10644 = vsub.f32 %v10056, %v10643
  %10645 = vmatmul.f32.gmra.mxu0 %v10644
  %v10646 = vpop.f32.mrf.mxu0
  %v10647 = vadd.f32 %v10584, %v10646
  %v10648 = vand.u32 %v10059, 4294901760
  %v10649 = vsub.f32 %v10059, %v10648
  %10650 = vmatmul.f32.gmra.mxu0 %v10649
  %v10651 = vpop.f32.mrf.mxu0
  %v10652 = vadd.f32 %v10588, %v10651
  %10653 = vdwg.mxu0
  %10654 = vmatpush.msra.mxu0 0.0
  %10655 = vmatpush.msra.mxu0 0.0
  %10656 = vmatpush.msra.mxu0 0.0
  %10657 = vmatpush.msra.mxu0 0.0
  %10658 = vmatpush.msra.mxu0 0.0
  %10659 = vmatpush.msra.mxu0 0.0
  %10660 = vmatpush.msra.mxu0 0.0
  %v10661 = vand.u32 %v59, 4294901760
  %10662 = vmatpush.msra.mxu0 %v10661
  %10663 = vmatpush.msra.mxu0 1.0
  %10664 = vmatpush.msra.mxu0 1.0
  %10665 = vmatpush.msra.mxu0 1.0
  %10666 = vmatpush.msra.mxu0 1.0
  %10667 = vmatpush.msra.mxu0 1.0
  %10668 = vmatpush.msra.mxu0 1.0
  %10669 = vmatpush.msra.mxu0 1.0
  %10670 = vmatpush.msra.mxu0 1.0
  %v10671 = vand.u32 %v10035, 4294901760
  %v10672 = vsub.f32 %v10035, %v10671
  %v10673 = vand.u32 %v10672, 4294901760
  %10674 = vmatmul.f32.gmra.mxu0 %v10673
  %v10675 = vpop.f32.mrf.mxu0
  %v10676 = vadd.f32 %v10612, %v10675
  %v10677 = vand.u32 %v10038, 4294901760
  %v10678 = vsub.f32 %v10038, %v10677
  %v10679 = vand.u32 %v10678, 4294901760
  %10680 = vmatmul.f32.gmra.mxu0 %v10679
  %v10681 = vpop.f32.mrf.mxu0
  %v10682 = vadd.f32 %v10617, %v10681
  %v10683 = vand.u32 %v10041, 4294901760
  %v10684 = vsub.f32 %v10041, %v10683
  %v10685 = vand.u32 %v10684, 4294901760
  %10686 = vmatmul.f32.gmra.mxu0 %v10685
  %v10687 = vpop.f32.mrf.mxu0
  %v10688 = vadd.f32 %v10622, %v10687
  %v10689 = vand.u32 %v10044, 4294901760
  %v10690 = vsub.f32 %v10044, %v10689
  %v10691 = vand.u32 %v10690, 4294901760
  %10692 = vmatmul.f32.gmra.mxu0 %v10691
  %v10693 = vpop.f32.mrf.mxu0
  %v10694 = vadd.f32 %v10627, %v10693
  %v10695 = vand.u32 %v10047, 4294901760
  %v10696 = vsub.f32 %v10047, %v10695
  %v10697 = vand.u32 %v10696, 4294901760
  %10698 = vmatmul.f32.gmra.mxu0 %v10697
  %v10699 = vpop.f32.mrf.mxu0
  %v10700 = vadd.f32 %v10632, %v10699
  %v10701 = vand.u32 %v10050, 4294901760
  %v10702 = vsub.f32 %v10050, %v10701
  %v10703 = vand.u32 %v10702, 4294901760
  %10704 = vmatmul.f32.gmra.mxu0 %v10703
  %v10705 = vpop.f32.mrf.mxu0
  %v10706 = vadd.f32 %v10637, %v10705
  %v10707 = vand.u32 %v10053, 4294901760
  %v10708 = vsub.f32 %v10053, %v10707
  %v10709 = vand.u32 %v10708, 4294901760
  %10710 = vmatmul.f32.gmra.mxu0 %v10709
  %v10711 = vpop.f32.mrf.mxu0
  %v10712 = vadd.f32 %v10642, %v10711
  %v10713 = vand.u32 %v10056, 4294901760
  %v10714 = vsub.f32 %v10056, %v10713
  %v10715 = vand.u32 %v10714, 4294901760
  %10716 = vmatmul.f32.gmra.mxu0 %v10715
  %v10717 = vpop.f32.mrf.mxu0
  %v10718 = vadd.f32 %v10647, %v10717
  %v10719 = vand.u32 %v10059, 4294901760
  %v10720 = vsub.f32 %v10059, %v10719
  %v10721 = vand.u32 %v10720, 4294901760
  %10722 = vmatmul.f32.gmra.mxu0 %v10721
  %v10723 = vpop.f32.mrf.mxu0
  %v10724 = vadd.f32 %v10652, %v10723
  %10725 = vdwg.mxu0
  %10726 = vmatpush.msra.mxu0 0.0
  %10727 = vmatpush.msra.mxu0 0.0
  %10728 = vmatpush.msra.mxu0 0.0
  %10729 = vmatpush.msra.mxu0 0.0
  %10730 = vmatpush.msra.mxu0 0.0
  %10731 = vmatpush.msra.mxu0 0.0
  %10732 = vmatpush.msra.mxu0 0.0
  %v10733 = vand.u32 %v59, 4294901760
  %v10734 = vsub.f32 %v59, %v10733
  %v10735 = vand.u32 %v10734, 4294901760
  %10736 = vmatpush.msra.mxu0 %v10735
  %10737 = vmatpush.msra.mxu0 0.0
  %10738 = vmatpush.msra.mxu0 0.0
  %10739 = vmatpush.msra.mxu0 0.0
  %10740 = vmatpush.msra.mxu0 0.0
  %10741 = vmatpush.msra.mxu0 0.0
  %10742 = vmatpush.msra.mxu0 0.0
  %10743 = vmatpush.msra.mxu0 0.0
  %10744 = vmatpush.msra.mxu0 0.0
  %v10745 = vand.u32 %v10035, 4294901760
  %10746 = vmatmul.f32.gmra.mxu0 %v10745
  %v10747 = vpop.f32.mrf.mxu0
  %v10748 = vadd.f32 %v10676, %v10747
  %v10749 = vand.u32 %v10038, 4294901760
  %10750 = vmatmul.f32.gmra.mxu0 %v10749
  %v10751 = vpop.f32.mrf.mxu0
  %v10752 = vadd.f32 %v10682, %v10751
  %v10753 = vand.u32 %v10041, 4294901760
  %10754 = vmatmul.f32.gmra.mxu0 %v10753
  %v10755 = vpop.f32.mrf.mxu0
  %v10756 = vadd.f32 %v10688, %v10755
  %v10757 = vand.u32 %v10044, 4294901760
  %10758 = vmatmul.f32.gmra.mxu0 %v10757
  %v10759 = vpop.f32.mrf.mxu0
  %v10760 = vadd.f32 %v10694, %v10759
  %v10761 = vand.u32 %v10047, 4294901760
  %10762 = vmatmul.f32.gmra.mxu0 %v10761
  %v10763 = vpop.f32.mrf.mxu0
  %v10764 = vadd.f32 %v10700, %v10763
  %v10765 = vand.u32 %v10050, 4294901760
  %10766 = vmatmul.f32.gmra.mxu0 %v10765
  %v10767 = vpop.f32.mrf.mxu0
  %v10768 = vadd.f32 %v10706, %v10767
  %v10769 = vand.u32 %v10053, 4294901760
  %10770 = vmatmul.f32.gmra.mxu0 %v10769
  %v10771 = vpop.f32.mrf.mxu0
  %v10772 = vadd.f32 %v10712, %v10771
  %v10773 = vand.u32 %v10056, 4294901760
  %10774 = vmatmul.f32.gmra.mxu0 %v10773
  %v10775 = vpop.f32.mrf.mxu0
  %v10776 = vadd.f32 %v10718, %v10775
  %v10777 = vand.u32 %v10059, 4294901760
  %10778 = vmatmul.f32.gmra.mxu0 %v10777
  %v10779 = vpop.f32.mrf.mxu0
  %v10780 = vadd.f32 %v10724, %v10779
  %10781 = vdwg.mxu0
  %10782 = vmatpush.msra.mxu0 0.0
  %10783 = vmatpush.msra.mxu0 0.0
  %10784 = vmatpush.msra.mxu0 0.0
  %10785 = vmatpush.msra.mxu0 0.0
  %10786 = vmatpush.msra.mxu0 0.0
  %10787 = vmatpush.msra.mxu0 0.0
  %10788 = vmatpush.msra.mxu0 0.0
  %v10789 = vand.u32 %v59, 4294901760
  %10790 = vmatpush.msra.mxu0 %v10789
  %10791 = vmatpush.msra.mxu0 1.0
  %10792 = vmatpush.msra.mxu0 1.0
  %10793 = vmatpush.msra.mxu0 1.0
  %10794 = vmatpush.msra.mxu0 1.0
  %10795 = vmatpush.msra.mxu0 1.0
  %10796 = vmatpush.msra.mxu0 1.0
  %10797 = vmatpush.msra.mxu0 1.0
  %10798 = vmatpush.msra.mxu0 1.0
  %v10799 = vand.u32 %v10035, 4294901760
  %10800 = vmatmul.f32.gmra.mxu0 %v10799
  %v10801 = vpop.f32.mrf.mxu0
  %v10802 = vadd.f32 %v10748, %v10801
  %v10803 = vand.u32 %v10038, 4294901760
  %10804 = vmatmul.f32.gmra.mxu0 %v10803
  %v10805 = vpop.f32.mrf.mxu0
  %v10806 = vadd.f32 %v10752, %v10805
  %v10807 = vand.u32 %v10041, 4294901760
  %10808 = vmatmul.f32.gmra.mxu0 %v10807
  %v10809 = vpop.f32.mrf.mxu0
  %v10810 = vadd.f32 %v10756, %v10809
  %v10811 = vand.u32 %v10044, 4294901760
  %10812 = vmatmul.f32.gmra.mxu0 %v10811
  %v10813 = vpop.f32.mrf.mxu0
  %v10814 = vadd.f32 %v10760, %v10813
  %v10815 = vand.u32 %v10047, 4294901760
  %10816 = vmatmul.f32.gmra.mxu0 %v10815
  %v10817 = vpop.f32.mrf.mxu0
  %v10818 = vadd.f32 %v10764, %v10817
  %v10819 = vand.u32 %v10050, 4294901760
  %10820 = vmatmul.f32.gmra.mxu0 %v10819
  %v10821 = vpop.f32.mrf.mxu0
  %v10822 = vadd.f32 %v10768, %v10821
  %v10823 = vand.u32 %v10053, 4294901760
  %10824 = vmatmul.f32.gmra.mxu0 %v10823
  %v10825 = vpop.f32.mrf.mxu0
  %v10826 = vadd.f32 %v10772, %v10825
  %v10827 = vand.u32 %v10056, 4294901760
  %10828 = vmatmul.f32.gmra.mxu0 %v10827
  %v10829 = vpop.f32.mrf.mxu0
  %v10830 = vadd.f32 %v10776, %v10829
  %v10831 = vand.u32 %v10059, 4294901760
  %10832 = vmatmul.f32.gmra.mxu0 %v10831
  %v10833 = vpop.f32.mrf.mxu0
  %v10834 = vadd.f32 %v10780, %v10833
  %10835 = vdwg.mxu0
  %v10836 = vmul.f32 %v10016, %v10016
  %v10837 = vmul.f32 %v10017, %v10017
  %v10838 = vmul.f32 %v10018, %v10018
  %v10839 = vmul.f32 %v10019, %v10019
  %v10840 = vmul.f32 %v10020, %v10020
  %v10841 = vmul.f32 %v10021, %v10021
  %v10842 = vmul.f32 %v10022, %v10022
  %v10843 = vmul.f32 %v10023, %v10023
  %v10844 = vmul.f32 %v10024, %v10024
  %v10845 = vmul.f32 %v10025, %v10025
  %v10846 = vmul.f32 %v10026, %v10026
  %v10847 = vmul.f32 %v10027, %v10027
  %v10848 = vmul.f32 %v10028, %v10028
  %v10849 = vmul.f32 %v10029, %v10029
  %v10850 = vmul.f32 %v10030, %v10030
  %v10851 = vmul.f32 %v10031, %v10031
  %v10852 = vmul.f32 %v10032, %v10032
  %v10853 = vmul.f32 %v10033, %v10033
  %v10855 = vsel %vm29, %v10837, 0
  %v10858 = vsel %vm29, %v10839, 0
  %v10861 = vsel %vm29, %v10841, 0
  %v10864 = vsel %vm29, %v10843, 0
  %v10867 = vsel %vm29, %v10845, 0
  %v10870 = vsel %vm29, %v10847, 0
  %v10873 = vsel %vm29, %v10849, 0
  %v10876 = vsel %vm29, %v10851, 0
  %v10879 = vsel %vm29, %v10853, 0
  %10881 = vmatpush.msra.mxu0 1.0
  %10882 = vmatpush.msra.mxu0 1.0
  %10883 = vmatpush.msra.mxu0 1.0
  %10884 = vmatpush.msra.mxu0 1.0
  %10885 = vmatpush.msra.mxu0 1.0
  %10886 = vmatpush.msra.mxu0 1.0
  %10887 = vmatpush.msra.mxu0 1.0
  %10888 = vmatpush.msra.mxu0 1.0
  %10889 = vmatpush.msra.mxu0 1.0
  %10890 = vmatpush.msra.mxu0 1.0
  %10891 = vmatpush.msra.mxu0 1.0
  %10892 = vmatpush.msra.mxu0 1.0
  %10893 = vmatpush.msra.mxu0 1.0
  %10894 = vmatpush.msra.mxu0 1.0
  %10895 = vmatpush.msra.mxu0 1.0
  %10896 = vmatpush.msra.mxu0 1.0
  %v10897 = vand.u32 %v10836, 4294901760
  %v10898 = vsub.f32 %v10836, %v10897
  %v10899 = vand.u32 %v10898, 4294901760
  %v10900 = vsub.f32 %v10898, %v10899
  %v10901 = vand.u32 %v10900, 4294901760
  %10902 = vmatmul.f32.gmra.mxu0 %v10901
  %v10903 = vpop.f32.mrf.mxu0
  %v10904 = vadd.f32 0.0, %v10903
  %v10905 = vand.u32 %v10838, 4294901760
  %v10906 = vsub.f32 %v10838, %v10905
  %v10907 = vand.u32 %v10906, 4294901760
  %v10908 = vsub.f32 %v10906, %v10907
  %v10909 = vand.u32 %v10908, 4294901760
  %10910 = vmatmul.f32.gmra.mxu0 %v10909
  %v10911 = vpop.f32.mrf.mxu0
  %v10912 = vadd.f32 0.0, %v10911
  %v10913 = vand.u32 %v10840, 4294901760
  %v10914 = vsub.f32 %v10840, %v10913
  %v10915 = vand.u32 %v10914, 4294901760
  %v10916 = vsub.f32 %v10914, %v10915
  %v10917 = vand.u32 %v10916, 4294901760
  %10918 = vmatmul.f32.gmra.mxu0 %v10917
  %v10919 = vpop.f32.mrf.mxu0
  %v10920 = vadd.f32 0.0, %v10919
  %v10921 = vand.u32 %v10842, 4294901760
  %v10922 = vsub.f32 %v10842, %v10921
  %v10923 = vand.u32 %v10922, 4294901760
  %v10924 = vsub.f32 %v10922, %v10923
  %v10925 = vand.u32 %v10924, 4294901760
  %10926 = vmatmul.f32.gmra.mxu0 %v10925
  %v10927 = vpop.f32.mrf.mxu0
  %v10928 = vadd.f32 0.0, %v10927
  %v10929 = vand.u32 %v10844, 4294901760
  %v10930 = vsub.f32 %v10844, %v10929
  %v10931 = vand.u32 %v10930, 4294901760
  %v10932 = vsub.f32 %v10930, %v10931
  %v10933 = vand.u32 %v10932, 4294901760
  %10934 = vmatmul.f32.gmra.mxu0 %v10933
  %v10935 = vpop.f32.mrf.mxu0
  %v10936 = vadd.f32 0.0, %v10935
  %v10937 = vand.u32 %v10846, 4294901760
  %v10938 = vsub.f32 %v10846, %v10937
  %v10939 = vand.u32 %v10938, 4294901760
  %v10940 = vsub.f32 %v10938, %v10939
  %v10941 = vand.u32 %v10940, 4294901760
  %10942 = vmatmul.f32.gmra.mxu0 %v10941
  %v10943 = vpop.f32.mrf.mxu0
  %v10944 = vadd.f32 0.0, %v10943
  %v10945 = vand.u32 %v10848, 4294901760
  %v10946 = vsub.f32 %v10848, %v10945
  %v10947 = vand.u32 %v10946, 4294901760
  %v10948 = vsub.f32 %v10946, %v10947
  %v10949 = vand.u32 %v10948, 4294901760
  %10950 = vmatmul.f32.gmra.mxu0 %v10949
  %v10951 = vpop.f32.mrf.mxu0
  %v10952 = vadd.f32 0.0, %v10951
  %v10953 = vand.u32 %v10850, 4294901760
  %v10954 = vsub.f32 %v10850, %v10953
  %v10955 = vand.u32 %v10954, 4294901760
  %v10956 = vsub.f32 %v10954, %v10955
  %v10957 = vand.u32 %v10956, 4294901760
  %10958 = vmatmul.f32.gmra.mxu0 %v10957
  %v10959 = vpop.f32.mrf.mxu0
  %v10960 = vadd.f32 0.0, %v10959
  %v10961 = vand.u32 %v10852, 4294901760
  %v10962 = vsub.f32 %v10852, %v10961
  %v10963 = vand.u32 %v10962, 4294901760
  %v10964 = vsub.f32 %v10962, %v10963
  %v10965 = vand.u32 %v10964, 4294901760
  %10966 = vmatmul.f32.gmra.mxu0 %v10965
  %v10967 = vpop.f32.mrf.mxu0
  %v10968 = vadd.f32 0.0, %v10967
  %10969 = vdwg.mxu0
  %10970 = vmatpush.msra.mxu0 0.0
  %10971 = vmatpush.msra.mxu0 0.0
  %10972 = vmatpush.msra.mxu0 0.0
  %10973 = vmatpush.msra.mxu0 0.0
  %10974 = vmatpush.msra.mxu0 0.0
  %10975 = vmatpush.msra.mxu0 0.0
  %10976 = vmatpush.msra.mxu0 0.0
  %10977 = vmatpush.msra.mxu0 0.0
  %10978 = vmatpush.msra.mxu0 0.0
  %10979 = vmatpush.msra.mxu0 0.0
  %10980 = vmatpush.msra.mxu0 0.0
  %10981 = vmatpush.msra.mxu0 0.0
  %10982 = vmatpush.msra.mxu0 0.0
  %10983 = vmatpush.msra.mxu0 0.0
  %10984 = vmatpush.msra.mxu0 0.0
  %10985 = vmatpush.msra.mxu0 0.0
  %v10986 = vand.u32 %v10836, 4294901760
  %10987 = vmatmul.f32.gmra.mxu0 %v10986
  %v10988 = vpop.f32.mrf.mxu0
  %v10989 = vadd.f32 %v10904, %v10988
  %v10990 = vand.u32 %v10838, 4294901760
  %10991 = vmatmul.f32.gmra.mxu0 %v10990
  %v10992 = vpop.f32.mrf.mxu0
  %v10993 = vadd.f32 %v10912, %v10992
  %v10994 = vand.u32 %v10840, 4294901760
  %10995 = vmatmul.f32.gmra.mxu0 %v10994
  %v10996 = vpop.f32.mrf.mxu0
  %v10997 = vadd.f32 %v10920, %v10996
  %v10998 = vand.u32 %v10842, 4294901760
  %10999 = vmatmul.f32.gmra.mxu0 %v10998
  %v11000 = vpop.f32.mrf.mxu0
  %v11001 = vadd.f32 %v10928, %v11000
  %v11002 = vand.u32 %v10844, 4294901760
  %11003 = vmatmul.f32.gmra.mxu0 %v11002
  %v11004 = vpop.f32.mrf.mxu0
  %v11005 = vadd.f32 %v10936, %v11004
  %v11006 = vand.u32 %v10846, 4294901760
  %11007 = vmatmul.f32.gmra.mxu0 %v11006
  %v11008 = vpop.f32.mrf.mxu0
  %v11009 = vadd.f32 %v10944, %v11008
  %v11010 = vand.u32 %v10848, 4294901760
  %11011 = vmatmul.f32.gmra.mxu0 %v11010
  %v11012 = vpop.f32.mrf.mxu0
  %v11013 = vadd.f32 %v10952, %v11012
  %v11014 = vand.u32 %v10850, 4294901760
  %11015 = vmatmul.f32.gmra.mxu0 %v11014
  %v11016 = vpop.f32.mrf.mxu0
  %v11017 = vadd.f32 %v10960, %v11016
  %v11018 = vand.u32 %v10852, 4294901760
  %11019 = vmatmul.f32.gmra.mxu0 %v11018
  %v11020 = vpop.f32.mrf.mxu0
  %v11021 = vadd.f32 %v10968, %v11020
  %11022 = vdwg.mxu0
  %11023 = vmatpush.msra.mxu0 0.0
  %11024 = vmatpush.msra.mxu0 0.0
  %11025 = vmatpush.msra.mxu0 0.0
  %11026 = vmatpush.msra.mxu0 0.0
  %11027 = vmatpush.msra.mxu0 0.0
  %11028 = vmatpush.msra.mxu0 0.0
  %11029 = vmatpush.msra.mxu0 0.0
  %11030 = vmatpush.msra.mxu0 0.0
  %11031 = vmatpush.msra.mxu0 0.0
  %11032 = vmatpush.msra.mxu0 0.0
  %11033 = vmatpush.msra.mxu0 0.0
  %11034 = vmatpush.msra.mxu0 0.0
  %11035 = vmatpush.msra.mxu0 0.0
  %11036 = vmatpush.msra.mxu0 0.0
  %11037 = vmatpush.msra.mxu0 0.0
  %11038 = vmatpush.msra.mxu0 0.0
  %v11039 = vand.u32 %v10836, 4294901760
  %v11040 = vsub.f32 %v10836, %v11039
  %11041 = vmatmul.f32.gmra.mxu0 %v11040
  %v11042 = vpop.f32.mrf.mxu0
  %v11043 = vadd.f32 %v10989, %v11042
  %v11044 = vand.u32 %v10838, 4294901760
  %v11045 = vsub.f32 %v10838, %v11044
  %11046 = vmatmul.f32.gmra.mxu0 %v11045
  %v11047 = vpop.f32.mrf.mxu0
  %v11048 = vadd.f32 %v10993, %v11047
  %v11049 = vand.u32 %v10840, 4294901760
  %v11050 = vsub.f32 %v10840, %v11049
  %11051 = vmatmul.f32.gmra.mxu0 %v11050
  %v11052 = vpop.f32.mrf.mxu0
  %v11053 = vadd.f32 %v10997, %v11052
  %v11054 = vand.u32 %v10842, 4294901760
  %v11055 = vsub.f32 %v10842, %v11054
  %11056 = vmatmul.f32.gmra.mxu0 %v11055
  %v11057 = vpop.f32.mrf.mxu0
  %v11058 = vadd.f32 %v11001, %v11057
  %v11059 = vand.u32 %v10844, 4294901760
  %v11060 = vsub.f32 %v10844, %v11059
  %11061 = vmatmul.f32.gmra.mxu0 %v11060
  %v11062 = vpop.f32.mrf.mxu0
  %v11063 = vadd.f32 %v11005, %v11062
  %v11064 = vand.u32 %v10846, 4294901760
  %v11065 = vsub.f32 %v10846, %v11064
  %11066 = vmatmul.f32.gmra.mxu0 %v11065
  %v11067 = vpop.f32.mrf.mxu0
  %v11068 = vadd.f32 %v11009, %v11067
  %v11069 = vand.u32 %v10848, 4294901760
  %v11070 = vsub.f32 %v10848, %v11069
  %11071 = vmatmul.f32.gmra.mxu0 %v11070
  %v11072 = vpop.f32.mrf.mxu0
  %v11073 = vadd.f32 %v11013, %v11072
  %v11074 = vand.u32 %v10850, 4294901760
  %v11075 = vsub.f32 %v10850, %v11074
  %11076 = vmatmul.f32.gmra.mxu0 %v11075
  %v11077 = vpop.f32.mrf.mxu0
  %v11078 = vadd.f32 %v11017, %v11077
  %v11079 = vand.u32 %v10852, 4294901760
  %v11080 = vsub.f32 %v10852, %v11079
  %11081 = vmatmul.f32.gmra.mxu0 %v11080
  %v11082 = vpop.f32.mrf.mxu0
  %v11083 = vadd.f32 %v11021, %v11082
  %11084 = vdwg.mxu0
  %11085 = vmatpush.msra.mxu0 1.0
  %11086 = vmatpush.msra.mxu0 1.0
  %11087 = vmatpush.msra.mxu0 1.0
  %11088 = vmatpush.msra.mxu0 1.0
  %11089 = vmatpush.msra.mxu0 1.0
  %11090 = vmatpush.msra.mxu0 1.0
  %11091 = vmatpush.msra.mxu0 1.0
  %11092 = vmatpush.msra.mxu0 1.0
  %11093 = vmatpush.msra.mxu0 1.0
  %11094 = vmatpush.msra.mxu0 1.0
  %11095 = vmatpush.msra.mxu0 1.0
  %11096 = vmatpush.msra.mxu0 1.0
  %11097 = vmatpush.msra.mxu0 1.0
  %11098 = vmatpush.msra.mxu0 1.0
  %11099 = vmatpush.msra.mxu0 1.0
  %11100 = vmatpush.msra.mxu0 1.0
  %v11101 = vand.u32 %v10836, 4294901760
  %v11102 = vsub.f32 %v10836, %v11101
  %v11103 = vand.u32 %v11102, 4294901760
  %11104 = vmatmul.f32.gmra.mxu0 %v11103
  %v11105 = vpop.f32.mrf.mxu0
  %v11106 = vadd.f32 %v11043, %v11105
  %v11107 = vand.u32 %v10838, 4294901760
  %v11108 = vsub.f32 %v10838, %v11107
  %v11109 = vand.u32 %v11108, 4294901760
  %11110 = vmatmul.f32.gmra.mxu0 %v11109
  %v11111 = vpop.f32.mrf.mxu0
  %v11112 = vadd.f32 %v11048, %v11111
  %v11113 = vand.u32 %v10840, 4294901760
  %v11114 = vsub.f32 %v10840, %v11113
  %v11115 = vand.u32 %v11114, 4294901760
  %11116 = vmatmul.f32.gmra.mxu0 %v11115
  %v11117 = vpop.f32.mrf.mxu0
  %v11118 = vadd.f32 %v11053, %v11117
  %v11119 = vand.u32 %v10842, 4294901760
  %v11120 = vsub.f32 %v10842, %v11119
  %v11121 = vand.u32 %v11120, 4294901760
  %11122 = vmatmul.f32.gmra.mxu0 %v11121
  %v11123 = vpop.f32.mrf.mxu0
  %v11124 = vadd.f32 %v11058, %v11123
  %v11125 = vand.u32 %v10844, 4294901760
  %v11126 = vsub.f32 %v10844, %v11125
  %v11127 = vand.u32 %v11126, 4294901760
  %11128 = vmatmul.f32.gmra.mxu0 %v11127
  %v11129 = vpop.f32.mrf.mxu0
  %v11130 = vadd.f32 %v11063, %v11129
  %v11131 = vand.u32 %v10846, 4294901760
  %v11132 = vsub.f32 %v10846, %v11131
  %v11133 = vand.u32 %v11132, 4294901760
  %11134 = vmatmul.f32.gmra.mxu0 %v11133
  %v11135 = vpop.f32.mrf.mxu0
  %v11136 = vadd.f32 %v11068, %v11135
  %v11137 = vand.u32 %v10848, 4294901760
  %v11138 = vsub.f32 %v10848, %v11137
  %v11139 = vand.u32 %v11138, 4294901760
  %11140 = vmatmul.f32.gmra.mxu0 %v11139
  %v11141 = vpop.f32.mrf.mxu0
  %v11142 = vadd.f32 %v11073, %v11141
  %v11143 = vand.u32 %v10850, 4294901760
  %v11144 = vsub.f32 %v10850, %v11143
  %v11145 = vand.u32 %v11144, 4294901760
  %11146 = vmatmul.f32.gmra.mxu0 %v11145
  %v11147 = vpop.f32.mrf.mxu0
  %v11148 = vadd.f32 %v11078, %v11147
  %v11149 = vand.u32 %v10852, 4294901760
  %v11150 = vsub.f32 %v10852, %v11149
  %v11151 = vand.u32 %v11150, 4294901760
  %11152 = vmatmul.f32.gmra.mxu0 %v11151
  %v11153 = vpop.f32.mrf.mxu0
  %v11154 = vadd.f32 %v11083, %v11153
  %11155 = vdwg.mxu0
  %11156 = vmatpush.msra.mxu0 0.0
  %11157 = vmatpush.msra.mxu0 0.0
  %11158 = vmatpush.msra.mxu0 0.0
  %11159 = vmatpush.msra.mxu0 0.0
  %11160 = vmatpush.msra.mxu0 0.0
  %11161 = vmatpush.msra.mxu0 0.0
  %11162 = vmatpush.msra.mxu0 0.0
  %11163 = vmatpush.msra.mxu0 0.0
  %11164 = vmatpush.msra.mxu0 0.0
  %11165 = vmatpush.msra.mxu0 0.0
  %11166 = vmatpush.msra.mxu0 0.0
  %11167 = vmatpush.msra.mxu0 0.0
  %11168 = vmatpush.msra.mxu0 0.0
  %11169 = vmatpush.msra.mxu0 0.0
  %11170 = vmatpush.msra.mxu0 0.0
  %11171 = vmatpush.msra.mxu0 0.0
  %v11172 = vand.u32 %v10836, 4294901760
  %11173 = vmatmul.f32.gmra.mxu0 %v11172
  %v11174 = vpop.f32.mrf.mxu0
  %v11175 = vadd.f32 %v11106, %v11174
  %v11176 = vand.u32 %v10838, 4294901760
  %11177 = vmatmul.f32.gmra.mxu0 %v11176
  %v11178 = vpop.f32.mrf.mxu0
  %v11179 = vadd.f32 %v11112, %v11178
  %v11180 = vand.u32 %v10840, 4294901760
  %11181 = vmatmul.f32.gmra.mxu0 %v11180
  %v11182 = vpop.f32.mrf.mxu0
  %v11183 = vadd.f32 %v11118, %v11182
  %v11184 = vand.u32 %v10842, 4294901760
  %11185 = vmatmul.f32.gmra.mxu0 %v11184
  %v11186 = vpop.f32.mrf.mxu0
  %v11187 = vadd.f32 %v11124, %v11186
  %v11188 = vand.u32 %v10844, 4294901760
  %11189 = vmatmul.f32.gmra.mxu0 %v11188
  %v11190 = vpop.f32.mrf.mxu0
  %v11191 = vadd.f32 %v11130, %v11190
  %v11192 = vand.u32 %v10846, 4294901760
  %11193 = vmatmul.f32.gmra.mxu0 %v11192
  %v11194 = vpop.f32.mrf.mxu0
  %v11195 = vadd.f32 %v11136, %v11194
  %v11196 = vand.u32 %v10848, 4294901760
  %11197 = vmatmul.f32.gmra.mxu0 %v11196
  %v11198 = vpop.f32.mrf.mxu0
  %v11199 = vadd.f32 %v11142, %v11198
  %v11200 = vand.u32 %v10850, 4294901760
  %11201 = vmatmul.f32.gmra.mxu0 %v11200
  %v11202 = vpop.f32.mrf.mxu0
  %v11203 = vadd.f32 %v11148, %v11202
  %v11204 = vand.u32 %v10852, 4294901760
  %11205 = vmatmul.f32.gmra.mxu0 %v11204
  %v11206 = vpop.f32.mrf.mxu0
  %v11207 = vadd.f32 %v11154, %v11206
  %11208 = vdwg.mxu0
  %11209 = vmatpush.msra.mxu0 1.0
  %11210 = vmatpush.msra.mxu0 1.0
  %11211 = vmatpush.msra.mxu0 1.0
  %11212 = vmatpush.msra.mxu0 1.0
  %11213 = vmatpush.msra.mxu0 1.0
  %11214 = vmatpush.msra.mxu0 1.0
  %11215 = vmatpush.msra.mxu0 1.0
  %11216 = vmatpush.msra.mxu0 1.0
  %11217 = vmatpush.msra.mxu0 1.0
  %11218 = vmatpush.msra.mxu0 1.0
  %11219 = vmatpush.msra.mxu0 1.0
  %11220 = vmatpush.msra.mxu0 1.0
  %11221 = vmatpush.msra.mxu0 1.0
  %11222 = vmatpush.msra.mxu0 1.0
  %11223 = vmatpush.msra.mxu0 1.0
  %11224 = vmatpush.msra.mxu0 1.0
  %v11225 = vand.u32 %v10836, 4294901760
  %11226 = vmatmul.f32.gmra.mxu0 %v11225
  %v11227 = vpop.f32.mrf.mxu0
  %v11228 = vadd.f32 %v11175, %v11227
  %v11229 = vand.u32 %v10838, 4294901760
  %11230 = vmatmul.f32.gmra.mxu0 %v11229
  %v11231 = vpop.f32.mrf.mxu0
  %v11232 = vadd.f32 %v11179, %v11231
  %v11233 = vand.u32 %v10840, 4294901760
  %11234 = vmatmul.f32.gmra.mxu0 %v11233
  %v11235 = vpop.f32.mrf.mxu0
  %v11236 = vadd.f32 %v11183, %v11235
  %v11237 = vand.u32 %v10842, 4294901760
  %11238 = vmatmul.f32.gmra.mxu0 %v11237
  %v11239 = vpop.f32.mrf.mxu0
  %v11240 = vadd.f32 %v11187, %v11239
  %v11241 = vand.u32 %v10844, 4294901760
  %11242 = vmatmul.f32.gmra.mxu0 %v11241
  %v11243 = vpop.f32.mrf.mxu0
  %v11244 = vadd.f32 %v11191, %v11243
  %v11245 = vand.u32 %v10846, 4294901760
  %11246 = vmatmul.f32.gmra.mxu0 %v11245
  %v11247 = vpop.f32.mrf.mxu0
  %v11248 = vadd.f32 %v11195, %v11247
  %v11249 = vand.u32 %v10848, 4294901760
  %11250 = vmatmul.f32.gmra.mxu0 %v11249
  %v11251 = vpop.f32.mrf.mxu0
  %v11252 = vadd.f32 %v11199, %v11251
  %v11253 = vand.u32 %v10850, 4294901760
  %11254 = vmatmul.f32.gmra.mxu0 %v11253
  %v11255 = vpop.f32.mrf.mxu0
  %v11256 = vadd.f32 %v11203, %v11255
  %v11257 = vand.u32 %v10852, 4294901760
  %11258 = vmatmul.f32.gmra.mxu0 %v11257
  %v11259 = vpop.f32.mrf.mxu0
  %v11260 = vadd.f32 %v11207, %v11259
  %11261 = vdwg.mxu0
  %11262 = vmatpush.msra.mxu0 0.0
  %11263 = vmatpush.msra.mxu0 0.0
  %11264 = vmatpush.msra.mxu0 0.0
  %11265 = vmatpush.msra.mxu0 0.0
  %11266 = vmatpush.msra.mxu0 0.0
  %11267 = vmatpush.msra.mxu0 0.0
  %11268 = vmatpush.msra.mxu0 0.0
  %v11269 = vand.u32 %v59, 4294901760
  %11270 = vmatpush.msra.mxu0 %v11269
  %11271 = vmatpush.msra.mxu0 1.0
  %11272 = vmatpush.msra.mxu0 1.0
  %11273 = vmatpush.msra.mxu0 1.0
  %11274 = vmatpush.msra.mxu0 1.0
  %11275 = vmatpush.msra.mxu0 1.0
  %11276 = vmatpush.msra.mxu0 1.0
  %11277 = vmatpush.msra.mxu0 1.0
  %11278 = vmatpush.msra.mxu0 1.0
  %v11279 = vand.u32 %v10855, 4294901760
  %v11280 = vsub.f32 %v10855, %v11279
  %v11281 = vand.u32 %v11280, 4294901760
  %v11282 = vsub.f32 %v11280, %v11281
  %v11283 = vand.u32 %v11282, 4294901760
  %11284 = vmatmul.f32.gmra.mxu0 %v11283
  %v11285 = vpop.f32.mrf.mxu0
  %v11286 = vadd.f32 %v11228, %v11285
  %v11287 = vand.u32 %v10858, 4294901760
  %v11288 = vsub.f32 %v10858, %v11287
  %v11289 = vand.u32 %v11288, 4294901760
  %v11290 = vsub.f32 %v11288, %v11289
  %v11291 = vand.u32 %v11290, 4294901760
  %11292 = vmatmul.f32.gmra.mxu0 %v11291
  %v11293 = vpop.f32.mrf.mxu0
  %v11294 = vadd.f32 %v11232, %v11293
  %v11295 = vand.u32 %v10861, 4294901760
  %v11296 = vsub.f32 %v10861, %v11295
  %v11297 = vand.u32 %v11296, 4294901760
  %v11298 = vsub.f32 %v11296, %v11297
  %v11299 = vand.u32 %v11298, 4294901760
  %11300 = vmatmul.f32.gmra.mxu0 %v11299
  %v11301 = vpop.f32.mrf.mxu0
  %v11302 = vadd.f32 %v11236, %v11301
  %v11303 = vand.u32 %v10864, 4294901760
  %v11304 = vsub.f32 %v10864, %v11303
  %v11305 = vand.u32 %v11304, 4294901760
  %v11306 = vsub.f32 %v11304, %v11305
  %v11307 = vand.u32 %v11306, 4294901760
  %11308 = vmatmul.f32.gmra.mxu0 %v11307
  %v11309 = vpop.f32.mrf.mxu0
  %v11310 = vadd.f32 %v11240, %v11309
  %v11311 = vand.u32 %v10867, 4294901760
  %v11312 = vsub.f32 %v10867, %v11311
  %v11313 = vand.u32 %v11312, 4294901760
  %v11314 = vsub.f32 %v11312, %v11313
  %v11315 = vand.u32 %v11314, 4294901760
  %11316 = vmatmul.f32.gmra.mxu0 %v11315
  %v11317 = vpop.f32.mrf.mxu0
  %v11318 = vadd.f32 %v11244, %v11317
  %v11319 = vand.u32 %v10870, 4294901760
  %v11320 = vsub.f32 %v10870, %v11319
  %v11321 = vand.u32 %v11320, 4294901760
  %v11322 = vsub.f32 %v11320, %v11321
  %v11323 = vand.u32 %v11322, 4294901760
  %11324 = vmatmul.f32.gmra.mxu0 %v11323
  %v11325 = vpop.f32.mrf.mxu0
  %v11326 = vadd.f32 %v11248, %v11325
  %v11327 = vand.u32 %v10873, 4294901760
  %v11328 = vsub.f32 %v10873, %v11327
  %v11329 = vand.u32 %v11328, 4294901760
  %v11330 = vsub.f32 %v11328, %v11329
  %v11331 = vand.u32 %v11330, 4294901760
  %11332 = vmatmul.f32.gmra.mxu0 %v11331
  %v11333 = vpop.f32.mrf.mxu0
  %v11334 = vadd.f32 %v11252, %v11333
  %v11335 = vand.u32 %v10876, 4294901760
  %v11336 = vsub.f32 %v10876, %v11335
  %v11337 = vand.u32 %v11336, 4294901760
  %v11338 = vsub.f32 %v11336, %v11337
  %v11339 = vand.u32 %v11338, 4294901760
  %11340 = vmatmul.f32.gmra.mxu0 %v11339
  %v11341 = vpop.f32.mrf.mxu0
  %v11342 = vadd.f32 %v11256, %v11341
  %v11343 = vand.u32 %v10879, 4294901760
  %v11344 = vsub.f32 %v10879, %v11343
  %v11345 = vand.u32 %v11344, 4294901760
  %v11346 = vsub.f32 %v11344, %v11345
  %v11347 = vand.u32 %v11346, 4294901760
  %11348 = vmatmul.f32.gmra.mxu0 %v11347
  %v11349 = vpop.f32.mrf.mxu0
  %v11350 = vadd.f32 %v11260, %v11349
  %11351 = vdwg.mxu0
  %11352 = vmatpush.msra.mxu0 0.0
  %11353 = vmatpush.msra.mxu0 0.0
  %11354 = vmatpush.msra.mxu0 0.0
  %11355 = vmatpush.msra.mxu0 0.0
  %11356 = vmatpush.msra.mxu0 0.0
  %11357 = vmatpush.msra.mxu0 0.0
  %11358 = vmatpush.msra.mxu0 0.0
  %v11359 = vand.u32 %v59, 4294901760
  %v11360 = vsub.f32 %v59, %v11359
  %v11361 = vand.u32 %v11360, 4294901760
  %v11362 = vsub.f32 %v11360, %v11361
  %v11363 = vand.u32 %v11362, 4294901760
  %11364 = vmatpush.msra.mxu0 %v11363
  %11365 = vmatpush.msra.mxu0 0.0
  %11366 = vmatpush.msra.mxu0 0.0
  %11367 = vmatpush.msra.mxu0 0.0
  %11368 = vmatpush.msra.mxu0 0.0
  %11369 = vmatpush.msra.mxu0 0.0
  %11370 = vmatpush.msra.mxu0 0.0
  %11371 = vmatpush.msra.mxu0 0.0
  %11372 = vmatpush.msra.mxu0 0.0
  %v11373 = vand.u32 %v10855, 4294901760
  %11374 = vmatmul.f32.gmra.mxu0 %v11373
  %v11375 = vpop.f32.mrf.mxu0
  %v11376 = vadd.f32 %v11286, %v11375
  %v11377 = vand.u32 %v10858, 4294901760
  %11378 = vmatmul.f32.gmra.mxu0 %v11377
  %v11379 = vpop.f32.mrf.mxu0
  %v11380 = vadd.f32 %v11294, %v11379
  %v11381 = vand.u32 %v10861, 4294901760
  %11382 = vmatmul.f32.gmra.mxu0 %v11381
  %v11383 = vpop.f32.mrf.mxu0
  %v11384 = vadd.f32 %v11302, %v11383
  %v11385 = vand.u32 %v10864, 4294901760
  %11386 = vmatmul.f32.gmra.mxu0 %v11385
  %v11387 = vpop.f32.mrf.mxu0
  %v11388 = vadd.f32 %v11310, %v11387
  %v11389 = vand.u32 %v10867, 4294901760
  %11390 = vmatmul.f32.gmra.mxu0 %v11389
  %v11391 = vpop.f32.mrf.mxu0
  %v11392 = vadd.f32 %v11318, %v11391
  %v11393 = vand.u32 %v10870, 4294901760
  %11394 = vmatmul.f32.gmra.mxu0 %v11393
  %v11395 = vpop.f32.mrf.mxu0
  %v11396 = vadd.f32 %v11326, %v11395
  %v11397 = vand.u32 %v10873, 4294901760
  %11398 = vmatmul.f32.gmra.mxu0 %v11397
  %v11399 = vpop.f32.mrf.mxu0
  %v11400 = vadd.f32 %v11334, %v11399
  %v11401 = vand.u32 %v10876, 4294901760
  %11402 = vmatmul.f32.gmra.mxu0 %v11401
  %v11403 = vpop.f32.mrf.mxu0
  %v11404 = vadd.f32 %v11342, %v11403
  %v11405 = vand.u32 %v10879, 4294901760
  %11406 = vmatmul.f32.gmra.mxu0 %v11405
  %v11407 = vpop.f32.mrf.mxu0
  %v11408 = vadd.f32 %v11350, %v11407
  %11409 = vdwg.mxu0
  %11410 = vmatpush.msra.mxu0 0.0
  %11411 = vmatpush.msra.mxu0 0.0
  %11412 = vmatpush.msra.mxu0 0.0
  %11413 = vmatpush.msra.mxu0 0.0
  %11414 = vmatpush.msra.mxu0 0.0
  %11415 = vmatpush.msra.mxu0 0.0
  %11416 = vmatpush.msra.mxu0 0.0
  %v11417 = vand.u32 %v59, 4294901760
  %v11418 = vsub.f32 %v59, %v11417
  %11419 = vmatpush.msra.mxu0 %v11418
  %11420 = vmatpush.msra.mxu0 0.0
  %11421 = vmatpush.msra.mxu0 0.0
  %11422 = vmatpush.msra.mxu0 0.0
  %11423 = vmatpush.msra.mxu0 0.0
  %11424 = vmatpush.msra.mxu0 0.0
  %11425 = vmatpush.msra.mxu0 0.0
  %11426 = vmatpush.msra.mxu0 0.0
  %11427 = vmatpush.msra.mxu0 0.0
  %v11428 = vand.u32 %v10855, 4294901760
  %v11429 = vsub.f32 %v10855, %v11428
  %11430 = vmatmul.f32.gmra.mxu0 %v11429
  %v11431 = vpop.f32.mrf.mxu0
  %v11432 = vadd.f32 %v11376, %v11431
  %v11433 = vand.u32 %v10858, 4294901760
  %v11434 = vsub.f32 %v10858, %v11433
  %11435 = vmatmul.f32.gmra.mxu0 %v11434
  %v11436 = vpop.f32.mrf.mxu0
  %v11437 = vadd.f32 %v11380, %v11436
  %v11438 = vand.u32 %v10861, 4294901760
  %v11439 = vsub.f32 %v10861, %v11438
  %11440 = vmatmul.f32.gmra.mxu0 %v11439
  %v11441 = vpop.f32.mrf.mxu0
  %v11442 = vadd.f32 %v11384, %v11441
  %v11443 = vand.u32 %v10864, 4294901760
  %v11444 = vsub.f32 %v10864, %v11443
  %11445 = vmatmul.f32.gmra.mxu0 %v11444
  %v11446 = vpop.f32.mrf.mxu0
  %v11447 = vadd.f32 %v11388, %v11446
  %v11448 = vand.u32 %v10867, 4294901760
  %v11449 = vsub.f32 %v10867, %v11448
  %11450 = vmatmul.f32.gmra.mxu0 %v11449
  %v11451 = vpop.f32.mrf.mxu0
  %v11452 = vadd.f32 %v11392, %v11451
  %v11453 = vand.u32 %v10870, 4294901760
  %v11454 = vsub.f32 %v10870, %v11453
  %11455 = vmatmul.f32.gmra.mxu0 %v11454
  %v11456 = vpop.f32.mrf.mxu0
  %v11457 = vadd.f32 %v11396, %v11456
  %v11458 = vand.u32 %v10873, 4294901760
  %v11459 = vsub.f32 %v10873, %v11458
  %11460 = vmatmul.f32.gmra.mxu0 %v11459
  %v11461 = vpop.f32.mrf.mxu0
  %v11462 = vadd.f32 %v11400, %v11461
  %v11463 = vand.u32 %v10876, 4294901760
  %v11464 = vsub.f32 %v10876, %v11463
  %11465 = vmatmul.f32.gmra.mxu0 %v11464
  %v11466 = vpop.f32.mrf.mxu0
  %v11467 = vadd.f32 %v11404, %v11466
  %v11468 = vand.u32 %v10879, 4294901760
  %v11469 = vsub.f32 %v10879, %v11468
  %11470 = vmatmul.f32.gmra.mxu0 %v11469
  %v11471 = vpop.f32.mrf.mxu0
  %v11472 = vadd.f32 %v11408, %v11471
  %11473 = vdwg.mxu0
  %11474 = vmatpush.msra.mxu0 0.0
  %11475 = vmatpush.msra.mxu0 0.0
  %11476 = vmatpush.msra.mxu0 0.0
  %11477 = vmatpush.msra.mxu0 0.0
  %11478 = vmatpush.msra.mxu0 0.0
  %11479 = vmatpush.msra.mxu0 0.0
  %11480 = vmatpush.msra.mxu0 0.0
  %v11481 = vand.u32 %v59, 4294901760
  %11482 = vmatpush.msra.mxu0 %v11481
  %11483 = vmatpush.msra.mxu0 1.0
  %11484 = vmatpush.msra.mxu0 1.0
  %11485 = vmatpush.msra.mxu0 1.0
  %11486 = vmatpush.msra.mxu0 1.0
  %11487 = vmatpush.msra.mxu0 1.0
  %11488 = vmatpush.msra.mxu0 1.0
  %11489 = vmatpush.msra.mxu0 1.0
  %11490 = vmatpush.msra.mxu0 1.0
  %v11491 = vand.u32 %v10855, 4294901760
  %v11492 = vsub.f32 %v10855, %v11491
  %v11493 = vand.u32 %v11492, 4294901760
  %11494 = vmatmul.f32.gmra.mxu0 %v11493
  %v11495 = vpop.f32.mrf.mxu0
  %v11496 = vadd.f32 %v11432, %v11495
  %v11497 = vand.u32 %v10858, 4294901760
  %v11498 = vsub.f32 %v10858, %v11497
  %v11499 = vand.u32 %v11498, 4294901760
  %11500 = vmatmul.f32.gmra.mxu0 %v11499
  %v11501 = vpop.f32.mrf.mxu0
  %v11502 = vadd.f32 %v11437, %v11501
  %v11503 = vand.u32 %v10861, 4294901760
  %v11504 = vsub.f32 %v10861, %v11503
  %v11505 = vand.u32 %v11504, 4294901760
  %11506 = vmatmul.f32.gmra.mxu0 %v11505
  %v11507 = vpop.f32.mrf.mxu0
  %v11508 = vadd.f32 %v11442, %v11507
  %v11509 = vand.u32 %v10864, 4294901760
  %v11510 = vsub.f32 %v10864, %v11509
  %v11511 = vand.u32 %v11510, 4294901760
  %11512 = vmatmul.f32.gmra.mxu0 %v11511
  %v11513 = vpop.f32.mrf.mxu0
  %v11514 = vadd.f32 %v11447, %v11513
  %v11515 = vand.u32 %v10867, 4294901760
  %v11516 = vsub.f32 %v10867, %v11515
  %v11517 = vand.u32 %v11516, 4294901760
  %11518 = vmatmul.f32.gmra.mxu0 %v11517
  %v11519 = vpop.f32.mrf.mxu0
  %v11520 = vadd.f32 %v11452, %v11519
  %v11521 = vand.u32 %v10870, 4294901760
  %v11522 = vsub.f32 %v10870, %v11521
  %v11523 = vand.u32 %v11522, 4294901760
  %11524 = vmatmul.f32.gmra.mxu0 %v11523
  %v11525 = vpop.f32.mrf.mxu0
  %v11526 = vadd.f32 %v11457, %v11525
  %v11527 = vand.u32 %v10873, 4294901760
  %v11528 = vsub.f32 %v10873, %v11527
  %v11529 = vand.u32 %v11528, 4294901760
  %11530 = vmatmul.f32.gmra.mxu0 %v11529
  %v11531 = vpop.f32.mrf.mxu0
  %v11532 = vadd.f32 %v11462, %v11531
  %v11533 = vand.u32 %v10876, 4294901760
  %v11534 = vsub.f32 %v10876, %v11533
  %v11535 = vand.u32 %v11534, 4294901760
  %11536 = vmatmul.f32.gmra.mxu0 %v11535
  %v11537 = vpop.f32.mrf.mxu0
  %v11538 = vadd.f32 %v11467, %v11537
  %v11539 = vand.u32 %v10879, 4294901760
  %v11540 = vsub.f32 %v10879, %v11539
  %v11541 = vand.u32 %v11540, 4294901760
  %11542 = vmatmul.f32.gmra.mxu0 %v11541
  %v11543 = vpop.f32.mrf.mxu0
  %v11544 = vadd.f32 %v11472, %v11543
  %11545 = vdwg.mxu0
  %11546 = vmatpush.msra.mxu0 0.0
  %11547 = vmatpush.msra.mxu0 0.0
  %11548 = vmatpush.msra.mxu0 0.0
  %11549 = vmatpush.msra.mxu0 0.0
  %11550 = vmatpush.msra.mxu0 0.0
  %11551 = vmatpush.msra.mxu0 0.0
  %11552 = vmatpush.msra.mxu0 0.0
  %v11553 = vand.u32 %v59, 4294901760
  %v11554 = vsub.f32 %v59, %v11553
  %v11555 = vand.u32 %v11554, 4294901760
  %11556 = vmatpush.msra.mxu0 %v11555
  %11557 = vmatpush.msra.mxu0 0.0
  %11558 = vmatpush.msra.mxu0 0.0
  %11559 = vmatpush.msra.mxu0 0.0
  %11560 = vmatpush.msra.mxu0 0.0
  %11561 = vmatpush.msra.mxu0 0.0
  %11562 = vmatpush.msra.mxu0 0.0
  %11563 = vmatpush.msra.mxu0 0.0
  %11564 = vmatpush.msra.mxu0 0.0
  %v11565 = vand.u32 %v10855, 4294901760
  %11566 = vmatmul.f32.gmra.mxu0 %v11565
  %v11567 = vpop.f32.mrf.mxu0
  %v11568 = vadd.f32 %v11496, %v11567
  %v11569 = vand.u32 %v10858, 4294901760
  %11570 = vmatmul.f32.gmra.mxu0 %v11569
  %v11571 = vpop.f32.mrf.mxu0
  %v11572 = vadd.f32 %v11502, %v11571
  %v11573 = vand.u32 %v10861, 4294901760
  %11574 = vmatmul.f32.gmra.mxu0 %v11573
  %v11575 = vpop.f32.mrf.mxu0
  %v11576 = vadd.f32 %v11508, %v11575
  %v11577 = vand.u32 %v10864, 4294901760
  %11578 = vmatmul.f32.gmra.mxu0 %v11577
  %v11579 = vpop.f32.mrf.mxu0
  %v11580 = vadd.f32 %v11514, %v11579
  %v11581 = vand.u32 %v10867, 4294901760
  %11582 = vmatmul.f32.gmra.mxu0 %v11581
  %v11583 = vpop.f32.mrf.mxu0
  %v11584 = vadd.f32 %v11520, %v11583
  %v11585 = vand.u32 %v10870, 4294901760
  %11586 = vmatmul.f32.gmra.mxu0 %v11585
  %v11587 = vpop.f32.mrf.mxu0
  %v11588 = vadd.f32 %v11526, %v11587
  %v11589 = vand.u32 %v10873, 4294901760
  %11590 = vmatmul.f32.gmra.mxu0 %v11589
  %v11591 = vpop.f32.mrf.mxu0
  %v11592 = vadd.f32 %v11532, %v11591
  %v11593 = vand.u32 %v10876, 4294901760
  %11594 = vmatmul.f32.gmra.mxu0 %v11593
  %v11595 = vpop.f32.mrf.mxu0
  %v11596 = vadd.f32 %v11538, %v11595
  %v11597 = vand.u32 %v10879, 4294901760
  %11598 = vmatmul.f32.gmra.mxu0 %v11597
  %v11599 = vpop.f32.mrf.mxu0
  %v11600 = vadd.f32 %v11544, %v11599
  %11601 = vdwg.mxu0
  %11602 = vmatpush.msra.mxu0 0.0
  %11603 = vmatpush.msra.mxu0 0.0
  %11604 = vmatpush.msra.mxu0 0.0
  %11605 = vmatpush.msra.mxu0 0.0
  %11606 = vmatpush.msra.mxu0 0.0
  %11607 = vmatpush.msra.mxu0 0.0
  %11608 = vmatpush.msra.mxu0 0.0
  %v11609 = vand.u32 %v59, 4294901760
  %11610 = vmatpush.msra.mxu0 %v11609
  %11611 = vmatpush.msra.mxu0 1.0
  %11612 = vmatpush.msra.mxu0 1.0
  %11613 = vmatpush.msra.mxu0 1.0
  %11614 = vmatpush.msra.mxu0 1.0
  %11615 = vmatpush.msra.mxu0 1.0
  %11616 = vmatpush.msra.mxu0 1.0
  %11617 = vmatpush.msra.mxu0 1.0
  %11618 = vmatpush.msra.mxu0 1.0
  %v11619 = vand.u32 %v10855, 4294901760
  %11620 = vmatmul.f32.gmra.mxu0 %v11619
  %v11621 = vpop.f32.mrf.mxu0
  %v11622 = vadd.f32 %v11568, %v11621
  %v11623 = vand.u32 %v10858, 4294901760
  %11624 = vmatmul.f32.gmra.mxu0 %v11623
  %v11625 = vpop.f32.mrf.mxu0
  %v11626 = vadd.f32 %v11572, %v11625
  %v11627 = vand.u32 %v10861, 4294901760
  %11628 = vmatmul.f32.gmra.mxu0 %v11627
  %v11629 = vpop.f32.mrf.mxu0
  %v11630 = vadd.f32 %v11576, %v11629
  %v11631 = vand.u32 %v10864, 4294901760
  %11632 = vmatmul.f32.gmra.mxu0 %v11631
  %v11633 = vpop.f32.mrf.mxu0
  %v11634 = vadd.f32 %v11580, %v11633
  %v11635 = vand.u32 %v10867, 4294901760
  %11636 = vmatmul.f32.gmra.mxu0 %v11635
  %v11637 = vpop.f32.mrf.mxu0
  %v11638 = vadd.f32 %v11584, %v11637
  %v11639 = vand.u32 %v10870, 4294901760
  %11640 = vmatmul.f32.gmra.mxu0 %v11639
  %v11641 = vpop.f32.mrf.mxu0
  %v11642 = vadd.f32 %v11588, %v11641
  %v11643 = vand.u32 %v10873, 4294901760
  %11644 = vmatmul.f32.gmra.mxu0 %v11643
  %v11645 = vpop.f32.mrf.mxu0
  %v11646 = vadd.f32 %v11592, %v11645
  %v11647 = vand.u32 %v10876, 4294901760
  %11648 = vmatmul.f32.gmra.mxu0 %v11647
  %v11649 = vpop.f32.mrf.mxu0
  %v11650 = vadd.f32 %v11596, %v11649
  %v11651 = vand.u32 %v10879, 4294901760
  %11652 = vmatmul.f32.gmra.mxu0 %v11651
  %v11653 = vpop.f32.mrf.mxu0
  %v11654 = vadd.f32 %v11600, %v11653
  %11655 = vdwg.mxu0
  %v11656 = vmul.f32 %v10802, 0.0051020407
  %v11657 = vmul.f32 %v10806, 0.0051020407
  %v11658 = vmul.f32 %v10810, 0.0051020407
  %v11659 = vmul.f32 %v10814, 0.0051020407
  %v11660 = vmul.f32 %v10818, 0.0051020407
  %v11661 = vmul.f32 %v10822, 0.0051020407
  %v11662 = vmul.f32 %v10826, 0.0051020407
  %v11663 = vmul.f32 %v10830, 0.0051020407
  %v11664 = vmul.f32 %v10834, 0.0051020407
  %v11665 = vmul.f32 %v11622, 0.0051020407
  %v11666 = vmul.f32 %v11626, 0.0051020407
  %v11667 = vmul.f32 %v11630, 0.0051020407
  %v11668 = vmul.f32 %v11634, 0.0051020407
  %v11669 = vmul.f32 %v11638, 0.0051020407
  %v11670 = vmul.f32 %v11642, 0.0051020407
  %v11671 = vmul.f32 %v11646, 0.0051020407
  %v11672 = vmul.f32 %v11650, 0.0051020407
  %v11673 = vmul.f32 %v11654, 0.0051020407
  %v11674 = vmul.f32 %v11656, %v11656
  %v11675 = vmul.f32 %v11657, %v11657
  %v11676 = vmul.f32 %v11658, %v11658
  %v11677 = vmul.f32 %v11659, %v11659
  %v11678 = vmul.f32 %v11660, %v11660
  %v11679 = vmul.f32 %v11661, %v11661
  %v11680 = vmul.f32 %v11662, %v11662
  %v11681 = vmul.f32 %v11663, %v11663
  %v11682 = vmul.f32 %v11664, %v11664
  %v11683 = vsub.f32 %v11665, %v11674
  %v11684 = vsub.f32 %v11666, %v11675
  %v11685 = vsub.f32 %v11667, %v11676
  %v11686 = vsub.f32 %v11668, %v11677
  %v11687 = vsub.f32 %v11669, %v11678
  %v11688 = vsub.f32 %v11670, %v11679
  %v11689 = vsub.f32 %v11671, %v11680
  %v11690 = vsub.f32 %v11672, %v11681
  %v11691 = vsub.f32 %v11673, %v11682
  %v11692 = vmax.f32 %v11683, 0.0
  %v11693 = vmax.f32 %v11684, 0.0
  %v11694 = vmax.f32 %v11685, 0.0
  %v11695 = vmax.f32 %v11686, 0.0
  %v11696 = vmax.f32 %v11687, 0.0
  %v11697 = vmax.f32 %v11688, 0.0
  %v11698 = vmax.f32 %v11689, 0.0
  %v11699 = vmax.f32 %v11690, 0.0
  %v11700 = vmax.f32 %v11691, 0.0
  %v11701 = vadd.f32 %v11692, 1e-05
  %v11702 = vadd.f32 %v11693, 1e-05
  %v11703 = vadd.f32 %v11694, 1e-05
  %v11704 = vadd.f32 %v11695, 1e-05
  %v11705 = vadd.f32 %v11696, 1e-05
  %v11706 = vadd.f32 %v11697, 1e-05
  %v11707 = vadd.f32 %v11698, 1e-05
  %v11708 = vadd.f32 %v11699, 1e-05
  %v11709 = vadd.f32 %v11700, 1e-05
  %v11710 = vrsqrt.pop %v11701
  %v11711 = vmul.f32 %v11710, %v11701
  %v11712 = vmul.f32 %v11711, %v11710
  %v11713 = vmul.f32 0.5, %v11712
  %v11714 = vsub.f32 1.5, %v11713
  %v11715 = vmul.f32 %v11710, %v11714
  %vm11716 = vweird.f32 %v11701
  %vm11717 = vweird.f32 %v11710
  %vm11718 = vmor %vm11716, %vm11717
  %v11719 = vsel %vm11718, %v11710, %v11715
  %v11720 = vrsqrt.pop %v11702
  %v11721 = vmul.f32 %v11720, %v11702
  %v11722 = vmul.f32 %v11721, %v11720
  %v11723 = vmul.f32 0.5, %v11722
  %v11724 = vsub.f32 1.5, %v11723
  %v11725 = vmul.f32 %v11720, %v11724
  %vm11726 = vweird.f32 %v11702
  %vm11727 = vweird.f32 %v11720
  %vm11728 = vmor %vm11726, %vm11727
  %v11729 = vsel %vm11728, %v11720, %v11725
  %v11730 = vrsqrt.pop %v11703
  %v11731 = vmul.f32 %v11730, %v11703
  %v11732 = vmul.f32 %v11731, %v11730
  %v11733 = vmul.f32 0.5, %v11732
  %v11734 = vsub.f32 1.5, %v11733
  %v11735 = vmul.f32 %v11730, %v11734
  %vm11736 = vweird.f32 %v11703
  %vm11737 = vweird.f32 %v11730
  %vm11738 = vmor %vm11736, %vm11737
  %v11739 = vsel %vm11738, %v11730, %v11735
  %v11740 = vrsqrt.pop %v11704
  %v11741 = vmul.f32 %v11740, %v11704
  %v11742 = vmul.f32 %v11741, %v11740
  %v11743 = vmul.f32 0.5, %v11742
  %v11744 = vsub.f32 1.5, %v11743
  %v11745 = vmul.f32 %v11740, %v11744
  %vm11746 = vweird.f32 %v11704
  %vm11747 = vweird.f32 %v11740
  %vm11748 = vmor %vm11746, %vm11747
  %v11749 = vsel %vm11748, %v11740, %v11745
  %v11750 = vrsqrt.pop %v11705
  %v11751 = vmul.f32 %v11750, %v11705
  %v11752 = vmul.f32 %v11751, %v11750
  %v11753 = vmul.f32 0.5, %v11752
  %v11754 = vsub.f32 1.5, %v11753
  %v11755 = vmul.f32 %v11750, %v11754
  %vm11756 = vweird.f32 %v11705
  %vm11757 = vweird.f32 %v11750
  %vm11758 = vmor %vm11756, %vm11757
  %v11759 = vsel %vm11758, %v11750, %v11755
  %v11760 = vrsqrt.pop %v11706
  %v11761 = vmul.f32 %v11760, %v11706
  %v11762 = vmul.f32 %v11761, %v11760
  %v11763 = vmul.f32 0.5, %v11762
  %v11764 = vsub.f32 1.5, %v11763
  %v11765 = vmul.f32 %v11760, %v11764
  %vm11766 = vweird.f32 %v11706
  %vm11767 = vweird.f32 %v11760
  %vm11768 = vmor %vm11766, %vm11767
  %v11769 = vsel %vm11768, %v11760, %v11765
  %v11770 = vrsqrt.pop %v11707
  %v11771 = vmul.f32 %v11770, %v11707
  %v11772 = vmul.f32 %v11771, %v11770
  %v11773 = vmul.f32 0.5, %v11772
  %v11774 = vsub.f32 1.5, %v11773
  %v11775 = vmul.f32 %v11770, %v11774
  %vm11776 = vweird.f32 %v11707
  %vm11777 = vweird.f32 %v11770
  %vm11778 = vmor %vm11776, %vm11777
  %v11779 = vsel %vm11778, %v11770, %v11775
  %v11780 = vrsqrt.pop %v11708
  %v11781 = vmul.f32 %v11780, %v11708
  %v11782 = vmul.f32 %v11781, %v11780
  %v11783 = vmul.f32 0.5, %v11782
  %v11784 = vsub.f32 1.5, %v11783
  %v11785 = vmul.f32 %v11780, %v11784
  %vm11786 = vweird.f32 %v11708
  %vm11787 = vweird.f32 %v11780
  %vm11788 = vmor %vm11786, %vm11787
  %v11789 = vsel %vm11788, %v11780, %v11785
  %v11790 = vrsqrt.pop %v11709
  %v11791 = vmul.f32 %v11790, %v11709
  %v11792 = vmul.f32 %v11791, %v11790
  %v11793 = vmul.f32 0.5, %v11792
  %v11794 = vsub.f32 1.5, %v11793
  %v11795 = vmul.f32 %v11790, %v11794
  %vm11796 = vweird.f32 %v11709
  %vm11797 = vweird.f32 %v11790
  %vm11798 = vmor %vm11796, %vm11797
  %v11799 = vsel %vm11798, %v11790, %v11795
  %v11800 = vld [vmem:[%s1 + $0x168] sm:$0xff]
  %v11801 = vld [vmem:[%s1 + $0x170] sm:$0xff]
  %v11802 = vld [vmem:[%s1 + $0x178] sm:$0xff]
  %v11803 = vld [vmem:[%s1 + $0x180] sm:$0xff]
  %v11804 = vld [vmem:[%s1 + $0x188] sm:$0xff]
  %v11805 = vld [vmem:[%s1 + $0x190] sm:$0xff]
  %v11806 = vld [vmem:[%s1 + $0x198] sm:$0xff]
  %v11807 = vld [vmem:[%s1 + $0x1a0] sm:$0xff]
  %v11808 = vld [vmem:[%s1 + $0x1a8] sm:$0xff]
  %v11809 = vmul.f32 %v11800, %v11719
  %v11810 = vmul.f32 %v11801, %v11729
  %v11811 = vmul.f32 %v11802, %v11739
  %v11812 = vmul.f32 %v11803, %v11749
  %v11813 = vmul.f32 %v11804, %v11759
  %v11814 = vmul.f32 %v11805, %v11769
  %v11815 = vmul.f32 %v11806, %v11779
  %v11816 = vmul.f32 %v11807, %v11789
  %v11817 = vmul.f32 %v11808, %v11799
  %v11818 = vmul.f32 %v11656, %v11809
  %v11819 = vmul.f32 %v11657, %v11810
  %v11820 = vmul.f32 %v11658, %v11811
  %v11821 = vmul.f32 %v11659, %v11812
  %v11822 = vmul.f32 %v11660, %v11813
  %v11823 = vmul.f32 %v11661, %v11814
  %v11824 = vmul.f32 %v11662, %v11815
  %v11825 = vmul.f32 %v11663, %v11816
  %v11826 = vmul.f32 %v11664, %v11817
  %11836 = vrot.lane.b32.xlu0 %v11818, 1
  %v11837 = vpop.permute.xlu0 %11836
  %11838 = vrot.lane.b32.xlu0 %v11819, 1
  %v11839 = vpop.permute.xlu0 %11838
  %11840 = vrot.lane.b32.xlu0 %v11820, 1
  %v11841 = vpop.permute.xlu0 %11840
  %11842 = vrot.lane.b32.xlu0 %v11821, 1
  %v11843 = vpop.permute.xlu0 %11842
  %11844 = vrot.lane.b32.xlu0 %v11822, 1
  %v11845 = vpop.permute.xlu0 %11844
  %11846 = vrot.lane.b32.xlu0 %v11823, 1
  %v11847 = vpop.permute.xlu0 %11846
  %11848 = vrot.lane.b32.xlu0 %v11824, 1
  %v11849 = vpop.permute.xlu0 %11848
  %11850 = vrot.lane.b32.xlu0 %v11825, 1
  %v11851 = vpop.permute.xlu0 %11850
  %11852 = vrot.lane.b32.xlu0 %v11826, 1
  %v11853 = vpop.permute.xlu0 %11852
  %v11863 = vsub.f32 %v11800, %v11837
  %v11864 = vsub.f32 %v11801, %v11839
  %v11865 = vsub.f32 %v11802, %v11841
  %v11866 = vsub.f32 %v11803, %v11843
  %v11867 = vsub.f32 %v11804, %v11845
  %v11868 = vsub.f32 %v11805, %v11847
  %v11869 = vsub.f32 %v11806, %v11849
  %v11870 = vsub.f32 %v11807, %v11851
  %v11871 = vsub.f32 %v11808, %v11853
  %11873 = vset.pattern.permute.xlu0 0
  %11874 = vperm.xlu0 %11873, %v11809
  %v11875 = vpop.permute.xlu0 %11874
  %11878 = vset.pattern.permute.xlu0 0
  %11879 = vperm.xlu0 %11878, %v11810
  %v11880 = vpop.permute.xlu0 %11879
  %11883 = vset.pattern.permute.xlu0 0
  %11884 = vperm.xlu0 %11883, %v11811
  %v11885 = vpop.permute.xlu0 %11884
  %11888 = vset.pattern.permute.xlu0 0
  %11889 = vperm.xlu0 %11888, %v11812
  %v11890 = vpop.permute.xlu0 %11889
  %11893 = vset.pattern.permute.xlu0 0
  %11894 = vperm.xlu0 %11893, %v11813
  %v11895 = vpop.permute.xlu0 %11894
  %11898 = vset.pattern.permute.xlu0 0
  %11899 = vperm.xlu0 %11898, %v11814
  %v11900 = vpop.permute.xlu0 %11899
  %11903 = vset.pattern.permute.xlu0 0
  %11904 = vperm.xlu0 %11903, %v11815
  %v11905 = vpop.permute.xlu0 %11904
  %11908 = vset.pattern.permute.xlu0 0
  %11909 = vperm.xlu0 %11908, %v11816
  %v11910 = vpop.permute.xlu0 %11909
  %11913 = vset.pattern.permute.xlu0 0
  %11914 = vperm.xlu0 %11913, %v11817
  %v11915 = vpop.permute.xlu0 %11914
  %v11917 = vmul.f32 %v10016, %v11875
  %v11918 = vmul.f32 %v10017, %v11875
  %v11919 = vmul.f32 %v10018, %v11880
  %v11920 = vmul.f32 %v10019, %v11880
  %v11921 = vmul.f32 %v10020, %v11885
  %v11922 = vmul.f32 %v10021, %v11885
  %v11923 = vmul.f32 %v10022, %v11890
  %v11924 = vmul.f32 %v10023, %v11890
  %v11925 = vmul.f32 %v10024, %v11895
  %v11926 = vmul.f32 %v10025, %v11895
  %v11927 = vmul.f32 %v10026, %v11900
  %v11928 = vmul.f32 %v10027, %v11900
  %v11929 = vmul.f32 %v10028, %v11905
  %v11930 = vmul.f32 %v10029, %v11905
  %v11931 = vmul.f32 %v10030, %v11910
  %v11932 = vmul.f32 %v10031, %v11910
  %v11933 = vmul.f32 %v10032, %v11915
  %v11934 = vmul.f32 %v10033, %v11915
  %11936 = vset.pattern.permute.xlu0 1
  %11937 = vperm.xlu0 %11936, %v11863
  %v11938 = vpop.permute.xlu0 %11937
  %11941 = vset.pattern.permute.xlu0 1
  %11942 = vperm.xlu0 %11941, %v11864
  %v11943 = vpop.permute.xlu0 %11942
  %11946 = vset.pattern.permute.xlu0 1
  %11947 = vperm.xlu0 %11946, %v11865
  %v11948 = vpop.permute.xlu0 %11947
  %11951 = vset.pattern.permute.xlu0 1
  %11952 = vperm.xlu0 %11951, %v11866
  %v11953 = vpop.permute.xlu0 %11952
  %11956 = vset.pattern.permute.xlu0 1
  %11957 = vperm.xlu0 %11956, %v11867
  %v11958 = vpop.permute.xlu0 %11957
  %11961 = vset.pattern.permute.xlu0 1
  %11962 = vperm.xlu0 %11961, %v11868
  %v11963 = vpop.permute.xlu0 %11962
  %11966 = vset.pattern.permute.xlu0 1
  %11967 = vperm.xlu0 %11966, %v11869
  %v11968 = vpop.permute.xlu0 %11967
  %11971 = vset.pattern.permute.xlu0 1
  %11972 = vperm.xlu0 %11971, %v11870
  %v11973 = vpop.permute.xlu0 %11972
  %11976 = vset.pattern.permute.xlu0 1
  %11977 = vperm.xlu0 %11976, %v11871
  %v11978 = vpop.permute.xlu0 %11977
  %v11980 = vadd.f32 %v11917, %v11938
  %v11981 = vadd.f32 %v11918, %v11938
  %v11982 = vadd.f32 %v11919, %v11943
  %v11983 = vadd.f32 %v11920, %v11943
  %v11984 = vadd.f32 %v11921, %v11948
  %v11985 = vadd.f32 %v11922, %v11948
  %v11986 = vadd.f32 %v11923, %v11953
  %v11987 = vadd.f32 %v11924, %v11953
  %v11988 = vadd.f32 %v11925, %v11958
  %v11989 = vadd.f32 %v11926, %v11958
  %v11990 = vadd.f32 %v11927, %v11963
  %v11991 = vadd.f32 %v11928, %v11963
  %v11992 = vadd.f32 %v11929, %v11968
  %v11993 = vadd.f32 %v11930, %v11968
  %v11994 = vadd.f32 %v11931, %v11973
  %v11995 = vadd.f32 %v11932, %v11973
  %v11996 = vadd.f32 %v11933, %v11978
  %v11997 = vadd.f32 %v11934, %v11978
  %11998 = vst [vmem:[%s2 + $0x2d0] sm:$0xff] %v11980
  %11999 = vst.msk [vmem:[%s2 + $0x2d8] sm:$0xff] %vm29, %v11981
  %12000 = vst [vmem:[%s2 + $0x2e0] sm:$0xff] %v11982
  %12001 = vst.msk [vmem:[%s2 + $0x2e8] sm:$0xff] %vm29, %v11983
  %12002 = vst [vmem:[%s2 + $0x2f0] sm:$0xff] %v11984
  %12003 = vst.msk [vmem:[%s2 + $0x2f8] sm:$0xff] %vm29, %v11985
  %12004 = vst [vmem:[%s2 + $0x300] sm:$0xff] %v11986
  %12005 = vst.msk [vmem:[%s2 + $0x308] sm:$0xff] %vm29, %v11987
  %12006 = vst [vmem:[%s2 + $0x310] sm:$0xff] %v11988
  %12007 = vst.msk [vmem:[%s2 + $0x318] sm:$0xff] %vm29, %v11989
  %12008 = vst [vmem:[%s2 + $0x320] sm:$0xff] %v11990
  %12009 = vst.msk [vmem:[%s2 + $0x328] sm:$0xff] %vm29, %v11991
  %12010 = vst [vmem:[%s2 + $0x330] sm:$0xff] %v11992
  %12011 = vst.msk [vmem:[%s2 + $0x338] sm:$0xff] %vm29, %v11993
  %12012 = vst [vmem:[%s2 + $0x340] sm:$0xff] %v11994
  %12013 = vst.msk [vmem:[%s2 + $0x348] sm:$0xff] %vm29, %v11995
  %12014 = vst [vmem:[%s2 + $0x350] sm:$0xff] %v11996
  %12015 = vst.msk [vmem:[%s2 + $0x358] sm:$0xff] %vm29, %v11997
  // Predicated region
  $region10: #{tpu_custom_call.1} parent=0 // pred_check
    _
  $region11: #{tpu_custom_call.1} parent=0 // pred_check_branch
    %12017 = sbr.rel (0) target = $region13
  $region12: #{tpu_custom_call.1} parent=0 // pred_region
    _
  $region13: #{tpu_custom_call.1} parent=0 // pred_fallthru
    _
  // Predicated region
  $region14: #{tpu_custom_call.1} parent=0 // pred_check
    _
  $region15: #{tpu_custom_call.1} parent=0 // pred_check_branch
    %12019 = sbr.rel (0) target = $region17
  $region16: #{tpu_custom_call.1} parent=0 // pred_region
    _
  $region17: #{tpu_custom_call.1} parent=0 // pred_fallthru
    _

</llo_original>
